<compile_context>
chip_gen: v7x
topology: tpu7x:2x2x1
jax: 0.10.0
libtpu: 0.0.40
codegen_flags: <defaults>
</compile_context>

<pallas_src>
import math

import jax
import jax.numpy as jnp
from jax.experimental import pallas as pl
from jax.experimental.pallas import tpu as pltpu


def _round_up(x, m):
    return ((x + m - 1) // m) * m


# ----------------------------------------------------------------------------
# Pallas kernels
# ----------------------------------------------------------------------------
def conv_relu_pool_kernel(x_ref, w_ref, b_ref, o_ref):
    """Fused Conv2d(bias) + ReLU + MaxPool2d(2,2) for one tile of pooled rows.

    x_ref : (4, bm, Kp)  bf16 -- im2col rows for the 4 elements of each 2x2
                                 pool window (pool-phase-major layout)
    w_ref : (Kp, Cp)     bf16 -- im2col-folded conv weights (zero-padded)
    b_ref : (1, Cp)      f32
    o_ref : (bm, Cp)     bf16 -- pooled, ReLU'd output rows
    """
    ph, bm, kp = x_ref.shape
    # Leading-dim merge is layout-free (bm is a multiple of 16, kp of 128):
    # one fat matmul instead of four small ones re-feeding the same RHS.
    x = x_ref[...].reshape(ph * bm, kp)
    acc = jnp.dot(x, w_ref[...], preferred_element_type=jnp.float32)  # (4*bm, Cp)

    # 2x2 max-pool = elementwise max of the four phase row-blocks.
    m01 = jnp.maximum(acc[0 * bm:1 * bm], acc[1 * bm:2 * bm])
    m23 = jnp.maximum(acc[2 * bm:3 * bm], acc[3 * bm:4 * bm])
    pooled = jnp.maximum(m01, m23)

    # max-pool before bias+ReLU is exact: the bias is identical for all four
    # pool phases and ReLU is monotone, so max(relu(x+b)) == relu(max(x)+b).
    o_ref[...] = jnp.maximum(pooled + b_ref[...], 0.0).astype(o_ref.dtype)


def linear_kernel(x_ref, w_ref, b_ref, o_ref):
    o_ref[...] = (
        jnp.dot(x_ref[...], w_ref[...], preferred_element_type=jnp.float32)
        + b_ref[...]
    )


# ----------------------------------------------------------------------------
# Wrappers (glue: padding / im2col / BlockSpecs)
# ----------------------------------------------------------------------------
def conv2d_relu_maxpool(x_nhwc, w_oihw, b, *, dilation, block_rows):
    """'Same'-size Conv2d(stride=1) + ReLU + MaxPool2d(2,2), fused."""
    N, H, W, Cin = x_nhwc.shape
    Cout, _, KH, KW = w_oihw.shape
    pad = dilation * (KH - 1) // 2
    Ho, Wo = H // 2, W // 2
    K = KH * KW * Cin
    Kp = _round_up(K, 128)          # lane-dense contraction dim
    Cp = _round_up(Cout, 128)       # lane-dense output channels
    M = N * Ho * Wo                 # number of *pooled* output pixels

    # bf16 activations for the MXU matmul (no-op if the previous conv already
    # emitted bf16); also halves im2col HBM bytes.
    xb = x_nhwc.astype(jnp.bfloat16)
    xp = jnp.pad(xb, ((0, 0), (pad, pad), (pad, pad), (0, 0)))

    # im2col: cols[n, h, w, (kh, kw, cin)] = xp[n, h + kh*d, w + kw*d, cin]
    taps = []
    for kh in range(KH):
        for kw in range(KW):
            h0, w0 = kh * dilation, kw * dilation
            taps.append(xp[:, h0:h0 + H, w0:w0 + W, :])
    cols = jnp.stack(taps, axis=-2).reshape(N, H, W, K)
    if Kp != K:
        cols = jnp.pad(cols, ((0, 0), (0, 0), (0, 0), (0, Kp - K)))

    # Pool-phase-major layout: (py, px, n, ho, wo, K) -> (4, M, Kp) so that the
    # 2x2 max-pool becomes an elementwise max over the leading axis of 4.
    cols = cols.reshape(N, Ho, 2, Wo, 2, Kp)
    cols = jnp.transpose(cols, (2, 4, 0, 1, 3, 5)).reshape(4, M, Kp)

    # Fixed-size tiles along the pooled-row dim (multiple of 16 for bf16
    # sublane packing).  Guarantee >=2 grid steps whenever there is enough
    # work (v7x megacore sharding + double-buffered pipelining).
    bm = min(block_rows, _round_up(M, 16))
    if _round_up(M, bm) // bm < 2 and M > 16:
        bm = _round_up((M + 1) // 2, 16)
    Mp = _round_up(M, bm)
    if Mp != M:
        cols = jnp.pad(cols, ((0, 0), (0, Mp - M), (0, 0)))

    # (Cout, Cin, KH, KW) -> (K = KH*KW*Cin, Cout), matching the tap ordering,
    # zero-padded to (Kp, Cp).
    wm = jnp.transpose(w_oihw, (2, 3, 1, 0)).reshape(K, Cout).astype(jnp.bfloat16)
    wm = jnp.pad(wm, ((0, Kp - K), (0, Cp - Cout)))
    b2 = jnp.pad(b.astype(jnp.float32), (0, Cp - Cout)).reshape(1, Cp)

    out = pl.pallas_call(
        conv_relu_pool_kernel,
        out_shape=jax.ShapeDtypeStruct((Mp, Cp), jnp.bfloat16),
        grid=(Mp // bm,),
        in_specs=[
            pl.BlockSpec((4, bm, Kp), lambda i: (0, i, 0)),
            pl.BlockSpec((Kp, Cp), lambda i: (0, 0)),   # weight stays resident
            pl.BlockSpec((1, Cp), lambda i: (0, 0)),
        ],
        out_specs=pl.BlockSpec((bm, Cp), lambda i: (i, 0)),
        compiler_params=pltpu.CompilerParams(
            dimension_semantics=("parallel",),
            vmem_limit_bytes=32 << 20,   # fits 512-row layer-3 tiles on v5e/v7x
        ),
    )(cols, wm, b2)

    out = out[:M, :Cout]
    return out.reshape(N, Ho, Wo, Cout)


def linear(x, w_oi, b, *, lane_pad=128):
    """nn.Linear: x @ W.T + b, with Cout padded to a lane-dense 128."""
    N, K = x.shape
    Cout = w_oi.shape[0]
    Cp = _round_up(Cout, lane_pad)

    wt = jnp.transpose(w_oi).astype(jnp.bfloat16)          # (K, Cout)
    wt = jnp.pad(wt, ((0, 0), (0, Cp - Cout)))
    bp = jnp.pad(b.astype(jnp.float32), (0, Cp - Cout)).reshape(1, Cp)
    xb = x.astype(jnp.bfloat16)                            # no-op if already bf16

    out = pl.pallas_call(
        linear_kernel,
        out_shape=jax.ShapeDtypeStruct((N, Cp), jnp.float32),
        grid=(1,),
        in_specs=[
            pl.BlockSpec((N, K), lambda i: (0, 0)),
            pl.BlockSpec((K, Cp), lambda i: (0, 0)),
            pl.BlockSpec((1, Cp), lambda i: (0, 0)),
        ],
        out_specs=pl.BlockSpec((N, Cp), lambda i: (0, 0)),
    )(xb, wt, bp)
    return out[:, :Cout]


# ----------------------------------------------------------------------------
# DileNet forward
# ----------------------------------------------------------------------------
def dilenet_forward(x_nchw, params):
    x = jnp.transpose(x_nchw, (0, 2, 3, 1)).astype(jnp.float32)  # NCHW -> NHWC

    # features: each call = conv + ReLU + 2x2 maxpool, fused in one kernel.
    x = conv2d_relu_maxpool(x, params["w1"], params["b1"], dilation=1,
                            block_rows=1024)   # (N, 16, 16, 64)   bf16
    x = conv2d_relu_maxpool(x, params["w2"], params["b2"], dilation=2,
                            block_rows=512)    # (N,  8,  8, 192)  bf16
    x = conv2d_relu_maxpool(x, params["w3"], params["b3"], dilation=2,
                            block_rows=512)    # (N,  4,  4, 256)  bf16

    # Flatten in NHWC order and permute the (small) classifier weight instead
    # of relaying out the activation to PyTorch's NCHW-flatten order.
    N, Ho, Wo, C = x.shape
    x = x.reshape(N, Ho * Wo * C)
    wc = params["wc"].reshape(-1, C, Ho, Wo)                     # (cls, C, H, W)
    wc = jnp.transpose(wc, (0, 2, 3, 1)).reshape(-1, Ho * Wo * C)  # NHWC columns

    return linear(x, wc, params["bc"])                           # (N, 34)


def init_params(key, num_classes=34):
    ks = jax.random.split(key, 8)

    def conv_w(k, cout, cin, ksz):
        fan_in = cin * ksz * ksz
        return (
            jax.random.normal(k, (cout, cin, ksz, ksz), jnp.float32)
            / jnp.sqrt(fan_in)
        )

    return {
        "w1": conv_w(ks[0], 64, 3, 5),
        "b1": 0.01 * jax.random.normal(ks[1], (64,), jnp.float32),
        "w2": conv_w(ks[2], 192, 64, 3),
        "b2": 0.01 * jax.random.normal(ks[3], (192,), jnp.float32),
        "w3": conv_w(ks[4], 256, 192, 3),
        "b3": 0.01 * jax.random.normal(ks[5], (256,), jnp.float32),
        # Stored in PyTorch layout: (num_classes, 4096) over NCHW-flatten cols.
        "wc": jax.random.normal(ks[6], (num_classes, 4096), jnp.float32)
        / jnp.sqrt(4096.0),
        "bc": 0.01 * jax.random.normal(ks[7], (num_classes,), jnp.float32),
    }


if __name__ == "__main__":
    # Classifier expects 4096 = 256*4*4 features, so spatial must be 32x32
    # (CIFAR-sized); batch kept small.
    x = jax.random.normal(jax.random.PRNGKey(0), (2, 3, 32, 32), jnp.float32)
    params = init_params(jax.random.PRNGKey(42))

    fwd = jax.jit(dilenet_forward)
    logits = fwd(x, params)
    jax.block_until_ready(logits)

    assert logits.shape == (2, 34), logits.shape
    assert bool(jnp.all(jnp.isfinite(logits)))
    print("KERNEL_OK")
</pallas_src>

<mosaic_0001>
module attributes {stable_mosaic.version = 11 : i64} {
  func.func @conv_relu_pool_kernel(%arg0: i32, %arg1: memref<4x256x128xbf16, #tpu.memory_space<vmem>>, %arg2: memref<128x128xbf16, #tpu.memory_space<vmem>>, %arg3: memref<1x128xf32, #tpu.memory_space<vmem>>, %arg4: memref<256x128xbf16, #tpu.memory_space<vmem>>) attributes {dimension_semantics = [#tpu.dimension_semantics<parallel>], iteration_bounds = array<i64: 2>, scalar_prefetch = 0 : i64, scratch_operands = 0 : i64, tpu.core_type = #tpu.core_type<tc>, window_params = [{transform_indices = @transform_0, window_bounds = array<i64: 4, 256, 128>}, {pipeline_mode = #tpu.pipeline_mode<synchronous>, transform_indices = @transform_1, window_bounds = array<i64: 128, 128>}, {pipeline_mode = #tpu.pipeline_mode<synchronous>, transform_indices = @transform_2, window_bounds = array<i64: 1, 128>}, {transform_indices = @transform_3, window_bounds = array<i64: 256, 128>}]} {
    %c0 = arith.constant 0 : index
    %c0_0 = arith.constant 0 : index
    %c0_1 = arith.constant 0 : index
    %0 = vector.load %arg1[%c0, %c0_0, %c0_1] : memref<4x256x128xbf16, #tpu.memory_space<vmem>>, vector<4x256x128xbf16>
    %1 = vector.shape_cast %0 : vector<4x256x128xbf16> to vector<1024x128xbf16>
    %c0_2 = arith.constant 0 : index
    %c0_3 = arith.constant 0 : index
    %2 = vector.load %arg2[%c0_2, %c0_3] : memref<128x128xbf16, #tpu.memory_space<vmem>>, vector<128x128xbf16>
    %cst = arith.constant dense<0.000000e+00> : vector<1024x128xf32>
    %3 = tpu.matmul %1, %2, %cst {dimension_numbers = #tpu.dot_dimension_numbers<[1], [0], [0], [1], [0, 0, 1, 1], [], []>} : vector<1024x128xbf16>, vector<128x128xbf16>, vector<1024x128xf32> -> vector<1024x128xf32>
    %4 = vector.extract_strided_slice %3 {offsets = [0, 0], sizes = [256, 128], strides = [1, 1]} : vector<1024x128xf32> to vector<256x128xf32>
    %5 = vector.extract_strided_slice %3 {offsets = [256, 0], sizes = [256, 128], strides = [1, 1]} : vector<1024x128xf32> to vector<256x128xf32>
    %6 = arith.maximumf %4, %5 : vector<256x128xf32>
    %7 = vector.extract_strided_slice %3 {offsets = [512, 0], sizes = [256, 128], strides = [1, 1]} : vector<1024x128xf32> to vector<256x128xf32>
    %8 = vector.extract_strided_slice %3 {offsets = [768, 0], sizes = [256, 128], strides = [1, 1]} : vector<1024x128xf32> to vector<256x128xf32>
    %9 = arith.maximumf %7, %8 : vector<256x128xf32>
    %10 = arith.maximumf %6, %9 : vector<256x128xf32>
    %c0_4 = arith.constant 0 : index
    %c0_5 = arith.constant 0 : index
    %11 = vector.load %arg3[%c0_4, %c0_5] : memref<1x128xf32, #tpu.memory_space<vmem>>, vector<1x128xf32>
    %12 = vector.broadcast %11 : vector<1x128xf32> to vector<256x128xf32>
    %13 = arith.addf %10, %12 : vector<256x128xf32>
    %cst_6 = arith.constant 0.000000e+00 : f32
    %14 = vector.broadcast %cst_6 : f32 to vector<256x128xf32>
    %15 = arith.maximumf %13, %14 : vector<256x128xf32>
    %16 = arith.truncf %15 : vector<256x128xf32> to vector<256x128xbf16>
    %c0_7 = arith.constant 0 : index
    %c0_8 = arith.constant 0 : index
    %17 = vector.load %arg4[%c0_7, %c0_8] : memref<256x128xbf16, #tpu.memory_space<vmem>>, vector<256x128xbf16>
    tpu.vector_store %arg4[%c0_7, %c0_8], %16 {strides = array<i32>} : memref<256x128xbf16, #tpu.memory_space<vmem>>, vector<256x128xbf16>,
    return
  }
  func.func @transform_0(%arg0: i32) -> (i32, i32, i32) {
    %c0_i32 = arith.constant 0 : i32
    %c0_i32_0 = arith.constant 0 : i32
    %c0_i32_1 = arith.constant 0 : i32
    return %c0_i32, %arg0, %c0_i32_0 : i32, i32, i32
  }
  func.func @transform_1(%arg0: i32) -> (i32, i32) {
    %c0_i32 = arith.constant 0 : i32
    %c0_i32_0 = arith.constant 0 : i32
    %c0_i32_1 = arith.constant 0 : i32
    return %c0_i32, %c0_i32_0 : i32, i32
  }
  func.func @transform_2(%arg0: i32) -> (i32, i32) {
    %c0_i32 = arith.constant 0 : i32
    %c0_i32_0 = arith.constant 0 : i32
    %c0_i32_1 = arith.constant 0 : i32
    return %c0_i32, %c0_i32_0 : i32, i32
  }
  func.func @transform_3(%arg0: i32) -> (i32, i32) {
    %c0_i32 = arith.constant 0 : i32
    %c0_i32_0 = arith.constant 0 : i32
    return %arg0, %c0_i32 : i32, i32
  }
}

module attributes {stable_mosaic.version = 11 : i64} {
  func.func @conv_relu_pool_kernel(%arg0: i32, %arg1: memref<4x64x640xbf16, #tpu.memory_space<vmem>>, %arg2: memref<640x256xbf16, #tpu.memory_space<vmem>>, %arg3: memref<1x256xf32, #tpu.memory_space<vmem>>, %arg4: memref<64x256xbf16, #tpu.memory_space<vmem>>) attributes {dimension_semantics = [#tpu.dimension_semantics<parallel>], iteration_bounds = array<i64: 2>, scalar_prefetch = 0 : i64, scratch_operands = 0 : i64, tpu.core_type = #tpu.core_type<tc>, window_params = [{transform_indices = @transform_0, window_bounds = array<i64: 4, 64, 640>}, {pipeline_mode = #tpu.pipeline_mode<synchronous>, transform_indices = @transform_1, window_bounds = array<i64: 640, 256>}, {pipeline_mode = #tpu.pipeline_mode<synchronous>, transform_indices = @transform_2, window_bounds = array<i64: 1, 256>}, {transform_indices = @transform_3, window_bounds = array<i64: 64, 256>}]} {
    %c0 = arith.constant 0 : index
    %c0_0 = arith.constant 0 : index
    %c0_1 = arith.constant 0 : index
    %0 = vector.load %arg1[%c0, %c0_0, %c0_1] : memref<4x64x640xbf16, #tpu.memory_space<vmem>>, vector<4x64x640xbf16>
    %1 = vector.shape_cast %0 : vector<4x64x640xbf16> to vector<256x640xbf16>
    %c0_2 = arith.constant 0 : index
    %c0_3 = arith.constant 0 : index
    %2 = vector.load %arg2[%c0_2, %c0_3] : memref<640x256xbf16, #tpu.memory_space<vmem>>, vector<640x256xbf16>
    %cst = arith.constant dense<0.000000e+00> : vector<256x256xf32>
    %3 = tpu.matmul %1, %2, %cst {dimension_numbers = #tpu.dot_dimension_numbers<[1], [0], [0], [1], [0, 0, 1, 1], [], []>} : vector<256x640xbf16>, vector<640x256xbf16>, vector<256x256xf32> -> vector<256x256xf32>
    %4 = vector.extract_strided_slice %3 {offsets = [0, 0], sizes = [64, 256], strides = [1, 1]} : vector<256x256xf32> to vector<64x256xf32>
    %5 = vector.extract_strided_slice %3 {offsets = [64, 0], sizes = [64, 256], strides = [1, 1]} : vector<256x256xf32> to vector<64x256xf32>
    %6 = arith.maximumf %4, %5 : vector<64x256xf32>
    %7 = vector.extract_strided_slice %3 {offsets = [128, 0], sizes = [64, 256], strides = [1, 1]} : vector<256x256xf32> to vector<64x256xf32>
    %8 = vector.extract_strided_slice %3 {offsets = [192, 0], sizes = [64, 256], strides = [1, 1]} : vector<256x256xf32> to vector<64x256xf32>
    %9 = arith.maximumf %7, %8 : vector<64x256xf32>
    %10 = arith.maximumf %6, %9 : vector<64x256xf32>
    %c0_4 = arith.constant 0 : index
    %c0_5 = arith.constant 0 : index
    %11 = vector.load %arg3[%c0_4, %c0_5] : memref<1x256xf32, #tpu.memory_space<vmem>>, vector<1x256xf32>
    %12 = vector.broadcast %11 : vector<1x256xf32> to vector<64x256xf32>
    %13 = arith.addf %10, %12 : vector<64x256xf32>
    %cst_6 = arith.constant 0.000000e+00 : f32
    %14 = vector.broadcast %cst_6 : f32 to vector<64x256xf32>
    %15 = arith.maximumf %13, %14 : vector<64x256xf32>
    %16 = arith.truncf %15 : vector<64x256xf32> to vector<64x256xbf16>
    %c0_7 = arith.constant 0 : index
    %c0_8 = arith.constant 0 : index
    %17 = vector.load %arg4[%c0_7, %c0_8] : memref<64x256xbf16, #tpu.memory_space<vmem>>, vector<64x256xbf16>
    tpu.vector_store %arg4[%c0_7, %c0_8], %16 {strides = array<i32>} : memref<64x256xbf16, #tpu.memory_space<vmem>>, vector<64x256xbf16>,
    return
  }
  func.func @transform_0(%arg0: i32) -> (i32, i32, i32) {
    %c0_i32 = arith.constant 0 : i32
    %c0_i32_0 = arith.constant 0 : i32
    %c0_i32_1 = arith.constant 0 : i32
    return %c0_i32, %arg0, %c0_i32_0 : i32, i32, i32
  }
  func.func @transform_1(%arg0: i32) -> (i32, i32) {
    %c0_i32 = arith.constant 0 : i32
    %c0_i32_0 = arith.constant 0 : i32
    %c0_i32_1 = arith.constant 0 : i32
    return %c0_i32, %c0_i32_0 : i32, i32
  }
  func.func @transform_2(%arg0: i32) -> (i32, i32) {
    %c0_i32 = arith.constant 0 : i32
    %c0_i32_0 = arith.constant 0 : i32
    %c0_i32_1 = arith.constant 0 : i32
    return %c0_i32, %c0_i32_0 : i32, i32
  }
  func.func @transform_3(%arg0: i32) -> (i32, i32) {
    %c0_i32 = arith.constant 0 : i32
    %c0_i32_0 = arith.constant 0 : i32
    return %arg0, %c0_i32 : i32, i32
  }
}

module attributes {stable_mosaic.version = 11 : i64} {
  func.func @conv_relu_pool_kernel(%arg0: i32, %arg1: memref<4x16x1792xbf16, #tpu.memory_space<vmem>>, %arg2: memref<1792x256xbf16, #tpu.memory_space<vmem>>, %arg3: memref<1x256xf32, #tpu.memory_space<vmem>>, %arg4: memref<16x256xbf16, #tpu.memory_space<vmem>>) attributes {dimension_semantics = [#tpu.dimension_semantics<parallel>], iteration_bounds = array<i64: 2>, scalar_prefetch = 0 : i64, scratch_operands = 0 : i64, tpu.core_type = #tpu.core_type<tc>, window_params = [{transform_indices = @transform_0, window_bounds = array<i64: 4, 16, 1792>}, {pipeline_mode = #tpu.pipeline_mode<synchronous>, transform_indices = @transform_1, window_bounds = array<i64: 1792, 256>}, {pipeline_mode = #tpu.pipeline_mode<synchronous>, transform_indices = @transform_2, window_bounds = array<i64: 1, 256>}, {transform_indices = @transform_3, window_bounds = array<i64: 16, 256>}]} {
    %c0 = arith.constant 0 : index
    %c0_0 = arith.constant 0 : index
    %c0_1 = arith.constant 0 : index
    %0 = vector.load %arg1[%c0, %c0_0, %c0_1] : memref<4x16x1792xbf16, #tpu.memory_space<vmem>>, vector<4x16x1792xbf16>
    %1 = vector.shape_cast %0 : vector<4x16x1792xbf16> to vector<64x1792xbf16>
    %c0_2 = arith.constant 0 : index
    %c0_3 = arith.constant 0 : index
    %2 = vector.load %arg2[%c0_2, %c0_3] : memref<1792x256xbf16, #tpu.memory_space<vmem>>, vector<1792x256xbf16>
    %cst = arith.constant dense<0.000000e+00> : vector<64x256xf32>
    %3 = tpu.matmul %1, %2, %cst {dimension_numbers = #tpu.dot_dimension_numbers<[1], [0], [0], [1], [0, 0, 1, 1], [], []>} : vector<64x1792xbf16>, vector<1792x256xbf16>, vector<64x256xf32> -> vector<64x256xf32>
    %4 = vector.extract_strided_slice %3 {offsets = [0, 0], sizes = [16, 256], strides = [1, 1]} : vector<64x256xf32> to vector<16x256xf32>
    %5 = vector.extract_strided_slice %3 {offsets = [16, 0], sizes = [16, 256], strides = [1, 1]} : vector<64x256xf32> to vector<16x256xf32>
    %6 = arith.maximumf %4, %5 : vector<16x256xf32>
    %7 = vector.extract_strided_slice %3 {offsets = [32, 0], sizes = [16, 256], strides = [1, 1]} : vector<64x256xf32> to vector<16x256xf32>
    %8 = vector.extract_strided_slice %3 {offsets = [48, 0], sizes = [16, 256], strides = [1, 1]} : vector<64x256xf32> to vector<16x256xf32>
    %9 = arith.maximumf %7, %8 : vector<16x256xf32>
    %10 = arith.maximumf %6, %9 : vector<16x256xf32>
    %c0_4 = arith.constant 0 : index
    %c0_5 = arith.constant 0 : index
    %11 = vector.load %arg3[%c0_4, %c0_5] : memref<1x256xf32, #tpu.memory_space<vmem>>, vector<1x256xf32>
    %12 = vector.broadcast %11 : vector<1x256xf32> to vector<16x256xf32>
    %13 = arith.addf %10, %12 : vector<16x256xf32>
    %cst_6 = arith.constant 0.000000e+00 : f32
    %14 = vector.broadcast %cst_6 : f32 to vector<16x256xf32>
    %15 = arith.maximumf %13, %14 : vector<16x256xf32>
    %16 = arith.truncf %15 : vector<16x256xf32> to vector<16x256xbf16>
    %c0_7 = arith.constant 0 : index
    %c0_8 = arith.constant 0 : index
    %17 = vector.load %arg4[%c0_7, %c0_8] : memref<16x256xbf16, #tpu.memory_space<vmem>>, vector<16x256xbf16>
    tpu.vector_store %arg4[%c0_7, %c0_8], %16 {strides = array<i32>} : memref<16x256xbf16, #tpu.memory_space<vmem>>, vector<16x256xbf16>,
    return
  }
  func.func @transform_0(%arg0: i32) -> (i32, i32, i32) {
    %c0_i32 = arith.constant 0 : i32
    %c0_i32_0 = arith.constant 0 : i32
    %c0_i32_1 = arith.constant 0 : i32
    return %c0_i32, %arg0, %c0_i32_0 : i32, i32, i32
  }
  func.func @transform_1(%arg0: i32) -> (i32, i32) {
    %c0_i32 = arith.constant 0 : i32
    %c0_i32_0 = arith.constant 0 : i32
    %c0_i32_1 = arith.constant 0 : i32
    return %c0_i32, %c0_i32_0 : i32, i32
  }
  func.func @transform_2(%arg0: i32) -> (i32, i32) {
    %c0_i32 = arith.constant 0 : i32
    %c0_i32_0 = arith.constant 0 : i32
    %c0_i32_1 = arith.constant 0 : i32
    return %c0_i32, %c0_i32_0 : i32, i32
  }
  func.func @transform_3(%arg0: i32) -> (i32, i32) {
    %c0_i32 = arith.constant 0 : i32
    %c0_i32_0 = arith.constant 0 : i32
    return %arg0, %c0_i32 : i32, i32
  }
}

module attributes {stable_mosaic.version = 11 : i64} {
  func.func @linear_kernel(%arg0: i32, %arg1: memref<2x4096xbf16, #tpu.memory_space<vmem>>, %arg2: memref<4096x128xbf16, #tpu.memory_space<vmem>>, %arg3: memref<1x128xf32, #tpu.memory_space<vmem>>, %arg4: memref<2x128xf32, #tpu.memory_space<vmem>>) attributes {dimension_semantics = [#tpu.dimension_semantics<arbitrary>], iteration_bounds = array<i64: 1>, scalar_prefetch = 0 : i64, scratch_operands = 0 : i64, tpu.core_type = #tpu.core_type<tc>, window_params = [{pipeline_mode = #tpu.pipeline_mode<synchronous>, transform_indices = @transform_0, window_bounds = array<i64: 2, 4096>}, {pipeline_mode = #tpu.pipeline_mode<synchronous>, transform_indices = @transform_1, window_bounds = array<i64: 4096, 128>}, {pipeline_mode = #tpu.pipeline_mode<synchronous>, transform_indices = @transform_2, window_bounds = array<i64: 1, 128>}, {pipeline_mode = #tpu.pipeline_mode<synchronous>, transform_indices = @transform_3, window_bounds = array<i64: 2, 128>}]} {
    %c0 = arith.constant 0 : index
    %c0_0 = arith.constant 0 : index
    %0 = vector.load %arg1[%c0, %c0_0] : memref<2x4096xbf16, #tpu.memory_space<vmem>>, vector<2x4096xbf16>
    %c0_1 = arith.constant 0 : index
    %c0_2 = arith.constant 0 : index
    %1 = vector.load %arg2[%c0_1, %c0_2] : memref<4096x128xbf16, #tpu.memory_space<vmem>>, vector<4096x128xbf16>
    %cst = arith.constant dense<0.000000e+00> : vector<2x128xf32>
    %2 = tpu.matmul %0, %1, %cst {dimension_numbers = #tpu.dot_dimension_numbers<[1], [0], [0], [1], [0, 0, 1, 1], [], []>} : vector<2x4096xbf16>, vector<4096x128xbf16>, vector<2x128xf32> -> vector<2x128xf32>
    %c0_3 = arith.constant 0 : index
    %c0_4 = arith.constant 0 : index
    %3 = vector.load %arg3[%c0_3, %c0_4] : memref<1x128xf32, #tpu.memory_space<vmem>>, vector<1x128xf32>
    %4 = vector.broadcast %3 : vector<1x128xf32> to vector<2x128xf32>
    %5 = arith.addf %2, %4 : vector<2x128xf32>
    %c0_5 = arith.constant 0 : index
    %c0_6 = arith.constant 0 : index
    %6 = vector.load %arg4[%c0_5, %c0_6] : memref<2x128xf32, #tpu.memory_space<vmem>>, vector<2x128xf32>
    tpu.vector_store %arg4[%c0_5, %c0_6], %5 {strides = array<i32>} : memref<2x128xf32, #tpu.memory_space<vmem>>, vector<2x128xf32>,
    return
  }
  func.func @transform_0(%arg0: i32) -> (i32, i32) {
    %c0_i32 = arith.constant 0 : i32
    %c0_i32_0 = arith.constant 0 : i32
    %c0_i32_1 = arith.constant 0 : i32
    return %c0_i32, %c0_i32_0 : i32, i32
  }
  func.func @transform_1(%arg0: i32) -> (i32, i32) {
    %c0_i32 = arith.constant 0 : i32
    %c0_i32_0 = arith.constant 0 : i32
    %c0_i32_1 = arith.constant 0 : i32
    return %c0_i32, %c0_i32_0 : i32, i32
  }
  func.func @transform_2(%arg0: i32) -> (i32, i32) {
    %c0_i32 = arith.constant 0 : i32
    %c0_i32_0 = arith.constant 0 : i32
    %c0_i32_1 = arith.constant 0 : i32
    return %c0_i32, %c0_i32_0 : i32, i32
  }
  func.func @transform_3(%arg0: i32) -> (i32, i32) {
    %c0_i32 = arith.constant 0 : i32
    %c0_i32_0 = arith.constant 0 : i32
    %c0_i32_1 = arith.constant 0 : i32
    return %c0_i32, %c0_i32_0 : i32, i32
  }
}

</mosaic_0001>

<llo_original>
// kernel: dilenet_forward.4
$region0: #{dilenet_forward.4}
  #allocation0 [shape = 'u32[]', space=smem, size = 0x4, offset = 0x4, fixed_abs, tag = 'smem constant byte address 0x4 - core index']
  #allocation1 [shape = 'u32[144,128]{1,0:T(1,128)}', space=vmem, size = 0x12000, scoped, tag = 'internal scratch']
  %s0 = inlined_call_operand.vmem [shape: bf16[4,512,128], index: 0, kind: input, shape index: {}]
  %s1 = inlined_call_operand.vmem [shape: bf16[128,128], index: 1, kind: input, shape index: {}]
  %s2 = inlined_call_operand.vmem [shape: f32[1,128], index: 2, kind: input, shape index: {}]
  %s3 = inlined_call_operand.vmem [shape: bf16[512,128], index: 3, kind: output, shape index: {}]
  %s4 = sld [smem:[#allocation0]]
  $region86: #{dilenet_forward.4} parent=0
    _
  %s6 = ssub.s32 1, %s4
  %s7 = scalar_select 0, %s6, %s4
  $region1: #{dilenet_forward.4} parent=0
    #allocation2 [shape = 'u8[524288]{0}', space=vmem, size = 0x80000, scoped, tag = 'input window, operand 0']
    loop: start=0, step=1, limit=4
    $region2: #{dilenet_forward.4} parent=1 // loop_pre_header
      _
    $region3: #{dilenet_forward.4} parent=1 // loop_header
      %s9 = sphi 0, %s13
      %p10 = scmp.ge.s32.totalorder %s9, 4
      %s19 = sphi 0, %s21
      %s22 = sphi 0, %s19
      %s23 = sphi 0, %s22
      %s39 = sphi 0, %s23
      %s43 = sphi 0, %s43
      %s45 = sphi 0, %s43
      %s46 = sphi 0, %s45
      %s60 = sphi 0, %s46
      %s64 = sphi 0, %s64
      %s66 = sphi 0, %s64
      %s67 = sphi 0, %s66
      %s81 = sphi 0, %s67
      %s87 = sphi 0, %s89
      %s90 = sphi 0, %s87
      %s91 = sphi 0, %s90
      %s107 = sphi 0, %s91
    $region4: #{dilenet_forward.4} parent=1 // loop_header_branch
      %12 = sbr.rel (%p10) target = $region8
    $region5: #{dilenet_forward.4} parent=1 // loop_body
      %s14 = ssub.s32 %s9, 1
      %s15 = ssub.s32 %s9, 2
      %s16 = sadd.s32 %s9, 1
      %s17 = ssub.s32 %s9, %s16
      %p18 = scmp.eq.s32.totalorder %s17, 0
      %s20 = sadd.s32 %s19, 1
      %s21 = scalar_select %p18, %s19, %s20
      %p24 = pneg %p18
      %p25 = scmp.eq.s32.totalorder %s9, 1
      %p26 = por %p24, %p25
      %p27 = scmp.ne.s32.totalorder %s19, %s22
      %p28 = scmp.eq.s32.totalorder %s9, 0
      %p29 = por %p27, %p28
      %p30 = scmp.ne.s32.totalorder %s19, %s22
      %p31 = scmp.eq.s32.totalorder %s14, 1
      %p32 = por %p30, %p31
      %p33 = scmp.ne.s32.totalorder %s22, %s23
      %p34 = scmp.eq.s32.totalorder %s14, 0
      %p35 = por %p33, %p34
      %p36 = scmp.ne.s32.totalorder %s22, %s23
      %p37 = scmp.eq.s32.totalorder %s15, 1
      %p38 = por %p36, %p37
      %p40 = scmp.ne.s32.totalorder %s23, %s39
      %p41 = scmp.eq.s32.totalorder %s15, 0
      %p42 = por %p40, %p41
      %s44 = sadd.s32 %s43, 1
      %p47 = scmp.eq.s32.totalorder %s9, 1
      %p48 = scmp.ne.s32.totalorder %s43, %s45
      %p49 = scmp.eq.s32.totalorder %s9, 0
      %p50 = por %p48, %p49
      %p51 = scmp.ne.s32.totalorder %s43, %s45
      %p52 = scmp.eq.s32.totalorder %s14, 1
      %p53 = por %p51, %p52
      %p54 = scmp.ne.s32.totalorder %s45, %s46
      %p55 = scmp.eq.s32.totalorder %s14, 0
      %p56 = por %p54, %p55
      %p57 = scmp.ne.s32.totalorder %s45, %s46
      %p58 = scmp.eq.s32.totalorder %s15, 1
      %p59 = por %p57, %p58
      %p61 = scmp.ne.s32.totalorder %s46, %s60
      %p62 = scmp.eq.s32.totalorder %s15, 0
      %p63 = por %p61, %p62
      %s65 = sadd.s32 %s64, 1
      %p68 = scmp.eq.s32.totalorder %s9, 1
      %p69 = scmp.ne.s32.totalorder %s64, %s66
      %p70 = scmp.eq.s32.totalorder %s9, 0
      %p71 = por %p69, %p70
      %p72 = scmp.ne.s32.totalorder %s64, %s66
      %p73 = scmp.eq.s32.totalorder %s14, 1
      %p74 = por %p72, %p73
      %p75 = scmp.ne.s32.totalorder %s66, %s67
      %p76 = scmp.eq.s32.totalorder %s14, 0
      %p77 = por %p75, %p76
      %p78 = scmp.ne.s32.totalorder %s66, %s67
      %p79 = scmp.eq.s32.totalorder %s15, 1
      %p80 = por %p78, %p79
      %p82 = scmp.ne.s32.totalorder %s67, %s81
      %p83 = scmp.eq.s32.totalorder %s15, 0
      %p84 = por %p82, %p83
      %s85 = ssub.s32 %s9, %s16
      %p86 = scmp.eq.s32.totalorder %s85, 0
      %s88 = sadd.s32 %s87, 1
      %s89 = scalar_select %p86, %s87, %s88
      %p92 = pneg %p86
      %p93 = scmp.eq.s32.totalorder %s9, 1
      %p94 = por %p92, %p93
      %p95 = scmp.ne.s32.totalorder %s87, %s90
      %p96 = scmp.eq.s32.totalorder %s9, 0
      %p97 = por %p95, %p96
      %p98 = scmp.ne.s32.totalorder %s87, %s90
      %p99 = scmp.eq.s32.totalorder %s14, 1
      %p100 = por %p98, %p99
      %p101 = scmp.ne.s32.totalorder %s90, %s91
      %p102 = scmp.eq.s32.totalorder %s14, 0
      %p103 = por %p101, %p102
      %p104 = scmp.ne.s32.totalorder %s90, %s91
      %p105 = scmp.eq.s32.totalorder %s15, 1
      %p106 = por %p104, %p105
      %p108 = scmp.ne.s32.totalorder %s91, %s107
      %p109 = scmp.eq.s32.totalorder %s15, 0
      %p110 = por %p108, %p109
      %p111 = scmp.le.s32.totalorder 1, %s9
      %p112 = scmp.lt.s32.totalorder %s9, 3
      %p113 = pnand %p111, %p112
      %p114 = pneg %p113
      // Predicated region
      $region9: #{dilenet_forward.4} parent=5 // pred_check
        _
      $region10: #{dilenet_forward.4} parent=5 // pred_check_branch
        %116 = sbr.rel (%p113) target = $region12
      $region11: #{dilenet_forward.4} parent=5 // pred_region
        %s117 = ssub.s32 %s9, 1
        // Predicated region
        $region13: #{dilenet_forward.4} parent=11 // pred_check
          %p118 = pneg %p56
        $region14: #{dilenet_forward.4} parent=11 // pred_check_branch
          %120 = sbr.rel (%p118) target = $region16
        $region15: #{dilenet_forward.4} parent=11 // pred_region
          _
        $region16: #{dilenet_forward.4} parent=11 // pred_fallthru
          _
        // Predicated region
        $region17: #{dilenet_forward.4} parent=11 // pred_check
          %p121 = pneg %p77
        $region18: #{dilenet_forward.4} parent=11 // pred_check_branch
          %123 = sbr.rel (%p121) target = $region20
        $region19: #{dilenet_forward.4} parent=11 // pred_region
          _
        $region20: #{dilenet_forward.4} parent=11 // pred_fallthru
          _
      $region12: #{dilenet_forward.4} parent=5 // pred_fallthru
        _
      %p124 = scmp.lt.s32.totalorder %s9, 2
      // Predicated region
      $region21: #{dilenet_forward.4} parent=5 // pred_check
        %p125 = pneg %p124
      $region22: #{dilenet_forward.4} parent=5 // pred_check_branch
        %127 = sbr.rel (%p125) target = $region24
      $region23: #{dilenet_forward.4} parent=5 // pred_region
        // Predicated region
        $region25: #{dilenet_forward.4} parent=23 // pred_check
          %p128 = pneg %p29
        $region26: #{dilenet_forward.4} parent=23 // pred_check_branch
          %130 = sbr.rel (%p128) target = $region28
        $region27: #{dilenet_forward.4} parent=23 // pred_region
          %s131 = sand.u32 %s19, 1
          %s132 = sand.u32 %s19, 1
          %s133 = smul.addr %s132, 512
          %s134 = scalar_lea.vmem [#allocation2], %s133
          %s135 = smul.u32 32, %s9
          %s136 = smul.addr %s135, 4
          %s137 = scalar_lea.vmem %s0, %s136
          // Predicated region
          $region29: #{dilenet_forward.4} parent=27 // pred_check
            _
          $region30: #{dilenet_forward.4} parent=27 // pred_check_branch
            %139 = sbr.rel (0) target = $region32
          $region31: #{dilenet_forward.4} parent=27 // pred_region
            // Predicated region
            $region33: #{dilenet_forward.4} parent=31 // pred_check
              _
            $region34: #{dilenet_forward.4} parent=31 // pred_check_branch
              %141 = sbr.rel target = $region36
            $region35: #{dilenet_forward.4} parent=31 // pred_region
              // Predicated region
              $region48: #{dilenet_forward.4} parent=35 // pred_check
                _
              $region49: #{dilenet_forward.4} parent=35 // pred_check_branch
                %410 = sbr.rel (0) target = $region51
              $region50: #{dilenet_forward.4} parent=35 // pred_region
                loop: start=0, step=1, limit=1
                $region52: #{dilenet_forward.4} parent=50 // loop_pre_header
                  _
                $region53: #{dilenet_forward.4} parent=50 // loop_header
                  %s412 = sphi 0, %s416
                  %p413 = scmp.ge.s32.totalorder %s412, 1
                  %s417 = sphi %s137, %s137
                  %s418 = sphi %s134, %s134
                $region54: #{dilenet_forward.4} parent=50 // loop_header_branch
                  %415 = sbr.rel (%p413) target = $region58
                $region55: #{dilenet_forward.4} parent=50 // loop_body
                  _
                $region56: #{dilenet_forward.4} parent=50 // loop_footer
                  %s416 = sadd.s32 1, %s412
                $region57: #{dilenet_forward.4} parent=50 // loop_footer_branch
                  %411 = sbr.rel target = $region53
                $region58: #{dilenet_forward.4} parent=50 // loop_exit
                  _
                loop: start=0, step=1, limit=1
                $region59: #{dilenet_forward.4} parent=50 // loop_pre_header
                  _
                $region60: #{dilenet_forward.4} parent=50 // loop_header
                  %s421 = sphi 0, %s425
                  %p422 = scmp.ge.s32.totalorder %s421, 1
                  %s426 = sphi %s137, %s137
                  %s427 = sphi %s134, %s134
                $region61: #{dilenet_forward.4} parent=50 // loop_header_branch
                  %424 = sbr.rel (%p422) target = $region65
                $region62: #{dilenet_forward.4} parent=50 // loop_body
                  %v428 = vld [vmem:[%s426] sm:$0xf]
                  %429 = vst [vmem:[%s427] sm:$0xf] %v428
                  %v430 = vld [vmem:[%s426 + $0x4] sm:$0xf]
                  %431 = vst [vmem:[%s427 + $0x4] sm:$0xf] %v430
                  %v432 = vld [vmem:[%s426 + $0x8] sm:$0xf]
                  %433 = vst [vmem:[%s427 + $0x8] sm:$0xf] %v432
                  %v434 = vld [vmem:[%s426 + $0xc] sm:$0xf]
                  %435 = vst [vmem:[%s427 + $0xc] sm:$0xf] %v434
                  %v436 = vld [vmem:[%s426 + $0x10] sm:$0xf]
                  %437 = vst [vmem:[%s427 + $0x10] sm:$0xf] %v436
                  %v438 = vld [vmem:[%s426 + $0x14] sm:$0xf]
                  %439 = vst [vmem:[%s427 + $0x14] sm:$0xf] %v438
                  %v440 = vld [vmem:[%s426 + $0x18] sm:$0xf]
                  %441 = vst [vmem:[%s427 + $0x18] sm:$0xf] %v440
                  %v442 = vld [vmem:[%s426 + $0x1c] sm:$0xf]
                  %443 = vst [vmem:[%s427 + $0x1c] sm:$0xf] %v442
                  %v444 = vld [vmem:[%s426 + $0x20] sm:$0xf]
                  %445 = vst [vmem:[%s427 + $0x20] sm:$0xf] %v444
                  %v446 = vld [vmem:[%s426 + $0x24] sm:$0xf]
                  %447 = vst [vmem:[%s427 + $0x24] sm:$0xf] %v446
                  %v448 = vld [vmem:[%s426 + $0x28] sm:$0xf]
                  %449 = vst [vmem:[%s427 + $0x28] sm:$0xf] %v448
                  %v450 = vld [vmem:[%s426 + $0x2c] sm:$0xf]
                  %451 = vst [vmem:[%s427 + $0x2c] sm:$0xf] %v450
                  %v452 = vld [vmem:[%s426 + $0x30] sm:$0xf]
                  %453 = vst [vmem:[%s427 + $0x30] sm:$0xf] %v452
                  %v454 = vld [vmem:[%s426 + $0x34] sm:$0xf]
                  %455 = vst [vmem:[%s427 + $0x34] sm:$0xf] %v454
                  %v456 = vld [vmem:[%s426 + $0x38] sm:$0xf]
                  %457 = vst [vmem:[%s427 + $0x38] sm:$0xf] %v456
                  %v458 = vld [vmem:[%s426 + $0x3c] sm:$0xf]
                  %459 = vst [vmem:[%s427 + $0x3c] sm:$0xf] %v458
                  %v460 = vld [vmem:[%s426 + $0x40] sm:$0xf]
                  %461 = vst [vmem:[%s427 + $0x40] sm:$0xf] %v460
                  %v462 = vld [vmem:[%s426 + $0x44] sm:$0xf]
                  %463 = vst [vmem:[%s427 + $0x44] sm:$0xf] %v462
                  %v464 = vld [vmem:[%s426 + $0x48] sm:$0xf]
                  %465 = vst [vmem:[%s427 + $0x48] sm:$0xf] %v464
                  %v466 = vld [vmem:[%s426 + $0x4c] sm:$0xf]
                  %467 = vst [vmem:[%s427 + $0x4c] sm:$0xf] %v466
                  %v468 = vld [vmem:[%s426 + $0x50] sm:$0xf]
                  %469 = vst [vmem:[%s427 + $0x50] sm:$0xf] %v468
                  %v470 = vld [vmem:[%s426 + $0x54] sm:$0xf]
                  %471 = vst [vmem:[%s427 + $0x54] sm:$0xf] %v470
                  %v472 = vld [vmem:[%s426 + $0x58] sm:$0xf]
                  %473 = vst [vmem:[%s427 + $0x58] sm:$0xf] %v472
                  %v474 = vld [vmem:[%s426 + $0x5c] sm:$0xf]
                  %475 = vst [vmem:[%s427 + $0x5c] sm:$0xf] %v474
                  %v476 = vld [vmem:[%s426 + $0x60] sm:$0xf]
                  %477 = vst [vmem:[%s427 + $0x60] sm:$0xf] %v476
                  %v478 = vld [vmem:[%s426 + $0x64] sm:$0xf]
                  %479 = vst [vmem:[%s427 + $0x64] sm:$0xf] %v478
                  %v480 = vld [vmem:[%s426 + $0x68] sm:$0xf]
                  %481 = vst [vmem:[%s427 + $0x68] sm:$0xf] %v480
                  %v482 = vld [vmem:[%s426 + $0x6c] sm:$0xf]
                  %483 = vst [vmem:[%s427 + $0x6c] sm:$0xf] %v482
                  %v484 = vld [vmem:[%s426 + $0x70] sm:$0xf]
                  %485 = vst [vmem:[%s427 + $0x70] sm:$0xf] %v484
                  %v486 = vld [vmem:[%s426 + $0x74] sm:$0xf]
                  %487 = vst [vmem:[%s427 + $0x74] sm:$0xf] %v486
                  %v488 = vld [vmem:[%s426 + $0x78] sm:$0xf]
                  %489 = vst [vmem:[%s427 + $0x78] sm:$0xf] %v488
                  %v490 = vld [vmem:[%s426 + $0x7c] sm:$0xf]
                  %491 = vst [vmem:[%s427 + $0x7c] sm:$0xf] %v490
                  %v492 = vld [vmem:[%s426 + $0x100] sm:$0xf]
                  %493 = vst [vmem:[%s427 + $0x80] sm:$0xf] %v492
                  %v494 = vld [vmem:[%s426 + $0x104] sm:$0xf]
                  %495 = vst [vmem:[%s427 + $0x84] sm:$0xf] %v494
                  %v496 = vld [vmem:[%s426 + $0x108] sm:$0xf]
                  %497 = vst [vmem:[%s427 + $0x88] sm:$0xf] %v496
                  %v498 = vld [vmem:[%s426 + $0x10c] sm:$0xf]
                  %499 = vst [vmem:[%s427 + $0x8c] sm:$0xf] %v498
                  %v500 = vld [vmem:[%s426 + $0x110] sm:$0xf]
                  %501 = vst [vmem:[%s427 + $0x90] sm:$0xf] %v500
                  %v502 = vld [vmem:[%s426 + $0x114] sm:$0xf]
                  %503 = vst [vmem:[%s427 + $0x94] sm:$0xf] %v502
                  %v504 = vld [vmem:[%s426 + $0x118] sm:$0xf]
                  %505 = vst [vmem:[%s427 + $0x98] sm:$0xf] %v504
                  %v506 = vld [vmem:[%s426 + $0x11c] sm:$0xf]
                  %507 = vst [vmem:[%s427 + $0x9c] sm:$0xf] %v506
                  %v508 = vld [vmem:[%s426 + $0x120] sm:$0xf]
                  %509 = vst [vmem:[%s427 + $0xa0] sm:$0xf] %v508
                  %v510 = vld [vmem:[%s426 + $0x124] sm:$0xf]
                  %511 = vst [vmem:[%s427 + $0xa4] sm:$0xf] %v510
                  %v512 = vld [vmem:[%s426 + $0x128] sm:$0xf]
                  %513 = vst [vmem:[%s427 + $0xa8] sm:$0xf] %v512
                  %v514 = vld [vmem:[%s426 + $0x12c] sm:$0xf]
                  %515 = vst [vmem:[%s427 + $0xac] sm:$0xf] %v514
                  %v516 = vld [vmem:[%s426 + $0x130] sm:$0xf]
                  %517 = vst [vmem:[%s427 + $0xb0] sm:$0xf] %v516
                  %v518 = vld [vmem:[%s426 + $0x134] sm:$0xf]
                  %519 = vst [vmem:[%s427 + $0xb4] sm:$0xf] %v518
                  %v520 = vld [vmem:[%s426 + $0x138] sm:$0xf]
                  %521 = vst [vmem:[%s427 + $0xb8] sm:$0xf] %v520
                  %v522 = vld [vmem:[%s426 + $0x13c] sm:$0xf]
                  %523 = vst [vmem:[%s427 + $0xbc] sm:$0xf] %v522
                  %v524 = vld [vmem:[%s426 + $0x140] sm:$0xf]
                  %525 = vst [vmem:[%s427 + $0xc0] sm:$0xf] %v524
                  %v526 = vld [vmem:[%s426 + $0x144] sm:$0xf]
                  %527 = vst [vmem:[%s427 + $0xc4] sm:$0xf] %v526
                  %v528 = vld [vmem:[%s426 + $0x148] sm:$0xf]
                  %529 = vst [vmem:[%s427 + $0xc8] sm:$0xf] %v528
                  %v530 = vld [vmem:[%s426 + $0x14c] sm:$0xf]
                  %531 = vst [vmem:[%s427 + $0xcc] sm:$0xf] %v530
                  %v532 = vld [vmem:[%s426 + $0x150] sm:$0xf]
                  %533 = vst [vmem:[%s427 + $0xd0] sm:$0xf] %v532
                  %v534 = vld [vmem:[%s426 + $0x154] sm:$0xf]
                  %535 = vst [vmem:[%s427 + $0xd4] sm:$0xf] %v534
                  %v536 = vld [vmem:[%s426 + $0x158] sm:$0xf]
                  %537 = vst [vmem:[%s427 + $0xd8] sm:$0xf] %v536
                  %v538 = vld [vmem:[%s426 + $0x15c] sm:$0xf]
                  %539 = vst [vmem:[%s427 + $0xdc] sm:$0xf] %v538
                  %v540 = vld [vmem:[%s426 + $0x160] sm:$0xf]
                  %541 = vst [vmem:[%s427 + $0xe0] sm:$0xf] %v540
                  %v542 = vld [vmem:[%s426 + $0x164] sm:$0xf]
                  %543 = vst [vmem:[%s427 + $0xe4] sm:$0xf] %v542
                  %v544 = vld [vmem:[%s426 + $0x168] sm:$0xf]
                  %545 = vst [vmem:[%s427 + $0xe8] sm:$0xf] %v544
                  %v546 = vld [vmem:[%s426 + $0x16c] sm:$0xf]
                  %547 = vst [vmem:[%s427 + $0xec] sm:$0xf] %v546
                  %v548 = vld [vmem:[%s426 + $0x170] sm:$0xf]
                  %549 = vst [vmem:[%s427 + $0xf0] sm:$0xf] %v548
                  %v550 = vld [vmem:[%s426 + $0x174] sm:$0xf]
                  %551 = vst [vmem:[%s427 + $0xf4] sm:$0xf] %v550
                  %v552 = vld [vmem:[%s426 + $0x178] sm:$0xf]
                  %553 = vst [vmem:[%s427 + $0xf8] sm:$0xf] %v552
                  %v554 = vld [vmem:[%s426 + $0x17c] sm:$0xf]
                  %555 = vst [vmem:[%s427 + $0xfc] sm:$0xf] %v554
                  %v556 = vld [vmem:[%s426 + $0x200] sm:$0xf]
                  %557 = vst [vmem:[%s427 + $0x100] sm:$0xf] %v556
                  %v558 = vld [vmem:[%s426 + $0x204] sm:$0xf]
                  %559 = vst [vmem:[%s427 + $0x104] sm:$0xf] %v558
                  %v560 = vld [vmem:[%s426 + $0x208] sm:$0xf]
                  %561 = vst [vmem:[%s427 + $0x108] sm:$0xf] %v560
                  %v562 = vld [vmem:[%s426 + $0x20c] sm:$0xf]
                  %563 = vst [vmem:[%s427 + $0x10c] sm:$0xf] %v562
                  %v564 = vld [vmem:[%s426 + $0x210] sm:$0xf]
                  %565 = vst [vmem:[%s427 + $0x110] sm:$0xf] %v564
                  %v566 = vld [vmem:[%s426 + $0x214] sm:$0xf]
                  %567 = vst [vmem:[%s427 + $0x114] sm:$0xf] %v566
                  %v568 = vld [vmem:[%s426 + $0x218] sm:$0xf]
                  %569 = vst [vmem:[%s427 + $0x118] sm:$0xf] %v568
                  %v570 = vld [vmem:[%s426 + $0x21c] sm:$0xf]
                  %571 = vst [vmem:[%s427 + $0x11c] sm:$0xf] %v570
                  %v572 = vld [vmem:[%s426 + $0x220] sm:$0xf]
                  %573 = vst [vmem:[%s427 + $0x120] sm:$0xf] %v572
                  %v574 = vld [vmem:[%s426 + $0x224] sm:$0xf]
                  %575 = vst [vmem:[%s427 + $0x124] sm:$0xf] %v574
                  %v576 = vld [vmem:[%s426 + $0x228] sm:$0xf]
                  %577 = vst [vmem:[%s427 + $0x128] sm:$0xf] %v576
                  %v578 = vld [vmem:[%s426 + $0x22c] sm:$0xf]
                  %579 = vst [vmem:[%s427 + $0x12c] sm:$0xf] %v578
                  %v580 = vld [vmem:[%s426 + $0x230] sm:$0xf]
                  %581 = vst [vmem:[%s427 + $0x130] sm:$0xf] %v580
                  %v582 = vld [vmem:[%s426 + $0x234] sm:$0xf]
                  %583 = vst [vmem:[%s427 + $0x134] sm:$0xf] %v582
                  %v584 = vld [vmem:[%s426 + $0x238] sm:$0xf]
                  %585 = vst [vmem:[%s427 + $0x138] sm:$0xf] %v584
                  %v586 = vld [vmem:[%s426 + $0x23c] sm:$0xf]
                  %587 = vst [vmem:[%s427 + $0x13c] sm:$0xf] %v586
                  %v588 = vld [vmem:[%s426 + $0x240] sm:$0xf]
                  %589 = vst [vmem:[%s427 + $0x140] sm:$0xf] %v588
                  %v590 = vld [vmem:[%s426 + $0x244] sm:$0xf]
                  %591 = vst [vmem:[%s427 + $0x144] sm:$0xf] %v590
                  %v592 = vld [vmem:[%s426 + $0x248] sm:$0xf]
                  %593 = vst [vmem:[%s427 + $0x148] sm:$0xf] %v592
                  %v594 = vld [vmem:[%s426 + $0x24c] sm:$0xf]
                  %595 = vst [vmem:[%s427 + $0x14c] sm:$0xf] %v594
                  %v596 = vld [vmem:[%s426 + $0x250] sm:$0xf]
                  %597 = vst [vmem:[%s427 + $0x150] sm:$0xf] %v596
                  %v598 = vld [vmem:[%s426 + $0x254] sm:$0xf]
                  %599 = vst [vmem:[%s427 + $0x154] sm:$0xf] %v598
                  %v600 = vld [vmem:[%s426 + $0x258] sm:$0xf]
                  %601 = vst [vmem:[%s427 + $0x158] sm:$0xf] %v600
                  %v602 = vld [vmem:[%s426 + $0x25c] sm:$0xf]
                  %603 = vst [vmem:[%s427 + $0x15c] sm:$0xf] %v602
                  %v604 = vld [vmem:[%s426 + $0x260] sm:$0xf]
                  %605 = vst [vmem:[%s427 + $0x160] sm:$0xf] %v604
                  %v606 = vld [vmem:[%s426 + $0x264] sm:$0xf]
                  %607 = vst [vmem:[%s427 + $0x164] sm:$0xf] %v606
                  %v608 = vld [vmem:[%s426 + $0x268] sm:$0xf]
                  %609 = vst [vmem:[%s427 + $0x168] sm:$0xf] %v608
                  %v610 = vld [vmem:[%s426 + $0x26c] sm:$0xf]
                  %611 = vst [vmem:[%s427 + $0x16c] sm:$0xf] %v610
                  %v612 = vld [vmem:[%s426 + $0x270] sm:$0xf]
                  %613 = vst [vmem:[%s427 + $0x170] sm:$0xf] %v612
                  %v614 = vld [vmem:[%s426 + $0x274] sm:$0xf]
                  %615 = vst [vmem:[%s427 + $0x174] sm:$0xf] %v614
                  %v616 = vld [vmem:[%s426 + $0x278] sm:$0xf]
                  %617 = vst [vmem:[%s427 + $0x178] sm:$0xf] %v616
                  %v618 = vld [vmem:[%s426 + $0x27c] sm:$0xf]
                  %619 = vst [vmem:[%s427 + $0x17c] sm:$0xf] %v618
                  %v620 = vld [vmem:[%s426 + $0x300] sm:$0xf]
                  %621 = vst [vmem:[%s427 + $0x180] sm:$0xf] %v620
                  %v622 = vld [vmem:[%s426 + $0x304] sm:$0xf]
                  %623 = vst [vmem:[%s427 + $0x184] sm:$0xf] %v622
                  %v624 = vld [vmem:[%s426 + $0x308] sm:$0xf]
                  %625 = vst [vmem:[%s427 + $0x188] sm:$0xf] %v624
                  %v626 = vld [vmem:[%s426 + $0x30c] sm:$0xf]
                  %627 = vst [vmem:[%s427 + $0x18c] sm:$0xf] %v626
                  %v628 = vld [vmem:[%s426 + $0x310] sm:$0xf]
                  %629 = vst [vmem:[%s427 + $0x190] sm:$0xf] %v628
                  %v630 = vld [vmem:[%s426 + $0x314] sm:$0xf]
                  %631 = vst [vmem:[%s427 + $0x194] sm:$0xf] %v630
                  %v632 = vld [vmem:[%s426 + $0x318] sm:$0xf]
                  %633 = vst [vmem:[%s427 + $0x198] sm:$0xf] %v632
                  %v634 = vld [vmem:[%s426 + $0x31c] sm:$0xf]
                  %635 = vst [vmem:[%s427 + $0x19c] sm:$0xf] %v634
                  %v636 = vld [vmem:[%s426 + $0x320] sm:$0xf]
                  %637 = vst [vmem:[%s427 + $0x1a0] sm:$0xf] %v636
                  %v638 = vld [vmem:[%s426 + $0x324] sm:$0xf]
                  %639 = vst [vmem:[%s427 + $0x1a4] sm:$0xf] %v638
                  %v640 = vld [vmem:[%s426 + $0x328] sm:$0xf]
                  %641 = vst [vmem:[%s427 + $0x1a8] sm:$0xf] %v640
                  %v642 = vld [vmem:[%s426 + $0x32c] sm:$0xf]
                  %643 = vst [vmem:[%s427 + $0x1ac] sm:$0xf] %v642
                  %v644 = vld [vmem:[%s426 + $0x330] sm:$0xf]
                  %645 = vst [vmem:[%s427 + $0x1b0] sm:$0xf] %v644
                  %v646 = vld [vmem:[%s426 + $0x334] sm:$0xf]
                  %647 = vst [vmem:[%s427 + $0x1b4] sm:$0xf] %v646
                  %v648 = vld [vmem:[%s426 + $0x338] sm:$0xf]
                  %649 = vst [vmem:[%s427 + $0x1b8] sm:$0xf] %v648
                  %v650 = vld [vmem:[%s426 + $0x33c] sm:$0xf]
                  %651 = vst [vmem:[%s427 + $0x1bc] sm:$0xf] %v650
                  %v652 = vld [vmem:[%s426 + $0x340] sm:$0xf]
                  %653 = vst [vmem:[%s427 + $0x1c0] sm:$0xf] %v652
                  %v654 = vld [vmem:[%s426 + $0x344] sm:$0xf]
                  %655 = vst [vmem:[%s427 + $0x1c4] sm:$0xf] %v654
                  %v656 = vld [vmem:[%s426 + $0x348] sm:$0xf]
                  %657 = vst [vmem:[%s427 + $0x1c8] sm:$0xf] %v656
                  %v658 = vld [vmem:[%s426 + $0x34c] sm:$0xf]
                  %659 = vst [vmem:[%s427 + $0x1cc] sm:$0xf] %v658
                  %v660 = vld [vmem:[%s426 + $0x350] sm:$0xf]
                  %661 = vst [vmem:[%s427 + $0x1d0] sm:$0xf] %v660
                  %v662 = vld [vmem:[%s426 + $0x354] sm:$0xf]
                  %663 = vst [vmem:[%s427 + $0x1d4] sm:$0xf] %v662
                  %v664 = vld [vmem:[%s426 + $0x358] sm:$0xf]
                  %665 = vst [vmem:[%s427 + $0x1d8] sm:$0xf] %v664
                  %v666 = vld [vmem:[%s426 + $0x35c] sm:$0xf]
                  %667 = vst [vmem:[%s427 + $0x1dc] sm:$0xf] %v666
                  %v668 = vld [vmem:[%s426 + $0x360] sm:$0xf]
                  %669 = vst [vmem:[%s427 + $0x1e0] sm:$0xf] %v668
                  %v670 = vld [vmem:[%s426 + $0x364] sm:$0xf]
                  %671 = vst [vmem:[%s427 + $0x1e4] sm:$0xf] %v670
                  %v672 = vld [vmem:[%s426 + $0x368] sm:$0xf]
                  %673 = vst [vmem:[%s427 + $0x1e8] sm:$0xf] %v672
                  %v674 = vld [vmem:[%s426 + $0x36c] sm:$0xf]
                  %675 = vst [vmem:[%s427 + $0x1ec] sm:$0xf] %v674
                  %v676 = vld [vmem:[%s426 + $0x370] sm:$0xf]
                  %677 = vst [vmem:[%s427 + $0x1f0] sm:$0xf] %v676
                  %v678 = vld [vmem:[%s426 + $0x374] sm:$0xf]
                  %679 = vst [vmem:[%s427 + $0x1f4] sm:$0xf] %v678
                  %v680 = vld [vmem:[%s426 + $0x378] sm:$0xf]
                  %681 = vst [vmem:[%s427 + $0x1f8] sm:$0xf] %v680
                  %v682 = vld [vmem:[%s426 + $0x37c] sm:$0xf]
                  %683 = vst [vmem:[%s427 + $0x1fc] sm:$0xf] %v682
                $region63: #{dilenet_forward.4} parent=50 // loop_footer
                  %s425 = sadd.s32 1, %s421
                $region64: #{dilenet_forward.4} parent=50 // loop_footer_branch
                  %420 = sbr.rel target = $region60
                $region65: #{dilenet_forward.4} parent=50 // loop_exit
                  _
              $region51: #{dilenet_forward.4} parent=35 // pred_fallthru
                _
            $region36: #{dilenet_forward.4} parent=31 // pred_fallthru
              _
            // Predicated region
            $region37: #{dilenet_forward.4} parent=31 // pred_check
              _
            $region38: #{dilenet_forward.4} parent=31 // pred_check_branch
              %143 = sbr.rel (0) target = $region40
            $region39: #{dilenet_forward.4} parent=31 // pred_region
              loop: start=0, step=1, limit=1
              $region41: #{dilenet_forward.4} parent=39 // loop_pre_header
                _
              $region42: #{dilenet_forward.4} parent=39 // loop_header
                %s146 = sphi 0, %s150
                %p147 = scmp.ge.s32.totalorder %s146, 1
                %s151 = sphi %s137, %s137
                %s152 = sphi %s134, %s134
              $region43: #{dilenet_forward.4} parent=39 // loop_header_branch
                %149 = sbr.rel (%p147) target = $region47
              $region44: #{dilenet_forward.4} parent=39 // loop_body
                %v153 = vld [vmem:[%s151] sm:$0xf]
                %154 = vst [vmem:[%s152] sm:$0xf] %v153
                %v155 = vld [vmem:[%s151 + $0x4] sm:$0xf]
                %156 = vst [vmem:[%s152 + $0x4] sm:$0xf] %v155
                %v157 = vld [vmem:[%s151 + $0x8] sm:$0xf]
                %158 = vst [vmem:[%s152 + $0x8] sm:$0xf] %v157
                %v159 = vld [vmem:[%s151 + $0xc] sm:$0xf]
                %160 = vst [vmem:[%s152 + $0xc] sm:$0xf] %v159
                %v161 = vld [vmem:[%s151 + $0x10] sm:$0xf]
                %162 = vst [vmem:[%s152 + $0x10] sm:$0xf] %v161
                %v163 = vld [vmem:[%s151 + $0x14] sm:$0xf]
                %164 = vst [vmem:[%s152 + $0x14] sm:$0xf] %v163
                %v165 = vld [vmem:[%s151 + $0x18] sm:$0xf]
                %166 = vst [vmem:[%s152 + $0x18] sm:$0xf] %v165
                %v167 = vld [vmem:[%s151 + $0x1c] sm:$0xf]
                %168 = vst [vmem:[%s152 + $0x1c] sm:$0xf] %v167
                %v169 = vld [vmem:[%s151 + $0x20] sm:$0xf]
                %170 = vst [vmem:[%s152 + $0x20] sm:$0xf] %v169
                %v171 = vld [vmem:[%s151 + $0x24] sm:$0xf]
                %172 = vst [vmem:[%s152 + $0x24] sm:$0xf] %v171
                %v173 = vld [vmem:[%s151 + $0x28] sm:$0xf]
                %174 = vst [vmem:[%s152 + $0x28] sm:$0xf] %v173
                %v175 = vld [vmem:[%s151 + $0x2c] sm:$0xf]
                %176 = vst [vmem:[%s152 + $0x2c] sm:$0xf] %v175
                %v177 = vld [vmem:[%s151 + $0x30] sm:$0xf]
                %178 = vst [vmem:[%s152 + $0x30] sm:$0xf] %v177
                %v179 = vld [vmem:[%s151 + $0x34] sm:$0xf]
                %180 = vst [vmem:[%s152 + $0x34] sm:$0xf] %v179
                %v181 = vld [vmem:[%s151 + $0x38] sm:$0xf]
                %182 = vst [vmem:[%s152 + $0x38] sm:$0xf] %v181
                %v183 = vld [vmem:[%s151 + $0x3c] sm:$0xf]
                %184 = vst [vmem:[%s152 + $0x3c] sm:$0xf] %v183
                %v185 = vld [vmem:[%s151 + $0x40] sm:$0xf]
                %186 = vst [vmem:[%s152 + $0x40] sm:$0xf] %v185
                %v187 = vld [vmem:[%s151 + $0x44] sm:$0xf]
                %188 = vst [vmem:[%s152 + $0x44] sm:$0xf] %v187
                %v189 = vld [vmem:[%s151 + $0x48] sm:$0xf]
                %190 = vst [vmem:[%s152 + $0x48] sm:$0xf] %v189
                %v191 = vld [vmem:[%s151 + $0x4c] sm:$0xf]
                %192 = vst [vmem:[%s152 + $0x4c] sm:$0xf] %v191
                %v193 = vld [vmem:[%s151 + $0x50] sm:$0xf]
                %194 = vst [vmem:[%s152 + $0x50] sm:$0xf] %v193
                %v195 = vld [vmem:[%s151 + $0x54] sm:$0xf]
                %196 = vst [vmem:[%s152 + $0x54] sm:$0xf] %v195
                %v197 = vld [vmem:[%s151 + $0x58] sm:$0xf]
                %198 = vst [vmem:[%s152 + $0x58] sm:$0xf] %v197
                %v199 = vld [vmem:[%s151 + $0x5c] sm:$0xf]
                %200 = vst [vmem:[%s152 + $0x5c] sm:$0xf] %v199
                %v201 = vld [vmem:[%s151 + $0x60] sm:$0xf]
                %202 = vst [vmem:[%s152 + $0x60] sm:$0xf] %v201
                %v203 = vld [vmem:[%s151 + $0x64] sm:$0xf]
                %204 = vst [vmem:[%s152 + $0x64] sm:$0xf] %v203
                %v205 = vld [vmem:[%s151 + $0x68] sm:$0xf]
                %206 = vst [vmem:[%s152 + $0x68] sm:$0xf] %v205
                %v207 = vld [vmem:[%s151 + $0x6c] sm:$0xf]
                %208 = vst [vmem:[%s152 + $0x6c] sm:$0xf] %v207
                %v209 = vld [vmem:[%s151 + $0x70] sm:$0xf]
                %210 = vst [vmem:[%s152 + $0x70] sm:$0xf] %v209
                %v211 = vld [vmem:[%s151 + $0x74] sm:$0xf]
                %212 = vst [vmem:[%s152 + $0x74] sm:$0xf] %v211
                %v213 = vld [vmem:[%s151 + $0x78] sm:$0xf]
                %214 = vst [vmem:[%s152 + $0x78] sm:$0xf] %v213
                %v215 = vld [vmem:[%s151 + $0x7c] sm:$0xf]
                %216 = vst [vmem:[%s152 + $0x7c] sm:$0xf] %v215
                %v217 = vld [vmem:[%s151 + $0x100] sm:$0xf]
                %218 = vst [vmem:[%s152 + $0x80] sm:$0xf] %v217
                %v219 = vld [vmem:[%s151 + $0x104] sm:$0xf]
                %220 = vst [vmem:[%s152 + $0x84] sm:$0xf] %v219
                %v221 = vld [vmem:[%s151 + $0x108] sm:$0xf]
                %222 = vst [vmem:[%s152 + $0x88] sm:$0xf] %v221
                %v223 = vld [vmem:[%s151 + $0x10c] sm:$0xf]
                %224 = vst [vmem:[%s152 + $0x8c] sm:$0xf] %v223
                %v225 = vld [vmem:[%s151 + $0x110] sm:$0xf]
                %226 = vst [vmem:[%s152 + $0x90] sm:$0xf] %v225
                %v227 = vld [vmem:[%s151 + $0x114] sm:$0xf]
                %228 = vst [vmem:[%s152 + $0x94] sm:$0xf] %v227
                %v229 = vld [vmem:[%s151 + $0x118] sm:$0xf]
                %230 = vst [vmem:[%s152 + $0x98] sm:$0xf] %v229
                %v231 = vld [vmem:[%s151 + $0x11c] sm:$0xf]
                %232 = vst [vmem:[%s152 + $0x9c] sm:$0xf] %v231
                %v233 = vld [vmem:[%s151 + $0x120] sm:$0xf]
                %234 = vst [vmem:[%s152 + $0xa0] sm:$0xf] %v233
                %v235 = vld [vmem:[%s151 + $0x124] sm:$0xf]
                %236 = vst [vmem:[%s152 + $0xa4] sm:$0xf] %v235
                %v237 = vld [vmem:[%s151 + $0x128] sm:$0xf]
                %238 = vst [vmem:[%s152 + $0xa8] sm:$0xf] %v237
                %v239 = vld [vmem:[%s151 + $0x12c] sm:$0xf]
                %240 = vst [vmem:[%s152 + $0xac] sm:$0xf] %v239
                %v241 = vld [vmem:[%s151 + $0x130] sm:$0xf]
                %242 = vst [vmem:[%s152 + $0xb0] sm:$0xf] %v241
                %v243 = vld [vmem:[%s151 + $0x134] sm:$0xf]
                %244 = vst [vmem:[%s152 + $0xb4] sm:$0xf] %v243
                %v245 = vld [vmem:[%s151 + $0x138] sm:$0xf]
                %246 = vst [vmem:[%s152 + $0xb8] sm:$0xf] %v245
                %v247 = vld [vmem:[%s151 + $0x13c] sm:$0xf]
                %248 = vst [vmem:[%s152 + $0xbc] sm:$0xf] %v247
                %v249 = vld [vmem:[%s151 + $0x140] sm:$0xf]
                %250 = vst [vmem:[%s152 + $0xc0] sm:$0xf] %v249
                %v251 = vld [vmem:[%s151 + $0x144] sm:$0xf]
                %252 = vst [vmem:[%s152 + $0xc4] sm:$0xf] %v251
                %v253 = vld [vmem:[%s151 + $0x148] sm:$0xf]
                %254 = vst [vmem:[%s152 + $0xc8] sm:$0xf] %v253
                %v255 = vld [vmem:[%s151 + $0x14c] sm:$0xf]
                %256 = vst [vmem:[%s152 + $0xcc] sm:$0xf] %v255
                %v257 = vld [vmem:[%s151 + $0x150] sm:$0xf]
                %258 = vst [vmem:[%s152 + $0xd0] sm:$0xf] %v257
                %v259 = vld [vmem:[%s151 + $0x154] sm:$0xf]
                %260 = vst [vmem:[%s152 + $0xd4] sm:$0xf] %v259
                %v261 = vld [vmem:[%s151 + $0x158] sm:$0xf]
                %262 = vst [vmem:[%s152 + $0xd8] sm:$0xf] %v261
                %v263 = vld [vmem:[%s151 + $0x15c] sm:$0xf]
                %264 = vst [vmem:[%s152 + $0xdc] sm:$0xf] %v263
                %v265 = vld [vmem:[%s151 + $0x160] sm:$0xf]
                %266 = vst [vmem:[%s152 + $0xe0] sm:$0xf] %v265
                %v267 = vld [vmem:[%s151 + $0x164] sm:$0xf]
                %268 = vst [vmem:[%s152 + $0xe4] sm:$0xf] %v267
                %v269 = vld [vmem:[%s151 + $0x168] sm:$0xf]
                %270 = vst [vmem:[%s152 + $0xe8] sm:$0xf] %v269
                %v271 = vld [vmem:[%s151 + $0x16c] sm:$0xf]
                %272 = vst [vmem:[%s152 + $0xec] sm:$0xf] %v271
                %v273 = vld [vmem:[%s151 + $0x170] sm:$0xf]
                %274 = vst [vmem:[%s152 + $0xf0] sm:$0xf] %v273
                %v275 = vld [vmem:[%s151 + $0x174] sm:$0xf]
                %276 = vst [vmem:[%s152 + $0xf4] sm:$0xf] %v275
                %v277 = vld [vmem:[%s151 + $0x178] sm:$0xf]
                %278 = vst [vmem:[%s152 + $0xf8] sm:$0xf] %v277
                %v279 = vld [vmem:[%s151 + $0x17c] sm:$0xf]
                %280 = vst [vmem:[%s152 + $0xfc] sm:$0xf] %v279
                %v281 = vld [vmem:[%s151 + $0x200] sm:$0xf]
                %282 = vst [vmem:[%s152 + $0x100] sm:$0xf] %v281
                %v283 = vld [vmem:[%s151 + $0x204] sm:$0xf]
                %284 = vst [vmem:[%s152 + $0x104] sm:$0xf] %v283
                %v285 = vld [vmem:[%s151 + $0x208] sm:$0xf]
                %286 = vst [vmem:[%s152 + $0x108] sm:$0xf] %v285
                %v287 = vld [vmem:[%s151 + $0x20c] sm:$0xf]
                %288 = vst [vmem:[%s152 + $0x10c] sm:$0xf] %v287
                %v289 = vld [vmem:[%s151 + $0x210] sm:$0xf]
                %290 = vst [vmem:[%s152 + $0x110] sm:$0xf] %v289
                %v291 = vld [vmem:[%s151 + $0x214] sm:$0xf]
                %292 = vst [vmem:[%s152 + $0x114] sm:$0xf] %v291
                %v293 = vld [vmem:[%s151 + $0x218] sm:$0xf]
                %294 = vst [vmem:[%s152 + $0x118] sm:$0xf] %v293
                %v295 = vld [vmem:[%s151 + $0x21c] sm:$0xf]
                %296 = vst [vmem:[%s152 + $0x11c] sm:$0xf] %v295
                %v297 = vld [vmem:[%s151 + $0x220] sm:$0xf]
                %298 = vst [vmem:[%s152 + $0x120] sm:$0xf] %v297
                %v299 = vld [vmem:[%s151 + $0x224] sm:$0xf]
                %300 = vst [vmem:[%s152 + $0x124] sm:$0xf] %v299
                %v301 = vld [vmem:[%s151 + $0x228] sm:$0xf]
                %302 = vst [vmem:[%s152 + $0x128] sm:$0xf] %v301
                %v303 = vld [vmem:[%s151 + $0x22c] sm:$0xf]
                %304 = vst [vmem:[%s152 + $0x12c] sm:$0xf] %v303
                %v305 = vld [vmem:[%s151 + $0x230] sm:$0xf]
                %306 = vst [vmem:[%s152 + $0x130] sm:$0xf] %v305
                %v307 = vld [vmem:[%s151 + $0x234] sm:$0xf]
                %308 = vst [vmem:[%s152 + $0x134] sm:$0xf] %v307
                %v309 = vld [vmem:[%s151 + $0x238] sm:$0xf]
                %310 = vst [vmem:[%s152 + $0x138] sm:$0xf] %v309
                %v311 = vld [vmem:[%s151 + $0x23c] sm:$0xf]
                %312 = vst [vmem:[%s152 + $0x13c] sm:$0xf] %v311
                %v313 = vld [vmem:[%s151 + $0x240] sm:$0xf]
                %314 = vst [vmem:[%s152 + $0x140] sm:$0xf] %v313
                %v315 = vld [vmem:[%s151 + $0x244] sm:$0xf]
                %316 = vst [vmem:[%s152 + $0x144] sm:$0xf] %v315
                %v317 = vld [vmem:[%s151 + $0x248] sm:$0xf]
                %318 = vst [vmem:[%s152 + $0x148] sm:$0xf] %v317
                %v319 = vld [vmem:[%s151 + $0x24c] sm:$0xf]
                %320 = vst [vmem:[%s152 + $0x14c] sm:$0xf] %v319
                %v321 = vld [vmem:[%s151 + $0x250] sm:$0xf]
                %322 = vst [vmem:[%s152 + $0x150] sm:$0xf] %v321
                %v323 = vld [vmem:[%s151 + $0x254] sm:$0xf]
                %324 = vst [vmem:[%s152 + $0x154] sm:$0xf] %v323
                %v325 = vld [vmem:[%s151 + $0x258] sm:$0xf]
                %326 = vst [vmem:[%s152 + $0x158] sm:$0xf] %v325
                %v327 = vld [vmem:[%s151 + $0x25c] sm:$0xf]
                %328 = vst [vmem:[%s152 + $0x15c] sm:$0xf] %v327
                %v329 = vld [vmem:[%s151 + $0x260] sm:$0xf]
                %330 = vst [vmem:[%s152 + $0x160] sm:$0xf] %v329
                %v331 = vld [vmem:[%s151 + $0x264] sm:$0xf]
                %332 = vst [vmem:[%s152 + $0x164] sm:$0xf] %v331
                %v333 = vld [vmem:[%s151 + $0x268] sm:$0xf]
                %334 = vst [vmem:[%s152 + $0x168] sm:$0xf] %v333
                %v335 = vld [vmem:[%s151 + $0x26c] sm:$0xf]
                %336 = vst [vmem:[%s152 + $0x16c] sm:$0xf] %v335
                %v337 = vld [vmem:[%s151 + $0x270] sm:$0xf]
                %338 = vst [vmem:[%s152 + $0x170] sm:$0xf] %v337
                %v339 = vld [vmem:[%s151 + $0x274] sm:$0xf]
                %340 = vst [vmem:[%s152 + $0x174] sm:$0xf] %v339
                %v341 = vld [vmem:[%s151 + $0x278] sm:$0xf]
                %342 = vst [vmem:[%s152 + $0x178] sm:$0xf] %v341
                %v343 = vld [vmem:[%s151 + $0x27c] sm:$0xf]
                %344 = vst [vmem:[%s152 + $0x17c] sm:$0xf] %v343
                %v345 = vld [vmem:[%s151 + $0x300] sm:$0xf]
                %346 = vst [vmem:[%s152 + $0x180] sm:$0xf] %v345
                %v347 = vld [vmem:[%s151 + $0x304] sm:$0xf]
                %348 = vst [vmem:[%s152 + $0x184] sm:$0xf] %v347
                %v349 = vld [vmem:[%s151 + $0x308] sm:$0xf]
                %350 = vst [vmem:[%s152 + $0x188] sm:$0xf] %v349
                %v351 = vld [vmem:[%s151 + $0x30c] sm:$0xf]
                %352 = vst [vmem:[%s152 + $0x18c] sm:$0xf] %v351
                %v353 = vld [vmem:[%s151 + $0x310] sm:$0xf]
                %354 = vst [vmem:[%s152 + $0x190] sm:$0xf] %v353
                %v355 = vld [vmem:[%s151 + $0x314] sm:$0xf]
                %356 = vst [vmem:[%s152 + $0x194] sm:$0xf] %v355
                %v357 = vld [vmem:[%s151 + $0x318] sm:$0xf]
                %358 = vst [vmem:[%s152 + $0x198] sm:$0xf] %v357
                %v359 = vld [vmem:[%s151 + $0x31c] sm:$0xf]
                %360 = vst [vmem:[%s152 + $0x19c] sm:$0xf] %v359
                %v361 = vld [vmem:[%s151 + $0x320] sm:$0xf]
                %362 = vst [vmem:[%s152 + $0x1a0] sm:$0xf] %v361
                %v363 = vld [vmem:[%s151 + $0x324] sm:$0xf]
                %364 = vst [vmem:[%s152 + $0x1a4] sm:$0xf] %v363
                %v365 = vld [vmem:[%s151 + $0x328] sm:$0xf]
                %366 = vst [vmem:[%s152 + $0x1a8] sm:$0xf] %v365
                %v367 = vld [vmem:[%s151 + $0x32c] sm:$0xf]
                %368 = vst [vmem:[%s152 + $0x1ac] sm:$0xf] %v367
                %v369 = vld [vmem:[%s151 + $0x330] sm:$0xf]
                %370 = vst [vmem:[%s152 + $0x1b0] sm:$0xf] %v369
                %v371 = vld [vmem:[%s151 + $0x334] sm:$0xf]
                %372 = vst [vmem:[%s152 + $0x1b4] sm:$0xf] %v371
                %v373 = vld [vmem:[%s151 + $0x338] sm:$0xf]
                %374 = vst [vmem:[%s152 + $0x1b8] sm:$0xf] %v373
                %v375 = vld [vmem:[%s151 + $0x33c] sm:$0xf]
                %376 = vst [vmem:[%s152 + $0x1bc] sm:$0xf] %v375
                %v377 = vld [vmem:[%s151 + $0x340] sm:$0xf]
                %378 = vst [vmem:[%s152 + $0x1c0] sm:$0xf] %v377
                %v379 = vld [vmem:[%s151 + $0x344] sm:$0xf]
                %380 = vst [vmem:[%s152 + $0x1c4] sm:$0xf] %v379
                %v381 = vld [vmem:[%s151 + $0x348] sm:$0xf]
                %382 = vst [vmem:[%s152 + $0x1c8] sm:$0xf] %v381
                %v383 = vld [vmem:[%s151 + $0x34c] sm:$0xf]
                %384 = vst [vmem:[%s152 + $0x1cc] sm:$0xf] %v383
                %v385 = vld [vmem:[%s151 + $0x350] sm:$0xf]
                %386 = vst [vmem:[%s152 + $0x1d0] sm:$0xf] %v385
                %v387 = vld [vmem:[%s151 + $0x354] sm:$0xf]
                %388 = vst [vmem:[%s152 + $0x1d4] sm:$0xf] %v387
                %v389 = vld [vmem:[%s151 + $0x358] sm:$0xf]
                %390 = vst [vmem:[%s152 + $0x1d8] sm:$0xf] %v389
                %v391 = vld [vmem:[%s151 + $0x35c] sm:$0xf]
                %392 = vst [vmem:[%s152 + $0x1dc] sm:$0xf] %v391
                %v393 = vld [vmem:[%s151 + $0x360] sm:$0xf]
                %394 = vst [vmem:[%s152 + $0x1e0] sm:$0xf] %v393
                %v395 = vld [vmem:[%s151 + $0x364] sm:$0xf]
                %396 = vst [vmem:[%s152 + $0x1e4] sm:$0xf] %v395
                %v397 = vld [vmem:[%s151 + $0x368] sm:$0xf]
                %398 = vst [vmem:[%s152 + $0x1e8] sm:$0xf] %v397
                %v399 = vld [vmem:[%s151 + $0x36c] sm:$0xf]
                %400 = vst [vmem:[%s152 + $0x1ec] sm:$0xf] %v399
                %v401 = vld [vmem:[%s151 + $0x370] sm:$0xf]
                %402 = vst [vmem:[%s152 + $0x1f0] sm:$0xf] %v401
                %v403 = vld [vmem:[%s151 + $0x374] sm:$0xf]
                %404 = vst [vmem:[%s152 + $0x1f4] sm:$0xf] %v403
                %v405 = vld [vmem:[%s151 + $0x378] sm:$0xf]
                %406 = vst [vmem:[%s152 + $0x1f8] sm:$0xf] %v405
                %v407 = vld [vmem:[%s151 + $0x37c] sm:$0xf]
                %408 = vst [vmem:[%s152 + $0x1fc] sm:$0xf] %v407
              $region45: #{dilenet_forward.4} parent=39 // loop_footer
                %s150 = sadd.s32 1, %s146
              $region46: #{dilenet_forward.4} parent=39 // loop_footer_branch
                %145 = sbr.rel target = $region42
              $region47: #{dilenet_forward.4} parent=39 // loop_exit
                _
            $region40: #{dilenet_forward.4} parent=31 // pred_fallthru
              _
          $region32: #{dilenet_forward.4} parent=27 // pred_fallthru
            _
          %684 = vnop
        $region28: #{dilenet_forward.4} parent=23 // pred_fallthru
          _
      $region24: #{dilenet_forward.4} parent=5 // pred_fallthru
        _
      %p685 = scmp.le.s32.totalorder 1, %s9
      %p686 = scmp.lt.s32.totalorder %s9, 3
      %p687 = pnand %p685, %p686
      %p688 = pneg %p687
      // Predicated region
      $region66: #{dilenet_forward.4} parent=5 // pred_check
        _
      $region67: #{dilenet_forward.4} parent=5 // pred_check_branch
        %690 = sbr.rel (%p687) target = $region69
      $region68: #{dilenet_forward.4} parent=5 // pred_region
        %s691 = ssub.s32 %s9, 1
        %s692 = sand.u32 %s22, 1
        %s693 = sand.u32 %s22, 1
        %s694 = smul.addr %s693, 512
        %s695 = scalar_lea.vmem [#allocation2], %s694
        // Predicated region
        $region70: #{dilenet_forward.4} parent=68 // pred_check
          %p696 = pneg %p35
        $region71: #{dilenet_forward.4} parent=68 // pred_check_branch
          %698 = sbr.rel (%p696) target = $region73
        $region72: #{dilenet_forward.4} parent=68 // pred_region
          _
        $region73: #{dilenet_forward.4} parent=68 // pred_fallthru
          _
        %s699 = sand.u32 %s22, 1
        %s700 = sand.u32 %s22, 1
        %s701 = smul.addr %s700, 512
        %s702 = scalar_lea.vmem [#allocation2], %s701
        %p703 = pneg %p35
        %p704 = pneg %p32
        %p705 = pneg %p56
        %p706 = pneg %p53
        %p707 = pneg %p77
        %p708 = pneg %p74
        %p709 = pneg %p103
        %p710 = pneg %p100
        %s711 = smul.u32 32, %s14
        %p712 = scmp.lt.s32.totalorder %s711, 63
        %s713 = scalar_select %p712, %s711, 63
        %s714 = smul.addr %s713, 4
        %s715 = scalar_lea.vmem %s3, %s714
        %s716 = smul.u32 32, %s14
        %s717 = smul.u32 32, %s14
        %p718 = scmp.lt.s32.totalorder %s717, 63
        %s719 = scalar_select %p718, %s717, 63
        %s720 = smul.addr %s719, 4
        %s721 = scalar_lea.vmem %s3, %s720
        %s722 = smul.u32 32, %s14
        %v724 = vld [vmem:[%s695] sm:$0xf]
        %v725 = vld [vmem:[%s695 + $0x4] sm:$0xf]
        %v726 = vld [vmem:[%s695 + $0x8] sm:$0xf]
        %v727 = vld [vmem:[%s695 + $0xc] sm:$0xf]
        %v728 = vld [vmem:[%s695 + $0x10] sm:$0xf]
        %v729 = vld [vmem:[%s695 + $0x14] sm:$0xf]
        %v730 = vld [vmem:[%s695 + $0x18] sm:$0xf]
        %v731 = vld [vmem:[%s695 + $0x1c] sm:$0xf]
        %v732 = vld [vmem:[%s695 + $0x20] sm:$0xf]
        %v733 = vld [vmem:[%s695 + $0x24] sm:$0xf]
        %v734 = vld [vmem:[%s695 + $0x28] sm:$0xf]
        %v735 = vld [vmem:[%s695 + $0x2c] sm:$0xf]
        %v736 = vld [vmem:[%s695 + $0x30] sm:$0xf]
        %v737 = vld [vmem:[%s695 + $0x34] sm:$0xf]
        %v738 = vld [vmem:[%s695 + $0x38] sm:$0xf]
        %v739 = vld [vmem:[%s695 + $0x3c] sm:$0xf]
        %v740 = vld [vmem:[%s695 + $0x40] sm:$0xf]
        %v741 = vld [vmem:[%s695 + $0x44] sm:$0xf]
        %v742 = vld [vmem:[%s695 + $0x48] sm:$0xf]
        %v743 = vld [vmem:[%s695 + $0x4c] sm:$0xf]
        %v744 = vld [vmem:[%s695 + $0x50] sm:$0xf]
        %v745 = vld [vmem:[%s695 + $0x54] sm:$0xf]
        %v746 = vld [vmem:[%s695 + $0x58] sm:$0xf]
        %v747 = vld [vmem:[%s695 + $0x5c] sm:$0xf]
        %v748 = vld [vmem:[%s695 + $0x60] sm:$0xf]
        %v749 = vld [vmem:[%s695 + $0x64] sm:$0xf]
        %v750 = vld [vmem:[%s695 + $0x68] sm:$0xf]
        %v751 = vld [vmem:[%s695 + $0x6c] sm:$0xf]
        %v752 = vld [vmem:[%s695 + $0x70] sm:$0xf]
        %v753 = vld [vmem:[%s695 + $0x74] sm:$0xf]
        %v754 = vld [vmem:[%s695 + $0x78] sm:$0xf]
        %v755 = vld [vmem:[%s695 + $0x7c] sm:$0xf]
        %v756 = vld [vmem:[%s695 + $0x80] sm:$0xf]
        %v757 = vld [vmem:[%s695 + $0x84] sm:$0xf]
        %v758 = vld [vmem:[%s695 + $0x88] sm:$0xf]
        %v759 = vld [vmem:[%s695 + $0x8c] sm:$0xf]
        %v760 = vld [vmem:[%s695 + $0x90] sm:$0xf]
        %v761 = vld [vmem:[%s695 + $0x94] sm:$0xf]
        %v762 = vld [vmem:[%s695 + $0x98] sm:$0xf]
        %v763 = vld [vmem:[%s695 + $0x9c] sm:$0xf]
        %v764 = vld [vmem:[%s695 + $0xa0] sm:$0xf]
        %v765 = vld [vmem:[%s695 + $0xa4] sm:$0xf]
        %v766 = vld [vmem:[%s695 + $0xa8] sm:$0xf]
        %v767 = vld [vmem:[%s695 + $0xac] sm:$0xf]
        %v768 = vld [vmem:[%s695 + $0xb0] sm:$0xf]
        %v769 = vld [vmem:[%s695 + $0xb4] sm:$0xf]
        %v770 = vld [vmem:[%s695 + $0xb8] sm:$0xf]
        %v771 = vld [vmem:[%s695 + $0xbc] sm:$0xf]
        %v772 = vld [vmem:[%s695 + $0xc0] sm:$0xf]
        %v773 = vld [vmem:[%s695 + $0xc4] sm:$0xf]
        %v774 = vld [vmem:[%s695 + $0xc8] sm:$0xf]
        %v775 = vld [vmem:[%s695 + $0xcc] sm:$0xf]
        %v776 = vld [vmem:[%s695 + $0xd0] sm:$0xf]
        %v777 = vld [vmem:[%s695 + $0xd4] sm:$0xf]
        %v778 = vld [vmem:[%s695 + $0xd8] sm:$0xf]
        %v779 = vld [vmem:[%s695 + $0xdc] sm:$0xf]
        %v780 = vld [vmem:[%s695 + $0xe0] sm:$0xf]
        %v781 = vld [vmem:[%s695 + $0xe4] sm:$0xf]
        %v782 = vld [vmem:[%s695 + $0xe8] sm:$0xf]
        %v783 = vld [vmem:[%s695 + $0xec] sm:$0xf]
        %v784 = vld [vmem:[%s695 + $0xf0] sm:$0xf]
        %v785 = vld [vmem:[%s695 + $0xf4] sm:$0xf]
        %v786 = vld [vmem:[%s695 + $0xf8] sm:$0xf]
        %v787 = vld [vmem:[%s695 + $0xfc] sm:$0xf]
        %v788 = vld [vmem:[%s695 + $0x100] sm:$0xf]
        %v789 = vld [vmem:[%s695 + $0x104] sm:$0xf]
        %v790 = vld [vmem:[%s695 + $0x108] sm:$0xf]
        %v791 = vld [vmem:[%s695 + $0x10c] sm:$0xf]
        %v792 = vld [vmem:[%s695 + $0x110] sm:$0xf]
        %v793 = vld [vmem:[%s695 + $0x114] sm:$0xf]
        %v794 = vld [vmem:[%s695 + $0x118] sm:$0xf]
        %v795 = vld [vmem:[%s695 + $0x11c] sm:$0xf]
        %v796 = vld [vmem:[%s695 + $0x120] sm:$0xf]
        %v797 = vld [vmem:[%s695 + $0x124] sm:$0xf]
        %v798 = vld [vmem:[%s695 + $0x128] sm:$0xf]
        %v799 = vld [vmem:[%s695 + $0x12c] sm:$0xf]
        %v800 = vld [vmem:[%s695 + $0x130] sm:$0xf]
        %v801 = vld [vmem:[%s695 + $0x134] sm:$0xf]
        %v802 = vld [vmem:[%s695 + $0x138] sm:$0xf]
        %v803 = vld [vmem:[%s695 + $0x13c] sm:$0xf]
        %v804 = vld [vmem:[%s695 + $0x140] sm:$0xf]
        %v805 = vld [vmem:[%s695 + $0x144] sm:$0xf]
        %v806 = vld [vmem:[%s695 + $0x148] sm:$0xf]
        %v807 = vld [vmem:[%s695 + $0x14c] sm:$0xf]
        %v808 = vld [vmem:[%s695 + $0x150] sm:$0xf]
        %v809 = vld [vmem:[%s695 + $0x154] sm:$0xf]
        %v810 = vld [vmem:[%s695 + $0x158] sm:$0xf]
        %v811 = vld [vmem:[%s695 + $0x15c] sm:$0xf]
        %v812 = vld [vmem:[%s695 + $0x160] sm:$0xf]
        %v813 = vld [vmem:[%s695 + $0x164] sm:$0xf]
        %v814 = vld [vmem:[%s695 + $0x168] sm:$0xf]
        %v815 = vld [vmem:[%s695 + $0x16c] sm:$0xf]
        %v816 = vld [vmem:[%s695 + $0x170] sm:$0xf]
        %v817 = vld [vmem:[%s695 + $0x174] sm:$0xf]
        %v818 = vld [vmem:[%s695 + $0x178] sm:$0xf]
        %v819 = vld [vmem:[%s695 + $0x17c] sm:$0xf]
        %v820 = vld [vmem:[%s695 + $0x180] sm:$0xf]
        %v821 = vld [vmem:[%s695 + $0x184] sm:$0xf]
        %v822 = vld [vmem:[%s695 + $0x188] sm:$0xf]
        %v823 = vld [vmem:[%s695 + $0x18c] sm:$0xf]
        %v824 = vld [vmem:[%s695 + $0x190] sm:$0xf]
        %v825 = vld [vmem:[%s695 + $0x194] sm:$0xf]
        %v826 = vld [vmem:[%s695 + $0x198] sm:$0xf]
        %v827 = vld [vmem:[%s695 + $0x19c] sm:$0xf]
        %v828 = vld [vmem:[%s695 + $0x1a0] sm:$0xf]
        %v829 = vld [vmem:[%s695 + $0x1a4] sm:$0xf]
        %v830 = vld [vmem:[%s695 + $0x1a8] sm:$0xf]
        %v831 = vld [vmem:[%s695 + $0x1ac] sm:$0xf]
        %v832 = vld [vmem:[%s695 + $0x1b0] sm:$0xf]
        %v833 = vld [vmem:[%s695 + $0x1b4] sm:$0xf]
        %v834 = vld [vmem:[%s695 + $0x1b8] sm:$0xf]
        %v835 = vld [vmem:[%s695 + $0x1bc] sm:$0xf]
        %v836 = vld [vmem:[%s695 + $0x1c0] sm:$0xf]
        %v837 = vld [vmem:[%s695 + $0x1c4] sm:$0xf]
        %v838 = vld [vmem:[%s695 + $0x1c8] sm:$0xf]
        %v839 = vld [vmem:[%s695 + $0x1cc] sm:$0xf]
        %v840 = vld [vmem:[%s695 + $0x1d0] sm:$0xf]
        %v841 = vld [vmem:[%s695 + $0x1d4] sm:$0xf]
        %v842 = vld [vmem:[%s695 + $0x1d8] sm:$0xf]
        %v843 = vld [vmem:[%s695 + $0x1dc] sm:$0xf]
        %v844 = vld [vmem:[%s695 + $0x1e0] sm:$0xf]
        %v845 = vld [vmem:[%s695 + $0x1e4] sm:$0xf]
        %v846 = vld [vmem:[%s695 + $0x1e8] sm:$0xf]
        %v847 = vld [vmem:[%s695 + $0x1ec] sm:$0xf]
        %v848 = vld [vmem:[%s695 + $0x1f0] sm:$0xf]
        %v849 = vld [vmem:[%s695 + $0x1f4] sm:$0xf]
        %v850 = vld [vmem:[%s695 + $0x1f8] sm:$0xf]
        %v851 = vld [vmem:[%s695 + $0x1fc] sm:$0xf]
        %v852 = vld [vmem:[%s1] sm:$0xf]
        %v853 = vld [vmem:[%s1 + $0x4] sm:$0xf]
        %v854 = vld [vmem:[%s1 + $0x8] sm:$0xf]
        %v855 = vld [vmem:[%s1 + $0xc] sm:$0xf]
        %v856 = vld [vmem:[%s1 + $0x10] sm:$0xf]
        %v857 = vld [vmem:[%s1 + $0x14] sm:$0xf]
        %v858 = vld [vmem:[%s1 + $0x18] sm:$0xf]
        %v859 = vld [vmem:[%s1 + $0x1c] sm:$0xf]
        %v860 = vld [vmem:[%s1 + $0x20] sm:$0xf]
        %v861 = vld [vmem:[%s1 + $0x24] sm:$0xf]
        %v862 = vld [vmem:[%s1 + $0x28] sm:$0xf]
        %v863 = vld [vmem:[%s1 + $0x2c] sm:$0xf]
        %v864 = vld [vmem:[%s1 + $0x30] sm:$0xf]
        %v865 = vld [vmem:[%s1 + $0x34] sm:$0xf]
        %v866 = vld [vmem:[%s1 + $0x38] sm:$0xf]
        %v867 = vld [vmem:[%s1 + $0x3c] sm:$0xf]
        %v996 = vunpack.c.l.b16 %v724
        %v997 = vunpack.c.l.b16 %v725
        %v998 = vunpack.c.l.b16 %v726
        %v999 = vunpack.c.l.b16 %v727
        %v1000 = vunpack.c.l.b16 %v728
        %v1001 = vunpack.c.l.b16 %v729
        %v1002 = vunpack.c.l.b16 %v730
        %v1003 = vunpack.c.l.b16 %v731
        %v1004 = vunpack.c.l.b16 %v732
        %v1005 = vunpack.c.l.b16 %v733
        %v1006 = vunpack.c.l.b16 %v734
        %v1007 = vunpack.c.l.b16 %v735
        %v1008 = vunpack.c.l.b16 %v736
        %v1009 = vunpack.c.l.b16 %v737
        %v1010 = vunpack.c.l.b16 %v738
        %v1011 = vunpack.c.l.b16 %v739
        %v1012 = vunpack.c.l.b16 %v740
        %v1013 = vunpack.c.l.b16 %v741
        %v1014 = vunpack.c.l.b16 %v742
        %v1015 = vunpack.c.l.b16 %v743
        %v1016 = vunpack.c.l.b16 %v744
        %v1017 = vunpack.c.l.b16 %v745
        %v1018 = vunpack.c.l.b16 %v746
        %v1019 = vunpack.c.l.b16 %v747
        %v1020 = vunpack.c.l.b16 %v748
        %v1021 = vunpack.c.l.b16 %v749
        %v1022 = vunpack.c.l.b16 %v750
        %v1023 = vunpack.c.l.b16 %v751
        %v1024 = vunpack.c.l.b16 %v752
        %v1025 = vunpack.c.l.b16 %v753
        %v1026 = vunpack.c.l.b16 %v754
        %v1027 = vunpack.c.l.b16 %v755
        %v1028 = vunpack.c.l.b16 %v756
        %v1029 = vunpack.c.l.b16 %v757
        %v1030 = vunpack.c.l.b16 %v758
        %v1031 = vunpack.c.l.b16 %v759
        %v1032 = vunpack.c.l.b16 %v760
        %v1033 = vunpack.c.l.b16 %v761
        %v1034 = vunpack.c.l.b16 %v762
        %v1035 = vunpack.c.l.b16 %v763
        %v1036 = vunpack.c.l.b16 %v764
        %v1037 = vunpack.c.l.b16 %v765
        %v1038 = vunpack.c.l.b16 %v766
        %v1039 = vunpack.c.l.b16 %v767
        %v1040 = vunpack.c.l.b16 %v768
        %v1041 = vunpack.c.l.b16 %v769
        %v1042 = vunpack.c.l.b16 %v770
        %v1043 = vunpack.c.l.b16 %v771
        %v1044 = vunpack.c.l.b16 %v772
        %v1045 = vunpack.c.l.b16 %v773
        %v1046 = vunpack.c.l.b16 %v774
        %v1047 = vunpack.c.l.b16 %v775
        %v1048 = vunpack.c.l.b16 %v776
        %v1049 = vunpack.c.l.b16 %v777
        %v1050 = vunpack.c.l.b16 %v778
        %v1051 = vunpack.c.l.b16 %v779
        %v1052 = vunpack.c.l.b16 %v780
        %v1053 = vunpack.c.l.b16 %v781
        %v1054 = vunpack.c.l.b16 %v782
        %v1055 = vunpack.c.l.b16 %v783
        %v1056 = vunpack.c.l.b16 %v784
        %v1057 = vunpack.c.l.b16 %v785
        %v1058 = vunpack.c.l.b16 %v786
        %v1059 = vunpack.c.l.b16 %v787
        %v1060 = vunpack.c.l.b16 %v788
        %v1061 = vunpack.c.l.b16 %v789
        %v1062 = vunpack.c.l.b16 %v790
        %v1063 = vunpack.c.l.b16 %v791
        %v1064 = vunpack.c.l.b16 %v792
        %v1065 = vunpack.c.l.b16 %v793
        %v1066 = vunpack.c.l.b16 %v794
        %v1067 = vunpack.c.l.b16 %v795
        %v1068 = vunpack.c.l.b16 %v796
        %v1069 = vunpack.c.l.b16 %v797
        %v1070 = vunpack.c.l.b16 %v798
        %v1071 = vunpack.c.l.b16 %v799
        %v1072 = vunpack.c.l.b16 %v800
        %v1073 = vunpack.c.l.b16 %v801
        %v1074 = vunpack.c.l.b16 %v802
        %v1075 = vunpack.c.l.b16 %v803
        %v1076 = vunpack.c.l.b16 %v804
        %v1077 = vunpack.c.l.b16 %v805
        %v1078 = vunpack.c.l.b16 %v806
        %v1079 = vunpack.c.l.b16 %v807
        %v1080 = vunpack.c.l.b16 %v808
        %v1081 = vunpack.c.l.b16 %v809
        %v1082 = vunpack.c.l.b16 %v810
        %v1083 = vunpack.c.l.b16 %v811
        %v1084 = vunpack.c.l.b16 %v812
        %v1085 = vunpack.c.l.b16 %v813
        %v1086 = vunpack.c.l.b16 %v814
        %v1087 = vunpack.c.l.b16 %v815
        %v1088 = vunpack.c.l.b16 %v816
        %v1089 = vunpack.c.l.b16 %v817
        %v1090 = vunpack.c.l.b16 %v818
        %v1091 = vunpack.c.l.b16 %v819
        %v1092 = vunpack.c.l.b16 %v820
        %v1093 = vunpack.c.l.b16 %v821
        %v1094 = vunpack.c.l.b16 %v822
        %v1095 = vunpack.c.l.b16 %v823
        %v1096 = vunpack.c.l.b16 %v824
        %v1097 = vunpack.c.l.b16 %v825
        %v1098 = vunpack.c.l.b16 %v826
        %v1099 = vunpack.c.l.b16 %v827
        %v1100 = vunpack.c.l.b16 %v828
        %v1101 = vunpack.c.l.b16 %v829
        %v1102 = vunpack.c.l.b16 %v830
        %v1103 = vunpack.c.l.b16 %v831
        %v1104 = vunpack.c.l.b16 %v832
        %v1105 = vunpack.c.l.b16 %v833
        %v1106 = vunpack.c.l.b16 %v834
        %v1107 = vunpack.c.l.b16 %v835
        %v1108 = vunpack.c.l.b16 %v836
        %v1109 = vunpack.c.l.b16 %v837
        %v1110 = vunpack.c.l.b16 %v838
        %v1111 = vunpack.c.l.b16 %v839
        %v1112 = vunpack.c.l.b16 %v840
        %v1113 = vunpack.c.l.b16 %v841
        %v1114 = vunpack.c.l.b16 %v842
        %v1115 = vunpack.c.l.b16 %v843
        %v1116 = vunpack.c.l.b16 %v844
        %v1117 = vunpack.c.l.b16 %v845
        %v1118 = vunpack.c.l.b16 %v846
        %v1119 = vunpack.c.l.b16 %v847
        %v1120 = vunpack.c.l.b16 %v848
        %v1121 = vunpack.c.l.b16 %v849
        %v1122 = vunpack.c.l.b16 %v850
        %v1123 = vunpack.c.l.b16 %v851
        %v1124 = vpack.c.b16 %v997, %v996
        %v1125 = vpack.c.b16 %v999, %v998
        %v1126 = vpack.c.b16 %v1001, %v1000
        %v1127 = vpack.c.b16 %v1003, %v1002
        %v1128 = vpack.c.b16 %v1005, %v1004
        %v1129 = vpack.c.b16 %v1007, %v1006
        %v1130 = vpack.c.b16 %v1009, %v1008
        %v1131 = vpack.c.b16 %v1011, %v1010
        %v1132 = vpack.c.b16 %v1013, %v1012
        %v1133 = vpack.c.b16 %v1015, %v1014
        %v1134 = vpack.c.b16 %v1017, %v1016
        %v1135 = vpack.c.b16 %v1019, %v1018
        %v1136 = vpack.c.b16 %v1021, %v1020
        %v1137 = vpack.c.b16 %v1023, %v1022
        %v1138 = vpack.c.b16 %v1025, %v1024
        %v1139 = vpack.c.b16 %v1027, %v1026
        %v1140 = vpack.c.b16 %v1029, %v1028
        %v1141 = vpack.c.b16 %v1031, %v1030
        %v1142 = vpack.c.b16 %v1033, %v1032
        %v1143 = vpack.c.b16 %v1035, %v1034
        %v1144 = vpack.c.b16 %v1037, %v1036
        %v1145 = vpack.c.b16 %v1039, %v1038
        %v1146 = vpack.c.b16 %v1041, %v1040
        %v1147 = vpack.c.b16 %v1043, %v1042
        %v1148 = vpack.c.b16 %v1045, %v1044
        %v1149 = vpack.c.b16 %v1047, %v1046
        %v1150 = vpack.c.b16 %v1049, %v1048
        %v1151 = vpack.c.b16 %v1051, %v1050
        %v1152 = vpack.c.b16 %v1053, %v1052
        %v1153 = vpack.c.b16 %v1055, %v1054
        %v1154 = vpack.c.b16 %v1057, %v1056
        %v1155 = vpack.c.b16 %v1059, %v1058
        %v1156 = vpack.c.b16 %v1061, %v1060
        %v1157 = vpack.c.b16 %v1063, %v1062
        %v1158 = vpack.c.b16 %v1065, %v1064
        %v1159 = vpack.c.b16 %v1067, %v1066
        %v1160 = vpack.c.b16 %v1069, %v1068
        %v1161 = vpack.c.b16 %v1071, %v1070
        %v1162 = vpack.c.b16 %v1073, %v1072
        %v1163 = vpack.c.b16 %v1075, %v1074
        %v1164 = vpack.c.b16 %v1077, %v1076
        %v1165 = vpack.c.b16 %v1079, %v1078
        %v1166 = vpack.c.b16 %v1081, %v1080
        %v1167 = vpack.c.b16 %v1083, %v1082
        %v1168 = vpack.c.b16 %v1085, %v1084
        %v1169 = vpack.c.b16 %v1087, %v1086
        %v1170 = vpack.c.b16 %v1089, %v1088
        %v1171 = vpack.c.b16 %v1091, %v1090
        %v1172 = vpack.c.b16 %v1093, %v1092
        %v1173 = vpack.c.b16 %v1095, %v1094
        %v1174 = vpack.c.b16 %v1097, %v1096
        %v1175 = vpack.c.b16 %v1099, %v1098
        %v1176 = vpack.c.b16 %v1101, %v1100
        %v1177 = vpack.c.b16 %v1103, %v1102
        %v1178 = vpack.c.b16 %v1105, %v1104
        %v1179 = vpack.c.b16 %v1107, %v1106
        %v1180 = vpack.c.b16 %v1109, %v1108
        %v1181 = vpack.c.b16 %v1111, %v1110
        %v1182 = vpack.c.b16 %v1113, %v1112
        %v1183 = vpack.c.b16 %v1115, %v1114
        %v1184 = vpack.c.b16 %v1117, %v1116
        %v1185 = vpack.c.b16 %v1119, %v1118
        %v1186 = vpack.c.b16 %v1121, %v1120
        %v1187 = vpack.c.b16 %v1123, %v1122
        %v1268 = vunpack.c.l.b16 %v852
        %v1269 = vunpack.c.l.b16 %v853
        %v1270 = vunpack.c.l.b16 %v854
        %v1271 = vunpack.c.l.b16 %v855
        %v1272 = vunpack.c.l.b16 %v856
        %v1273 = vunpack.c.l.b16 %v857
        %v1274 = vunpack.c.l.b16 %v858
        %v1275 = vunpack.c.l.b16 %v859
        %v1276 = vunpack.c.l.b16 %v860
        %v1277 = vunpack.c.l.b16 %v861
        %v1278 = vunpack.c.l.b16 %v862
        %v1279 = vunpack.c.l.b16 %v863
        %v1280 = vunpack.c.l.b16 %v864
        %v1281 = vunpack.c.l.b16 %v865
        %v1282 = vunpack.c.l.b16 %v866
        %v1283 = vunpack.c.l.b16 %v867
        %v1284 = vpack.c.b16 %v1269, %v1268
        %v1285 = vpack.c.b16 %v1271, %v1270
        %v1286 = vpack.c.b16 %v1273, %v1272
        %v1287 = vpack.c.b16 %v1275, %v1274
        %v1288 = vpack.c.b16 %v1277, %v1276
        %v1289 = vpack.c.b16 %v1279, %v1278
        %v1290 = vpack.c.b16 %v1281, %v1280
        %v1291 = vpack.c.b16 %v1283, %v1282
        %1300 = vmatprep.subr.bf16.mxu0 0
        %1301 = vmatpush1.bf16.msra.mxu0 %v1284
        %1302 = vmatprep.subr.bf16.mxu0 0
        %1303 = vmatpush1.bf16.msra.mxu0 %v1285
        %1304 = vmatprep.subr.bf16.mxu0 0
        %1305 = vmatpush1.bf16.msra.mxu0 %v1286
        %1306 = vmatprep.subr.bf16.mxu0 0
        %1307 = vmatpush1.bf16.msra.mxu0 %v1287
        %1308 = vmatprep.subr.bf16.mxu0 0
        %1309 = vmatpush1.bf16.msra.mxu0 %v1288
        %1310 = vmatprep.subr.bf16.mxu0 0
        %1311 = vmatpush1.bf16.msra.mxu0 %v1289
        %1312 = vmatprep.subr.bf16.mxu0 0
        %1313 = vmatpush1.bf16.msra.mxu0 %v1290
        %1314 = vmatprep.subr.bf16.mxu0 0
        %1315 = vmatpush1.bf16.msra.mxu0 %v1291
        %1316 = vmatprep.subr.bf16.mxu0 0
        %1317 = vmatpush1.bf16.msra.mxu0 0
        %1318 = vmatprep.subr.bf16.mxu0 0
        %1319 = vmatpush1.bf16.msra.mxu0 0
        %1320 = vmatprep.subr.bf16.mxu0 0
        %1321 = vmatpush1.bf16.msra.mxu0 0
        %1322 = vmatprep.subr.bf16.mxu0 0
        %1323 = vmatpush1.bf16.msra.mxu0 0
        %1324 = vmatprep.subr.bf16.mxu0 0
        %1325 = vmatpush1.bf16.msra.mxu0 0
        %1326 = vmatprep.subr.bf16.mxu0 0
        %1327 = vmatpush1.bf16.msra.mxu0 0
        %1328 = vmatprep.subr.bf16.mxu0 0
        %1329 = vmatpush1.bf16.msra.mxu0 0
        %1330 = vmatprep.subr.bf16.mxu0 0
        %1331 = vmatpush1.bf16.msra.mxu0 0
        %1332 = vmatprep.mubr.bf16.mxu0 0
        %1333 = vmatmul.mubr.bf16.gmra.mrb[0].mxu0 %v1124
        %v1334 = vpop.f32.mrb[0].mxu0
        %v1335 = vadd.f32 0.0, %v1334
        %v1336 = vpop.f32.mrb[0].mxu0
        %v1337 = vpop.f32.mrb[0].mxu0
        %v1338 = vadd.f32 0.0, %v1337
        %v1339 = vpop.f32.mrb[0].mxu0
        %1340 = vmatprep.mubr.bf16.mxu0 0
        %1341 = vmatmul.mubr.bf16.gmra.mrb[0].mxu0 %v1125
        %v1342 = vpop.f32.mrb[0].mxu0
        %v1343 = vadd.f32 0.0, %v1342
        %v1344 = vpop.f32.mrb[0].mxu0
        %v1345 = vpop.f32.mrb[0].mxu0
        %v1346 = vadd.f32 0.0, %v1345
        %v1347 = vpop.f32.mrb[0].mxu0
        %1348 = vmatprep.mubr.bf16.mxu0 0
        %1349 = vmatmul.mubr.bf16.gmra.mrb[0].mxu0 %v1126
        %v1350 = vpop.f32.mrb[0].mxu0
        %v1351 = vadd.f32 0.0, %v1350
        %v1352 = vpop.f32.mrb[0].mxu0
        %v1353 = vpop.f32.mrb[0].mxu0
        %v1354 = vadd.f32 0.0, %v1353
        %v1355 = vpop.f32.mrb[0].mxu0
        %1356 = vmatprep.mubr.bf16.mxu0 0
        %1357 = vmatmul.mubr.bf16.gmra.mrb[0].mxu0 %v1127
        %v1358 = vpop.f32.mrb[0].mxu0
        %v1359 = vadd.f32 0.0, %v1358
        %v1360 = vpop.f32.mrb[0].mxu0
        %v1361 = vpop.f32.mrb[0].mxu0
        %v1362 = vadd.f32 0.0, %v1361
        %v1363 = vpop.f32.mrb[0].mxu0
        %1364 = vmatprep.mubr.bf16.mxu0 0
        %1365 = vmatmul.mubr.bf16.gmra.mrb[0].mxu0 %v1128
        %v1366 = vpop.f32.mrb[0].mxu0
        %v1367 = vadd.f32 0.0, %v1366
        %v1368 = vpop.f32.mrb[0].mxu0
        %v1369 = vpop.f32.mrb[0].mxu0
        %v1370 = vadd.f32 0.0, %v1369
        %v1371 = vpop.f32.mrb[0].mxu0
        %1372 = vmatprep.mubr.bf16.mxu0 0
        %1373 = vmatmul.mubr.bf16.gmra.mrb[0].mxu0 %v1129
        %v1374 = vpop.f32.mrb[0].mxu0
        %v1375 = vadd.f32 0.0, %v1374
        %v1376 = vpop.f32.mrb[0].mxu0
        %v1377 = vpop.f32.mrb[0].mxu0
        %v1378 = vadd.f32 0.0, %v1377
        %v1379 = vpop.f32.mrb[0].mxu0
        %1380 = vmatprep.mubr.bf16.mxu0 0
        %1381 = vmatmul.mubr.bf16.gmra.mrb[0].mxu0 %v1130
        %v1382 = vpop.f32.mrb[0].mxu0
        %v1383 = vadd.f32 0.0, %v1382
        %v1384 = vpop.f32.mrb[0].mxu0
        %v1385 = vpop.f32.mrb[0].mxu0
        %v1386 = vadd.f32 0.0, %v1385
        %v1387 = vpop.f32.mrb[0].mxu0
        %1388 = vmatprep.mubr.bf16.mxu0 0
        %1389 = vmatmul.mubr.bf16.gmra.mrb[0].mxu0 %v1131
        %v1390 = vpop.f32.mrb[0].mxu0
        %v1391 = vadd.f32 0.0, %v1390
        %v1392 = vpop.f32.mrb[0].mxu0
        %v1393 = vpop.f32.mrb[0].mxu0
        %v1394 = vadd.f32 0.0, %v1393
        %v1395 = vpop.f32.mrb[0].mxu0
        %1396 = vmatprep.mubr.bf16.mxu0 0
        %1397 = vmatmul.mubr.bf16.gmra.mrb[0].mxu0 %v1132
        %v1398 = vpop.f32.mrb[0].mxu0
        %v1399 = vadd.f32 0.0, %v1398
        %v1400 = vpop.f32.mrb[0].mxu0
        %v1401 = vpop.f32.mrb[0].mxu0
        %v1402 = vadd.f32 0.0, %v1401
        %v1403 = vpop.f32.mrb[0].mxu0
        %1404 = vmatprep.mubr.bf16.mxu0 0
        %1405 = vmatmul.mubr.bf16.gmra.mrb[0].mxu0 %v1133
        %v1406 = vpop.f32.mrb[0].mxu0
        %v1407 = vadd.f32 0.0, %v1406
        %v1408 = vpop.f32.mrb[0].mxu0
        %v1409 = vpop.f32.mrb[0].mxu0
        %v1410 = vadd.f32 0.0, %v1409
        %v1411 = vpop.f32.mrb[0].mxu0
        %1412 = vmatprep.mubr.bf16.mxu0 0
        %1413 = vmatmul.mubr.bf16.gmra.mrb[0].mxu0 %v1134
        %v1414 = vpop.f32.mrb[0].mxu0
        %v1415 = vadd.f32 0.0, %v1414
        %v1416 = vpop.f32.mrb[0].mxu0
        %v1417 = vpop.f32.mrb[0].mxu0
        %v1418 = vadd.f32 0.0, %v1417
        %v1419 = vpop.f32.mrb[0].mxu0
        %1420 = vmatprep.mubr.bf16.mxu0 0
        %1421 = vmatmul.mubr.bf16.gmra.mrb[0].mxu0 %v1135
        %v1422 = vpop.f32.mrb[0].mxu0
        %v1423 = vadd.f32 0.0, %v1422
        %v1424 = vpop.f32.mrb[0].mxu0
        %v1425 = vpop.f32.mrb[0].mxu0
        %v1426 = vadd.f32 0.0, %v1425
        %v1427 = vpop.f32.mrb[0].mxu0
        %1428 = vmatprep.mubr.bf16.mxu0 0
        %1429 = vmatmul.mubr.bf16.gmra.mrb[0].mxu0 %v1136
        %v1430 = vpop.f32.mrb[0].mxu0
        %v1431 = vadd.f32 0.0, %v1430
        %v1432 = vpop.f32.mrb[0].mxu0
        %v1433 = vpop.f32.mrb[0].mxu0
        %v1434 = vadd.f32 0.0, %v1433
        %v1435 = vpop.f32.mrb[0].mxu0
        %1436 = vmatprep.mubr.bf16.mxu0 0
        %1437 = vmatmul.mubr.bf16.gmra.mrb[0].mxu0 %v1137
        %v1438 = vpop.f32.mrb[0].mxu0
        %v1439 = vadd.f32 0.0, %v1438
        %v1440 = vpop.f32.mrb[0].mxu0
        %v1441 = vpop.f32.mrb[0].mxu0
        %v1442 = vadd.f32 0.0, %v1441
        %v1443 = vpop.f32.mrb[0].mxu0
        %1444 = vmatprep.mubr.bf16.mxu0 0
        %1445 = vmatmul.mubr.bf16.gmra.mrb[0].mxu0 %v1138
        %v1446 = vpop.f32.mrb[0].mxu0
        %v1447 = vadd.f32 0.0, %v1446
        %v1448 = vpop.f32.mrb[0].mxu0
        %v1449 = vpop.f32.mrb[0].mxu0
        %v1450 = vadd.f32 0.0, %v1449
        %v1451 = vpop.f32.mrb[0].mxu0
        %1452 = vmatprep.mubr.bf16.mxu0 0
        %1453 = vmatmul.mubr.bf16.gmra.mrb[0].mxu0 %v1139
        %v1454 = vpop.f32.mrb[0].mxu0
        %v1455 = vadd.f32 0.0, %v1454
        %v1456 = vpop.f32.mrb[0].mxu0
        %v1457 = vpop.f32.mrb[0].mxu0
        %v1458 = vadd.f32 0.0, %v1457
        %v1459 = vpop.f32.mrb[0].mxu0
        %1460 = vmatprep.mubr.bf16.mxu0 0
        %1461 = vmatmul.mubr.bf16.gmra.mrb[0].mxu0 %v1140
        %v1462 = vpop.f32.mrb[0].mxu0
        %v1463 = vadd.f32 0.0, %v1462
        %v1464 = vpop.f32.mrb[0].mxu0
        %v1465 = vpop.f32.mrb[0].mxu0
        %v1466 = vadd.f32 0.0, %v1465
        %v1467 = vpop.f32.mrb[0].mxu0
        %1468 = vmatprep.mubr.bf16.mxu0 0
        %1469 = vmatmul.mubr.bf16.gmra.mrb[0].mxu0 %v1141
        %v1470 = vpop.f32.mrb[0].mxu0
        %v1471 = vadd.f32 0.0, %v1470
        %v1472 = vpop.f32.mrb[0].mxu0
        %v1473 = vpop.f32.mrb[0].mxu0
        %v1474 = vadd.f32 0.0, %v1473
        %v1475 = vpop.f32.mrb[0].mxu0
        %1476 = vmatprep.mubr.bf16.mxu0 0
        %1477 = vmatmul.mubr.bf16.gmra.mrb[0].mxu0 %v1142
        %v1478 = vpop.f32.mrb[0].mxu0
        %v1479 = vadd.f32 0.0, %v1478
        %v1480 = vpop.f32.mrb[0].mxu0
        %v1481 = vpop.f32.mrb[0].mxu0
        %v1482 = vadd.f32 0.0, %v1481
        %v1483 = vpop.f32.mrb[0].mxu0
        %1484 = vmatprep.mubr.bf16.mxu0 0
        %1485 = vmatmul.mubr.bf16.gmra.mrb[0].mxu0 %v1143
        %v1486 = vpop.f32.mrb[0].mxu0
        %v1487 = vadd.f32 0.0, %v1486
        %v1488 = vpop.f32.mrb[0].mxu0
        %v1489 = vpop.f32.mrb[0].mxu0
        %v1490 = vadd.f32 0.0, %v1489
        %v1491 = vpop.f32.mrb[0].mxu0
        %1492 = vmatprep.mubr.bf16.mxu0 0
        %1493 = vmatmul.mubr.bf16.gmra.mrb[0].mxu0 %v1144
        %v1494 = vpop.f32.mrb[0].mxu0
        %v1495 = vadd.f32 0.0, %v1494
        %v1496 = vpop.f32.mrb[0].mxu0
        %v1497 = vpop.f32.mrb[0].mxu0
        %v1498 = vadd.f32 0.0, %v1497
        %v1499 = vpop.f32.mrb[0].mxu0
        %1500 = vmatprep.mubr.bf16.mxu0 0
        %1501 = vmatmul.mubr.bf16.gmra.mrb[0].mxu0 %v1145
        %v1502 = vpop.f32.mrb[0].mxu0
        %v1503 = vadd.f32 0.0, %v1502
        %v1504 = vpop.f32.mrb[0].mxu0
        %v1505 = vpop.f32.mrb[0].mxu0
        %v1506 = vadd.f32 0.0, %v1505
        %v1507 = vpop.f32.mrb[0].mxu0
        %1508 = vmatprep.mubr.bf16.mxu0 0
        %1509 = vmatmul.mubr.bf16.gmra.mrb[0].mxu0 %v1146
        %v1510 = vpop.f32.mrb[0].mxu0
        %v1511 = vadd.f32 0.0, %v1510
        %v1512 = vpop.f32.mrb[0].mxu0
        %v1513 = vpop.f32.mrb[0].mxu0
        %v1514 = vadd.f32 0.0, %v1513
        %v1515 = vpop.f32.mrb[0].mxu0
        %1516 = vmatprep.mubr.bf16.mxu0 0
        %1517 = vmatmul.mubr.bf16.gmra.mrb[0].mxu0 %v1147
        %v1518 = vpop.f32.mrb[0].mxu0
        %v1519 = vadd.f32 0.0, %v1518
        %v1520 = vpop.f32.mrb[0].mxu0
        %v1521 = vpop.f32.mrb[0].mxu0
        %v1522 = vadd.f32 0.0, %v1521
        %v1523 = vpop.f32.mrb[0].mxu0
        %1524 = vmatprep.mubr.bf16.mxu0 0
        %1525 = vmatmul.mubr.bf16.gmra.mrb[0].mxu0 %v1148
        %v1526 = vpop.f32.mrb[0].mxu0
        %v1527 = vadd.f32 0.0, %v1526
        %v1528 = vpop.f32.mrb[0].mxu0
        %v1529 = vpop.f32.mrb[0].mxu0
        %v1530 = vadd.f32 0.0, %v1529
        %v1531 = vpop.f32.mrb[0].mxu0
        %1532 = vmatprep.mubr.bf16.mxu0 0
        %1533 = vmatmul.mubr.bf16.gmra.mrb[0].mxu0 %v1149
        %v1534 = vpop.f32.mrb[0].mxu0
        %v1535 = vadd.f32 0.0, %v1534
        %v1536 = vpop.f32.mrb[0].mxu0
        %v1537 = vpop.f32.mrb[0].mxu0
        %v1538 = vadd.f32 0.0, %v1537
        %v1539 = vpop.f32.mrb[0].mxu0
        %1540 = vmatprep.mubr.bf16.mxu0 0
        %1541 = vmatmul.mubr.bf16.gmra.mrb[0].mxu0 %v1150
        %v1542 = vpop.f32.mrb[0].mxu0
        %v1543 = vadd.f32 0.0, %v1542
        %v1544 = vpop.f32.mrb[0].mxu0
        %v1545 = vpop.f32.mrb[0].mxu0
        %v1546 = vadd.f32 0.0, %v1545
        %v1547 = vpop.f32.mrb[0].mxu0
        %1548 = vmatprep.mubr.bf16.mxu0 0
        %1549 = vmatmul.mubr.bf16.gmra.mrb[0].mxu0 %v1151
        %v1550 = vpop.f32.mrb[0].mxu0
        %v1551 = vadd.f32 0.0, %v1550
        %v1552 = vpop.f32.mrb[0].mxu0
        %v1553 = vpop.f32.mrb[0].mxu0
        %v1554 = vadd.f32 0.0, %v1553
        %v1555 = vpop.f32.mrb[0].mxu0
        %1556 = vmatprep.mubr.bf16.mxu0 0
        %1557 = vmatmul.mubr.bf16.gmra.mrb[0].mxu0 %v1152
        %v1558 = vpop.f32.mrb[0].mxu0
        %v1559 = vadd.f32 0.0, %v1558
        %v1560 = vpop.f32.mrb[0].mxu0
        %v1561 = vpop.f32.mrb[0].mxu0
        %v1562 = vadd.f32 0.0, %v1561
        %v1563 = vpop.f32.mrb[0].mxu0
        %1564 = vmatprep.mubr.bf16.mxu0 0
        %1565 = vmatmul.mubr.bf16.gmra.mrb[0].mxu0 %v1153
        %v1566 = vpop.f32.mrb[0].mxu0
        %v1567 = vadd.f32 0.0, %v1566
        %v1568 = vpop.f32.mrb[0].mxu0
        %v1569 = vpop.f32.mrb[0].mxu0
        %v1570 = vadd.f32 0.0, %v1569
        %v1571 = vpop.f32.mrb[0].mxu0
        %1572 = vmatprep.mubr.bf16.mxu0 0
        %1573 = vmatmul.mubr.bf16.gmra.mrb[0].mxu0 %v1154
        %v1574 = vpop.f32.mrb[0].mxu0
        %v1575 = vadd.f32 0.0, %v1574
        %v1576 = vpop.f32.mrb[0].mxu0
        %v1577 = vpop.f32.mrb[0].mxu0
        %v1578 = vadd.f32 0.0, %v1577
        %v1579 = vpop.f32.mrb[0].mxu0
        %1580 = vmatprep.mubr.bf16.mxu0 0
        %1581 = vmatmul.mubr.bf16.gmra.mrb[0].mxu0 %v1155
        %v1582 = vpop.f32.mrb[0].mxu0
        %v1583 = vadd.f32 0.0, %v1582
        %v1584 = vpop.f32.mrb[0].mxu0
        %v1585 = vpop.f32.mrb[0].mxu0
        %v1586 = vadd.f32 0.0, %v1585
        %v1587 = vpop.f32.mrb[0].mxu0
        %1588 = vmatprep.mubr.bf16.mxu0 0
        %1589 = vmatmul.mubr.bf16.gmra.mrb[0].mxu0 %v1156
        %v1590 = vpop.f32.mrb[0].mxu0
        %v1591 = vadd.f32 0.0, %v1590
        %v1592 = vpop.f32.mrb[0].mxu0
        %v1593 = vpop.f32.mrb[0].mxu0
        %v1594 = vadd.f32 0.0, %v1593
        %v1595 = vpop.f32.mrb[0].mxu0
        %1596 = vmatprep.mubr.bf16.mxu0 0
        %1597 = vmatmul.mubr.bf16.gmra.mrb[0].mxu0 %v1157
        %v1598 = vpop.f32.mrb[0].mxu0
        %v1599 = vadd.f32 0.0, %v1598
        %v1600 = vpop.f32.mrb[0].mxu0
        %v1601 = vpop.f32.mrb[0].mxu0
        %v1602 = vadd.f32 0.0, %v1601
        %v1603 = vpop.f32.mrb[0].mxu0
        %1604 = vmatprep.mubr.bf16.mxu0 0
        %1605 = vmatmul.mubr.bf16.gmra.mrb[0].mxu0 %v1158
        %v1606 = vpop.f32.mrb[0].mxu0
        %v1607 = vadd.f32 0.0, %v1606
        %v1608 = vpop.f32.mrb[0].mxu0
        %v1609 = vpop.f32.mrb[0].mxu0
        %v1610 = vadd.f32 0.0, %v1609
        %v1611 = vpop.f32.mrb[0].mxu0
        %1612 = vmatprep.mubr.bf16.mxu0 0
        %1613 = vmatmul.mubr.bf16.gmra.mrb[0].mxu0 %v1159
        %v1614 = vpop.f32.mrb[0].mxu0
        %v1615 = vadd.f32 0.0, %v1614
        %v1616 = vpop.f32.mrb[0].mxu0
        %v1617 = vpop.f32.mrb[0].mxu0
        %v1618 = vadd.f32 0.0, %v1617
        %v1619 = vpop.f32.mrb[0].mxu0
        %1620 = vmatprep.mubr.bf16.mxu0 0
        %1621 = vmatmul.mubr.bf16.gmra.mrb[0].mxu0 %v1160
        %v1622 = vpop.f32.mrb[0].mxu0
        %v1623 = vadd.f32 0.0, %v1622
        %v1624 = vpop.f32.mrb[0].mxu0
        %v1625 = vpop.f32.mrb[0].mxu0
        %v1626 = vadd.f32 0.0, %v1625
        %v1627 = vpop.f32.mrb[0].mxu0
        %1628 = vmatprep.mubr.bf16.mxu0 0
        %1629 = vmatmul.mubr.bf16.gmra.mrb[0].mxu0 %v1161
        %v1630 = vpop.f32.mrb[0].mxu0
        %v1631 = vadd.f32 0.0, %v1630
        %v1632 = vpop.f32.mrb[0].mxu0
        %v1633 = vpop.f32.mrb[0].mxu0
        %v1634 = vadd.f32 0.0, %v1633
        %v1635 = vpop.f32.mrb[0].mxu0
        %1636 = vmatprep.mubr.bf16.mxu0 0
        %1637 = vmatmul.mubr.bf16.gmra.mrb[0].mxu0 %v1162
        %v1638 = vpop.f32.mrb[0].mxu0
        %v1639 = vadd.f32 0.0, %v1638
        %v1640 = vpop.f32.mrb[0].mxu0
        %v1641 = vpop.f32.mrb[0].mxu0
        %v1642 = vadd.f32 0.0, %v1641
        %v1643 = vpop.f32.mrb[0].mxu0
        %1644 = vmatprep.mubr.bf16.mxu0 0
        %1645 = vmatmul.mubr.bf16.gmra.mrb[0].mxu0 %v1163
        %v1646 = vpop.f32.mrb[0].mxu0
        %v1647 = vadd.f32 0.0, %v1646
        %v1648 = vpop.f32.mrb[0].mxu0
        %v1649 = vpop.f32.mrb[0].mxu0
        %v1650 = vadd.f32 0.0, %v1649
        %v1651 = vpop.f32.mrb[0].mxu0
        %1652 = vmatprep.mubr.bf16.mxu0 0
        %1653 = vmatmul.mubr.bf16.gmra.mrb[0].mxu0 %v1164
        %v1654 = vpop.f32.mrb[0].mxu0
        %v1655 = vadd.f32 0.0, %v1654
        %v1656 = vpop.f32.mrb[0].mxu0
        %v1657 = vpop.f32.mrb[0].mxu0
        %v1658 = vadd.f32 0.0, %v1657
        %v1659 = vpop.f32.mrb[0].mxu0
        %1660 = vmatprep.mubr.bf16.mxu0 0
        %1661 = vmatmul.mubr.bf16.gmra.mrb[0].mxu0 %v1165
        %v1662 = vpop.f32.mrb[0].mxu0
        %v1663 = vadd.f32 0.0, %v1662
        %v1664 = vpop.f32.mrb[0].mxu0
        %v1665 = vpop.f32.mrb[0].mxu0
        %v1666 = vadd.f32 0.0, %v1665
        %v1667 = vpop.f32.mrb[0].mxu0
        %1668 = vmatprep.mubr.bf16.mxu0 0
        %1669 = vmatmul.mubr.bf16.gmra.mrb[0].mxu0 %v1166
        %v1670 = vpop.f32.mrb[0].mxu0
        %v1671 = vadd.f32 0.0, %v1670
        %v1672 = vpop.f32.mrb[0].mxu0
        %v1673 = vpop.f32.mrb[0].mxu0
        %v1674 = vadd.f32 0.0, %v1673
        %v1675 = vpop.f32.mrb[0].mxu0
        %1676 = vmatprep.mubr.bf16.mxu0 0
        %1677 = vmatmul.mubr.bf16.gmra.mrb[0].mxu0 %v1167
        %v1678 = vpop.f32.mrb[0].mxu0
        %v1679 = vadd.f32 0.0, %v1678
        %v1680 = vpop.f32.mrb[0].mxu0
        %v1681 = vpop.f32.mrb[0].mxu0
        %v1682 = vadd.f32 0.0, %v1681
        %v1683 = vpop.f32.mrb[0].mxu0
        %1684 = vmatprep.mubr.bf16.mxu0 0
        %1685 = vmatmul.mubr.bf16.gmra.mrb[0].mxu0 %v1168
        %v1686 = vpop.f32.mrb[0].mxu0
        %v1687 = vadd.f32 0.0, %v1686
        %v1688 = vpop.f32.mrb[0].mxu0
        %v1689 = vpop.f32.mrb[0].mxu0
        %v1690 = vadd.f32 0.0, %v1689
        %v1691 = vpop.f32.mrb[0].mxu0
        %1692 = vmatprep.mubr.bf16.mxu0 0
        %1693 = vmatmul.mubr.bf16.gmra.mrb[0].mxu0 %v1169
        %v1694 = vpop.f32.mrb[0].mxu0
        %v1695 = vadd.f32 0.0, %v1694
        %v1696 = vpop.f32.mrb[0].mxu0
        %v1697 = vpop.f32.mrb[0].mxu0
        %v1698 = vadd.f32 0.0, %v1697
        %v1699 = vpop.f32.mrb[0].mxu0
        %1700 = vmatprep.mubr.bf16.mxu0 0
        %1701 = vmatmul.mubr.bf16.gmra.mrb[0].mxu0 %v1170
        %v1702 = vpop.f32.mrb[0].mxu0
        %v1703 = vadd.f32 0.0, %v1702
        %v1704 = vpop.f32.mrb[0].mxu0
        %v1705 = vpop.f32.mrb[0].mxu0
        %v1706 = vadd.f32 0.0, %v1705
        %v1707 = vpop.f32.mrb[0].mxu0
        %1708 = vmatprep.mubr.bf16.mxu0 0
        %1709 = vmatmul.mubr.bf16.gmra.mrb[0].mxu0 %v1171
        %v1710 = vpop.f32.mrb[0].mxu0
        %v1711 = vadd.f32 0.0, %v1710
        %v1712 = vpop.f32.mrb[0].mxu0
        %v1713 = vpop.f32.mrb[0].mxu0
        %v1714 = vadd.f32 0.0, %v1713
        %v1715 = vpop.f32.mrb[0].mxu0
        %1716 = vmatprep.mubr.bf16.mxu0 0
        %1717 = vmatmul.mubr.bf16.gmra.mrb[0].mxu0 %v1172
        %v1718 = vpop.f32.mrb[0].mxu0
        %v1719 = vadd.f32 0.0, %v1718
        %v1720 = vpop.f32.mrb[0].mxu0
        %v1721 = vpop.f32.mrb[0].mxu0
        %v1722 = vadd.f32 0.0, %v1721
        %v1723 = vpop.f32.mrb[0].mxu0
        %1724 = vmatprep.mubr.bf16.mxu0 0
        %1725 = vmatmul.mubr.bf16.gmra.mrb[0].mxu0 %v1173
        %v1726 = vpop.f32.mrb[0].mxu0
        %v1727 = vadd.f32 0.0, %v1726
        %v1728 = vpop.f32.mrb[0].mxu0
        %v1729 = vpop.f32.mrb[0].mxu0
        %v1730 = vadd.f32 0.0, %v1729
        %v1731 = vpop.f32.mrb[0].mxu0
        %1732 = vmatprep.mubr.bf16.mxu0 0
        %1733 = vmatmul.mubr.bf16.gmra.mrb[0].mxu0 %v1174
        %v1734 = vpop.f32.mrb[0].mxu0
        %v1735 = vadd.f32 0.0, %v1734
        %v1736 = vpop.f32.mrb[0].mxu0
        %v1737 = vpop.f32.mrb[0].mxu0
        %v1738 = vadd.f32 0.0, %v1737
        %v1739 = vpop.f32.mrb[0].mxu0
        %1740 = vmatprep.mubr.bf16.mxu0 0
        %1741 = vmatmul.mubr.bf16.gmra.mrb[0].mxu0 %v1175
        %v1742 = vpop.f32.mrb[0].mxu0
        %v1743 = vadd.f32 0.0, %v1742
        %v1744 = vpop.f32.mrb[0].mxu0
        %v1745 = vpop.f32.mrb[0].mxu0
        %v1746 = vadd.f32 0.0, %v1745
        %v1747 = vpop.f32.mrb[0].mxu0
        %1748 = vmatprep.mubr.bf16.mxu0 0
        %1749 = vmatmul.mubr.bf16.gmra.mrb[0].mxu0 %v1176
        %v1750 = vpop.f32.mrb[0].mxu0
        %v1751 = vadd.f32 0.0, %v1750
        %v1752 = vpop.f32.mrb[0].mxu0
        %v1753 = vpop.f32.mrb[0].mxu0
        %v1754 = vadd.f32 0.0, %v1753
        %v1755 = vpop.f32.mrb[0].mxu0
        %1756 = vmatprep.mubr.bf16.mxu0 0
        %1757 = vmatmul.mubr.bf16.gmra.mrb[0].mxu0 %v1177
        %v1758 = vpop.f32.mrb[0].mxu0
        %v1759 = vadd.f32 0.0, %v1758
        %v1760 = vpop.f32.mrb[0].mxu0
        %v1761 = vpop.f32.mrb[0].mxu0
        %v1762 = vadd.f32 0.0, %v1761
        %v1763 = vpop.f32.mrb[0].mxu0
        %1764 = vmatprep.mubr.bf16.mxu0 0
        %1765 = vmatmul.mubr.bf16.gmra.mrb[0].mxu0 %v1178
        %v1766 = vpop.f32.mrb[0].mxu0
        %v1767 = vadd.f32 0.0, %v1766
        %v1768 = vpop.f32.mrb[0].mxu0
        %v1769 = vpop.f32.mrb[0].mxu0
        %v1770 = vadd.f32 0.0, %v1769
        %v1771 = vpop.f32.mrb[0].mxu0
        %1772 = vmatprep.mubr.bf16.mxu0 0
        %1773 = vmatmul.mubr.bf16.gmra.mrb[0].mxu0 %v1179
        %v1774 = vpop.f32.mrb[0].mxu0
        %v1775 = vadd.f32 0.0, %v1774
        %v1776 = vpop.f32.mrb[0].mxu0
        %v1777 = vpop.f32.mrb[0].mxu0
        %v1778 = vadd.f32 0.0, %v1777
        %v1779 = vpop.f32.mrb[0].mxu0
        %1780 = vmatprep.mubr.bf16.mxu0 0
        %1781 = vmatmul.mubr.bf16.gmra.mrb[0].mxu0 %v1180
        %v1782 = vpop.f32.mrb[0].mxu0
        %v1783 = vadd.f32 0.0, %v1782
        %v1784 = vpop.f32.mrb[0].mxu0
        %v1785 = vpop.f32.mrb[0].mxu0
        %v1786 = vadd.f32 0.0, %v1785
        %v1787 = vpop.f32.mrb[0].mxu0
        %1788 = vmatprep.mubr.bf16.mxu0 0
        %1789 = vmatmul.mubr.bf16.gmra.mrb[0].mxu0 %v1181
        %v1790 = vpop.f32.mrb[0].mxu0
        %v1791 = vadd.f32 0.0, %v1790
        %v1792 = vpop.f32.mrb[0].mxu0
        %v1793 = vpop.f32.mrb[0].mxu0
        %v1794 = vadd.f32 0.0, %v1793
        %v1795 = vpop.f32.mrb[0].mxu0
        %1796 = vmatprep.mubr.bf16.mxu0 0
        %1797 = vmatmul.mubr.bf16.gmra.mrb[0].mxu0 %v1182
        %v1798 = vpop.f32.mrb[0].mxu0
        %v1799 = vadd.f32 0.0, %v1798
        %v1800 = vpop.f32.mrb[0].mxu0
        %v1801 = vpop.f32.mrb[0].mxu0
        %v1802 = vadd.f32 0.0, %v1801
        %v1803 = vpop.f32.mrb[0].mxu0
        %1804 = vmatprep.mubr.bf16.mxu0 0
        %1805 = vmatmul.mubr.bf16.gmra.mrb[0].mxu0 %v1183
        %v1806 = vpop.f32.mrb[0].mxu0
        %v1807 = vadd.f32 0.0, %v1806
        %v1808 = vpop.f32.mrb[0].mxu0
        %v1809 = vpop.f32.mrb[0].mxu0
        %v1810 = vadd.f32 0.0, %v1809
        %v1811 = vpop.f32.mrb[0].mxu0
        %1812 = vmatprep.mubr.bf16.mxu0 0
        %1813 = vmatmul.mubr.bf16.gmra.mrb[0].mxu0 %v1184
        %v1814 = vpop.f32.mrb[0].mxu0
        %v1815 = vadd.f32 0.0, %v1814
        %v1816 = vpop.f32.mrb[0].mxu0
        %v1817 = vpop.f32.mrb[0].mxu0
        %v1818 = vadd.f32 0.0, %v1817
        %v1819 = vpop.f32.mrb[0].mxu0
        %1820 = vmatprep.mubr.bf16.mxu0 0
        %1821 = vmatmul.mubr.bf16.gmra.mrb[0].mxu0 %v1185
        %v1822 = vpop.f32.mrb[0].mxu0
        %v1823 = vadd.f32 0.0, %v1822
        %v1824 = vpop.f32.mrb[0].mxu0
        %v1825 = vpop.f32.mrb[0].mxu0
        %v1826 = vadd.f32 0.0, %v1825
        %v1827 = vpop.f32.mrb[0].mxu0
        %1828 = vmatprep.mubr.bf16.mxu0 0
        %1829 = vmatmul.mubr.bf16.gmra.mrb[0].mxu0 %v1186
        %v1830 = vpop.f32.mrb[0].mxu0
        %v1831 = vadd.f32 0.0, %v1830
        %v1832 = vpop.f32.mrb[0].mxu0
        %v1833 = vpop.f32.mrb[0].mxu0
        %v1834 = vadd.f32 0.0, %v1833
        %v1835 = vpop.f32.mrb[0].mxu0
        %1836 = vmatprep.mubr.bf16.mxu0 0
        %1837 = vmatmul.mubr.bf16.gmra.mrb[0].mxu0 %v1187
        %v1838 = vpop.f32.mrb[0].mxu0
        %v1839 = vadd.f32 0.0, %v1838
        %v1840 = vpop.f32.mrb[0].mxu0
        %v1841 = vpop.f32.mrb[0].mxu0
        %v1842 = vadd.f32 0.0, %v1841
        %v1843 = vpop.f32.mrb[0].mxu0
        %1844 = vdwg.mxu0
        %v1845 = vmax.f32 %v1335, %v1463
        %v1846 = vmax.f32 %v1338, %v1466
        %v1847 = vmax.f32 %v1343, %v1471
        %v1848 = vmax.f32 %v1346, %v1474
        %v1849 = vmax.f32 %v1351, %v1479
        %v1850 = vmax.f32 %v1354, %v1482
        %v1851 = vmax.f32 %v1359, %v1487
        %v1852 = vmax.f32 %v1362, %v1490
        %v1853 = vmax.f32 %v1367, %v1495
        %v1854 = vmax.f32 %v1370, %v1498
        %v1855 = vmax.f32 %v1375, %v1503
        %v1856 = vmax.f32 %v1378, %v1506
        %v1857 = vmax.f32 %v1383, %v1511
        %v1858 = vmax.f32 %v1386, %v1514
        %v1859 = vmax.f32 %v1391, %v1519
        %v1860 = vmax.f32 %v1394, %v1522
        %v1861 = vmax.f32 %v1399, %v1527
        %v1862 = vmax.f32 %v1402, %v1530
        %v1863 = vmax.f32 %v1407, %v1535
        %v1864 = vmax.f32 %v1410, %v1538
        %v1865 = vmax.f32 %v1415, %v1543
        %v1866 = vmax.f32 %v1418, %v1546
        %v1867 = vmax.f32 %v1423, %v1551
        %v1868 = vmax.f32 %v1426, %v1554
        %v1869 = vmax.f32 %v1431, %v1559
        %v1870 = vmax.f32 %v1434, %v1562
        %v1871 = vmax.f32 %v1439, %v1567
        %v1872 = vmax.f32 %v1442, %v1570
        %v1873 = vmax.f32 %v1447, %v1575
        %v1874 = vmax.f32 %v1450, %v1578
        %v1875 = vmax.f32 %v1455, %v1583
        %v1876 = vmax.f32 %v1458, %v1586
        %v1877 = vmax.f32 %v1591, %v1719
        %v1878 = vmax.f32 %v1594, %v1722
        %v1879 = vmax.f32 %v1599, %v1727
        %v1880 = vmax.f32 %v1602, %v1730
        %v1881 = vmax.f32 %v1607, %v1735
        %v1882 = vmax.f32 %v1610, %v1738
        %v1883 = vmax.f32 %v1615, %v1743
        %v1884 = vmax.f32 %v1618, %v1746
        %v1885 = vmax.f32 %v1623, %v1751
        %v1886 = vmax.f32 %v1626, %v1754
        %v1887 = vmax.f32 %v1631, %v1759
        %v1888 = vmax.f32 %v1634, %v1762
        %v1889 = vmax.f32 %v1639, %v1767
        %v1890 = vmax.f32 %v1642, %v1770
        %v1891 = vmax.f32 %v1647, %v1775
        %v1892 = vmax.f32 %v1650, %v1778
        %v1893 = vmax.f32 %v1655, %v1783
        %v1894 = vmax.f32 %v1658, %v1786
        %v1895 = vmax.f32 %v1663, %v1791
        %v1896 = vmax.f32 %v1666, %v1794
        %v1897 = vmax.f32 %v1671, %v1799
        %v1898 = vmax.f32 %v1674, %v1802
        %v1899 = vmax.f32 %v1679, %v1807
        %v1900 = vmax.f32 %v1682, %v1810
        %v1901 = vmax.f32 %v1687, %v1815
        %v1902 = vmax.f32 %v1690, %v1818
        %v1903 = vmax.f32 %v1695, %v1823
        %v1904 = vmax.f32 %v1698, %v1826
        %v1905 = vmax.f32 %v1703, %v1831
        %v1906 = vmax.f32 %v1706, %v1834
        %v1907 = vmax.f32 %v1711, %v1839
        %v1908 = vmax.f32 %v1714, %v1842
        %v1909 = vmax.f32 %v1845, %v1877
        %v1910 = vmax.f32 %v1846, %v1878
        %v1911 = vmax.f32 %v1847, %v1879
        %v1912 = vmax.f32 %v1848, %v1880
        %v1913 = vmax.f32 %v1849, %v1881
        %v1914 = vmax.f32 %v1850, %v1882
        %v1915 = vmax.f32 %v1851, %v1883
        %v1916 = vmax.f32 %v1852, %v1884
        %v1917 = vmax.f32 %v1853, %v1885
        %v1918 = vmax.f32 %v1854, %v1886
        %v1919 = vmax.f32 %v1855, %v1887
        %v1920 = vmax.f32 %v1856, %v1888
        %v1921 = vmax.f32 %v1857, %v1889
        %v1922 = vmax.f32 %v1858, %v1890
        %v1923 = vmax.f32 %v1859, %v1891
        %v1924 = vmax.f32 %v1860, %v1892
        %v1925 = vmax.f32 %v1861, %v1893
        %v1926 = vmax.f32 %v1862, %v1894
        %v1927 = vmax.f32 %v1863, %v1895
        %v1928 = vmax.f32 %v1864, %v1896
        %v1929 = vmax.f32 %v1865, %v1897
        %v1930 = vmax.f32 %v1866, %v1898
        %v1931 = vmax.f32 %v1867, %v1899
        %v1932 = vmax.f32 %v1868, %v1900
        %v1933 = vmax.f32 %v1869, %v1901
        %v1934 = vmax.f32 %v1870, %v1902
        %v1935 = vmax.f32 %v1871, %v1903
        %v1936 = vmax.f32 %v1872, %v1904
        %v1937 = vmax.f32 %v1873, %v1905
        %v1938 = vmax.f32 %v1874, %v1906
        %v1939 = vmax.f32 %v1875, %v1907
        %v1940 = vmax.f32 %v1876, %v1908
        %v1941 = vld [vmem:[%s2] sm:$0x1]
        %v1943 = vlaneseq
        %v1944 = vshrl.u32 %v1943, 7
        %v1945 = vsub.s32 0, %v1944
        %v1946 = vrot.slane %v1941, %v1945
        %v1948 = vadd.f32 %v1909, %v1946
        %v1949 = vadd.f32 %v1910, %v1946
        %v1950 = vadd.f32 %v1911, %v1946
        %v1951 = vadd.f32 %v1912, %v1946
        %v1952 = vadd.f32 %v1913, %v1946
        %v1953 = vadd.f32 %v1914, %v1946
        %v1954 = vadd.f32 %v1915, %v1946
        %v1955 = vadd.f32 %v1916, %v1946
        %v1956 = vadd.f32 %v1917, %v1946
        %v1957 = vadd.f32 %v1918, %v1946
        %v1958 = vadd.f32 %v1919, %v1946
        %v1959 = vadd.f32 %v1920, %v1946
        %v1960 = vadd.f32 %v1921, %v1946
        %v1961 = vadd.f32 %v1922, %v1946
        %v1962 = vadd.f32 %v1923, %v1946
        %v1963 = vadd.f32 %v1924, %v1946
        %v1964 = vadd.f32 %v1925, %v1946
        %v1965 = vadd.f32 %v1926, %v1946
        %v1966 = vadd.f32 %v1927, %v1946
        %v1967 = vadd.f32 %v1928, %v1946
        %v1968 = vadd.f32 %v1929, %v1946
        %v1969 = vadd.f32 %v1930, %v1946
        %v1970 = vadd.f32 %v1931, %v1946
        %v1971 = vadd.f32 %v1932, %v1946
        %v1972 = vadd.f32 %v1933, %v1946
        %v1973 = vadd.f32 %v1934, %v1946
        %v1974 = vadd.f32 %v1935, %v1946
        %v1975 = vadd.f32 %v1936, %v1946
        %v1976 = vadd.f32 %v1937, %v1946
        %v1977 = vadd.f32 %v1938, %v1946
        %v1978 = vadd.f32 %v1939, %v1946
        %v1979 = vadd.f32 %v1940, %v1946
        %v1980 = vmax.f32 %v1948, 0.0
        %v1981 = vmax.f32 %v1949, 0.0
        %v1982 = vmax.f32 %v1950, 0.0
        %v1983 = vmax.f32 %v1951, 0.0
        %v1984 = vmax.f32 %v1952, 0.0
        %v1985 = vmax.f32 %v1953, 0.0
        %v1986 = vmax.f32 %v1954, 0.0
        %v1987 = vmax.f32 %v1955, 0.0
        %v1988 = vmax.f32 %v1956, 0.0
        %v1989 = vmax.f32 %v1957, 0.0
        %v1990 = vmax.f32 %v1958, 0.0
        %v1991 = vmax.f32 %v1959, 0.0
        %v1992 = vmax.f32 %v1960, 0.0
        %v1993 = vmax.f32 %v1961, 0.0
        %v1994 = vmax.f32 %v1962, 0.0
        %v1995 = vmax.f32 %v1963, 0.0
        %v1996 = vmax.f32 %v1964, 0.0
        %v1997 = vmax.f32 %v1965, 0.0
        %v1998 = vmax.f32 %v1966, 0.0
        %v1999 = vmax.f32 %v1967, 0.0
        %v2000 = vmax.f32 %v1968, 0.0
        %v2001 = vmax.f32 %v1969, 0.0
        %v2002 = vmax.f32 %v1970, 0.0
        %v2003 = vmax.f32 %v1971, 0.0
        %v2004 = vmax.f32 %v1972, 0.0
        %v2005 = vmax.f32 %v1973, 0.0
        %v2006 = vmax.f32 %v1974, 0.0
        %v2007 = vmax.f32 %v1975, 0.0
        %v2008 = vmax.f32 %v1976, 0.0
        %v2009 = vmax.f32 %v1977, 0.0
        %v2010 = vmax.f32 %v1978, 0.0
        %v2011 = vmax.f32 %v1979, 0.0
        %v2012 = vpack.c.bf16 %v1981, %v1980
        %v2013 = vpack.c.bf16 %v1983, %v1982
        %v2014 = vpack.c.bf16 %v1985, %v1984
        %v2015 = vpack.c.bf16 %v1987, %v1986
        %v2016 = vpack.c.bf16 %v1989, %v1988
        %v2017 = vpack.c.bf16 %v1991, %v1990
        %v2018 = vpack.c.bf16 %v1993, %v1992
        %v2019 = vpack.c.bf16 %v1995, %v1994
        %v2020 = vpack.c.bf16 %v1997, %v1996
        %v2021 = vpack.c.bf16 %v1999, %v1998
        %v2022 = vpack.c.bf16 %v2001, %v2000
        %v2023 = vpack.c.bf16 %v2003, %v2002
        %v2024 = vpack.c.bf16 %v2005, %v2004
        %v2025 = vpack.c.bf16 %v2007, %v2006
        %v2026 = vpack.c.bf16 %v2009, %v2008
        %v2027 = vpack.c.bf16 %v2011, %v2010
        %v2044 = vunpack.c.l.b16 %v2012
        %v2045 = vunpack.c.h.b16 %v2012
        %v2046 = vunpack.c.l.b16 %v2013
        %v2047 = vunpack.c.h.b16 %v2013
        %v2048 = vunpack.c.l.b16 %v2014
        %v2049 = vunpack.c.h.b16 %v2014
        %v2050 = vunpack.c.l.b16 %v2015
        %v2051 = vunpack.c.h.b16 %v2015
        %v2052 = vunpack.c.l.b16 %v2016
        %v2053 = vunpack.c.h.b16 %v2016
        %v2054 = vunpack.c.l.b16 %v2017
        %v2055 = vunpack.c.h.b16 %v2017
        %v2056 = vunpack.c.l.b16 %v2018
        %v2057 = vunpack.c.h.b16 %v2018
        %v2058 = vunpack.c.l.b16 %v2019
        %v2059 = vunpack.c.h.b16 %v2019
        %v2060 = vunpack.c.l.b16 %v2020
        %v2061 = vunpack.c.h.b16 %v2020
        %v2062 = vunpack.c.l.b16 %v2021
        %v2063 = vunpack.c.h.b16 %v2021
        %v2064 = vunpack.c.l.b16 %v2022
        %v2065 = vunpack.c.h.b16 %v2022
        %v2066 = vunpack.c.l.b16 %v2023
        %v2067 = vunpack.c.h.b16 %v2023
        %v2068 = vunpack.c.l.b16 %v2024
        %v2069 = vunpack.c.h.b16 %v2024
        %v2070 = vunpack.c.l.b16 %v2025
        %v2071 = vunpack.c.h.b16 %v2025
        %v2072 = vunpack.c.l.b16 %v2026
        %v2073 = vunpack.c.h.b16 %v2026
        %v2074 = vunpack.c.l.b16 %v2027
        %v2075 = vunpack.c.h.b16 %v2027
        %v2076 = vpack.c.b16 %v2044, %v2044
        %v2077 = vpack.c.b16 %v2045, %v2045
        %v2078 = vpack.c.b16 %v2046, %v2046
        %v2079 = vpack.c.b16 %v2047, %v2047
        %v2080 = vpack.c.b16 %v2048, %v2048
        %v2081 = vpack.c.b16 %v2049, %v2049
        %v2082 = vpack.c.b16 %v2050, %v2050
        %v2083 = vpack.c.b16 %v2051, %v2051
        %v2084 = vpack.c.b16 %v2052, %v2052
        %v2085 = vpack.c.b16 %v2053, %v2053
        %v2086 = vpack.c.b16 %v2054, %v2054
        %v2087 = vpack.c.b16 %v2055, %v2055
        %v2088 = vpack.c.b16 %v2056, %v2056
        %v2089 = vpack.c.b16 %v2057, %v2057
        %v2090 = vpack.c.b16 %v2058, %v2058
        %v2091 = vpack.c.b16 %v2059, %v2059
        %v2092 = vpack.c.b16 %v2060, %v2060
        %v2093 = vpack.c.b16 %v2061, %v2061
        %v2094 = vpack.c.b16 %v2062, %v2062
        %v2095 = vpack.c.b16 %v2063, %v2063
        %v2096 = vpack.c.b16 %v2064, %v2064
        %v2097 = vpack.c.b16 %v2065, %v2065
        %v2098 = vpack.c.b16 %v2066, %v2066
        %v2099 = vpack.c.b16 %v2067, %v2067
        %v2100 = vpack.c.b16 %v2068, %v2068
        %v2101 = vpack.c.b16 %v2069, %v2069
        %v2102 = vpack.c.b16 %v2070, %v2070
        %v2103 = vpack.c.b16 %v2071, %v2071
        %v2104 = vpack.c.b16 %v2072, %v2072
        %v2105 = vpack.c.b16 %v2073, %v2073
        %v2106 = vpack.c.b16 %v2074, %v2074
        %v2107 = vpack.c.b16 %v2075, %v2075
        %2140 = vst [vmem:[%s721] sm:$0xf] %v2076
        %2141 = vst [vmem:[%s721 + $0x4] sm:$0xf] %v2077
        %2142 = vst [vmem:[%s721 + $0x8] sm:$0xf] %v2078
        %2143 = vst [vmem:[%s721 + $0xc] sm:$0xf] %v2079
        %2144 = vst [vmem:[%s721 + $0x10] sm:$0xf] %v2080
        %2145 = vst [vmem:[%s721 + $0x14] sm:$0xf] %v2081
        %2146 = vst [vmem:[%s721 + $0x18] sm:$0xf] %v2082
        %2147 = vst [vmem:[%s721 + $0x1c] sm:$0xf] %v2083
        %2148 = vst [vmem:[%s721 + $0x20] sm:$0xf] %v2084
        %2149 = vst [vmem:[%s721 + $0x24] sm:$0xf] %v2085
        %2150 = vst [vmem:[%s721 + $0x28] sm:$0xf] %v2086
        %2151 = vst [vmem:[%s721 + $0x2c] sm:$0xf] %v2087
        %2152 = vst [vmem:[%s721 + $0x30] sm:$0xf] %v2088
        %2153 = vst [vmem:[%s721 + $0x34] sm:$0xf] %v2089
        %2154 = vst [vmem:[%s721 + $0x38] sm:$0xf] %v2090
        %2155 = vst [vmem:[%s721 + $0x3c] sm:$0xf] %v2091
        %2156 = vst [vmem:[%s721 + $0x40] sm:$0xf] %v2092
        %2157 = vst [vmem:[%s721 + $0x44] sm:$0xf] %v2093
        %2158 = vst [vmem:[%s721 + $0x48] sm:$0xf] %v2094
        %2159 = vst [vmem:[%s721 + $0x4c] sm:$0xf] %v2095
        %2160 = vst [vmem:[%s721 + $0x50] sm:$0xf] %v2096
        %2161 = vst [vmem:[%s721 + $0x54] sm:$0xf] %v2097
        %2162 = vst [vmem:[%s721 + $0x58] sm:$0xf] %v2098
        %2163 = vst [vmem:[%s721 + $0x5c] sm:$0xf] %v2099
        %2164 = vst [vmem:[%s721 + $0x60] sm:$0xf] %v2100
        %2165 = vst [vmem:[%s721 + $0x64] sm:$0xf] %v2101
        %2166 = vst [vmem:[%s721 + $0x68] sm:$0xf] %v2102
        %2167 = vst [vmem:[%s721 + $0x6c] sm:$0xf] %v2103
        %2168 = vst [vmem:[%s721 + $0x70] sm:$0xf] %v2104
        %2169 = vst [vmem:[%s721 + $0x74] sm:$0xf] %v2105
        %2170 = vst [vmem:[%s721 + $0x78] sm:$0xf] %v2106
        %2171 = vst [vmem:[%s721 + $0x7c] sm:$0xf] %v2107
        %s2172 = smul.u32 32, %s14
        %p2173 = scmp.lt.s32.totalorder %s2172, 63
        %s2174 = scalar_select %p2173, %s2172, 63
        %s2175 = smul.addr %s2174, 4
        %s2176 = scalar_lea.vmem %s3, %s2175
        // Predicated region
        $region74: #{dilenet_forward.4} parent=68 // pred_check
          %p2177 = pneg %p100
        $region75: #{dilenet_forward.4} parent=68 // pred_check_branch
          %2179 = sbr.rel (%p2177) target = $region77
        $region76: #{dilenet_forward.4} parent=68 // pred_region
          %s2180 = smul.u32 32, %s14
        $region77: #{dilenet_forward.4} parent=68 // pred_fallthru
          _
      $region69: #{dilenet_forward.4} parent=5 // pred_fallthru
        _
      %p2181 = scmp.le.s32.totalorder 2, %s9
      // Predicated region
      $region78: #{dilenet_forward.4} parent=5 // pred_check
        %p2182 = pneg %p2181
      $region79: #{dilenet_forward.4} parent=5 // pred_check_branch
        %2184 = sbr.rel (%p2182) target = $region81
      $region80: #{dilenet_forward.4} parent=5 // pred_region
        %s2185 = ssub.s32 %s9, 2
        // Predicated region
        $region82: #{dilenet_forward.4} parent=80 // pred_check
          %p2186 = pneg %p106
        $region83: #{dilenet_forward.4} parent=80 // pred_check_branch
          %2188 = sbr.rel (%p2186) target = $region85
        $region84: #{dilenet_forward.4} parent=80 // pred_region
          %s2189 = smul.u32 32, %s15
          %p2190 = scmp.lt.s32.totalorder %s2189, 63
          %s2191 = scalar_select %p2190, %s2189, 63
          %s2192 = smul.addr %s2191, 4
          %s2193 = scalar_lea.vmem %s3, %s2192
        $region85: #{dilenet_forward.4} parent=80 // pred_fallthru
          _
      $region81: #{dilenet_forward.4} parent=5 // pred_fallthru
        _
    $region6: #{dilenet_forward.4} parent=1 // loop_footer
      %s13 = sadd.s32 1, %s9
    $region7: #{dilenet_forward.4} parent=1 // loop_footer_branch
      %8 = sbr.rel target = $region3
    $region8: #{dilenet_forward.4} parent=1 // loop_exit
      _

// kernel: dilenet_forward.5
$region0: #{dilenet_forward.5}
  #allocation0 [shape = 'u32[]', space=smem, size = 0x4, offset = 0x4, fixed_abs, tag = 'smem constant byte address 0x4 - core index']
  #allocation1 [shape = 'u32[144,128]{1,0:T(1,128)}', space=vmem, size = 0x12000, scoped, tag = 'internal scratch']
  %s0 = inlined_call_operand.vmem [shape: bf16[4,128,640], index: 0, kind: input, shape index: {}]
  %s1 = inlined_call_operand.vmem [shape: bf16[640,256], index: 1, kind: input, shape index: {}]
  %s2 = inlined_call_operand.vmem [shape: f32[1,256], index: 2, kind: input, shape index: {}]
  %s3 = inlined_call_operand.vmem [shape: bf16[128,256], index: 3, kind: output, shape index: {}]
  %s4 = sld [smem:[#allocation0]]
  $region71: #{dilenet_forward.5} parent=0
    _
  %s6 = ssub.s32 1, %s4
  %s7 = scalar_select 0, %s6, %s4
  $region1: #{dilenet_forward.5} parent=0
    #allocation2 [shape = 'u8[655360]{0}', space=vmem, size = 0xa0000, scoped, tag = 'input window, operand 0']
    loop: start=0, step=1, limit=4
    $region2: #{dilenet_forward.5} parent=1 // loop_pre_header
      _
    $region3: #{dilenet_forward.5} parent=1 // loop_header
      %s9 = sphi 0, %s13
      %p10 = scmp.ge.s32.totalorder %s9, 4
      %s19 = sphi 0, %s21
      %s22 = sphi 0, %s19
      %s23 = sphi 0, %s22
      %s39 = sphi 0, %s23
      %s43 = sphi 0, %s43
      %s45 = sphi 0, %s43
      %s46 = sphi 0, %s45
      %s60 = sphi 0, %s46
      %s64 = sphi 0, %s64
      %s66 = sphi 0, %s64
      %s67 = sphi 0, %s66
      %s81 = sphi 0, %s67
      %s87 = sphi 0, %s89
      %s90 = sphi 0, %s87
      %s91 = sphi 0, %s90
      %s107 = sphi 0, %s91
    $region4: #{dilenet_forward.5} parent=1 // loop_header_branch
      %12 = sbr.rel (%p10) target = $region8
    $region5: #{dilenet_forward.5} parent=1 // loop_body
      %s14 = ssub.s32 %s9, 1
      %s15 = ssub.s32 %s9, 2
      %s16 = sadd.s32 %s9, 1
      %s17 = ssub.s32 %s9, %s16
      %p18 = scmp.eq.s32.totalorder %s17, 0
      %s20 = sadd.s32 %s19, 1
      %s21 = scalar_select %p18, %s19, %s20
      %p24 = pneg %p18
      %p25 = scmp.eq.s32.totalorder %s9, 1
      %p26 = por %p24, %p25
      %p27 = scmp.ne.s32.totalorder %s19, %s22
      %p28 = scmp.eq.s32.totalorder %s9, 0
      %p29 = por %p27, %p28
      %p30 = scmp.ne.s32.totalorder %s19, %s22
      %p31 = scmp.eq.s32.totalorder %s14, 1
      %p32 = por %p30, %p31
      %p33 = scmp.ne.s32.totalorder %s22, %s23
      %p34 = scmp.eq.s32.totalorder %s14, 0
      %p35 = por %p33, %p34
      %p36 = scmp.ne.s32.totalorder %s22, %s23
      %p37 = scmp.eq.s32.totalorder %s15, 1
      %p38 = por %p36, %p37
      %p40 = scmp.ne.s32.totalorder %s23, %s39
      %p41 = scmp.eq.s32.totalorder %s15, 0
      %p42 = por %p40, %p41
      %s44 = sadd.s32 %s43, 1
      %p47 = scmp.eq.s32.totalorder %s9, 1
      %p48 = scmp.ne.s32.totalorder %s43, %s45
      %p49 = scmp.eq.s32.totalorder %s9, 0
      %p50 = por %p48, %p49
      %p51 = scmp.ne.s32.totalorder %s43, %s45
      %p52 = scmp.eq.s32.totalorder %s14, 1
      %p53 = por %p51, %p52
      %p54 = scmp.ne.s32.totalorder %s45, %s46
      %p55 = scmp.eq.s32.totalorder %s14, 0
      %p56 = por %p54, %p55
      %p57 = scmp.ne.s32.totalorder %s45, %s46
      %p58 = scmp.eq.s32.totalorder %s15, 1
      %p59 = por %p57, %p58
      %p61 = scmp.ne.s32.totalorder %s46, %s60
      %p62 = scmp.eq.s32.totalorder %s15, 0
      %p63 = por %p61, %p62
      %s65 = sadd.s32 %s64, 1
      %p68 = scmp.eq.s32.totalorder %s9, 1
      %p69 = scmp.ne.s32.totalorder %s64, %s66
      %p70 = scmp.eq.s32.totalorder %s9, 0
      %p71 = por %p69, %p70
      %p72 = scmp.ne.s32.totalorder %s64, %s66
      %p73 = scmp.eq.s32.totalorder %s14, 1
      %p74 = por %p72, %p73
      %p75 = scmp.ne.s32.totalorder %s66, %s67
      %p76 = scmp.eq.s32.totalorder %s14, 0
      %p77 = por %p75, %p76
      %p78 = scmp.ne.s32.totalorder %s66, %s67
      %p79 = scmp.eq.s32.totalorder %s15, 1
      %p80 = por %p78, %p79
      %p82 = scmp.ne.s32.totalorder %s67, %s81
      %p83 = scmp.eq.s32.totalorder %s15, 0
      %p84 = por %p82, %p83
      %s85 = ssub.s32 %s9, %s16
      %p86 = scmp.eq.s32.totalorder %s85, 0
      %s88 = sadd.s32 %s87, 1
      %s89 = scalar_select %p86, %s87, %s88
      %p92 = pneg %p86
      %p93 = scmp.eq.s32.totalorder %s9, 1
      %p94 = por %p92, %p93
      %p95 = scmp.ne.s32.totalorder %s87, %s90
      %p96 = scmp.eq.s32.totalorder %s9, 0
      %p97 = por %p95, %p96
      %p98 = scmp.ne.s32.totalorder %s87, %s90
      %p99 = scmp.eq.s32.totalorder %s14, 1
      %p100 = por %p98, %p99
      %p101 = scmp.ne.s32.totalorder %s90, %s91
      %p102 = scmp.eq.s32.totalorder %s14, 0
      %p103 = por %p101, %p102
      %p104 = scmp.ne.s32.totalorder %s90, %s91
      %p105 = scmp.eq.s32.totalorder %s15, 1
      %p106 = por %p104, %p105
      %p108 = scmp.ne.s32.totalorder %s91, %s107
      %p109 = scmp.eq.s32.totalorder %s15, 0
      %p110 = por %p108, %p109
      %p111 = scmp.le.s32.totalorder 1, %s9
      %p112 = scmp.lt.s32.totalorder %s9, 3
      %p113 = pnand %p111, %p112
      %p114 = pneg %p113
      // Predicated region
      $region9: #{dilenet_forward.5} parent=5 // pred_check
        _
      $region10: #{dilenet_forward.5} parent=5 // pred_check_branch
        %116 = sbr.rel (%p113) target = $region12
      $region11: #{dilenet_forward.5} parent=5 // pred_region
        %s117 = ssub.s32 %s9, 1
        // Predicated region
        $region13: #{dilenet_forward.5} parent=11 // pred_check
          %p118 = pneg %p56
        $region14: #{dilenet_forward.5} parent=11 // pred_check_branch
          %120 = sbr.rel (%p118) target = $region16
        $region15: #{dilenet_forward.5} parent=11 // pred_region
          _
        $region16: #{dilenet_forward.5} parent=11 // pred_fallthru
          _
        // Predicated region
        $region17: #{dilenet_forward.5} parent=11 // pred_check
          %p121 = pneg %p77
        $region18: #{dilenet_forward.5} parent=11 // pred_check_branch
          %123 = sbr.rel (%p121) target = $region20
        $region19: #{dilenet_forward.5} parent=11 // pred_region
          _
        $region20: #{dilenet_forward.5} parent=11 // pred_fallthru
          _
      $region12: #{dilenet_forward.5} parent=5 // pred_fallthru
        _
      %p124 = scmp.lt.s32.totalorder %s9, 2
      // Predicated region
      $region21: #{dilenet_forward.5} parent=5 // pred_check
        %p125 = pneg %p124
      $region22: #{dilenet_forward.5} parent=5 // pred_check_branch
        %127 = sbr.rel (%p125) target = $region24
      $region23: #{dilenet_forward.5} parent=5 // pred_region
        // Predicated region
        $region25: #{dilenet_forward.5} parent=23 // pred_check
          %p128 = pneg %p29
        $region26: #{dilenet_forward.5} parent=23 // pred_check_branch
          %130 = sbr.rel (%p128) target = $region28
        $region27: #{dilenet_forward.5} parent=23 // pred_region
          %s131 = sand.u32 %s19, 1
          %s132 = sand.u32 %s19, 1
          %s133 = smul.addr %s132, 640
          %s134 = scalar_lea.vmem [#allocation2], %s133
          %s135 = smul.u32 8, %s9
          %s136 = smul.addr %s135, 5
          %s137 = smul.addr %s136, 4
          %s138 = scalar_lea.vmem %s0, %s137
          // Predicated region
          $region29: #{dilenet_forward.5} parent=27 // pred_check
            _
          $region30: #{dilenet_forward.5} parent=27 // pred_check_branch
            %140 = sbr.rel (0) target = $region32
          $region31: #{dilenet_forward.5} parent=27 // pred_region
            // Predicated region
            $region33: #{dilenet_forward.5} parent=31 // pred_check
              _
            $region34: #{dilenet_forward.5} parent=31 // pred_check_branch
              %142 = sbr.rel (0) target = $region36
            $region35: #{dilenet_forward.5} parent=31 // pred_region
              %s143 = scalar_lea.vmem %s138, 16
              %s144 = scalar_lea.vmem %s134, 16 [#allocation2]
              loop: start=0, step=1, limit=1
              $region37: #{dilenet_forward.5} parent=35 // loop_pre_header
                _
              $region38: #{dilenet_forward.5} parent=35 // loop_header
                %s146 = sphi 0, %s150
                %p147 = scmp.ge.s32.totalorder %s146, 1
                %s151 = sphi %s138, %s138
                %s152 = sphi %s134, %s134
              $region39: #{dilenet_forward.5} parent=35 // loop_header_branch
                %149 = sbr.rel (%p147) target = $region43
              $region40: #{dilenet_forward.5} parent=35 // loop_body
                %v153 = vld [vmem:[%s151] sm:$0xff]
                %154 = vst [vmem:[%s152] sm:$0xff] %v153
                %v155 = vld [vmem:[%s151 + $0x8] sm:$0xff]
                %156 = vst [vmem:[%s152 + $0x8] sm:$0xff] %v155
                %v157 = vld [vmem:[%s151 + $0x14] sm:$0xff]
                %158 = vst [vmem:[%s152 + $0x14] sm:$0xff] %v157
                %v159 = vld [vmem:[%s151 + $0x1c] sm:$0xff]
                %160 = vst [vmem:[%s152 + $0x1c] sm:$0xff] %v159
                %v161 = vld [vmem:[%s151 + $0x28] sm:$0xff]
                %162 = vst [vmem:[%s152 + $0x28] sm:$0xff] %v161
                %v163 = vld [vmem:[%s151 + $0x30] sm:$0xff]
                %164 = vst [vmem:[%s152 + $0x30] sm:$0xff] %v163
                %v165 = vld [vmem:[%s151 + $0x3c] sm:$0xff]
                %166 = vst [vmem:[%s152 + $0x3c] sm:$0xff] %v165
                %v167 = vld [vmem:[%s151 + $0x44] sm:$0xff]
                %168 = vst [vmem:[%s152 + $0x44] sm:$0xff] %v167
                %v169 = vld [vmem:[%s151 + $0x50] sm:$0xff]
                %170 = vst [vmem:[%s152 + $0x50] sm:$0xff] %v169
                %v171 = vld [vmem:[%s151 + $0x58] sm:$0xff]
                %172 = vst [vmem:[%s152 + $0x58] sm:$0xff] %v171
                %v173 = vld [vmem:[%s151 + $0x64] sm:$0xff]
                %174 = vst [vmem:[%s152 + $0x64] sm:$0xff] %v173
                %v175 = vld [vmem:[%s151 + $0x6c] sm:$0xff]
                %176 = vst [vmem:[%s152 + $0x6c] sm:$0xff] %v175
                %v177 = vld [vmem:[%s151 + $0x78] sm:$0xff]
                %178 = vst [vmem:[%s152 + $0x78] sm:$0xff] %v177
                %v179 = vld [vmem:[%s151 + $0x80] sm:$0xff]
                %180 = vst [vmem:[%s152 + $0x80] sm:$0xff] %v179
                %v181 = vld [vmem:[%s151 + $0x8c] sm:$0xff]
                %182 = vst [vmem:[%s152 + $0x8c] sm:$0xff] %v181
                %v183 = vld [vmem:[%s151 + $0x94] sm:$0xff]
                %184 = vst [vmem:[%s152 + $0x94] sm:$0xff] %v183
                %v185 = vld [vmem:[%s151 + $0x140] sm:$0xff]
                %186 = vst [vmem:[%s152 + $0xa0] sm:$0xff] %v185
                %v187 = vld [vmem:[%s151 + $0x148] sm:$0xff]
                %188 = vst [vmem:[%s152 + $0xa8] sm:$0xff] %v187
                %v189 = vld [vmem:[%s151 + $0x154] sm:$0xff]
                %190 = vst [vmem:[%s152 + $0xb4] sm:$0xff] %v189
                %v191 = vld [vmem:[%s151 + $0x15c] sm:$0xff]
                %192 = vst [vmem:[%s152 + $0xbc] sm:$0xff] %v191
                %v193 = vld [vmem:[%s151 + $0x168] sm:$0xff]
                %194 = vst [vmem:[%s152 + $0xc8] sm:$0xff] %v193
                %v195 = vld [vmem:[%s151 + $0x170] sm:$0xff]
                %196 = vst [vmem:[%s152 + $0xd0] sm:$0xff] %v195
                %v197 = vld [vmem:[%s151 + $0x17c] sm:$0xff]
                %198 = vst [vmem:[%s152 + $0xdc] sm:$0xff] %v197
                %v199 = vld [vmem:[%s151 + $0x184] sm:$0xff]
                %200 = vst [vmem:[%s152 + $0xe4] sm:$0xff] %v199
                %v201 = vld [vmem:[%s151 + $0x190] sm:$0xff]
                %202 = vst [vmem:[%s152 + $0xf0] sm:$0xff] %v201
                %v203 = vld [vmem:[%s151 + $0x198] sm:$0xff]
                %204 = vst [vmem:[%s152 + $0xf8] sm:$0xff] %v203
                %v205 = vld [vmem:[%s151 + $0x1a4] sm:$0xff]
                %206 = vst [vmem:[%s152 + $0x104] sm:$0xff] %v205
                %v207 = vld [vmem:[%s151 + $0x1ac] sm:$0xff]
                %208 = vst [vmem:[%s152 + $0x10c] sm:$0xff] %v207
                %v209 = vld [vmem:[%s151 + $0x1b8] sm:$0xff]
                %210 = vst [vmem:[%s152 + $0x118] sm:$0xff] %v209
                %v211 = vld [vmem:[%s151 + $0x1c0] sm:$0xff]
                %212 = vst [vmem:[%s152 + $0x120] sm:$0xff] %v211
                %v213 = vld [vmem:[%s151 + $0x1cc] sm:$0xff]
                %214 = vst [vmem:[%s152 + $0x12c] sm:$0xff] %v213
                %v215 = vld [vmem:[%s151 + $0x1d4] sm:$0xff]
                %216 = vst [vmem:[%s152 + $0x134] sm:$0xff] %v215
                %v217 = vld [vmem:[%s151 + $0x280] sm:$0xff]
                %218 = vst [vmem:[%s152 + $0x140] sm:$0xff] %v217
                %v219 = vld [vmem:[%s151 + $0x288] sm:$0xff]
                %220 = vst [vmem:[%s152 + $0x148] sm:$0xff] %v219
                %v221 = vld [vmem:[%s151 + $0x294] sm:$0xff]
                %222 = vst [vmem:[%s152 + $0x154] sm:$0xff] %v221
                %v223 = vld [vmem:[%s151 + $0x29c] sm:$0xff]
                %224 = vst [vmem:[%s152 + $0x15c] sm:$0xff] %v223
                %v225 = vld [vmem:[%s151 + $0x2a8] sm:$0xff]
                %226 = vst [vmem:[%s152 + $0x168] sm:$0xff] %v225
                %v227 = vld [vmem:[%s151 + $0x2b0] sm:$0xff]
                %228 = vst [vmem:[%s152 + $0x170] sm:$0xff] %v227
                %v229 = vld [vmem:[%s151 + $0x2bc] sm:$0xff]
                %230 = vst [vmem:[%s152 + $0x17c] sm:$0xff] %v229
                %v231 = vld [vmem:[%s151 + $0x2c4] sm:$0xff]
                %232 = vst [vmem:[%s152 + $0x184] sm:$0xff] %v231
                %v233 = vld [vmem:[%s151 + $0x2d0] sm:$0xff]
                %234 = vst [vmem:[%s152 + $0x190] sm:$0xff] %v233
                %v235 = vld [vmem:[%s151 + $0x2d8] sm:$0xff]
                %236 = vst [vmem:[%s152 + $0x198] sm:$0xff] %v235
                %v237 = vld [vmem:[%s151 + $0x2e4] sm:$0xff]
                %238 = vst [vmem:[%s152 + $0x1a4] sm:$0xff] %v237
                %v239 = vld [vmem:[%s151 + $0x2ec] sm:$0xff]
                %240 = vst [vmem:[%s152 + $0x1ac] sm:$0xff] %v239
                %v241 = vld [vmem:[%s151 + $0x2f8] sm:$0xff]
                %242 = vst [vmem:[%s152 + $0x1b8] sm:$0xff] %v241
                %v243 = vld [vmem:[%s151 + $0x300] sm:$0xff]
                %244 = vst [vmem:[%s152 + $0x1c0] sm:$0xff] %v243
                %v245 = vld [vmem:[%s151 + $0x30c] sm:$0xff]
                %246 = vst [vmem:[%s152 + $0x1cc] sm:$0xff] %v245
                %v247 = vld [vmem:[%s151 + $0x314] sm:$0xff]
                %248 = vst [vmem:[%s152 + $0x1d4] sm:$0xff] %v247
                %v249 = vld [vmem:[%s151 + $0x3c0] sm:$0xff]
                %250 = vst [vmem:[%s152 + $0x1e0] sm:$0xff] %v249
                %v251 = vld [vmem:[%s151 + $0x3c8] sm:$0xff]
                %252 = vst [vmem:[%s152 + $0x1e8] sm:$0xff] %v251
                %v253 = vld [vmem:[%s151 + $0x3d4] sm:$0xff]
                %254 = vst [vmem:[%s152 + $0x1f4] sm:$0xff] %v253
                %v255 = vld [vmem:[%s151 + $0x3dc] sm:$0xff]
                %256 = vst [vmem:[%s152 + $0x1fc] sm:$0xff] %v255
                %v257 = vld [vmem:[%s151 + $0x3e8] sm:$0xff]
                %258 = vst [vmem:[%s152 + $0x208] sm:$0xff] %v257
                %v259 = vld [vmem:[%s151 + $0x3f0] sm:$0xff]
                %260 = vst [vmem:[%s152 + $0x210] sm:$0xff] %v259
                %v261 = vld [vmem:[%s151 + $0x3fc] sm:$0xff]
                %262 = vst [vmem:[%s152 + $0x21c] sm:$0xff] %v261
                %v263 = vld [vmem:[%s151 + $0x404] sm:$0xff]
                %264 = vst [vmem:[%s152 + $0x224] sm:$0xff] %v263
                %v265 = vld [vmem:[%s151 + $0x410] sm:$0xff]
                %266 = vst [vmem:[%s152 + $0x230] sm:$0xff] %v265
                %v267 = vld [vmem:[%s151 + $0x418] sm:$0xff]
                %268 = vst [vmem:[%s152 + $0x238] sm:$0xff] %v267
                %v269 = vld [vmem:[%s151 + $0x424] sm:$0xff]
                %270 = vst [vmem:[%s152 + $0x244] sm:$0xff] %v269
                %v271 = vld [vmem:[%s151 + $0x42c] sm:$0xff]
                %272 = vst [vmem:[%s152 + $0x24c] sm:$0xff] %v271
                %v273 = vld [vmem:[%s151 + $0x438] sm:$0xff]
                %274 = vst [vmem:[%s152 + $0x258] sm:$0xff] %v273
                %v275 = vld [vmem:[%s151 + $0x440] sm:$0xff]
                %276 = vst [vmem:[%s152 + $0x260] sm:$0xff] %v275
                %v277 = vld [vmem:[%s151 + $0x44c] sm:$0xff]
                %278 = vst [vmem:[%s152 + $0x26c] sm:$0xff] %v277
                %v279 = vld [vmem:[%s151 + $0x454] sm:$0xff]
                %280 = vst [vmem:[%s152 + $0x274] sm:$0xff] %v279
              $region41: #{dilenet_forward.5} parent=35 // loop_footer
                %s150 = sadd.s32 1, %s146
              $region42: #{dilenet_forward.5} parent=35 // loop_footer_branch
                %145 = sbr.rel target = $region38
              $region43: #{dilenet_forward.5} parent=35 // loop_exit
                _
              loop: start=0, step=1, limit=1
              $region44: #{dilenet_forward.5} parent=35 // loop_pre_header
                _
              $region45: #{dilenet_forward.5} parent=35 // loop_header
                %s283 = sphi 0, %s287
                %p284 = scmp.ge.s32.totalorder %s283, 1
                %s288 = sphi %s143, %s143
                %s289 = sphi %s144, %s144
              $region46: #{dilenet_forward.5} parent=35 // loop_header_branch
                %286 = sbr.rel (%p284) target = $region50
              $region47: #{dilenet_forward.5} parent=35 // loop_body
                %v290 = vld [vmem:[%s288] sm:$0xf]
                %291 = vst [vmem:[%s289] sm:$0xf] %v290
                %v292 = vld [vmem:[%s288 + $0x14] sm:$0xf]
                %293 = vst [vmem:[%s289 + $0x14] sm:$0xf] %v292
                %v294 = vld [vmem:[%s288 + $0x28] sm:$0xf]
                %295 = vst [vmem:[%s289 + $0x28] sm:$0xf] %v294
                %v296 = vld [vmem:[%s288 + $0x3c] sm:$0xf]
                %297 = vst [vmem:[%s289 + $0x3c] sm:$0xf] %v296
                %v298 = vld [vmem:[%s288 + $0x50] sm:$0xf]
                %299 = vst [vmem:[%s289 + $0x50] sm:$0xf] %v298
                %v300 = vld [vmem:[%s288 + $0x64] sm:$0xf]
                %301 = vst [vmem:[%s289 + $0x64] sm:$0xf] %v300
                %v302 = vld [vmem:[%s288 + $0x78] sm:$0xf]
                %303 = vst [vmem:[%s289 + $0x78] sm:$0xf] %v302
                %v304 = vld [vmem:[%s288 + $0x8c] sm:$0xf]
                %305 = vst [vmem:[%s289 + $0x8c] sm:$0xf] %v304
                %v306 = vld [vmem:[%s288 + $0x140] sm:$0xf]
                %307 = vst [vmem:[%s289 + $0xa0] sm:$0xf] %v306
                %v308 = vld [vmem:[%s288 + $0x154] sm:$0xf]
                %309 = vst [vmem:[%s289 + $0xb4] sm:$0xf] %v308
                %v310 = vld [vmem:[%s288 + $0x168] sm:$0xf]
                %311 = vst [vmem:[%s289 + $0xc8] sm:$0xf] %v310
                %v312 = vld [vmem:[%s288 + $0x17c] sm:$0xf]
                %313 = vst [vmem:[%s289 + $0xdc] sm:$0xf] %v312
                %v314 = vld [vmem:[%s288 + $0x190] sm:$0xf]
                %315 = vst [vmem:[%s289 + $0xf0] sm:$0xf] %v314
                %v316 = vld [vmem:[%s288 + $0x1a4] sm:$0xf]
                %317 = vst [vmem:[%s289 + $0x104] sm:$0xf] %v316
                %v318 = vld [vmem:[%s288 + $0x1b8] sm:$0xf]
                %319 = vst [vmem:[%s289 + $0x118] sm:$0xf] %v318
                %v320 = vld [vmem:[%s288 + $0x1cc] sm:$0xf]
                %321 = vst [vmem:[%s289 + $0x12c] sm:$0xf] %v320
                %v322 = vld [vmem:[%s288 + $0x280] sm:$0xf]
                %323 = vst [vmem:[%s289 + $0x140] sm:$0xf] %v322
                %v324 = vld [vmem:[%s288 + $0x294] sm:$0xf]
                %325 = vst [vmem:[%s289 + $0x154] sm:$0xf] %v324
                %v326 = vld [vmem:[%s288 + $0x2a8] sm:$0xf]
                %327 = vst [vmem:[%s289 + $0x168] sm:$0xf] %v326
                %v328 = vld [vmem:[%s288 + $0x2bc] sm:$0xf]
                %329 = vst [vmem:[%s289 + $0x17c] sm:$0xf] %v328
                %v330 = vld [vmem:[%s288 + $0x2d0] sm:$0xf]
                %331 = vst [vmem:[%s289 + $0x190] sm:$0xf] %v330
                %v332 = vld [vmem:[%s288 + $0x2e4] sm:$0xf]
                %333 = vst [vmem:[%s289 + $0x1a4] sm:$0xf] %v332
                %v334 = vld [vmem:[%s288 + $0x2f8] sm:$0xf]
                %335 = vst [vmem:[%s289 + $0x1b8] sm:$0xf] %v334
                %v336 = vld [vmem:[%s288 + $0x30c] sm:$0xf]
                %337 = vst [vmem:[%s289 + $0x1cc] sm:$0xf] %v336
                %v338 = vld [vmem:[%s288 + $0x3c0] sm:$0xf]
                %339 = vst [vmem:[%s289 + $0x1e0] sm:$0xf] %v338
                %v340 = vld [vmem:[%s288 + $0x3d4] sm:$0xf]
                %341 = vst [vmem:[%s289 + $0x1f4] sm:$0xf] %v340
                %v342 = vld [vmem:[%s288 + $0x3e8] sm:$0xf]
                %343 = vst [vmem:[%s289 + $0x208] sm:$0xf] %v342
                %v344 = vld [vmem:[%s288 + $0x3fc] sm:$0xf]
                %345 = vst [vmem:[%s289 + $0x21c] sm:$0xf] %v344
                %v346 = vld [vmem:[%s288 + $0x410] sm:$0xf]
                %347 = vst [vmem:[%s289 + $0x230] sm:$0xf] %v346
                %v348 = vld [vmem:[%s288 + $0x424] sm:$0xf]
                %349 = vst [vmem:[%s289 + $0x244] sm:$0xf] %v348
                %v350 = vld [vmem:[%s288 + $0x438] sm:$0xf]
                %351 = vst [vmem:[%s289 + $0x258] sm:$0xf] %v350
                %v352 = vld [vmem:[%s288 + $0x44c] sm:$0xf]
                %353 = vst [vmem:[%s289 + $0x26c] sm:$0xf] %v352
              $region48: #{dilenet_forward.5} parent=35 // loop_footer
                %s287 = sadd.s32 1, %s283
              $region49: #{dilenet_forward.5} parent=35 // loop_footer_branch
                %282 = sbr.rel target = $region45
              $region50: #{dilenet_forward.5} parent=35 // loop_exit
                _
            $region36: #{dilenet_forward.5} parent=31 // pred_fallthru
              _
          $region32: #{dilenet_forward.5} parent=27 // pred_fallthru
            _
          %354 = vnop
        $region28: #{dilenet_forward.5} parent=23 // pred_fallthru
          _
      $region24: #{dilenet_forward.5} parent=5 // pred_fallthru
        _
      %p355 = scmp.le.s32.totalorder 1, %s9
      %p356 = scmp.lt.s32.totalorder %s9, 3
      %p357 = pnand %p355, %p356
      %p358 = pneg %p357
      // Predicated region
      $region51: #{dilenet_forward.5} parent=5 // pred_check
        _
      $region52: #{dilenet_forward.5} parent=5 // pred_check_branch
        %360 = sbr.rel (%p357) target = $region54
      $region53: #{dilenet_forward.5} parent=5 // pred_region
        %s361 = ssub.s32 %s9, 1
        %s362 = sand.u32 %s22, 1
        %s363 = sand.u32 %s22, 1
        %s364 = smul.addr %s363, 640
        %s365 = scalar_lea.vmem [#allocation2], %s364
        // Predicated region
        $region55: #{dilenet_forward.5} parent=53 // pred_check
          %p366 = pneg %p35
        $region56: #{dilenet_forward.5} parent=53 // pred_check_branch
          %368 = sbr.rel (%p366) target = $region58
        $region57: #{dilenet_forward.5} parent=53 // pred_region
          _
        $region58: #{dilenet_forward.5} parent=53 // pred_fallthru
          _
        %s369 = sand.u32 %s22, 1
        %s370 = sand.u32 %s22, 1
        %s371 = smul.addr %s370, 640
        %s372 = scalar_lea.vmem [#allocation2], %s371
        %p373 = pneg %p35
        %p374 = pneg %p32
        %p375 = pneg %p56
        %p376 = pneg %p53
        %p377 = pneg %p77
        %p378 = pneg %p74
        %p379 = pneg %p103
        %p380 = pneg %p100
        %s381 = smul.u32 8, %s14
        %p382 = scmp.lt.s32.totalorder %s381, 15
        %s383 = scalar_select %p382, %s381, 15
        %s384 = smul.addr %s383, 2
        %s385 = smul.addr %s384, 4
        %s386 = scalar_lea.vmem %s3, %s385
        %s387 = smul.u32 8, %s14
        %s388 = smul.u32 8, %s14
        %p389 = scmp.lt.s32.totalorder %s388, 15
        %s390 = scalar_select %p389, %s388, 15
        %s391 = smul.addr %s390, 2
        %s392 = smul.addr %s391, 4
        %s393 = scalar_lea.vmem %s3, %s392
        %s394 = smul.u32 8, %s14
        %v396 = vld [vmem:[%s365] sm:$0xff]
        %v397 = vld [vmem:[%s365 + $0x8] sm:$0xff]
        %v398 = vld [vmem:[%s365 + $0x10] sm:$0xf]
        %v399 = vld [vmem:[%s365 + $0x14] sm:$0xff]
        %v400 = vld [vmem:[%s365 + $0x1c] sm:$0xff]
        %v401 = vld [vmem:[%s365 + $0x24] sm:$0xf]
        %v402 = vld [vmem:[%s365 + $0x28] sm:$0xff]
        %v403 = vld [vmem:[%s365 + $0x30] sm:$0xff]
        %v404 = vld [vmem:[%s365 + $0x38] sm:$0xf]
        %v405 = vld [vmem:[%s365 + $0x3c] sm:$0xff]
        %v406 = vld [vmem:[%s365 + $0x44] sm:$0xff]
        %v407 = vld [vmem:[%s365 + $0x4c] sm:$0xf]
        %v408 = vld [vmem:[%s365 + $0x50] sm:$0xff]
        %v409 = vld [vmem:[%s365 + $0x58] sm:$0xff]
        %v410 = vld [vmem:[%s365 + $0x60] sm:$0xf]
        %v411 = vld [vmem:[%s365 + $0x64] sm:$0xff]
        %v412 = vld [vmem:[%s365 + $0x6c] sm:$0xff]
        %v413 = vld [vmem:[%s365 + $0x74] sm:$0xf]
        %v414 = vld [vmem:[%s365 + $0x78] sm:$0xff]
        %v415 = vld [vmem:[%s365 + $0x80] sm:$0xff]
        %v416 = vld [vmem:[%s365 + $0x88] sm:$0xf]
        %v417 = vld [vmem:[%s365 + $0x8c] sm:$0xff]
        %v418 = vld [vmem:[%s365 + $0x94] sm:$0xff]
        %v419 = vld [vmem:[%s365 + $0x9c] sm:$0xf]
        %v420 = vld [vmem:[%s365 + $0xa0] sm:$0xff]
        %v421 = vld [vmem:[%s365 + $0xa8] sm:$0xff]
        %v422 = vld [vmem:[%s365 + $0xb0] sm:$0xf]
        %v423 = vld [vmem:[%s365 + $0xb4] sm:$0xff]
        %v424 = vld [vmem:[%s365 + $0xbc] sm:$0xff]
        %v425 = vld [vmem:[%s365 + $0xc4] sm:$0xf]
        %v426 = vld [vmem:[%s365 + $0xc8] sm:$0xff]
        %v427 = vld [vmem:[%s365 + $0xd0] sm:$0xff]
        %v428 = vld [vmem:[%s365 + $0xd8] sm:$0xf]
        %v429 = vld [vmem:[%s365 + $0xdc] sm:$0xff]
        %v430 = vld [vmem:[%s365 + $0xe4] sm:$0xff]
        %v431 = vld [vmem:[%s365 + $0xec] sm:$0xf]
        %v432 = vld [vmem:[%s365 + $0xf0] sm:$0xff]
        %v433 = vld [vmem:[%s365 + $0xf8] sm:$0xff]
        %v434 = vld [vmem:[%s365 + $0x100] sm:$0xf]
        %v435 = vld [vmem:[%s365 + $0x104] sm:$0xff]
        %v436 = vld [vmem:[%s365 + $0x10c] sm:$0xff]
        %v437 = vld [vmem:[%s365 + $0x114] sm:$0xf]
        %v438 = vld [vmem:[%s365 + $0x118] sm:$0xff]
        %v439 = vld [vmem:[%s365 + $0x120] sm:$0xff]
        %v440 = vld [vmem:[%s365 + $0x128] sm:$0xf]
        %v441 = vld [vmem:[%s365 + $0x12c] sm:$0xff]
        %v442 = vld [vmem:[%s365 + $0x134] sm:$0xff]
        %v443 = vld [vmem:[%s365 + $0x13c] sm:$0xf]
        %v444 = vld [vmem:[%s365 + $0x140] sm:$0xff]
        %v445 = vld [vmem:[%s365 + $0x148] sm:$0xff]
        %v446 = vld [vmem:[%s365 + $0x150] sm:$0xf]
        %v447 = vld [vmem:[%s365 + $0x154] sm:$0xff]
        %v448 = vld [vmem:[%s365 + $0x15c] sm:$0xff]
        %v449 = vld [vmem:[%s365 + $0x164] sm:$0xf]
        %v450 = vld [vmem:[%s365 + $0x168] sm:$0xff]
        %v451 = vld [vmem:[%s365 + $0x170] sm:$0xff]
        %v452 = vld [vmem:[%s365 + $0x178] sm:$0xf]
        %v453 = vld [vmem:[%s365 + $0x17c] sm:$0xff]
        %v454 = vld [vmem:[%s365 + $0x184] sm:$0xff]
        %v455 = vld [vmem:[%s365 + $0x18c] sm:$0xf]
        %v456 = vld [vmem:[%s365 + $0x190] sm:$0xff]
        %v457 = vld [vmem:[%s365 + $0x198] sm:$0xff]
        %v458 = vld [vmem:[%s365 + $0x1a0] sm:$0xf]
        %v459 = vld [vmem:[%s365 + $0x1a4] sm:$0xff]
        %v460 = vld [vmem:[%s365 + $0x1ac] sm:$0xff]
        %v461 = vld [vmem:[%s365 + $0x1b4] sm:$0xf]
        %v462 = vld [vmem:[%s365 + $0x1b8] sm:$0xff]
        %v463 = vld [vmem:[%s365 + $0x1c0] sm:$0xff]
        %v464 = vld [vmem:[%s365 + $0x1c8] sm:$0xf]
        %v465 = vld [vmem:[%s365 + $0x1cc] sm:$0xff]
        %v466 = vld [vmem:[%s365 + $0x1d4] sm:$0xff]
        %v467 = vld [vmem:[%s365 + $0x1dc] sm:$0xf]
        %v468 = vld [vmem:[%s365 + $0x1e0] sm:$0xff]
        %v469 = vld [vmem:[%s365 + $0x1e8] sm:$0xff]
        %v470 = vld [vmem:[%s365 + $0x1f0] sm:$0xf]
        %v471 = vld [vmem:[%s365 + $0x1f4] sm:$0xff]
        %v472 = vld [vmem:[%s365 + $0x1fc] sm:$0xff]
        %v473 = vld [vmem:[%s365 + $0x204] sm:$0xf]
        %v474 = vld [vmem:[%s365 + $0x208] sm:$0xff]
        %v475 = vld [vmem:[%s365 + $0x210] sm:$0xff]
        %v476 = vld [vmem:[%s365 + $0x218] sm:$0xf]
        %v477 = vld [vmem:[%s365 + $0x21c] sm:$0xff]
        %v478 = vld [vmem:[%s365 + $0x224] sm:$0xff]
        %v479 = vld [vmem:[%s365 + $0x22c] sm:$0xf]
        %v480 = vld [vmem:[%s365 + $0x230] sm:$0xff]
        %v481 = vld [vmem:[%s365 + $0x238] sm:$0xff]
        %v482 = vld [vmem:[%s365 + $0x240] sm:$0xf]
        %v483 = vld [vmem:[%s365 + $0x244] sm:$0xff]
        %v484 = vld [vmem:[%s365 + $0x24c] sm:$0xff]
        %v485 = vld [vmem:[%s365 + $0x254] sm:$0xf]
        %v486 = vld [vmem:[%s365 + $0x258] sm:$0xff]
        %v487 = vld [vmem:[%s365 + $0x260] sm:$0xff]
        %v488 = vld [vmem:[%s365 + $0x268] sm:$0xf]
        %v489 = vld [vmem:[%s365 + $0x26c] sm:$0xff]
        %v490 = vld [vmem:[%s365 + $0x274] sm:$0xff]
        %v491 = vld [vmem:[%s365 + $0x27c] sm:$0xf]
        %v492 = vld [vmem:[%s1] sm:$0xff]
        %v493 = vld [vmem:[%s1 + $0x8] sm:$0xff]
        %v494 = vld [vmem:[%s1 + $0x10] sm:$0xff]
        %v495 = vld [vmem:[%s1 + $0x18] sm:$0xff]
        %v496 = vld [vmem:[%s1 + $0x20] sm:$0xff]
        %v497 = vld [vmem:[%s1 + $0x28] sm:$0xff]
        %v498 = vld [vmem:[%s1 + $0x30] sm:$0xff]
        %v499 = vld [vmem:[%s1 + $0x38] sm:$0xff]
        %v500 = vld [vmem:[%s1 + $0x40] sm:$0xff]
        %v501 = vld [vmem:[%s1 + $0x48] sm:$0xff]
        %v502 = vld [vmem:[%s1 + $0x50] sm:$0xff]
        %v503 = vld [vmem:[%s1 + $0x58] sm:$0xff]
        %v504 = vld [vmem:[%s1 + $0x60] sm:$0xff]
        %v505 = vld [vmem:[%s1 + $0x68] sm:$0xff]
        %v506 = vld [vmem:[%s1 + $0x70] sm:$0xff]
        %v507 = vld [vmem:[%s1 + $0x78] sm:$0xff]
        %v508 = vld [vmem:[%s1 + $0x80] sm:$0xff]
        %v509 = vld [vmem:[%s1 + $0x88] sm:$0xff]
        %v510 = vld [vmem:[%s1 + $0x90] sm:$0xff]
        %v511 = vld [vmem:[%s1 + $0x98] sm:$0xff]
        %v512 = vld [vmem:[%s1 + $0xa0] sm:$0xff]
        %v513 = vld [vmem:[%s1 + $0xa8] sm:$0xff]
        %v514 = vld [vmem:[%s1 + $0xb0] sm:$0xff]
        %v515 = vld [vmem:[%s1 + $0xb8] sm:$0xff]
        %v516 = vld [vmem:[%s1 + $0xc0] sm:$0xff]
        %v517 = vld [vmem:[%s1 + $0xc8] sm:$0xff]
        %v518 = vld [vmem:[%s1 + $0xd0] sm:$0xff]
        %v519 = vld [vmem:[%s1 + $0xd8] sm:$0xff]
        %v520 = vld [vmem:[%s1 + $0xe0] sm:$0xff]
        %v521 = vld [vmem:[%s1 + $0xe8] sm:$0xff]
        %v522 = vld [vmem:[%s1 + $0xf0] sm:$0xff]
        %v523 = vld [vmem:[%s1 + $0xf8] sm:$0xff]
        %v524 = vld [vmem:[%s1 + $0x100] sm:$0xff]
        %v525 = vld [vmem:[%s1 + $0x108] sm:$0xff]
        %v526 = vld [vmem:[%s1 + $0x110] sm:$0xff]
        %v527 = vld [vmem:[%s1 + $0x118] sm:$0xff]
        %v528 = vld [vmem:[%s1 + $0x120] sm:$0xff]
        %v529 = vld [vmem:[%s1 + $0x128] sm:$0xff]
        %v530 = vld [vmem:[%s1 + $0x130] sm:$0xff]
        %v531 = vld [vmem:[%s1 + $0x138] sm:$0xff]
        %v532 = vld [vmem:[%s1 + $0x140] sm:$0xff]
        %v533 = vld [vmem:[%s1 + $0x148] sm:$0xff]
        %v534 = vld [vmem:[%s1 + $0x150] sm:$0xff]
        %v535 = vld [vmem:[%s1 + $0x158] sm:$0xff]
        %v536 = vld [vmem:[%s1 + $0x160] sm:$0xff]
        %v537 = vld [vmem:[%s1 + $0x168] sm:$0xff]
        %v538 = vld [vmem:[%s1 + $0x170] sm:$0xff]
        %v539 = vld [vmem:[%s1 + $0x178] sm:$0xff]
        %v540 = vld [vmem:[%s1 + $0x180] sm:$0xff]
        %v541 = vld [vmem:[%s1 + $0x188] sm:$0xff]
        %v542 = vld [vmem:[%s1 + $0x190] sm:$0xff]
        %v543 = vld [vmem:[%s1 + $0x198] sm:$0xff]
        %v544 = vld [vmem:[%s1 + $0x1a0] sm:$0xff]
        %v545 = vld [vmem:[%s1 + $0x1a8] sm:$0xff]
        %v546 = vld [vmem:[%s1 + $0x1b0] sm:$0xff]
        %v547 = vld [vmem:[%s1 + $0x1b8] sm:$0xff]
        %v548 = vld [vmem:[%s1 + $0x1c0] sm:$0xff]
        %v549 = vld [vmem:[%s1 + $0x1c8] sm:$0xff]
        %v550 = vld [vmem:[%s1 + $0x1d0] sm:$0xff]
        %v551 = vld [vmem:[%s1 + $0x1d8] sm:$0xff]
        %v552 = vld [vmem:[%s1 + $0x1e0] sm:$0xff]
        %v553 = vld [vmem:[%s1 + $0x1e8] sm:$0xff]
        %v554 = vld [vmem:[%s1 + $0x1f0] sm:$0xff]
        %v555 = vld [vmem:[%s1 + $0x1f8] sm:$0xff]
        %v556 = vld [vmem:[%s1 + $0x200] sm:$0xff]
        %v557 = vld [vmem:[%s1 + $0x208] sm:$0xff]
        %v558 = vld [vmem:[%s1 + $0x210] sm:$0xff]
        %v559 = vld [vmem:[%s1 + $0x218] sm:$0xff]
        %v560 = vld [vmem:[%s1 + $0x220] sm:$0xff]
        %v561 = vld [vmem:[%s1 + $0x228] sm:$0xff]
        %v562 = vld [vmem:[%s1 + $0x230] sm:$0xff]
        %v563 = vld [vmem:[%s1 + $0x238] sm:$0xff]
        %v564 = vld [vmem:[%s1 + $0x240] sm:$0xff]
        %v565 = vld [vmem:[%s1 + $0x248] sm:$0xff]
        %v566 = vld [vmem:[%s1 + $0x250] sm:$0xff]
        %v567 = vld [vmem:[%s1 + $0x258] sm:$0xff]
        %v568 = vld [vmem:[%s1 + $0x260] sm:$0xff]
        %v569 = vld [vmem:[%s1 + $0x268] sm:$0xff]
        %v570 = vld [vmem:[%s1 + $0x270] sm:$0xff]
        %v571 = vld [vmem:[%s1 + $0x278] sm:$0xff]
        %v668 = vunpack.c.l.b16 %v396
        %v669 = vunpack.c.h.b16 %v396
        %v670 = vunpack.c.l.b16 %v397
        %v671 = vunpack.c.h.b16 %v397
        %v672 = vunpack.c.l.b16 %v398
        %v673 = vunpack.c.l.b16 %v399
        %v674 = vunpack.c.h.b16 %v399
        %v675 = vunpack.c.l.b16 %v400
        %v676 = vunpack.c.h.b16 %v400
        %v677 = vunpack.c.l.b16 %v401
        %v678 = vunpack.c.l.b16 %v402
        %v679 = vunpack.c.h.b16 %v402
        %v680 = vunpack.c.l.b16 %v403
        %v681 = vunpack.c.h.b16 %v403
        %v682 = vunpack.c.l.b16 %v404
        %v683 = vunpack.c.l.b16 %v405
        %v684 = vunpack.c.h.b16 %v405
        %v685 = vunpack.c.l.b16 %v406
        %v686 = vunpack.c.h.b16 %v406
        %v687 = vunpack.c.l.b16 %v407
        %v688 = vunpack.c.l.b16 %v408
        %v689 = vunpack.c.h.b16 %v408
        %v690 = vunpack.c.l.b16 %v409
        %v691 = vunpack.c.h.b16 %v409
        %v692 = vunpack.c.l.b16 %v410
        %v693 = vunpack.c.l.b16 %v411
        %v694 = vunpack.c.h.b16 %v411
        %v695 = vunpack.c.l.b16 %v412
        %v696 = vunpack.c.h.b16 %v412
        %v697 = vunpack.c.l.b16 %v413
        %v698 = vunpack.c.l.b16 %v414
        %v699 = vunpack.c.h.b16 %v414
        %v700 = vunpack.c.l.b16 %v415
        %v701 = vunpack.c.h.b16 %v415
        %v702 = vunpack.c.l.b16 %v416
        %v703 = vunpack.c.l.b16 %v417
        %v704 = vunpack.c.h.b16 %v417
        %v705 = vunpack.c.l.b16 %v418
        %v706 = vunpack.c.h.b16 %v418
        %v707 = vunpack.c.l.b16 %v419
        %v708 = vunpack.c.l.b16 %v420
        %v709 = vunpack.c.h.b16 %v420
        %v710 = vunpack.c.l.b16 %v421
        %v711 = vunpack.c.h.b16 %v421
        %v712 = vunpack.c.l.b16 %v422
        %v713 = vunpack.c.l.b16 %v423
        %v714 = vunpack.c.h.b16 %v423
        %v715 = vunpack.c.l.b16 %v424
        %v716 = vunpack.c.h.b16 %v424
        %v717 = vunpack.c.l.b16 %v425
        %v718 = vunpack.c.l.b16 %v426
        %v719 = vunpack.c.h.b16 %v426
        %v720 = vunpack.c.l.b16 %v427
        %v721 = vunpack.c.h.b16 %v427
        %v722 = vunpack.c.l.b16 %v428
        %v723 = vunpack.c.l.b16 %v429
        %v724 = vunpack.c.h.b16 %v429
        %v725 = vunpack.c.l.b16 %v430
        %v726 = vunpack.c.h.b16 %v430
        %v727 = vunpack.c.l.b16 %v431
        %v728 = vunpack.c.l.b16 %v432
        %v729 = vunpack.c.h.b16 %v432
        %v730 = vunpack.c.l.b16 %v433
        %v731 = vunpack.c.h.b16 %v433
        %v732 = vunpack.c.l.b16 %v434
        %v733 = vunpack.c.l.b16 %v435
        %v734 = vunpack.c.h.b16 %v435
        %v735 = vunpack.c.l.b16 %v436
        %v736 = vunpack.c.h.b16 %v436
        %v737 = vunpack.c.l.b16 %v437
        %v738 = vunpack.c.l.b16 %v438
        %v739 = vunpack.c.h.b16 %v438
        %v740 = vunpack.c.l.b16 %v439
        %v741 = vunpack.c.h.b16 %v439
        %v742 = vunpack.c.l.b16 %v440
        %v743 = vunpack.c.l.b16 %v441
        %v744 = vunpack.c.h.b16 %v441
        %v745 = vunpack.c.l.b16 %v442
        %v746 = vunpack.c.h.b16 %v442
        %v747 = vunpack.c.l.b16 %v443
        %v748 = vunpack.c.l.b16 %v444
        %v749 = vunpack.c.h.b16 %v444
        %v750 = vunpack.c.l.b16 %v445
        %v751 = vunpack.c.h.b16 %v445
        %v752 = vunpack.c.l.b16 %v446
        %v753 = vunpack.c.l.b16 %v447
        %v754 = vunpack.c.h.b16 %v447
        %v755 = vunpack.c.l.b16 %v448
        %v756 = vunpack.c.h.b16 %v448
        %v757 = vunpack.c.l.b16 %v449
        %v758 = vunpack.c.l.b16 %v450
        %v759 = vunpack.c.h.b16 %v450
        %v760 = vunpack.c.l.b16 %v451
        %v761 = vunpack.c.h.b16 %v451
        %v762 = vunpack.c.l.b16 %v452
        %v763 = vunpack.c.l.b16 %v453
        %v764 = vunpack.c.h.b16 %v453
        %v765 = vunpack.c.l.b16 %v454
        %v766 = vunpack.c.h.b16 %v454
        %v767 = vunpack.c.l.b16 %v455
        %v768 = vunpack.c.l.b16 %v456
        %v769 = vunpack.c.h.b16 %v456
        %v770 = vunpack.c.l.b16 %v457
        %v771 = vunpack.c.h.b16 %v457
        %v772 = vunpack.c.l.b16 %v458
        %v773 = vunpack.c.l.b16 %v459
        %v774 = vunpack.c.h.b16 %v459
        %v775 = vunpack.c.l.b16 %v460
        %v776 = vunpack.c.h.b16 %v460
        %v777 = vunpack.c.l.b16 %v461
        %v778 = vunpack.c.l.b16 %v462
        %v779 = vunpack.c.h.b16 %v462
        %v780 = vunpack.c.l.b16 %v463
        %v781 = vunpack.c.h.b16 %v463
        %v782 = vunpack.c.l.b16 %v464
        %v783 = vunpack.c.l.b16 %v465
        %v784 = vunpack.c.h.b16 %v465
        %v785 = vunpack.c.l.b16 %v466
        %v786 = vunpack.c.h.b16 %v466
        %v787 = vunpack.c.l.b16 %v467
        %v788 = vunpack.c.l.b16 %v468
        %v789 = vunpack.c.h.b16 %v468
        %v790 = vunpack.c.l.b16 %v469
        %v791 = vunpack.c.h.b16 %v469
        %v792 = vunpack.c.l.b16 %v470
        %v793 = vunpack.c.l.b16 %v471
        %v794 = vunpack.c.h.b16 %v471
        %v795 = vunpack.c.l.b16 %v472
        %v796 = vunpack.c.h.b16 %v472
        %v797 = vunpack.c.l.b16 %v473
        %v798 = vunpack.c.l.b16 %v474
        %v799 = vunpack.c.h.b16 %v474
        %v800 = vunpack.c.l.b16 %v475
        %v801 = vunpack.c.h.b16 %v475
        %v802 = vunpack.c.l.b16 %v476
        %v803 = vunpack.c.l.b16 %v477
        %v804 = vunpack.c.h.b16 %v477
        %v805 = vunpack.c.l.b16 %v478
        %v806 = vunpack.c.h.b16 %v478
        %v807 = vunpack.c.l.b16 %v479
        %v808 = vunpack.c.l.b16 %v480
        %v809 = vunpack.c.h.b16 %v480
        %v810 = vunpack.c.l.b16 %v481
        %v811 = vunpack.c.h.b16 %v481
        %v812 = vunpack.c.l.b16 %v482
        %v813 = vunpack.c.l.b16 %v483
        %v814 = vunpack.c.h.b16 %v483
        %v815 = vunpack.c.l.b16 %v484
        %v816 = vunpack.c.h.b16 %v484
        %v817 = vunpack.c.l.b16 %v485
        %v818 = vunpack.c.l.b16 %v486
        %v819 = vunpack.c.h.b16 %v486
        %v820 = vunpack.c.l.b16 %v487
        %v821 = vunpack.c.h.b16 %v487
        %v822 = vunpack.c.l.b16 %v488
        %v823 = vunpack.c.l.b16 %v489
        %v824 = vunpack.c.h.b16 %v489
        %v825 = vunpack.c.l.b16 %v490
        %v826 = vunpack.c.h.b16 %v490
        %v827 = vunpack.c.l.b16 %v491
        %v828 = vpack.c.b16 %v673, %v668
        %v829 = vpack.c.b16 %v674, %v669
        %v830 = vpack.c.b16 %v675, %v670
        %v831 = vpack.c.b16 %v676, %v671
        %v832 = vpack.c.b16 %v677, %v672
        %v833 = vpack.c.b16 %v683, %v678
        %v834 = vpack.c.b16 %v684, %v679
        %v835 = vpack.c.b16 %v685, %v680
        %v836 = vpack.c.b16 %v686, %v681
        %v837 = vpack.c.b16 %v687, %v682
        %v838 = vpack.c.b16 %v693, %v688
        %v839 = vpack.c.b16 %v694, %v689
        %v840 = vpack.c.b16 %v695, %v690
        %v841 = vpack.c.b16 %v696, %v691
        %v842 = vpack.c.b16 %v697, %v692
        %v843 = vpack.c.b16 %v703, %v698
        %v844 = vpack.c.b16 %v704, %v699
        %v845 = vpack.c.b16 %v705, %v700
        %v846 = vpack.c.b16 %v706, %v701
        %v847 = vpack.c.b16 %v707, %v702
        %v848 = vpack.c.b16 %v713, %v708
        %v849 = vpack.c.b16 %v714, %v709
        %v850 = vpack.c.b16 %v715, %v710
        %v851 = vpack.c.b16 %v716, %v711
        %v852 = vpack.c.b16 %v717, %v712
        %v853 = vpack.c.b16 %v723, %v718
        %v854 = vpack.c.b16 %v724, %v719
        %v855 = vpack.c.b16 %v725, %v720
        %v856 = vpack.c.b16 %v726, %v721
        %v857 = vpack.c.b16 %v727, %v722
        %v858 = vpack.c.b16 %v733, %v728
        %v859 = vpack.c.b16 %v734, %v729
        %v860 = vpack.c.b16 %v735, %v730
        %v861 = vpack.c.b16 %v736, %v731
        %v862 = vpack.c.b16 %v737, %v732
        %v863 = vpack.c.b16 %v743, %v738
        %v864 = vpack.c.b16 %v744, %v739
        %v865 = vpack.c.b16 %v745, %v740
        %v866 = vpack.c.b16 %v746, %v741
        %v867 = vpack.c.b16 %v747, %v742
        %v868 = vpack.c.b16 %v753, %v748
        %v869 = vpack.c.b16 %v754, %v749
        %v870 = vpack.c.b16 %v755, %v750
        %v871 = vpack.c.b16 %v756, %v751
        %v872 = vpack.c.b16 %v757, %v752
        %v873 = vpack.c.b16 %v763, %v758
        %v874 = vpack.c.b16 %v764, %v759
        %v875 = vpack.c.b16 %v765, %v760
        %v876 = vpack.c.b16 %v766, %v761
        %v877 = vpack.c.b16 %v767, %v762
        %v878 = vpack.c.b16 %v773, %v768
        %v879 = vpack.c.b16 %v774, %v769
        %v880 = vpack.c.b16 %v775, %v770
        %v881 = vpack.c.b16 %v776, %v771
        %v882 = vpack.c.b16 %v777, %v772
        %v883 = vpack.c.b16 %v783, %v778
        %v884 = vpack.c.b16 %v784, %v779
        %v885 = vpack.c.b16 %v785, %v780
        %v886 = vpack.c.b16 %v786, %v781
        %v887 = vpack.c.b16 %v787, %v782
        %v888 = vpack.c.b16 %v793, %v788
        %v889 = vpack.c.b16 %v794, %v789
        %v890 = vpack.c.b16 %v795, %v790
        %v891 = vpack.c.b16 %v796, %v791
        %v892 = vpack.c.b16 %v797, %v792
        %v893 = vpack.c.b16 %v803, %v798
        %v894 = vpack.c.b16 %v804, %v799
        %v895 = vpack.c.b16 %v805, %v800
        %v896 = vpack.c.b16 %v806, %v801
        %v897 = vpack.c.b16 %v807, %v802
        %v898 = vpack.c.b16 %v813, %v808
        %v899 = vpack.c.b16 %v814, %v809
        %v900 = vpack.c.b16 %v815, %v810
        %v901 = vpack.c.b16 %v816, %v811
        %v902 = vpack.c.b16 %v817, %v812
        %v903 = vpack.c.b16 %v823, %v818
        %v904 = vpack.c.b16 %v824, %v819
        %v905 = vpack.c.b16 %v825, %v820
        %v906 = vpack.c.b16 %v826, %v821
        %v907 = vpack.c.b16 %v827, %v822
        %v1068 = vunpack.c.l.b16 %v492
        %v1069 = vunpack.c.h.b16 %v492
        %v1070 = vunpack.c.l.b16 %v493
        %v1071 = vunpack.c.h.b16 %v493
        %v1072 = vunpack.c.l.b16 %v494
        %v1073 = vunpack.c.h.b16 %v494
        %v1074 = vunpack.c.l.b16 %v495
        %v1075 = vunpack.c.h.b16 %v495
        %v1076 = vunpack.c.l.b16 %v496
        %v1077 = vunpack.c.h.b16 %v496
        %v1078 = vunpack.c.l.b16 %v497
        %v1079 = vunpack.c.h.b16 %v497
        %v1080 = vunpack.c.l.b16 %v498
        %v1081 = vunpack.c.h.b16 %v498
        %v1082 = vunpack.c.l.b16 %v499
        %v1083 = vunpack.c.h.b16 %v499
        %v1084 = vunpack.c.l.b16 %v500
        %v1085 = vunpack.c.h.b16 %v500
        %v1086 = vunpack.c.l.b16 %v501
        %v1087 = vunpack.c.h.b16 %v501
        %v1088 = vunpack.c.l.b16 %v502
        %v1089 = vunpack.c.h.b16 %v502
        %v1090 = vunpack.c.l.b16 %v503
        %v1091 = vunpack.c.h.b16 %v503
        %v1092 = vunpack.c.l.b16 %v504
        %v1093 = vunpack.c.h.b16 %v504
        %v1094 = vunpack.c.l.b16 %v505
        %v1095 = vunpack.c.h.b16 %v505
        %v1096 = vunpack.c.l.b16 %v506
        %v1097 = vunpack.c.h.b16 %v506
        %v1098 = vunpack.c.l.b16 %v507
        %v1099 = vunpack.c.h.b16 %v507
        %v1100 = vunpack.c.l.b16 %v508
        %v1101 = vunpack.c.h.b16 %v508
        %v1102 = vunpack.c.l.b16 %v509
        %v1103 = vunpack.c.h.b16 %v509
        %v1104 = vunpack.c.l.b16 %v510
        %v1105 = vunpack.c.h.b16 %v510
        %v1106 = vunpack.c.l.b16 %v511
        %v1107 = vunpack.c.h.b16 %v511
        %v1108 = vunpack.c.l.b16 %v512
        %v1109 = vunpack.c.h.b16 %v512
        %v1110 = vunpack.c.l.b16 %v513
        %v1111 = vunpack.c.h.b16 %v513
        %v1112 = vunpack.c.l.b16 %v514
        %v1113 = vunpack.c.h.b16 %v514
        %v1114 = vunpack.c.l.b16 %v515
        %v1115 = vunpack.c.h.b16 %v515
        %v1116 = vunpack.c.l.b16 %v516
        %v1117 = vunpack.c.h.b16 %v516
        %v1118 = vunpack.c.l.b16 %v517
        %v1119 = vunpack.c.h.b16 %v517
        %v1120 = vunpack.c.l.b16 %v518
        %v1121 = vunpack.c.h.b16 %v518
        %v1122 = vunpack.c.l.b16 %v519
        %v1123 = vunpack.c.h.b16 %v519
        %v1124 = vunpack.c.l.b16 %v520
        %v1125 = vunpack.c.h.b16 %v520
        %v1126 = vunpack.c.l.b16 %v521
        %v1127 = vunpack.c.h.b16 %v521
        %v1128 = vunpack.c.l.b16 %v522
        %v1129 = vunpack.c.h.b16 %v522
        %v1130 = vunpack.c.l.b16 %v523
        %v1131 = vunpack.c.h.b16 %v523
        %v1132 = vunpack.c.l.b16 %v524
        %v1133 = vunpack.c.h.b16 %v524
        %v1134 = vunpack.c.l.b16 %v525
        %v1135 = vunpack.c.h.b16 %v525
        %v1136 = vunpack.c.l.b16 %v526
        %v1137 = vunpack.c.h.b16 %v526
        %v1138 = vunpack.c.l.b16 %v527
        %v1139 = vunpack.c.h.b16 %v527
        %v1140 = vunpack.c.l.b16 %v528
        %v1141 = vunpack.c.h.b16 %v528
        %v1142 = vunpack.c.l.b16 %v529
        %v1143 = vunpack.c.h.b16 %v529
        %v1144 = vunpack.c.l.b16 %v530
        %v1145 = vunpack.c.h.b16 %v530
        %v1146 = vunpack.c.l.b16 %v531
        %v1147 = vunpack.c.h.b16 %v531
        %v1148 = vunpack.c.l.b16 %v532
        %v1149 = vunpack.c.h.b16 %v532
        %v1150 = vunpack.c.l.b16 %v533
        %v1151 = vunpack.c.h.b16 %v533
        %v1152 = vunpack.c.l.b16 %v534
        %v1153 = vunpack.c.h.b16 %v534
        %v1154 = vunpack.c.l.b16 %v535
        %v1155 = vunpack.c.h.b16 %v535
        %v1156 = vunpack.c.l.b16 %v536
        %v1157 = vunpack.c.h.b16 %v536
        %v1158 = vunpack.c.l.b16 %v537
        %v1159 = vunpack.c.h.b16 %v537
        %v1160 = vunpack.c.l.b16 %v538
        %v1161 = vunpack.c.h.b16 %v538
        %v1162 = vunpack.c.l.b16 %v539
        %v1163 = vunpack.c.h.b16 %v539
        %v1164 = vunpack.c.l.b16 %v540
        %v1165 = vunpack.c.h.b16 %v540
        %v1166 = vunpack.c.l.b16 %v541
        %v1167 = vunpack.c.h.b16 %v541
        %v1168 = vunpack.c.l.b16 %v542
        %v1169 = vunpack.c.h.b16 %v542
        %v1170 = vunpack.c.l.b16 %v543
        %v1171 = vunpack.c.h.b16 %v543
        %v1172 = vunpack.c.l.b16 %v544
        %v1173 = vunpack.c.h.b16 %v544
        %v1174 = vunpack.c.l.b16 %v545
        %v1175 = vunpack.c.h.b16 %v545
        %v1176 = vunpack.c.l.b16 %v546
        %v1177 = vunpack.c.h.b16 %v546
        %v1178 = vunpack.c.l.b16 %v547
        %v1179 = vunpack.c.h.b16 %v547
        %v1180 = vunpack.c.l.b16 %v548
        %v1181 = vunpack.c.h.b16 %v548
        %v1182 = vunpack.c.l.b16 %v549
        %v1183 = vunpack.c.h.b16 %v549
        %v1184 = vunpack.c.l.b16 %v550
        %v1185 = vunpack.c.h.b16 %v550
        %v1186 = vunpack.c.l.b16 %v551
        %v1187 = vunpack.c.h.b16 %v551
        %v1188 = vunpack.c.l.b16 %v552
        %v1189 = vunpack.c.h.b16 %v552
        %v1190 = vunpack.c.l.b16 %v553
        %v1191 = vunpack.c.h.b16 %v553
        %v1192 = vunpack.c.l.b16 %v554
        %v1193 = vunpack.c.h.b16 %v554
        %v1194 = vunpack.c.l.b16 %v555
        %v1195 = vunpack.c.h.b16 %v555
        %v1196 = vunpack.c.l.b16 %v556
        %v1197 = vunpack.c.h.b16 %v556
        %v1198 = vunpack.c.l.b16 %v557
        %v1199 = vunpack.c.h.b16 %v557
        %v1200 = vunpack.c.l.b16 %v558
        %v1201 = vunpack.c.h.b16 %v558
        %v1202 = vunpack.c.l.b16 %v559
        %v1203 = vunpack.c.h.b16 %v559
        %v1204 = vunpack.c.l.b16 %v560
        %v1205 = vunpack.c.h.b16 %v560
        %v1206 = vunpack.c.l.b16 %v561
        %v1207 = vunpack.c.h.b16 %v561
        %v1208 = vunpack.c.l.b16 %v562
        %v1209 = vunpack.c.h.b16 %v562
        %v1210 = vunpack.c.l.b16 %v563
        %v1211 = vunpack.c.h.b16 %v563
        %v1212 = vunpack.c.l.b16 %v564
        %v1213 = vunpack.c.h.b16 %v564
        %v1214 = vunpack.c.l.b16 %v565
        %v1215 = vunpack.c.h.b16 %v565
        %v1216 = vunpack.c.l.b16 %v566
        %v1217 = vunpack.c.h.b16 %v566
        %v1218 = vunpack.c.l.b16 %v567
        %v1219 = vunpack.c.h.b16 %v567
        %v1220 = vunpack.c.l.b16 %v568
        %v1221 = vunpack.c.h.b16 %v568
        %v1222 = vunpack.c.l.b16 %v569
        %v1223 = vunpack.c.h.b16 %v569
        %v1224 = vunpack.c.l.b16 %v570
        %v1225 = vunpack.c.h.b16 %v570
        %v1226 = vunpack.c.l.b16 %v571
        %v1227 = vunpack.c.h.b16 %v571
        %v1228 = vpack.c.b16 %v1070, %v1068
        %v1229 = vpack.c.b16 %v1071, %v1069
        %v1230 = vpack.c.b16 %v1074, %v1072
        %v1231 = vpack.c.b16 %v1075, %v1073
        %v1232 = vpack.c.b16 %v1078, %v1076
        %v1233 = vpack.c.b16 %v1079, %v1077
        %v1234 = vpack.c.b16 %v1082, %v1080
        %v1235 = vpack.c.b16 %v1083, %v1081
        %v1236 = vpack.c.b16 %v1086, %v1084
        %v1237 = vpack.c.b16 %v1087, %v1085
        %v1238 = vpack.c.b16 %v1090, %v1088
        %v1239 = vpack.c.b16 %v1091, %v1089
        %v1240 = vpack.c.b16 %v1094, %v1092
        %v1241 = vpack.c.b16 %v1095, %v1093
        %v1242 = vpack.c.b16 %v1098, %v1096
        %v1243 = vpack.c.b16 %v1099, %v1097
        %v1244 = vpack.c.b16 %v1102, %v1100
        %v1245 = vpack.c.b16 %v1103, %v1101
        %v1246 = vpack.c.b16 %v1106, %v1104
        %v1247 = vpack.c.b16 %v1107, %v1105
        %v1248 = vpack.c.b16 %v1110, %v1108
        %v1249 = vpack.c.b16 %v1111, %v1109
        %v1250 = vpack.c.b16 %v1114, %v1112
        %v1251 = vpack.c.b16 %v1115, %v1113
        %v1252 = vpack.c.b16 %v1118, %v1116
        %v1253 = vpack.c.b16 %v1119, %v1117
        %v1254 = vpack.c.b16 %v1122, %v1120
        %v1255 = vpack.c.b16 %v1123, %v1121
        %v1256 = vpack.c.b16 %v1126, %v1124
        %v1257 = vpack.c.b16 %v1127, %v1125
        %v1258 = vpack.c.b16 %v1130, %v1128
        %v1259 = vpack.c.b16 %v1131, %v1129
        %v1260 = vpack.c.b16 %v1134, %v1132
        %v1261 = vpack.c.b16 %v1135, %v1133
        %v1262 = vpack.c.b16 %v1138, %v1136
        %v1263 = vpack.c.b16 %v1139, %v1137
        %v1264 = vpack.c.b16 %v1142, %v1140
        %v1265 = vpack.c.b16 %v1143, %v1141
        %v1266 = vpack.c.b16 %v1146, %v1144
        %v1267 = vpack.c.b16 %v1147, %v1145
        %v1268 = vpack.c.b16 %v1150, %v1148
        %v1269 = vpack.c.b16 %v1151, %v1149
        %v1270 = vpack.c.b16 %v1154, %v1152
        %v1271 = vpack.c.b16 %v1155, %v1153
        %v1272 = vpack.c.b16 %v1158, %v1156
        %v1273 = vpack.c.b16 %v1159, %v1157
        %v1274 = vpack.c.b16 %v1162, %v1160
        %v1275 = vpack.c.b16 %v1163, %v1161
        %v1276 = vpack.c.b16 %v1166, %v1164
        %v1277 = vpack.c.b16 %v1167, %v1165
        %v1278 = vpack.c.b16 %v1170, %v1168
        %v1279 = vpack.c.b16 %v1171, %v1169
        %v1280 = vpack.c.b16 %v1174, %v1172
        %v1281 = vpack.c.b16 %v1175, %v1173
        %v1282 = vpack.c.b16 %v1178, %v1176
        %v1283 = vpack.c.b16 %v1179, %v1177
        %v1284 = vpack.c.b16 %v1182, %v1180
        %v1285 = vpack.c.b16 %v1183, %v1181
        %v1286 = vpack.c.b16 %v1186, %v1184
        %v1287 = vpack.c.b16 %v1187, %v1185
        %v1288 = vpack.c.b16 %v1190, %v1188
        %v1289 = vpack.c.b16 %v1191, %v1189
        %v1290 = vpack.c.b16 %v1194, %v1192
        %v1291 = vpack.c.b16 %v1195, %v1193
        %v1292 = vpack.c.b16 %v1198, %v1196
        %v1293 = vpack.c.b16 %v1199, %v1197
        %v1294 = vpack.c.b16 %v1202, %v1200
        %v1295 = vpack.c.b16 %v1203, %v1201
        %v1296 = vpack.c.b16 %v1206, %v1204
        %v1297 = vpack.c.b16 %v1207, %v1205
        %v1298 = vpack.c.b16 %v1210, %v1208
        %v1299 = vpack.c.b16 %v1211, %v1209
        %v1300 = vpack.c.b16 %v1214, %v1212
        %v1301 = vpack.c.b16 %v1215, %v1213
        %v1302 = vpack.c.b16 %v1218, %v1216
        %v1303 = vpack.c.b16 %v1219, %v1217
        %v1304 = vpack.c.b16 %v1222, %v1220
        %v1305 = vpack.c.b16 %v1223, %v1221
        %v1306 = vpack.c.b16 %v1226, %v1224
        %v1307 = vpack.c.b16 %v1227, %v1225
        %1388 = vmatprep.subr.bf16.mxu0 %v1229
        %1389 = vmatpush1.bf16.msra.mxu0 %v1228
        %1390 = vmatprep.subr.bf16.mxu0 %v1231
        %1391 = vmatpush1.bf16.msra.mxu0 %v1230
        %1392 = vmatprep.subr.bf16.mxu0 %v1233
        %1393 = vmatpush1.bf16.msra.mxu0 %v1232
        %1394 = vmatprep.subr.bf16.mxu0 %v1235
        %1395 = vmatpush1.bf16.msra.mxu0 %v1234
        %1396 = vmatprep.subr.bf16.mxu0 %v1237
        %1397 = vmatpush1.bf16.msra.mxu0 %v1236
        %1398 = vmatprep.subr.bf16.mxu0 %v1239
        %1399 = vmatpush1.bf16.msra.mxu0 %v1238
        %1400 = vmatprep.subr.bf16.mxu0 %v1241
        %1401 = vmatpush1.bf16.msra.mxu0 %v1240
        %1402 = vmatprep.subr.bf16.mxu0 %v1243
        %1403 = vmatpush1.bf16.msra.mxu0 %v1242
        %1404 = vmatprep.subr.bf16.mxu0 %v1245
        %1405 = vmatpush1.bf16.msra.mxu0 %v1244
        %1406 = vmatprep.subr.bf16.mxu0 %v1247
        %1407 = vmatpush1.bf16.msra.mxu0 %v1246
        %1408 = vmatprep.subr.bf16.mxu0 %v1249
        %1409 = vmatpush1.bf16.msra.mxu0 %v1248
        %1410 = vmatprep.subr.bf16.mxu0 %v1251
        %1411 = vmatpush1.bf16.msra.mxu0 %v1250
        %1412 = vmatprep.subr.bf16.mxu0 %v1253
        %1413 = vmatpush1.bf16.msra.mxu0 %v1252
        %1414 = vmatprep.subr.bf16.mxu0 %v1255
        %1415 = vmatpush1.bf16.msra.mxu0 %v1254
        %1416 = vmatprep.subr.bf16.mxu0 %v1257
        %1417 = vmatpush1.bf16.msra.mxu0 %v1256
        %1418 = vmatprep.subr.bf16.mxu0 %v1259
        %1419 = vmatpush1.bf16.msra.mxu0 %v1258
        %1420 = vmatprep.mubr.bf16.mxu0 %v829
        %1421 = vmatmul.mubr.bf16.gmra.mrb[0].mxu0 %v828
        %v1422 = vpop.f32.mrb[0].mxu0
        %v1423 = vadd.f32 0.0, %v1422
        %v1424 = vpop.f32.mrb[0].mxu0
        %v1425 = vadd.f32 0.0, %v1424
        %v1426 = vpop.f32.mrb[0].mxu0
        %v1427 = vadd.f32 0.0, %v1426
        %v1428 = vpop.f32.mrb[0].mxu0
        %v1429 = vadd.f32 0.0, %v1428
        %1430 = vmatprep.mubr.bf16.mxu0 %v834
        %1431 = vmatmul.mubr.bf16.gmra.mrb[0].mxu0 %v833
        %v1432 = vpop.f32.mrb[0].mxu0
        %v1433 = vadd.f32 0.0, %v1432
        %v1434 = vpop.f32.mrb[0].mxu0
        %v1435 = vadd.f32 0.0, %v1434
        %v1436 = vpop.f32.mrb[0].mxu0
        %v1437 = vadd.f32 0.0, %v1436
        %v1438 = vpop.f32.mrb[0].mxu0
        %v1439 = vadd.f32 0.0, %v1438
        %1440 = vmatprep.mubr.bf16.mxu0 %v839
        %1441 = vmatmul.mubr.bf16.gmra.mrb[0].mxu0 %v838
        %v1442 = vpop.f32.mrb[0].mxu0
        %v1443 = vadd.f32 0.0, %v1442
        %v1444 = vpop.f32.mrb[0].mxu0
        %v1445 = vadd.f32 0.0, %v1444
        %v1446 = vpop.f32.mrb[0].mxu0
        %v1447 = vadd.f32 0.0, %v1446
        %v1448 = vpop.f32.mrb[0].mxu0
        %v1449 = vadd.f32 0.0, %v1448
        %1450 = vmatprep.mubr.bf16.mxu0 %v844
        %1451 = vmatmul.mubr.bf16.gmra.mrb[0].mxu0 %v843
        %v1452 = vpop.f32.mrb[0].mxu0
        %v1453 = vadd.f32 0.0, %v1452
        %v1454 = vpop.f32.mrb[0].mxu0
        %v1455 = vadd.f32 0.0, %v1454
        %v1456 = vpop.f32.mrb[0].mxu0
        %v1457 = vadd.f32 0.0, %v1456
        %v1458 = vpop.f32.mrb[0].mxu0
        %v1459 = vadd.f32 0.0, %v1458
        %1460 = vmatprep.mubr.bf16.mxu0 %v849
        %1461 = vmatmul.mubr.bf16.gmra.mrb[0].mxu0 %v848
        %v1462 = vpop.f32.mrb[0].mxu0
        %v1463 = vadd.f32 0.0, %v1462
        %v1464 = vpop.f32.mrb[0].mxu0
        %v1465 = vadd.f32 0.0, %v1464
        %v1466 = vpop.f32.mrb[0].mxu0
        %v1467 = vadd.f32 0.0, %v1466
        %v1468 = vpop.f32.mrb[0].mxu0
        %v1469 = vadd.f32 0.0, %v1468
        %1470 = vmatprep.mubr.bf16.mxu0 %v854
        %1471 = vmatmul.mubr.bf16.gmra.mrb[0].mxu0 %v853
        %v1472 = vpop.f32.mrb[0].mxu0
        %v1473 = vadd.f32 0.0, %v1472
        %v1474 = vpop.f32.mrb[0].mxu0
        %v1475 = vadd.f32 0.0, %v1474
        %v1476 = vpop.f32.mrb[0].mxu0
        %v1477 = vadd.f32 0.0, %v1476
        %v1478 = vpop.f32.mrb[0].mxu0
        %v1479 = vadd.f32 0.0, %v1478
        %1480 = vmatprep.mubr.bf16.mxu0 %v859
        %1481 = vmatmul.mubr.bf16.gmra.mrb[0].mxu0 %v858
        %v1482 = vpop.f32.mrb[0].mxu0
        %v1483 = vadd.f32 0.0, %v1482
        %v1484 = vpop.f32.mrb[0].mxu0
        %v1485 = vadd.f32 0.0, %v1484
        %v1486 = vpop.f32.mrb[0].mxu0
        %v1487 = vadd.f32 0.0, %v1486
        %v1488 = vpop.f32.mrb[0].mxu0
        %v1489 = vadd.f32 0.0, %v1488
        %1490 = vmatprep.mubr.bf16.mxu0 %v864
        %1491 = vmatmul.mubr.bf16.gmra.mrb[0].mxu0 %v863
        %v1492 = vpop.f32.mrb[0].mxu0
        %v1493 = vadd.f32 0.0, %v1492
        %v1494 = vpop.f32.mrb[0].mxu0
        %v1495 = vadd.f32 0.0, %v1494
        %v1496 = vpop.f32.mrb[0].mxu0
        %v1497 = vadd.f32 0.0, %v1496
        %v1498 = vpop.f32.mrb[0].mxu0
        %v1499 = vadd.f32 0.0, %v1498
        %1500 = vmatprep.mubr.bf16.mxu0 %v869
        %1501 = vmatmul.mubr.bf16.gmra.mrb[0].mxu0 %v868
        %v1502 = vpop.f32.mrb[0].mxu0
        %v1503 = vadd.f32 0.0, %v1502
        %v1504 = vpop.f32.mrb[0].mxu0
        %v1505 = vadd.f32 0.0, %v1504
        %v1506 = vpop.f32.mrb[0].mxu0
        %v1507 = vadd.f32 0.0, %v1506
        %v1508 = vpop.f32.mrb[0].mxu0
        %v1509 = vadd.f32 0.0, %v1508
        %1510 = vmatprep.mubr.bf16.mxu0 %v874
        %1511 = vmatmul.mubr.bf16.gmra.mrb[0].mxu0 %v873
        %v1512 = vpop.f32.mrb[0].mxu0
        %v1513 = vadd.f32 0.0, %v1512
        %v1514 = vpop.f32.mrb[0].mxu0
        %v1515 = vadd.f32 0.0, %v1514
        %v1516 = vpop.f32.mrb[0].mxu0
        %v1517 = vadd.f32 0.0, %v1516
        %v1518 = vpop.f32.mrb[0].mxu0
        %v1519 = vadd.f32 0.0, %v1518
        %1520 = vmatprep.mubr.bf16.mxu0 %v879
        %1521 = vmatmul.mubr.bf16.gmra.mrb[0].mxu0 %v878
        %v1522 = vpop.f32.mrb[0].mxu0
        %v1523 = vadd.f32 0.0, %v1522
        %v1524 = vpop.f32.mrb[0].mxu0
        %v1525 = vadd.f32 0.0, %v1524
        %v1526 = vpop.f32.mrb[0].mxu0
        %v1527 = vadd.f32 0.0, %v1526
        %v1528 = vpop.f32.mrb[0].mxu0
        %v1529 = vadd.f32 0.0, %v1528
        %1530 = vmatprep.mubr.bf16.mxu0 %v884
        %1531 = vmatmul.mubr.bf16.gmra.mrb[0].mxu0 %v883
        %v1532 = vpop.f32.mrb[0].mxu0
        %v1533 = vadd.f32 0.0, %v1532
        %v1534 = vpop.f32.mrb[0].mxu0
        %v1535 = vadd.f32 0.0, %v1534
        %v1536 = vpop.f32.mrb[0].mxu0
        %v1537 = vadd.f32 0.0, %v1536
        %v1538 = vpop.f32.mrb[0].mxu0
        %v1539 = vadd.f32 0.0, %v1538
        %1540 = vmatprep.mubr.bf16.mxu0 %v889
        %1541 = vmatmul.mubr.bf16.gmra.mrb[0].mxu0 %v888
        %v1542 = vpop.f32.mrb[0].mxu0
        %v1543 = vadd.f32 0.0, %v1542
        %v1544 = vpop.f32.mrb[0].mxu0
        %v1545 = vadd.f32 0.0, %v1544
        %v1546 = vpop.f32.mrb[0].mxu0
        %v1547 = vadd.f32 0.0, %v1546
        %v1548 = vpop.f32.mrb[0].mxu0
        %v1549 = vadd.f32 0.0, %v1548
        %1550 = vmatprep.mubr.bf16.mxu0 %v894
        %1551 = vmatmul.mubr.bf16.gmra.mrb[0].mxu0 %v893
        %v1552 = vpop.f32.mrb[0].mxu0
        %v1553 = vadd.f32 0.0, %v1552
        %v1554 = vpop.f32.mrb[0].mxu0
        %v1555 = vadd.f32 0.0, %v1554
        %v1556 = vpop.f32.mrb[0].mxu0
        %v1557 = vadd.f32 0.0, %v1556
        %v1558 = vpop.f32.mrb[0].mxu0
        %v1559 = vadd.f32 0.0, %v1558
        %1560 = vmatprep.mubr.bf16.mxu0 %v899
        %1561 = vmatmul.mubr.bf16.gmra.mrb[0].mxu0 %v898
        %v1562 = vpop.f32.mrb[0].mxu0
        %v1563 = vadd.f32 0.0, %v1562
        %v1564 = vpop.f32.mrb[0].mxu0
        %v1565 = vadd.f32 0.0, %v1564
        %v1566 = vpop.f32.mrb[0].mxu0
        %v1567 = vadd.f32 0.0, %v1566
        %v1568 = vpop.f32.mrb[0].mxu0
        %v1569 = vadd.f32 0.0, %v1568
        %1570 = vmatprep.mubr.bf16.mxu0 %v904
        %1571 = vmatmul.mubr.bf16.gmra.mrb[0].mxu0 %v903
        %v1572 = vpop.f32.mrb[0].mxu0
        %v1573 = vadd.f32 0.0, %v1572
        %v1574 = vpop.f32.mrb[0].mxu0
        %v1575 = vadd.f32 0.0, %v1574
        %v1576 = vpop.f32.mrb[0].mxu0
        %v1577 = vadd.f32 0.0, %v1576
        %v1578 = vpop.f32.mrb[0].mxu0
        %v1579 = vadd.f32 0.0, %v1578
        %1580 = vdwg.mxu0
        %1581 = vmatprep.subr.bf16.mxu0 %v1261
        %1582 = vmatpush1.bf16.msra.mxu0 %v1260
        %1583 = vmatprep.subr.bf16.mxu0 %v1263
        %1584 = vmatpush1.bf16.msra.mxu0 %v1262
        %1585 = vmatprep.subr.bf16.mxu0 %v1265
        %1586 = vmatpush1.bf16.msra.mxu0 %v1264
        %1587 = vmatprep.subr.bf16.mxu0 %v1267
        %1588 = vmatpush1.bf16.msra.mxu0 %v1266
        %1589 = vmatprep.subr.bf16.mxu0 %v1269
        %1590 = vmatpush1.bf16.msra.mxu0 %v1268
        %1591 = vmatprep.subr.bf16.mxu0 %v1271
        %1592 = vmatpush1.bf16.msra.mxu0 %v1270
        %1593 = vmatprep.subr.bf16.mxu0 %v1273
        %1594 = vmatpush1.bf16.msra.mxu0 %v1272
        %1595 = vmatprep.subr.bf16.mxu0 %v1275
        %1596 = vmatpush1.bf16.msra.mxu0 %v1274
        %1597 = vmatprep.subr.bf16.mxu0 %v1277
        %1598 = vmatpush1.bf16.msra.mxu0 %v1276
        %1599 = vmatprep.subr.bf16.mxu0 %v1279
        %1600 = vmatpush1.bf16.msra.mxu0 %v1278
        %1601 = vmatprep.subr.bf16.mxu0 %v1281
        %1602 = vmatpush1.bf16.msra.mxu0 %v1280
        %1603 = vmatprep.subr.bf16.mxu0 %v1283
        %1604 = vmatpush1.bf16.msra.mxu0 %v1282
        %1605 = vmatprep.subr.bf16.mxu0 %v1285
        %1606 = vmatpush1.bf16.msra.mxu0 %v1284
        %1607 = vmatprep.subr.bf16.mxu0 %v1287
        %1608 = vmatpush1.bf16.msra.mxu0 %v1286
        %1609 = vmatprep.subr.bf16.mxu0 %v1289
        %1610 = vmatpush1.bf16.msra.mxu0 %v1288
        %1611 = vmatprep.subr.bf16.mxu0 %v1291
        %1612 = vmatpush1.bf16.msra.mxu0 %v1290
        %1613 = vmatprep.mubr.bf16.mxu0 %v831
        %1614 = vmatmul.mubr.bf16.gmra.mrb[0].mxu0 %v830
        %v1615 = vpop.f32.mrb[0].mxu0
        %v1616 = vadd.f32 %v1423, %v1615
        %v1617 = vpop.f32.mrb[0].mxu0
        %v1618 = vadd.f32 %v1425, %v1617
        %v1619 = vpop.f32.mrb[0].mxu0
        %v1620 = vadd.f32 %v1427, %v1619
        %v1621 = vpop.f32.mrb[0].mxu0
        %v1622 = vadd.f32 %v1429, %v1621
        %1623 = vmatprep.mubr.bf16.mxu0 %v836
        %1624 = vmatmul.mubr.bf16.gmra.mrb[0].mxu0 %v835
        %v1625 = vpop.f32.mrb[0].mxu0
        %v1626 = vadd.f32 %v1433, %v1625
        %v1627 = vpop.f32.mrb[0].mxu0
        %v1628 = vadd.f32 %v1435, %v1627
        %v1629 = vpop.f32.mrb[0].mxu0
        %v1630 = vadd.f32 %v1437, %v1629
        %v1631 = vpop.f32.mrb[0].mxu0
        %v1632 = vadd.f32 %v1439, %v1631
        %1633 = vmatprep.mubr.bf16.mxu0 %v841
        %1634 = vmatmul.mubr.bf16.gmra.mrb[0].mxu0 %v840
        %v1635 = vpop.f32.mrb[0].mxu0
        %v1636 = vadd.f32 %v1443, %v1635
        %v1637 = vpop.f32.mrb[0].mxu0
        %v1638 = vadd.f32 %v1445, %v1637
        %v1639 = vpop.f32.mrb[0].mxu0
        %v1640 = vadd.f32 %v1447, %v1639
        %v1641 = vpop.f32.mrb[0].mxu0
        %v1642 = vadd.f32 %v1449, %v1641
        %1643 = vmatprep.mubr.bf16.mxu0 %v846
        %1644 = vmatmul.mubr.bf16.gmra.mrb[0].mxu0 %v845
        %v1645 = vpop.f32.mrb[0].mxu0
        %v1646 = vadd.f32 %v1453, %v1645
        %v1647 = vpop.f32.mrb[0].mxu0
        %v1648 = vadd.f32 %v1455, %v1647
        %v1649 = vpop.f32.mrb[0].mxu0
        %v1650 = vadd.f32 %v1457, %v1649
        %v1651 = vpop.f32.mrb[0].mxu0
        %v1652 = vadd.f32 %v1459, %v1651
        %1653 = vmatprep.mubr.bf16.mxu0 %v851
        %1654 = vmatmul.mubr.bf16.gmra.mrb[0].mxu0 %v850
        %v1655 = vpop.f32.mrb[0].mxu0
        %v1656 = vadd.f32 %v1463, %v1655
        %v1657 = vpop.f32.mrb[0].mxu0
        %v1658 = vadd.f32 %v1465, %v1657
        %v1659 = vpop.f32.mrb[0].mxu0
        %v1660 = vadd.f32 %v1467, %v1659
        %v1661 = vpop.f32.mrb[0].mxu0
        %v1662 = vadd.f32 %v1469, %v1661
        %1663 = vmatprep.mubr.bf16.mxu0 %v856
        %1664 = vmatmul.mubr.bf16.gmra.mrb[0].mxu0 %v855
        %v1665 = vpop.f32.mrb[0].mxu0
        %v1666 = vadd.f32 %v1473, %v1665
        %v1667 = vpop.f32.mrb[0].mxu0
        %v1668 = vadd.f32 %v1475, %v1667
        %v1669 = vpop.f32.mrb[0].mxu0
        %v1670 = vadd.f32 %v1477, %v1669
        %v1671 = vpop.f32.mrb[0].mxu0
        %v1672 = vadd.f32 %v1479, %v1671
        %1673 = vmatprep.mubr.bf16.mxu0 %v861
        %1674 = vmatmul.mubr.bf16.gmra.mrb[0].mxu0 %v860
        %v1675 = vpop.f32.mrb[0].mxu0
        %v1676 = vadd.f32 %v1483, %v1675
        %v1677 = vpop.f32.mrb[0].mxu0
        %v1678 = vadd.f32 %v1485, %v1677
        %v1679 = vpop.f32.mrb[0].mxu0
        %v1680 = vadd.f32 %v1487, %v1679
        %v1681 = vpop.f32.mrb[0].mxu0
        %v1682 = vadd.f32 %v1489, %v1681
        %1683 = vmatprep.mubr.bf16.mxu0 %v866
        %1684 = vmatmul.mubr.bf16.gmra.mrb[0].mxu0 %v865
        %v1685 = vpop.f32.mrb[0].mxu0
        %v1686 = vadd.f32 %v1493, %v1685
        %v1687 = vpop.f32.mrb[0].mxu0
        %v1688 = vadd.f32 %v1495, %v1687
        %v1689 = vpop.f32.mrb[0].mxu0
        %v1690 = vadd.f32 %v1497, %v1689
        %v1691 = vpop.f32.mrb[0].mxu0
        %v1692 = vadd.f32 %v1499, %v1691
        %1693 = vmatprep.mubr.bf16.mxu0 %v871
        %1694 = vmatmul.mubr.bf16.gmra.mrb[0].mxu0 %v870
        %v1695 = vpop.f32.mrb[0].mxu0
        %v1696 = vadd.f32 %v1503, %v1695
        %v1697 = vpop.f32.mrb[0].mxu0
        %v1698 = vadd.f32 %v1505, %v1697
        %v1699 = vpop.f32.mrb[0].mxu0
        %v1700 = vadd.f32 %v1507, %v1699
        %v1701 = vpop.f32.mrb[0].mxu0
        %v1702 = vadd.f32 %v1509, %v1701
        %1703 = vmatprep.mubr.bf16.mxu0 %v876
        %1704 = vmatmul.mubr.bf16.gmra.mrb[0].mxu0 %v875
        %v1705 = vpop.f32.mrb[0].mxu0
        %v1706 = vadd.f32 %v1513, %v1705
        %v1707 = vpop.f32.mrb[0].mxu0
        %v1708 = vadd.f32 %v1515, %v1707
        %v1709 = vpop.f32.mrb[0].mxu0
        %v1710 = vadd.f32 %v1517, %v1709
        %v1711 = vpop.f32.mrb[0].mxu0
        %v1712 = vadd.f32 %v1519, %v1711
        %1713 = vmatprep.mubr.bf16.mxu0 %v881
        %1714 = vmatmul.mubr.bf16.gmra.mrb[0].mxu0 %v880
        %v1715 = vpop.f32.mrb[0].mxu0
        %v1716 = vadd.f32 %v1523, %v1715
        %v1717 = vpop.f32.mrb[0].mxu0
        %v1718 = vadd.f32 %v1525, %v1717
        %v1719 = vpop.f32.mrb[0].mxu0
        %v1720 = vadd.f32 %v1527, %v1719
        %v1721 = vpop.f32.mrb[0].mxu0
        %v1722 = vadd.f32 %v1529, %v1721
        %1723 = vmatprep.mubr.bf16.mxu0 %v886
        %1724 = vmatmul.mubr.bf16.gmra.mrb[0].mxu0 %v885
        %v1725 = vpop.f32.mrb[0].mxu0
        %v1726 = vadd.f32 %v1533, %v1725
        %v1727 = vpop.f32.mrb[0].mxu0
        %v1728 = vadd.f32 %v1535, %v1727
        %v1729 = vpop.f32.mrb[0].mxu0
        %v1730 = vadd.f32 %v1537, %v1729
        %v1731 = vpop.f32.mrb[0].mxu0
        %v1732 = vadd.f32 %v1539, %v1731
        %1733 = vmatprep.mubr.bf16.mxu0 %v891
        %1734 = vmatmul.mubr.bf16.gmra.mrb[0].mxu0 %v890
        %v1735 = vpop.f32.mrb[0].mxu0
        %v1736 = vadd.f32 %v1543, %v1735
        %v1737 = vpop.f32.mrb[0].mxu0
        %v1738 = vadd.f32 %v1545, %v1737
        %v1739 = vpop.f32.mrb[0].mxu0
        %v1740 = vadd.f32 %v1547, %v1739
        %v1741 = vpop.f32.mrb[0].mxu0
        %v1742 = vadd.f32 %v1549, %v1741
        %1743 = vmatprep.mubr.bf16.mxu0 %v896
        %1744 = vmatmul.mubr.bf16.gmra.mrb[0].mxu0 %v895
        %v1745 = vpop.f32.mrb[0].mxu0
        %v1746 = vadd.f32 %v1553, %v1745
        %v1747 = vpop.f32.mrb[0].mxu0
        %v1748 = vadd.f32 %v1555, %v1747
        %v1749 = vpop.f32.mrb[0].mxu0
        %v1750 = vadd.f32 %v1557, %v1749
        %v1751 = vpop.f32.mrb[0].mxu0
        %v1752 = vadd.f32 %v1559, %v1751
        %1753 = vmatprep.mubr.bf16.mxu0 %v901
        %1754 = vmatmul.mubr.bf16.gmra.mrb[0].mxu0 %v900
        %v1755 = vpop.f32.mrb[0].mxu0
        %v1756 = vadd.f32 %v1563, %v1755
        %v1757 = vpop.f32.mrb[0].mxu0
        %v1758 = vadd.f32 %v1565, %v1757
        %v1759 = vpop.f32.mrb[0].mxu0
        %v1760 = vadd.f32 %v1567, %v1759
        %v1761 = vpop.f32.mrb[0].mxu0
        %v1762 = vadd.f32 %v1569, %v1761
        %1763 = vmatprep.mubr.bf16.mxu0 %v906
        %1764 = vmatmul.mubr.bf16.gmra.mrb[0].mxu0 %v905
        %v1765 = vpop.f32.mrb[0].mxu0
        %v1766 = vadd.f32 %v1573, %v1765
        %v1767 = vpop.f32.mrb[0].mxu0
        %v1768 = vadd.f32 %v1575, %v1767
        %v1769 = vpop.f32.mrb[0].mxu0
        %v1770 = vadd.f32 %v1577, %v1769
        %v1771 = vpop.f32.mrb[0].mxu0
        %v1772 = vadd.f32 %v1579, %v1771
        %1773 = vdwg.mxu0
        %1774 = vmatprep.subr.bf16.mxu0 %v1293
        %1775 = vmatpush1.bf16.msra.mxu0 %v1292
        %1776 = vmatprep.subr.bf16.mxu0 %v1295
        %1777 = vmatpush1.bf16.msra.mxu0 %v1294
        %1778 = vmatprep.subr.bf16.mxu0 %v1297
        %1779 = vmatpush1.bf16.msra.mxu0 %v1296
        %1780 = vmatprep.subr.bf16.mxu0 %v1299
        %1781 = vmatpush1.bf16.msra.mxu0 %v1298
        %1782 = vmatprep.subr.bf16.mxu0 %v1301
        %1783 = vmatpush1.bf16.msra.mxu0 %v1300
        %1784 = vmatprep.subr.bf16.mxu0 %v1303
        %1785 = vmatpush1.bf16.msra.mxu0 %v1302
        %1786 = vmatprep.subr.bf16.mxu0 %v1305
        %1787 = vmatpush1.bf16.msra.mxu0 %v1304
        %1788 = vmatprep.subr.bf16.mxu0 %v1307
        %1789 = vmatpush1.bf16.msra.mxu0 %v1306
        %1790 = vmatprep.subr.bf16.mxu0 0
        %1791 = vmatpush1.bf16.msra.mxu0 0
        %1792 = vmatprep.subr.bf16.mxu0 0
        %1793 = vmatpush1.bf16.msra.mxu0 0
        %1794 = vmatprep.subr.bf16.mxu0 0
        %1795 = vmatpush1.bf16.msra.mxu0 0
        %1796 = vmatprep.subr.bf16.mxu0 0
        %1797 = vmatpush1.bf16.msra.mxu0 0
        %1798 = vmatprep.subr.bf16.mxu0 0
        %1799 = vmatpush1.bf16.msra.mxu0 0
        %1800 = vmatprep.subr.bf16.mxu0 0
        %1801 = vmatpush1.bf16.msra.mxu0 0
        %1802 = vmatprep.subr.bf16.mxu0 0
        %1803 = vmatpush1.bf16.msra.mxu0 0
        %1804 = vmatprep.subr.bf16.mxu0 0
        %1805 = vmatpush1.bf16.msra.mxu0 0
        %1806 = vmatprep.mubr.bf16.mxu0 0
        %1807 = vmatmul.mubr.bf16.gmra.mrb[0].mxu0 %v832
        %v1808 = vpop.f32.mrb[0].mxu0
        %v1809 = vadd.f32 %v1616, %v1808
        %v1810 = vpop.f32.mrb[0].mxu0
        %v1811 = vadd.f32 %v1618, %v1810
        %v1812 = vpop.f32.mrb[0].mxu0
        %v1813 = vadd.f32 %v1620, %v1812
        %v1814 = vpop.f32.mrb[0].mxu0
        %v1815 = vadd.f32 %v1622, %v1814
        %1816 = vmatprep.mubr.bf16.mxu0 0
        %1817 = vmatmul.mubr.bf16.gmra.mrb[0].mxu0 %v837
        %v1818 = vpop.f32.mrb[0].mxu0
        %v1819 = vadd.f32 %v1626, %v1818
        %v1820 = vpop.f32.mrb[0].mxu0
        %v1821 = vadd.f32 %v1628, %v1820
        %v1822 = vpop.f32.mrb[0].mxu0
        %v1823 = vadd.f32 %v1630, %v1822
        %v1824 = vpop.f32.mrb[0].mxu0
        %v1825 = vadd.f32 %v1632, %v1824
        %1826 = vmatprep.mubr.bf16.mxu0 0
        %1827 = vmatmul.mubr.bf16.gmra.mrb[0].mxu0 %v842
        %v1828 = vpop.f32.mrb[0].mxu0
        %v1829 = vadd.f32 %v1636, %v1828
        %v1830 = vpop.f32.mrb[0].mxu0
        %v1831 = vadd.f32 %v1638, %v1830
        %v1832 = vpop.f32.mrb[0].mxu0
        %v1833 = vadd.f32 %v1640, %v1832
        %v1834 = vpop.f32.mrb[0].mxu0
        %v1835 = vadd.f32 %v1642, %v1834
        %1836 = vmatprep.mubr.bf16.mxu0 0
        %1837 = vmatmul.mubr.bf16.gmra.mrb[0].mxu0 %v847
        %v1838 = vpop.f32.mrb[0].mxu0
        %v1839 = vadd.f32 %v1646, %v1838
        %v1840 = vpop.f32.mrb[0].mxu0
        %v1841 = vadd.f32 %v1648, %v1840
        %v1842 = vpop.f32.mrb[0].mxu0
        %v1843 = vadd.f32 %v1650, %v1842
        %v1844 = vpop.f32.mrb[0].mxu0
        %v1845 = vadd.f32 %v1652, %v1844
        %1846 = vmatprep.mubr.bf16.mxu0 0
        %1847 = vmatmul.mubr.bf16.gmra.mrb[0].mxu0 %v852
        %v1848 = vpop.f32.mrb[0].mxu0
        %v1849 = vadd.f32 %v1656, %v1848
        %v1850 = vpop.f32.mrb[0].mxu0
        %v1851 = vadd.f32 %v1658, %v1850
        %v1852 = vpop.f32.mrb[0].mxu0
        %v1853 = vadd.f32 %v1660, %v1852
        %v1854 = vpop.f32.mrb[0].mxu0
        %v1855 = vadd.f32 %v1662, %v1854
        %1856 = vmatprep.mubr.bf16.mxu0 0
        %1857 = vmatmul.mubr.bf16.gmra.mrb[0].mxu0 %v857
        %v1858 = vpop.f32.mrb[0].mxu0
        %v1859 = vadd.f32 %v1666, %v1858
        %v1860 = vpop.f32.mrb[0].mxu0
        %v1861 = vadd.f32 %v1668, %v1860
        %v1862 = vpop.f32.mrb[0].mxu0
        %v1863 = vadd.f32 %v1670, %v1862
        %v1864 = vpop.f32.mrb[0].mxu0
        %v1865 = vadd.f32 %v1672, %v1864
        %1866 = vmatprep.mubr.bf16.mxu0 0
        %1867 = vmatmul.mubr.bf16.gmra.mrb[0].mxu0 %v862
        %v1868 = vpop.f32.mrb[0].mxu0
        %v1869 = vadd.f32 %v1676, %v1868
        %v1870 = vpop.f32.mrb[0].mxu0
        %v1871 = vadd.f32 %v1678, %v1870
        %v1872 = vpop.f32.mrb[0].mxu0
        %v1873 = vadd.f32 %v1680, %v1872
        %v1874 = vpop.f32.mrb[0].mxu0
        %v1875 = vadd.f32 %v1682, %v1874
        %1876 = vmatprep.mubr.bf16.mxu0 0
        %1877 = vmatmul.mubr.bf16.gmra.mrb[0].mxu0 %v867
        %v1878 = vpop.f32.mrb[0].mxu0
        %v1879 = vadd.f32 %v1686, %v1878
        %v1880 = vpop.f32.mrb[0].mxu0
        %v1881 = vadd.f32 %v1688, %v1880
        %v1882 = vpop.f32.mrb[0].mxu0
        %v1883 = vadd.f32 %v1690, %v1882
        %v1884 = vpop.f32.mrb[0].mxu0
        %v1885 = vadd.f32 %v1692, %v1884
        %1886 = vmatprep.mubr.bf16.mxu0 0
        %1887 = vmatmul.mubr.bf16.gmra.mrb[0].mxu0 %v872
        %v1888 = vpop.f32.mrb[0].mxu0
        %v1889 = vadd.f32 %v1696, %v1888
        %v1890 = vpop.f32.mrb[0].mxu0
        %v1891 = vadd.f32 %v1698, %v1890
        %v1892 = vpop.f32.mrb[0].mxu0
        %v1893 = vadd.f32 %v1700, %v1892
        %v1894 = vpop.f32.mrb[0].mxu0
        %v1895 = vadd.f32 %v1702, %v1894
        %1896 = vmatprep.mubr.bf16.mxu0 0
        %1897 = vmatmul.mubr.bf16.gmra.mrb[0].mxu0 %v877
        %v1898 = vpop.f32.mrb[0].mxu0
        %v1899 = vadd.f32 %v1706, %v1898
        %v1900 = vpop.f32.mrb[0].mxu0
        %v1901 = vadd.f32 %v1708, %v1900
        %v1902 = vpop.f32.mrb[0].mxu0
        %v1903 = vadd.f32 %v1710, %v1902
        %v1904 = vpop.f32.mrb[0].mxu0
        %v1905 = vadd.f32 %v1712, %v1904
        %1906 = vmatprep.mubr.bf16.mxu0 0
        %1907 = vmatmul.mubr.bf16.gmra.mrb[0].mxu0 %v882
        %v1908 = vpop.f32.mrb[0].mxu0
        %v1909 = vadd.f32 %v1716, %v1908
        %v1910 = vpop.f32.mrb[0].mxu0
        %v1911 = vadd.f32 %v1718, %v1910
        %v1912 = vpop.f32.mrb[0].mxu0
        %v1913 = vadd.f32 %v1720, %v1912
        %v1914 = vpop.f32.mrb[0].mxu0
        %v1915 = vadd.f32 %v1722, %v1914
        %1916 = vmatprep.mubr.bf16.mxu0 0
        %1917 = vmatmul.mubr.bf16.gmra.mrb[0].mxu0 %v887
        %v1918 = vpop.f32.mrb[0].mxu0
        %v1919 = vadd.f32 %v1726, %v1918
        %v1920 = vpop.f32.mrb[0].mxu0
        %v1921 = vadd.f32 %v1728, %v1920
        %v1922 = vpop.f32.mrb[0].mxu0
        %v1923 = vadd.f32 %v1730, %v1922
        %v1924 = vpop.f32.mrb[0].mxu0
        %v1925 = vadd.f32 %v1732, %v1924
        %1926 = vmatprep.mubr.bf16.mxu0 0
        %1927 = vmatmul.mubr.bf16.gmra.mrb[0].mxu0 %v892
        %v1928 = vpop.f32.mrb[0].mxu0
        %v1929 = vadd.f32 %v1736, %v1928
        %v1930 = vpop.f32.mrb[0].mxu0
        %v1931 = vadd.f32 %v1738, %v1930
        %v1932 = vpop.f32.mrb[0].mxu0
        %v1933 = vadd.f32 %v1740, %v1932
        %v1934 = vpop.f32.mrb[0].mxu0
        %v1935 = vadd.f32 %v1742, %v1934
        %1936 = vmatprep.mubr.bf16.mxu0 0
        %1937 = vmatmul.mubr.bf16.gmra.mrb[0].mxu0 %v897
        %v1938 = vpop.f32.mrb[0].mxu0
        %v1939 = vadd.f32 %v1746, %v1938
        %v1940 = vpop.f32.mrb[0].mxu0
        %v1941 = vadd.f32 %v1748, %v1940
        %v1942 = vpop.f32.mrb[0].mxu0
        %v1943 = vadd.f32 %v1750, %v1942
        %v1944 = vpop.f32.mrb[0].mxu0
        %v1945 = vadd.f32 %v1752, %v1944
        %1946 = vmatprep.mubr.bf16.mxu0 0
        %1947 = vmatmul.mubr.bf16.gmra.mrb[0].mxu0 %v902
        %v1948 = vpop.f32.mrb[0].mxu0
        %v1949 = vadd.f32 %v1756, %v1948
        %v1950 = vpop.f32.mrb[0].mxu0
        %v1951 = vadd.f32 %v1758, %v1950
        %v1952 = vpop.f32.mrb[0].mxu0
        %v1953 = vadd.f32 %v1760, %v1952
        %v1954 = vpop.f32.mrb[0].mxu0
        %v1955 = vadd.f32 %v1762, %v1954
        %1956 = vmatprep.mubr.bf16.mxu0 0
        %1957 = vmatmul.mubr.bf16.gmra.mrb[0].mxu0 %v907
        %v1958 = vpop.f32.mrb[0].mxu0
        %v1959 = vadd.f32 %v1766, %v1958
        %v1960 = vpop.f32.mrb[0].mxu0
        %v1961 = vadd.f32 %v1768, %v1960
        %v1962 = vpop.f32.mrb[0].mxu0
        %v1963 = vadd.f32 %v1770, %v1962
        %v1964 = vpop.f32.mrb[0].mxu0
        %v1965 = vadd.f32 %v1772, %v1964
        %1966 = vdwg.mxu0
        %v1967 = vmax.f32 %v1809, %v1849
        %v1968 = vmax.f32 %v1811, %v1851
        %v1969 = vmax.f32 %v1813, %v1853
        %v1970 = vmax.f32 %v1815, %v1855
        %v1971 = vmax.f32 %v1819, %v1859
        %v1972 = vmax.f32 %v1821, %v1861
        %v1973 = vmax.f32 %v1823, %v1863
        %v1974 = vmax.f32 %v1825, %v1865
        %v1975 = vmax.f32 %v1829, %v1869
        %v1976 = vmax.f32 %v1831, %v1871
        %v1977 = vmax.f32 %v1833, %v1873
        %v1978 = vmax.f32 %v1835, %v1875
        %v1979 = vmax.f32 %v1839, %v1879
        %v1980 = vmax.f32 %v1841, %v1881
        %v1981 = vmax.f32 %v1843, %v1883
        %v1982 = vmax.f32 %v1845, %v1885
        %v1983 = vmax.f32 %v1889, %v1929
        %v1984 = vmax.f32 %v1891, %v1931
        %v1985 = vmax.f32 %v1893, %v1933
        %v1986 = vmax.f32 %v1895, %v1935
        %v1987 = vmax.f32 %v1899, %v1939
        %v1988 = vmax.f32 %v1901, %v1941
        %v1989 = vmax.f32 %v1903, %v1943
        %v1990 = vmax.f32 %v1905, %v1945
        %v1991 = vmax.f32 %v1909, %v1949
        %v1992 = vmax.f32 %v1911, %v1951
        %v1993 = vmax.f32 %v1913, %v1953
        %v1994 = vmax.f32 %v1915, %v1955
        %v1995 = vmax.f32 %v1919, %v1959
        %v1996 = vmax.f32 %v1921, %v1961
        %v1997 = vmax.f32 %v1923, %v1963
        %v1998 = vmax.f32 %v1925, %v1965
        %v1999 = vmax.f32 %v1967, %v1983
        %v2000 = vmax.f32 %v1968, %v1984
        %v2001 = vmax.f32 %v1969, %v1985
        %v2002 = vmax.f32 %v1970, %v1986
        %v2003 = vmax.f32 %v1971, %v1987
        %v2004 = vmax.f32 %v1972, %v1988
        %v2005 = vmax.f32 %v1973, %v1989
        %v2006 = vmax.f32 %v1974, %v1990
        %v2007 = vmax.f32 %v1975, %v1991
        %v2008 = vmax.f32 %v1976, %v1992
        %v2009 = vmax.f32 %v1977, %v1993
        %v2010 = vmax.f32 %v1978, %v1994
        %v2011 = vmax.f32 %v1979, %v1995
        %v2012 = vmax.f32 %v1980, %v1996
        %v2013 = vmax.f32 %v1981, %v1997
        %v2014 = vmax.f32 %v1982, %v1998
        %v2015 = vld [vmem:[%s2] sm:$0x3]
        %v2017 = vlaneseq
        %v2018 = vshrl.u32 %v2017, 7
        %v2019 = vsub.s32 0, %v2018
        %v2020 = vrot.slane %v2015, %v2019
        %v2021 = vlaneseq
        %v2022 = vshrl.u32 %v2021, 7
        %v2023 = vsub.s32 1, %v2022
        %v2024 = vrot.slane %v2015, %v2023
        %v2027 = vadd.f32 %v1999, %v2020
        %v2028 = vadd.f32 %v2000, %v2024
        %v2029 = vadd.f32 %v2001, %v2020
        %v2030 = vadd.f32 %v2002, %v2024
        %v2031 = vadd.f32 %v2003, %v2020
        %v2032 = vadd.f32 %v2004, %v2024
        %v2033 = vadd.f32 %v2005, %v2020
        %v2034 = vadd.f32 %v2006, %v2024
        %v2035 = vadd.f32 %v2007, %v2020
        %v2036 = vadd.f32 %v2008, %v2024
        %v2037 = vadd.f32 %v2009, %v2020
        %v2038 = vadd.f32 %v2010, %v2024
        %v2039 = vadd.f32 %v2011, %v2020
        %v2040 = vadd.f32 %v2012, %v2024
        %v2041 = vadd.f32 %v2013, %v2020
        %v2042 = vadd.f32 %v2014, %v2024
        %v2043 = vmax.f32 %v2027, 0.0
        %v2044 = vmax.f32 %v2028, 0.0
        %v2045 = vmax.f32 %v2029, 0.0
        %v2046 = vmax.f32 %v2030, 0.0
        %v2047 = vmax.f32 %v2031, 0.0
        %v2048 = vmax.f32 %v2032, 0.0
        %v2049 = vmax.f32 %v2033, 0.0
        %v2050 = vmax.f32 %v2034, 0.0
        %v2051 = vmax.f32 %v2035, 0.0
        %v2052 = vmax.f32 %v2036, 0.0
        %v2053 = vmax.f32 %v2037, 0.0
        %v2054 = vmax.f32 %v2038, 0.0
        %v2055 = vmax.f32 %v2039, 0.0
        %v2056 = vmax.f32 %v2040, 0.0
        %v2057 = vmax.f32 %v2041, 0.0
        %v2058 = vmax.f32 %v2042, 0.0
        %v2059 = vpack.c.bf16 %v2045, %v2043
        %v2060 = vpack.c.bf16 %v2046, %v2044
        %v2061 = vpack.c.bf16 %v2049, %v2047
        %v2062 = vpack.c.bf16 %v2050, %v2048
        %v2063 = vpack.c.bf16 %v2053, %v2051
        %v2064 = vpack.c.bf16 %v2054, %v2052
        %v2065 = vpack.c.bf16 %v2057, %v2055
        %v2066 = vpack.c.bf16 %v2058, %v2056
        %v2075 = vunpack.c.l.b16 %v2059
        %v2076 = vunpack.c.l.b16 %v2060
        %v2077 = vunpack.c.h.b16 %v2059
        %v2078 = vunpack.c.h.b16 %v2060
        %v2079 = vunpack.c.l.b16 %v2061
        %v2080 = vunpack.c.l.b16 %v2062
        %v2081 = vunpack.c.h.b16 %v2061
        %v2082 = vunpack.c.h.b16 %v2062
        %v2083 = vunpack.c.l.b16 %v2063
        %v2084 = vunpack.c.l.b16 %v2064
        %v2085 = vunpack.c.h.b16 %v2063
        %v2086 = vunpack.c.h.b16 %v2064
        %v2087 = vunpack.c.l.b16 %v2065
        %v2088 = vunpack.c.l.b16 %v2066
        %v2089 = vunpack.c.h.b16 %v2065
        %v2090 = vunpack.c.h.b16 %v2066
        %v2091 = vpack.c.b16 %v2076, %v2075
        %v2092 = vpack.c.b16 %v2078, %v2077
        %v2093 = vpack.c.b16 %v2080, %v2079
        %v2094 = vpack.c.b16 %v2082, %v2081
        %v2095 = vpack.c.b16 %v2084, %v2083
        %v2096 = vpack.c.b16 %v2086, %v2085
        %v2097 = vpack.c.b16 %v2088, %v2087
        %v2098 = vpack.c.b16 %v2090, %v2089
        %2107 = vst [vmem:[%s393] sm:$0xff] %v2091
        %2108 = vst [vmem:[%s393 + $0x8] sm:$0xff] %v2092
        %2109 = vst [vmem:[%s393 + $0x10] sm:$0xff] %v2093
        %2110 = vst [vmem:[%s393 + $0x18] sm:$0xff] %v2094
        %2111 = vst [vmem:[%s393 + $0x20] sm:$0xff] %v2095
        %2112 = vst [vmem:[%s393 + $0x28] sm:$0xff] %v2096
        %2113 = vst [vmem:[%s393 + $0x30] sm:$0xff] %v2097
        %2114 = vst [vmem:[%s393 + $0x38] sm:$0xff] %v2098
        %s2115 = smul.u32 8, %s14
        %p2116 = scmp.lt.s32.totalorder %s2115, 15
        %s2117 = scalar_select %p2116, %s2115, 15
        %s2118 = smul.addr %s2117, 2
        %s2119 = smul.addr %s2118, 4
        %s2120 = scalar_lea.vmem %s3, %s2119
        // Predicated region
        $region59: #{dilenet_forward.5} parent=53 // pred_check
          %p2121 = pneg %p100
        $region60: #{dilenet_forward.5} parent=53 // pred_check_branch
          %2123 = sbr.rel (%p2121) target = $region62
        $region61: #{dilenet_forward.5} parent=53 // pred_region
          %s2124 = smul.u32 8, %s14
        $region62: #{dilenet_forward.5} parent=53 // pred_fallthru
          _
      $region54: #{dilenet_forward.5} parent=5 // pred_fallthru
        _
      %p2125 = scmp.le.s32.totalorder 2, %s9
      // Predicated region
      $region63: #{dilenet_forward.5} parent=5 // pred_check
        %p2126 = pneg %p2125
      $region64: #{dilenet_forward.5} parent=5 // pred_check_branch
        %2128 = sbr.rel (%p2126) target = $region66
      $region65: #{dilenet_forward.5} parent=5 // pred_region
        %s2129 = ssub.s32 %s9, 2
        // Predicated region
        $region67: #{dilenet_forward.5} parent=65 // pred_check
          %p2130 = pneg %p106
        $region68: #{dilenet_forward.5} parent=65 // pred_check_branch
          %2132 = sbr.rel (%p2130) target = $region70
        $region69: #{dilenet_forward.5} parent=65 // pred_region
          %s2133 = smul.u32 8, %s15
          %p2134 = scmp.lt.s32.totalorder %s2133, 15
          %s2135 = scalar_select %p2134, %s2133, 15
          %s2136 = smul.addr %s2135, 2
          %s2137 = smul.addr %s2136, 4
          %s2138 = scalar_lea.vmem %s3, %s2137
        $region70: #{dilenet_forward.5} parent=65 // pred_fallthru
          _
      $region66: #{dilenet_forward.5} parent=5 // pred_fallthru
        _
    $region6: #{dilenet_forward.5} parent=1 // loop_footer
      %s13 = sadd.s32 1, %s9
    $region7: #{dilenet_forward.5} parent=1 // loop_footer_branch
      %8 = sbr.rel target = $region3
    $region8: #{dilenet_forward.5} parent=1 // loop_exit
      _

// kernel: dilenet_forward.6
$region0: #{dilenet_forward.6}
  #allocation0 [shape = 'u32[]', space=smem, size = 0x4, offset = 0x4, fixed_abs, tag = 'smem constant byte address 0x4 - core index']
  #allocation1 [shape = 'u32[144,128]{1,0:T(1,128)}', space=vmem, size = 0x12000, scoped, tag = 'internal scratch']
  %s0 = inlined_call_operand.vmem [shape: bf16[4,32,1792], index: 0, kind: input, shape index: {}]
  %s1 = inlined_call_operand.vmem [shape: bf16[1792,256], index: 1, kind: input, shape index: {}]
  %s2 = inlined_call_operand.vmem [shape: f32[1,256], index: 2, kind: input, shape index: {}]
  %s3 = inlined_call_operand.vmem [shape: bf16[32,256], index: 3, kind: output, shape index: {}]
  %s4 = sld [smem:[#allocation0]]
  $region68: #{dilenet_forward.6} parent=0
    _
  %s6 = ssub.s32 1, %s4
  %s7 = scalar_select 0, %s6, %s4
  $region1: #{dilenet_forward.6} parent=0
    #allocation2 [shape = 'u8[458752]{0}', space=vmem, size = 0x70000, scoped, tag = 'input window, operand 0']
    loop: start=0, step=1, limit=4
    $region2: #{dilenet_forward.6} parent=1 // loop_pre_header
      _
    $region3: #{dilenet_forward.6} parent=1 // loop_header
      %s9 = sphi 0, %s13
      %p10 = scmp.ge.s32.totalorder %s9, 4
      %s19 = sphi 0, %s21
      %s22 = sphi 0, %s19
      %s23 = sphi 0, %s22
      %s39 = sphi 0, %s23
      %s43 = sphi 0, %s43
      %s45 = sphi 0, %s43
      %s46 = sphi 0, %s45
      %s60 = sphi 0, %s46
      %s64 = sphi 0, %s64
      %s66 = sphi 0, %s64
      %s67 = sphi 0, %s66
      %s81 = sphi 0, %s67
      %s87 = sphi 0, %s89
      %s90 = sphi 0, %s87
      %s91 = sphi 0, %s90
      %s107 = sphi 0, %s91
    $region4: #{dilenet_forward.6} parent=1 // loop_header_branch
      %12 = sbr.rel (%p10) target = $region8
    $region5: #{dilenet_forward.6} parent=1 // loop_body
      %s14 = ssub.s32 %s9, 1
      %s15 = ssub.s32 %s9, 2
      %s16 = sadd.s32 %s9, 1
      %s17 = ssub.s32 %s9, %s16
      %p18 = scmp.eq.s32.totalorder %s17, 0
      %s20 = sadd.s32 %s19, 1
      %s21 = scalar_select %p18, %s19, %s20
      %p24 = pneg %p18
      %p25 = scmp.eq.s32.totalorder %s9, 1
      %p26 = por %p24, %p25
      %p27 = scmp.ne.s32.totalorder %s19, %s22
      %p28 = scmp.eq.s32.totalorder %s9, 0
      %p29 = por %p27, %p28
      %p30 = scmp.ne.s32.totalorder %s19, %s22
      %p31 = scmp.eq.s32.totalorder %s14, 1
      %p32 = por %p30, %p31
      %p33 = scmp.ne.s32.totalorder %s22, %s23
      %p34 = scmp.eq.s32.totalorder %s14, 0
      %p35 = por %p33, %p34
      %p36 = scmp.ne.s32.totalorder %s22, %s23
      %p37 = scmp.eq.s32.totalorder %s15, 1
      %p38 = por %p36, %p37
      %p40 = scmp.ne.s32.totalorder %s23, %s39
      %p41 = scmp.eq.s32.totalorder %s15, 0
      %p42 = por %p40, %p41
      %s44 = sadd.s32 %s43, 1
      %p47 = scmp.eq.s32.totalorder %s9, 1
      %p48 = scmp.ne.s32.totalorder %s43, %s45
      %p49 = scmp.eq.s32.totalorder %s9, 0
      %p50 = por %p48, %p49
      %p51 = scmp.ne.s32.totalorder %s43, %s45
      %p52 = scmp.eq.s32.totalorder %s14, 1
      %p53 = por %p51, %p52
      %p54 = scmp.ne.s32.totalorder %s45, %s46
      %p55 = scmp.eq.s32.totalorder %s14, 0
      %p56 = por %p54, %p55
      %p57 = scmp.ne.s32.totalorder %s45, %s46
      %p58 = scmp.eq.s32.totalorder %s15, 1
      %p59 = por %p57, %p58
      %p61 = scmp.ne.s32.totalorder %s46, %s60
      %p62 = scmp.eq.s32.totalorder %s15, 0
      %p63 = por %p61, %p62
      %s65 = sadd.s32 %s64, 1
      %p68 = scmp.eq.s32.totalorder %s9, 1
      %p69 = scmp.ne.s32.totalorder %s64, %s66
      %p70 = scmp.eq.s32.totalorder %s9, 0
      %p71 = por %p69, %p70
      %p72 = scmp.ne.s32.totalorder %s64, %s66
      %p73 = scmp.eq.s32.totalorder %s14, 1
      %p74 = por %p72, %p73
      %p75 = scmp.ne.s32.totalorder %s66, %s67
      %p76 = scmp.eq.s32.totalorder %s14, 0
      %p77 = por %p75, %p76
      %p78 = scmp.ne.s32.totalorder %s66, %s67
      %p79 = scmp.eq.s32.totalorder %s15, 1
      %p80 = por %p78, %p79
      %p82 = scmp.ne.s32.totalorder %s67, %s81
      %p83 = scmp.eq.s32.totalorder %s15, 0
      %p84 = por %p82, %p83
      %s85 = ssub.s32 %s9, %s16
      %p86 = scmp.eq.s32.totalorder %s85, 0
      %s88 = sadd.s32 %s87, 1
      %s89 = scalar_select %p86, %s87, %s88
      %p92 = pneg %p86
      %p93 = scmp.eq.s32.totalorder %s9, 1
      %p94 = por %p92, %p93
      %p95 = scmp.ne.s32.totalorder %s87, %s90
      %p96 = scmp.eq.s32.totalorder %s9, 0
      %p97 = por %p95, %p96
      %p98 = scmp.ne.s32.totalorder %s87, %s90
      %p99 = scmp.eq.s32.totalorder %s14, 1
      %p100 = por %p98, %p99
      %p101 = scmp.ne.s32.totalorder %s90, %s91
      %p102 = scmp.eq.s32.totalorder %s14, 0
      %p103 = por %p101, %p102
      %p104 = scmp.ne.s32.totalorder %s90, %s91
      %p105 = scmp.eq.s32.totalorder %s15, 1
      %p106 = por %p104, %p105
      %p108 = scmp.ne.s32.totalorder %s91, %s107
      %p109 = scmp.eq.s32.totalorder %s15, 0
      %p110 = por %p108, %p109
      %p111 = scmp.le.s32.totalorder 1, %s9
      %p112 = scmp.lt.s32.totalorder %s9, 3
      %p113 = pnand %p111, %p112
      %p114 = pneg %p113
      // Predicated region
      $region9: #{dilenet_forward.6} parent=5 // pred_check
        _
      $region10: #{dilenet_forward.6} parent=5 // pred_check_branch
        %116 = sbr.rel (%p113) target = $region12
      $region11: #{dilenet_forward.6} parent=5 // pred_region
        %s117 = ssub.s32 %s9, 1
        // Predicated region
        $region13: #{dilenet_forward.6} parent=11 // pred_check
          %p118 = pneg %p56
        $region14: #{dilenet_forward.6} parent=11 // pred_check_branch
          %120 = sbr.rel (%p118) target = $region16
        $region15: #{dilenet_forward.6} parent=11 // pred_region
          _
        $region16: #{dilenet_forward.6} parent=11 // pred_fallthru
          _
        // Predicated region
        $region17: #{dilenet_forward.6} parent=11 // pred_check
          %p121 = pneg %p77
        $region18: #{dilenet_forward.6} parent=11 // pred_check_branch
          %123 = sbr.rel (%p121) target = $region20
        $region19: #{dilenet_forward.6} parent=11 // pred_region
          _
        $region20: #{dilenet_forward.6} parent=11 // pred_fallthru
          _
      $region12: #{dilenet_forward.6} parent=5 // pred_fallthru
        _
      %p124 = scmp.lt.s32.totalorder %s9, 2
      // Predicated region
      $region21: #{dilenet_forward.6} parent=5 // pred_check
        %p125 = pneg %p124
      $region22: #{dilenet_forward.6} parent=5 // pred_check_branch
        %127 = sbr.rel (%p125) target = $region24
      $region23: #{dilenet_forward.6} parent=5 // pred_region
        // Predicated region
        $region25: #{dilenet_forward.6} parent=23 // pred_check
          %p128 = pneg %p29
        $region26: #{dilenet_forward.6} parent=23 // pred_check_branch
          %130 = sbr.rel (%p128) target = $region28
        $region27: #{dilenet_forward.6} parent=23 // pred_region
          %s131 = sand.u32 %s19, 1
          %s132 = sand.u32 %s19, 1
          %s133 = smul.addr %s132, 448
          %s134 = scalar_lea.vmem [#allocation2], %s133
          %s135 = smul.u32 2, %s9
          %s136 = smul.addr %s135, 14
          %s137 = smul.addr %s136, 4
          %s138 = scalar_lea.vmem %s0, %s137
          // Predicated region
          $region29: #{dilenet_forward.6} parent=27 // pred_check
            _
          $region30: #{dilenet_forward.6} parent=27 // pred_check_branch
            %140 = sbr.rel (0) target = $region32
          $region31: #{dilenet_forward.6} parent=27 // pred_region
            // Predicated region
            $region33: #{dilenet_forward.6} parent=31 // pred_check
              _
            $region34: #{dilenet_forward.6} parent=31 // pred_check_branch
              %142 = sbr.rel (0) target = $region36
            $region35: #{dilenet_forward.6} parent=31 // pred_region
              loop: start=0, step=1, limit=1
              $region37: #{dilenet_forward.6} parent=35 // loop_pre_header
                _
              $region38: #{dilenet_forward.6} parent=35 // loop_header
                %s144 = sphi 0, %s148
                %p145 = scmp.ge.s32.totalorder %s144, 1
                %s149 = sphi %s138, %s138
                %s150 = sphi %s134, %s134
              $region39: #{dilenet_forward.6} parent=35 // loop_header_branch
                %147 = sbr.rel (%p145) target = $region43
              $region40: #{dilenet_forward.6} parent=35 // loop_body
                %v151 = vld [vmem:[%s149] sm:$0xff]
                %152 = vst [vmem:[%s150] sm:$0xff] %v151
                %v153 = vld [vmem:[%s149 + $0x8] sm:$0xff]
                %154 = vst [vmem:[%s150 + $0x8] sm:$0xff] %v153
                %v155 = vld [vmem:[%s149 + $0x10] sm:$0xff]
                %156 = vst [vmem:[%s150 + $0x10] sm:$0xff] %v155
                %v157 = vld [vmem:[%s149 + $0x18] sm:$0xff]
                %158 = vst [vmem:[%s150 + $0x18] sm:$0xff] %v157
                %v159 = vld [vmem:[%s149 + $0x20] sm:$0xff]
                %160 = vst [vmem:[%s150 + $0x20] sm:$0xff] %v159
                %v161 = vld [vmem:[%s149 + $0x28] sm:$0xff]
                %162 = vst [vmem:[%s150 + $0x28] sm:$0xff] %v161
                %v163 = vld [vmem:[%s149 + $0x30] sm:$0xff]
                %164 = vst [vmem:[%s150 + $0x30] sm:$0xff] %v163
                %v165 = vld [vmem:[%s149 + $0x38] sm:$0xff]
                %166 = vst [vmem:[%s150 + $0x38] sm:$0xff] %v165
                %v167 = vld [vmem:[%s149 + $0x40] sm:$0xff]
                %168 = vst [vmem:[%s150 + $0x40] sm:$0xff] %v167
                %v169 = vld [vmem:[%s149 + $0x48] sm:$0xff]
                %170 = vst [vmem:[%s150 + $0x48] sm:$0xff] %v169
                %v171 = vld [vmem:[%s149 + $0x50] sm:$0xff]
                %172 = vst [vmem:[%s150 + $0x50] sm:$0xff] %v171
                %v173 = vld [vmem:[%s149 + $0x58] sm:$0xff]
                %174 = vst [vmem:[%s150 + $0x58] sm:$0xff] %v173
                %v175 = vld [vmem:[%s149 + $0x60] sm:$0xff]
                %176 = vst [vmem:[%s150 + $0x60] sm:$0xff] %v175
                %v177 = vld [vmem:[%s149 + $0x68] sm:$0xff]
                %178 = vst [vmem:[%s150 + $0x68] sm:$0xff] %v177
                %v179 = vld [vmem:[%s149 + $0xe0] sm:$0xff]
                %180 = vst [vmem:[%s150 + $0x70] sm:$0xff] %v179
                %v181 = vld [vmem:[%s149 + $0xe8] sm:$0xff]
                %182 = vst [vmem:[%s150 + $0x78] sm:$0xff] %v181
                %v183 = vld [vmem:[%s149 + $0xf0] sm:$0xff]
                %184 = vst [vmem:[%s150 + $0x80] sm:$0xff] %v183
                %v185 = vld [vmem:[%s149 + $0xf8] sm:$0xff]
                %186 = vst [vmem:[%s150 + $0x88] sm:$0xff] %v185
                %v187 = vld [vmem:[%s149 + $0x100] sm:$0xff]
                %188 = vst [vmem:[%s150 + $0x90] sm:$0xff] %v187
                %v189 = vld [vmem:[%s149 + $0x108] sm:$0xff]
                %190 = vst [vmem:[%s150 + $0x98] sm:$0xff] %v189
                %v191 = vld [vmem:[%s149 + $0x110] sm:$0xff]
                %192 = vst [vmem:[%s150 + $0xa0] sm:$0xff] %v191
                %v193 = vld [vmem:[%s149 + $0x118] sm:$0xff]
                %194 = vst [vmem:[%s150 + $0xa8] sm:$0xff] %v193
                %v195 = vld [vmem:[%s149 + $0x120] sm:$0xff]
                %196 = vst [vmem:[%s150 + $0xb0] sm:$0xff] %v195
                %v197 = vld [vmem:[%s149 + $0x128] sm:$0xff]
                %198 = vst [vmem:[%s150 + $0xb8] sm:$0xff] %v197
                %v199 = vld [vmem:[%s149 + $0x130] sm:$0xff]
                %200 = vst [vmem:[%s150 + $0xc0] sm:$0xff] %v199
                %v201 = vld [vmem:[%s149 + $0x138] sm:$0xff]
                %202 = vst [vmem:[%s150 + $0xc8] sm:$0xff] %v201
                %v203 = vld [vmem:[%s149 + $0x140] sm:$0xff]
                %204 = vst [vmem:[%s150 + $0xd0] sm:$0xff] %v203
                %v205 = vld [vmem:[%s149 + $0x148] sm:$0xff]
                %206 = vst [vmem:[%s150 + $0xd8] sm:$0xff] %v205
                %v207 = vld [vmem:[%s149 + $0x1c0] sm:$0xff]
                %208 = vst [vmem:[%s150 + $0xe0] sm:$0xff] %v207
                %v209 = vld [vmem:[%s149 + $0x1c8] sm:$0xff]
                %210 = vst [vmem:[%s150 + $0xe8] sm:$0xff] %v209
                %v211 = vld [vmem:[%s149 + $0x1d0] sm:$0xff]
                %212 = vst [vmem:[%s150 + $0xf0] sm:$0xff] %v211
                %v213 = vld [vmem:[%s149 + $0x1d8] sm:$0xff]
                %214 = vst [vmem:[%s150 + $0xf8] sm:$0xff] %v213
                %v215 = vld [vmem:[%s149 + $0x1e0] sm:$0xff]
                %216 = vst [vmem:[%s150 + $0x100] sm:$0xff] %v215
                %v217 = vld [vmem:[%s149 + $0x1e8] sm:$0xff]
                %218 = vst [vmem:[%s150 + $0x108] sm:$0xff] %v217
                %v219 = vld [vmem:[%s149 + $0x1f0] sm:$0xff]
                %220 = vst [vmem:[%s150 + $0x110] sm:$0xff] %v219
                %v221 = vld [vmem:[%s149 + $0x1f8] sm:$0xff]
                %222 = vst [vmem:[%s150 + $0x118] sm:$0xff] %v221
                %v223 = vld [vmem:[%s149 + $0x200] sm:$0xff]
                %224 = vst [vmem:[%s150 + $0x120] sm:$0xff] %v223
                %v225 = vld [vmem:[%s149 + $0x208] sm:$0xff]
                %226 = vst [vmem:[%s150 + $0x128] sm:$0xff] %v225
                %v227 = vld [vmem:[%s149 + $0x210] sm:$0xff]
                %228 = vst [vmem:[%s150 + $0x130] sm:$0xff] %v227
                %v229 = vld [vmem:[%s149 + $0x218] sm:$0xff]
                %230 = vst [vmem:[%s150 + $0x138] sm:$0xff] %v229
                %v231 = vld [vmem:[%s149 + $0x220] sm:$0xff]
                %232 = vst [vmem:[%s150 + $0x140] sm:$0xff] %v231
                %v233 = vld [vmem:[%s149 + $0x228] sm:$0xff]
                %234 = vst [vmem:[%s150 + $0x148] sm:$0xff] %v233
                %v235 = vld [vmem:[%s149 + $0x2a0] sm:$0xff]
                %236 = vst [vmem:[%s150 + $0x150] sm:$0xff] %v235
                %v237 = vld [vmem:[%s149 + $0x2a8] sm:$0xff]
                %238 = vst [vmem:[%s150 + $0x158] sm:$0xff] %v237
                %v239 = vld [vmem:[%s149 + $0x2b0] sm:$0xff]
                %240 = vst [vmem:[%s150 + $0x160] sm:$0xff] %v239
                %v241 = vld [vmem:[%s149 + $0x2b8] sm:$0xff]
                %242 = vst [vmem:[%s150 + $0x168] sm:$0xff] %v241
                %v243 = vld [vmem:[%s149 + $0x2c0] sm:$0xff]
                %244 = vst [vmem:[%s150 + $0x170] sm:$0xff] %v243
                %v245 = vld [vmem:[%s149 + $0x2c8] sm:$0xff]
                %246 = vst [vmem:[%s150 + $0x178] sm:$0xff] %v245
                %v247 = vld [vmem:[%s149 + $0x2d0] sm:$0xff]
                %248 = vst [vmem:[%s150 + $0x180] sm:$0xff] %v247
                %v249 = vld [vmem:[%s149 + $0x2d8] sm:$0xff]
                %250 = vst [vmem:[%s150 + $0x188] sm:$0xff] %v249
                %v251 = vld [vmem:[%s149 + $0x2e0] sm:$0xff]
                %252 = vst [vmem:[%s150 + $0x190] sm:$0xff] %v251
                %v253 = vld [vmem:[%s149 + $0x2e8] sm:$0xff]
                %254 = vst [vmem:[%s150 + $0x198] sm:$0xff] %v253
                %v255 = vld [vmem:[%s149 + $0x2f0] sm:$0xff]
                %256 = vst [vmem:[%s150 + $0x1a0] sm:$0xff] %v255
                %v257 = vld [vmem:[%s149 + $0x2f8] sm:$0xff]
                %258 = vst [vmem:[%s150 + $0x1a8] sm:$0xff] %v257
                %v259 = vld [vmem:[%s149 + $0x300] sm:$0xff]
                %260 = vst [vmem:[%s150 + $0x1b0] sm:$0xff] %v259
                %v261 = vld [vmem:[%s149 + $0x308] sm:$0xff]
                %262 = vst [vmem:[%s150 + $0x1b8] sm:$0xff] %v261
              $region41: #{dilenet_forward.6} parent=35 // loop_footer
                %s148 = sadd.s32 1, %s144
              $region42: #{dilenet_forward.6} parent=35 // loop_footer_branch
                %143 = sbr.rel target = $region38
              $region43: #{dilenet_forward.6} parent=35 // loop_exit
                _
            $region36: #{dilenet_forward.6} parent=31 // pred_fallthru
              _
            // Predicated region
            $region44: #{dilenet_forward.6} parent=31 // pred_check
              _
            $region45: #{dilenet_forward.6} parent=31 // pred_check_branch
              %264 = sbr.rel target = $region47
            $region46: #{dilenet_forward.6} parent=31 // pred_region
              _
            $region47: #{dilenet_forward.6} parent=31 // pred_fallthru
              _
          $region32: #{dilenet_forward.6} parent=27 // pred_fallthru
            _
          %265 = vnop
        $region28: #{dilenet_forward.6} parent=23 // pred_fallthru
          _
      $region24: #{dilenet_forward.6} parent=5 // pred_fallthru
        _
      %p266 = scmp.le.s32.totalorder 1, %s9
      %p267 = scmp.lt.s32.totalorder %s9, 3
      %p268 = pnand %p266, %p267
      %p269 = pneg %p268
      // Predicated region
      $region48: #{dilenet_forward.6} parent=5 // pred_check
        _
      $region49: #{dilenet_forward.6} parent=5 // pred_check_branch
        %271 = sbr.rel (%p268) target = $region51
      $region50: #{dilenet_forward.6} parent=5 // pred_region
        %s272 = ssub.s32 %s9, 1
        %s273 = sand.u32 %s22, 1
        %s274 = sand.u32 %s22, 1
        %s275 = smul.addr %s274, 448
        %s276 = scalar_lea.vmem [#allocation2], %s275
        // Predicated region
        $region52: #{dilenet_forward.6} parent=50 // pred_check
          %p277 = pneg %p35
        $region53: #{dilenet_forward.6} parent=50 // pred_check_branch
          %279 = sbr.rel (%p277) target = $region55
        $region54: #{dilenet_forward.6} parent=50 // pred_region
          _
        $region55: #{dilenet_forward.6} parent=50 // pred_fallthru
          _
        %s280 = sand.u32 %s22, 1
        %s281 = sand.u32 %s22, 1
        %s282 = smul.addr %s281, 448
        %s283 = scalar_lea.vmem [#allocation2], %s282
        %p284 = pneg %p35
        %p285 = pneg %p32
        %p286 = pneg %p56
        %p287 = pneg %p53
        %p288 = pneg %p77
        %p289 = pneg %p74
        %p290 = pneg %p103
        %p291 = pneg %p100
        %s292 = smul.u32 2, %s14
        %p293 = scmp.lt.s32.totalorder %s292, 3
        %s294 = scalar_select %p293, %s292, 3
        %s295 = smul.addr %s294, 2
        %s296 = smul.addr %s295, 4
        %s297 = scalar_lea.vmem %s3, %s296
        %s298 = smul.u32 2, %s14
        %s299 = smul.u32 2, %s14
        %p300 = scmp.lt.s32.totalorder %s299, 3
        %s301 = scalar_select %p300, %s299, 3
        %s302 = smul.addr %s301, 2
        %s303 = smul.addr %s302, 4
        %s304 = scalar_lea.vmem %s3, %s303
        %s305 = smul.u32 2, %s14
        %v306 = vld [vmem:[%s276] sm:$0xff]
        %v307 = vld [vmem:[%s276 + $0x8] sm:$0xff]
        %v308 = vld [vmem:[%s276 + $0x10] sm:$0xff]
        %v309 = vld [vmem:[%s276 + $0x18] sm:$0xff]
        %v310 = vld [vmem:[%s276 + $0x20] sm:$0xff]
        %v311 = vld [vmem:[%s276 + $0x28] sm:$0xff]
        %v312 = vld [vmem:[%s276 + $0x30] sm:$0xff]
        %v313 = vld [vmem:[%s276 + $0x38] sm:$0xff]
        %v314 = vld [vmem:[%s276 + $0x40] sm:$0xff]
        %v315 = vld [vmem:[%s276 + $0x48] sm:$0xff]
        %v316 = vld [vmem:[%s276 + $0x50] sm:$0xff]
        %v317 = vld [vmem:[%s276 + $0x58] sm:$0xff]
        %v318 = vld [vmem:[%s276 + $0x60] sm:$0xff]
        %v319 = vld [vmem:[%s276 + $0x68] sm:$0xff]
        %v320 = vld [vmem:[%s276 + $0x70] sm:$0xff]
        %v321 = vld [vmem:[%s276 + $0x78] sm:$0xff]
        %v322 = vld [vmem:[%s276 + $0x80] sm:$0xff]
        %v323 = vld [vmem:[%s276 + $0x88] sm:$0xff]
        %v324 = vld [vmem:[%s276 + $0x90] sm:$0xff]
        %v325 = vld [vmem:[%s276 + $0x98] sm:$0xff]
        %v326 = vld [vmem:[%s276 + $0xa0] sm:$0xff]
        %v327 = vld [vmem:[%s276 + $0xa8] sm:$0xff]
        %v328 = vld [vmem:[%s276 + $0xb0] sm:$0xff]
        %v329 = vld [vmem:[%s276 + $0xb8] sm:$0xff]
        %v330 = vld [vmem:[%s276 + $0xc0] sm:$0xff]
        %v331 = vld [vmem:[%s276 + $0xc8] sm:$0xff]
        %v332 = vld [vmem:[%s276 + $0xd0] sm:$0xff]
        %v333 = vld [vmem:[%s276 + $0xd8] sm:$0xff]
        %v334 = vld [vmem:[%s276 + $0xe0] sm:$0xff]
        %v335 = vld [vmem:[%s276 + $0xe8] sm:$0xff]
        %v336 = vld [vmem:[%s276 + $0xf0] sm:$0xff]
        %v337 = vld [vmem:[%s276 + $0xf8] sm:$0xff]
        %v338 = vld [vmem:[%s276 + $0x100] sm:$0xff]
        %v339 = vld [vmem:[%s276 + $0x108] sm:$0xff]
        %v340 = vld [vmem:[%s276 + $0x110] sm:$0xff]
        %v341 = vld [vmem:[%s276 + $0x118] sm:$0xff]
        %v342 = vld [vmem:[%s276 + $0x120] sm:$0xff]
        %v343 = vld [vmem:[%s276 + $0x128] sm:$0xff]
        %v344 = vld [vmem:[%s276 + $0x130] sm:$0xff]
        %v345 = vld [vmem:[%s276 + $0x138] sm:$0xff]
        %v346 = vld [vmem:[%s276 + $0x140] sm:$0xff]
        %v347 = vld [vmem:[%s276 + $0x148] sm:$0xff]
        %v348 = vld [vmem:[%s276 + $0x150] sm:$0xff]
        %v349 = vld [vmem:[%s276 + $0x158] sm:$0xff]
        %v350 = vld [vmem:[%s276 + $0x160] sm:$0xff]
        %v351 = vld [vmem:[%s276 + $0x168] sm:$0xff]
        %v352 = vld [vmem:[%s276 + $0x170] sm:$0xff]
        %v353 = vld [vmem:[%s276 + $0x178] sm:$0xff]
        %v354 = vld [vmem:[%s276 + $0x180] sm:$0xff]
        %v355 = vld [vmem:[%s276 + $0x188] sm:$0xff]
        %v356 = vld [vmem:[%s276 + $0x190] sm:$0xff]
        %v357 = vld [vmem:[%s276 + $0x198] sm:$0xff]
        %v358 = vld [vmem:[%s276 + $0x1a0] sm:$0xff]
        %v359 = vld [vmem:[%s276 + $0x1a8] sm:$0xff]
        %v360 = vld [vmem:[%s276 + $0x1b0] sm:$0xff]
        %v361 = vld [vmem:[%s276 + $0x1b8] sm:$0xff]
        %v362 = vld [vmem:[%s1] sm:$0xff]
        %v363 = vld [vmem:[%s1 + $0x8] sm:$0xff]
        %v364 = vld [vmem:[%s1 + $0x10] sm:$0xff]
        %v365 = vld [vmem:[%s1 + $0x18] sm:$0xff]
        %v366 = vld [vmem:[%s1 + $0x20] sm:$0xff]
        %v367 = vld [vmem:[%s1 + $0x28] sm:$0xff]
        %v368 = vld [vmem:[%s1 + $0x30] sm:$0xff]
        %v369 = vld [vmem:[%s1 + $0x38] sm:$0xff]
        %v370 = vld [vmem:[%s1 + $0x40] sm:$0xff]
        %v371 = vld [vmem:[%s1 + $0x48] sm:$0xff]
        %v372 = vld [vmem:[%s1 + $0x50] sm:$0xff]
        %v373 = vld [vmem:[%s1 + $0x58] sm:$0xff]
        %v374 = vld [vmem:[%s1 + $0x60] sm:$0xff]
        %v375 = vld [vmem:[%s1 + $0x68] sm:$0xff]
        %v376 = vld [vmem:[%s1 + $0x70] sm:$0xff]
        %v377 = vld [vmem:[%s1 + $0x78] sm:$0xff]
        %v378 = vld [vmem:[%s1 + $0x80] sm:$0xff]
        %v379 = vld [vmem:[%s1 + $0x88] sm:$0xff]
        %v380 = vld [vmem:[%s1 + $0x90] sm:$0xff]
        %v381 = vld [vmem:[%s1 + $0x98] sm:$0xff]
        %v382 = vld [vmem:[%s1 + $0xa0] sm:$0xff]
        %v383 = vld [vmem:[%s1 + $0xa8] sm:$0xff]
        %v384 = vld [vmem:[%s1 + $0xb0] sm:$0xff]
        %v385 = vld [vmem:[%s1 + $0xb8] sm:$0xff]
        %v386 = vld [vmem:[%s1 + $0xc0] sm:$0xff]
        %v387 = vld [vmem:[%s1 + $0xc8] sm:$0xff]
        %v388 = vld [vmem:[%s1 + $0xd0] sm:$0xff]
        %v389 = vld [vmem:[%s1 + $0xd8] sm:$0xff]
        %v390 = vld [vmem:[%s1 + $0xe0] sm:$0xff]
        %v391 = vld [vmem:[%s1 + $0xe8] sm:$0xff]
        %v392 = vld [vmem:[%s1 + $0xf0] sm:$0xff]
        %v393 = vld [vmem:[%s1 + $0xf8] sm:$0xff]
        %v394 = vld [vmem:[%s1 + $0x100] sm:$0xff]
        %v395 = vld [vmem:[%s1 + $0x108] sm:$0xff]
        %v396 = vld [vmem:[%s1 + $0x110] sm:$0xff]
        %v397 = vld [vmem:[%s1 + $0x118] sm:$0xff]
        %v398 = vld [vmem:[%s1 + $0x120] sm:$0xff]
        %v399 = vld [vmem:[%s1 + $0x128] sm:$0xff]
        %v400 = vld [vmem:[%s1 + $0x130] sm:$0xff]
        %v401 = vld [vmem:[%s1 + $0x138] sm:$0xff]
        %v402 = vld [vmem:[%s1 + $0x140] sm:$0xff]
        %v403 = vld [vmem:[%s1 + $0x148] sm:$0xff]
        %v404 = vld [vmem:[%s1 + $0x150] sm:$0xff]
        %v405 = vld [vmem:[%s1 + $0x158] sm:$0xff]
        %v406 = vld [vmem:[%s1 + $0x160] sm:$0xff]
        %v407 = vld [vmem:[%s1 + $0x168] sm:$0xff]
        %v408 = vld [vmem:[%s1 + $0x170] sm:$0xff]
        %v409 = vld [vmem:[%s1 + $0x178] sm:$0xff]
        %v410 = vld [vmem:[%s1 + $0x180] sm:$0xff]
        %v411 = vld [vmem:[%s1 + $0x188] sm:$0xff]
        %v412 = vld [vmem:[%s1 + $0x190] sm:$0xff]
        %v413 = vld [vmem:[%s1 + $0x198] sm:$0xff]
        %v414 = vld [vmem:[%s1 + $0x1a0] sm:$0xff]
        %v415 = vld [vmem:[%s1 + $0x1a8] sm:$0xff]
        %v416 = vld [vmem:[%s1 + $0x1b0] sm:$0xff]
        %v417 = vld [vmem:[%s1 + $0x1b8] sm:$0xff]
        %v418 = vld [vmem:[%s1 + $0x1c0] sm:$0xff]
        %v419 = vld [vmem:[%s1 + $0x1c8] sm:$0xff]
        %v420 = vld [vmem:[%s1 + $0x1d0] sm:$0xff]
        %v421 = vld [vmem:[%s1 + $0x1d8] sm:$0xff]
        %v422 = vld [vmem:[%s1 + $0x1e0] sm:$0xff]
        %v423 = vld [vmem:[%s1 + $0x1e8] sm:$0xff]
        %v424 = vld [vmem:[%s1 + $0x1f0] sm:$0xff]
        %v425 = vld [vmem:[%s1 + $0x1f8] sm:$0xff]
        %v426 = vld [vmem:[%s1 + $0x200] sm:$0xff]
        %v427 = vld [vmem:[%s1 + $0x208] sm:$0xff]
        %v428 = vld [vmem:[%s1 + $0x210] sm:$0xff]
        %v429 = vld [vmem:[%s1 + $0x218] sm:$0xff]
        %v430 = vld [vmem:[%s1 + $0x220] sm:$0xff]
        %v431 = vld [vmem:[%s1 + $0x228] sm:$0xff]
        %v432 = vld [vmem:[%s1 + $0x230] sm:$0xff]
        %v433 = vld [vmem:[%s1 + $0x238] sm:$0xff]
        %v434 = vld [vmem:[%s1 + $0x240] sm:$0xff]
        %v435 = vld [vmem:[%s1 + $0x248] sm:$0xff]
        %v436 = vld [vmem:[%s1 + $0x250] sm:$0xff]
        %v437 = vld [vmem:[%s1 + $0x258] sm:$0xff]
        %v438 = vld [vmem:[%s1 + $0x260] sm:$0xff]
        %v439 = vld [vmem:[%s1 + $0x268] sm:$0xff]
        %v440 = vld [vmem:[%s1 + $0x270] sm:$0xff]
        %v441 = vld [vmem:[%s1 + $0x278] sm:$0xff]
        %v442 = vld [vmem:[%s1 + $0x280] sm:$0xff]
        %v443 = vld [vmem:[%s1 + $0x288] sm:$0xff]
        %v444 = vld [vmem:[%s1 + $0x290] sm:$0xff]
        %v445 = vld [vmem:[%s1 + $0x298] sm:$0xff]
        %v446 = vld [vmem:[%s1 + $0x2a0] sm:$0xff]
        %v447 = vld [vmem:[%s1 + $0x2a8] sm:$0xff]
        %v448 = vld [vmem:[%s1 + $0x2b0] sm:$0xff]
        %v449 = vld [vmem:[%s1 + $0x2b8] sm:$0xff]
        %v450 = vld [vmem:[%s1 + $0x2c0] sm:$0xff]
        %v451 = vld [vmem:[%s1 + $0x2c8] sm:$0xff]
        %v452 = vld [vmem:[%s1 + $0x2d0] sm:$0xff]
        %v453 = vld [vmem:[%s1 + $0x2d8] sm:$0xff]
        %v454 = vld [vmem:[%s1 + $0x2e0] sm:$0xff]
        %v455 = vld [vmem:[%s1 + $0x2e8] sm:$0xff]
        %v456 = vld [vmem:[%s1 + $0x2f0] sm:$0xff]
        %v457 = vld [vmem:[%s1 + $0x2f8] sm:$0xff]
        %v458 = vld [vmem:[%s1 + $0x300] sm:$0xff]
        %v459 = vld [vmem:[%s1 + $0x308] sm:$0xff]
        %v460 = vld [vmem:[%s1 + $0x310] sm:$0xff]
        %v461 = vld [vmem:[%s1 + $0x318] sm:$0xff]
        %v462 = vld [vmem:[%s1 + $0x320] sm:$0xff]
        %v463 = vld [vmem:[%s1 + $0x328] sm:$0xff]
        %v464 = vld [vmem:[%s1 + $0x330] sm:$0xff]
        %v465 = vld [vmem:[%s1 + $0x338] sm:$0xff]
        %v466 = vld [vmem:[%s1 + $0x340] sm:$0xff]
        %v467 = vld [vmem:[%s1 + $0x348] sm:$0xff]
        %v468 = vld [vmem:[%s1 + $0x350] sm:$0xff]
        %v469 = vld [vmem:[%s1 + $0x358] sm:$0xff]
        %v470 = vld [vmem:[%s1 + $0x360] sm:$0xff]
        %v471 = vld [vmem:[%s1 + $0x368] sm:$0xff]
        %v472 = vld [vmem:[%s1 + $0x370] sm:$0xff]
        %v473 = vld [vmem:[%s1 + $0x378] sm:$0xff]
        %v474 = vld [vmem:[%s1 + $0x380] sm:$0xff]
        %v475 = vld [vmem:[%s1 + $0x388] sm:$0xff]
        %v476 = vld [vmem:[%s1 + $0x390] sm:$0xff]
        %v477 = vld [vmem:[%s1 + $0x398] sm:$0xff]
        %v478 = vld [vmem:[%s1 + $0x3a0] sm:$0xff]
        %v479 = vld [vmem:[%s1 + $0x3a8] sm:$0xff]
        %v480 = vld [vmem:[%s1 + $0x3b0] sm:$0xff]
        %v481 = vld [vmem:[%s1 + $0x3b8] sm:$0xff]
        %v482 = vld [vmem:[%s1 + $0x3c0] sm:$0xff]
        %v483 = vld [vmem:[%s1 + $0x3c8] sm:$0xff]
        %v484 = vld [vmem:[%s1 + $0x3d0] sm:$0xff]
        %v485 = vld [vmem:[%s1 + $0x3d8] sm:$0xff]
        %v486 = vld [vmem:[%s1 + $0x3e0] sm:$0xff]
        %v487 = vld [vmem:[%s1 + $0x3e8] sm:$0xff]
        %v488 = vld [vmem:[%s1 + $0x3f0] sm:$0xff]
        %v489 = vld [vmem:[%s1 + $0x3f8] sm:$0xff]
        %v490 = vld [vmem:[%s1 + $0x400] sm:$0xff]
        %v491 = vld [vmem:[%s1 + $0x408] sm:$0xff]
        %v492 = vld [vmem:[%s1 + $0x410] sm:$0xff]
        %v493 = vld [vmem:[%s1 + $0x418] sm:$0xff]
        %v494 = vld [vmem:[%s1 + $0x420] sm:$0xff]
        %v495 = vld [vmem:[%s1 + $0x428] sm:$0xff]
        %v496 = vld [vmem:[%s1 + $0x430] sm:$0xff]
        %v497 = vld [vmem:[%s1 + $0x438] sm:$0xff]
        %v498 = vld [vmem:[%s1 + $0x440] sm:$0xff]
        %v499 = vld [vmem:[%s1 + $0x448] sm:$0xff]
        %v500 = vld [vmem:[%s1 + $0x450] sm:$0xff]
        %v501 = vld [vmem:[%s1 + $0x458] sm:$0xff]
        %v502 = vld [vmem:[%s1 + $0x460] sm:$0xff]
        %v503 = vld [vmem:[%s1 + $0x468] sm:$0xff]
        %v504 = vld [vmem:[%s1 + $0x470] sm:$0xff]
        %v505 = vld [vmem:[%s1 + $0x478] sm:$0xff]
        %v506 = vld [vmem:[%s1 + $0x480] sm:$0xff]
        %v507 = vld [vmem:[%s1 + $0x488] sm:$0xff]
        %v508 = vld [vmem:[%s1 + $0x490] sm:$0xff]
        %v509 = vld [vmem:[%s1 + $0x498] sm:$0xff]
        %v510 = vld [vmem:[%s1 + $0x4a0] sm:$0xff]
        %v511 = vld [vmem:[%s1 + $0x4a8] sm:$0xff]
        %v512 = vld [vmem:[%s1 + $0x4b0] sm:$0xff]
        %v513 = vld [vmem:[%s1 + $0x4b8] sm:$0xff]
        %v514 = vld [vmem:[%s1 + $0x4c0] sm:$0xff]
        %v515 = vld [vmem:[%s1 + $0x4c8] sm:$0xff]
        %v516 = vld [vmem:[%s1 + $0x4d0] sm:$0xff]
        %v517 = vld [vmem:[%s1 + $0x4d8] sm:$0xff]
        %v518 = vld [vmem:[%s1 + $0x4e0] sm:$0xff]
        %v519 = vld [vmem:[%s1 + $0x4e8] sm:$0xff]
        %v520 = vld [vmem:[%s1 + $0x4f0] sm:$0xff]
        %v521 = vld [vmem:[%s1 + $0x4f8] sm:$0xff]
        %v522 = vld [vmem:[%s1 + $0x500] sm:$0xff]
        %v523 = vld [vmem:[%s1 + $0x508] sm:$0xff]
        %v524 = vld [vmem:[%s1 + $0x510] sm:$0xff]
        %v525 = vld [vmem:[%s1 + $0x518] sm:$0xff]
        %v526 = vld [vmem:[%s1 + $0x520] sm:$0xff]
        %v527 = vld [vmem:[%s1 + $0x528] sm:$0xff]
        %v528 = vld [vmem:[%s1 + $0x530] sm:$0xff]
        %v529 = vld [vmem:[%s1 + $0x538] sm:$0xff]
        %v530 = vld [vmem:[%s1 + $0x540] sm:$0xff]
        %v531 = vld [vmem:[%s1 + $0x548] sm:$0xff]
        %v532 = vld [vmem:[%s1 + $0x550] sm:$0xff]
        %v533 = vld [vmem:[%s1 + $0x558] sm:$0xff]
        %v534 = vld [vmem:[%s1 + $0x560] sm:$0xff]
        %v535 = vld [vmem:[%s1 + $0x568] sm:$0xff]
        %v536 = vld [vmem:[%s1 + $0x570] sm:$0xff]
        %v537 = vld [vmem:[%s1 + $0x578] sm:$0xff]
        %v538 = vld [vmem:[%s1 + $0x580] sm:$0xff]
        %v539 = vld [vmem:[%s1 + $0x588] sm:$0xff]
        %v540 = vld [vmem:[%s1 + $0x590] sm:$0xff]
        %v541 = vld [vmem:[%s1 + $0x598] sm:$0xff]
        %v542 = vld [vmem:[%s1 + $0x5a0] sm:$0xff]
        %v543 = vld [vmem:[%s1 + $0x5a8] sm:$0xff]
        %v544 = vld [vmem:[%s1 + $0x5b0] sm:$0xff]
        %v545 = vld [vmem:[%s1 + $0x5b8] sm:$0xff]
        %v546 = vld [vmem:[%s1 + $0x5c0] sm:$0xff]
        %v547 = vld [vmem:[%s1 + $0x5c8] sm:$0xff]
        %v548 = vld [vmem:[%s1 + $0x5d0] sm:$0xff]
        %v549 = vld [vmem:[%s1 + $0x5d8] sm:$0xff]
        %v550 = vld [vmem:[%s1 + $0x5e0] sm:$0xff]
        %v551 = vld [vmem:[%s1 + $0x5e8] sm:$0xff]
        %v552 = vld [vmem:[%s1 + $0x5f0] sm:$0xff]
        %v553 = vld [vmem:[%s1 + $0x5f8] sm:$0xff]
        %v554 = vld [vmem:[%s1 + $0x600] sm:$0xff]
        %v555 = vld [vmem:[%s1 + $0x608] sm:$0xff]
        %v556 = vld [vmem:[%s1 + $0x610] sm:$0xff]
        %v557 = vld [vmem:[%s1 + $0x618] sm:$0xff]
        %v558 = vld [vmem:[%s1 + $0x620] sm:$0xff]
        %v559 = vld [vmem:[%s1 + $0x628] sm:$0xff]
        %v560 = vld [vmem:[%s1 + $0x630] sm:$0xff]
        %v561 = vld [vmem:[%s1 + $0x638] sm:$0xff]
        %v562 = vld [vmem:[%s1 + $0x640] sm:$0xff]
        %v563 = vld [vmem:[%s1 + $0x648] sm:$0xff]
        %v564 = vld [vmem:[%s1 + $0x650] sm:$0xff]
        %v565 = vld [vmem:[%s1 + $0x658] sm:$0xff]
        %v566 = vld [vmem:[%s1 + $0x660] sm:$0xff]
        %v567 = vld [vmem:[%s1 + $0x668] sm:$0xff]
        %v568 = vld [vmem:[%s1 + $0x670] sm:$0xff]
        %v569 = vld [vmem:[%s1 + $0x678] sm:$0xff]
        %v570 = vld [vmem:[%s1 + $0x680] sm:$0xff]
        %v571 = vld [vmem:[%s1 + $0x688] sm:$0xff]
        %v572 = vld [vmem:[%s1 + $0x690] sm:$0xff]
        %v573 = vld [vmem:[%s1 + $0x698] sm:$0xff]
        %v574 = vld [vmem:[%s1 + $0x6a0] sm:$0xff]
        %v575 = vld [vmem:[%s1 + $0x6a8] sm:$0xff]
        %v576 = vld [vmem:[%s1 + $0x6b0] sm:$0xff]
        %v577 = vld [vmem:[%s1 + $0x6b8] sm:$0xff]
        %v578 = vld [vmem:[%s1 + $0x6c0] sm:$0xff]
        %v579 = vld [vmem:[%s1 + $0x6c8] sm:$0xff]
        %v580 = vld [vmem:[%s1 + $0x6d0] sm:$0xff]
        %v581 = vld [vmem:[%s1 + $0x6d8] sm:$0xff]
        %v582 = vld [vmem:[%s1 + $0x6e0] sm:$0xff]
        %v583 = vld [vmem:[%s1 + $0x6e8] sm:$0xff]
        %v584 = vld [vmem:[%s1 + $0x6f0] sm:$0xff]
        %v585 = vld [vmem:[%s1 + $0x6f8] sm:$0xff]
        %v642 = vunpack.c.l.b16 %v306
        %v643 = vunpack.c.h.b16 %v306
        %v644 = vunpack.c.l.b16 %v307
        %v645 = vunpack.c.h.b16 %v307
        %v646 = vunpack.c.l.b16 %v308
        %v647 = vunpack.c.h.b16 %v308
        %v648 = vunpack.c.l.b16 %v309
        %v649 = vunpack.c.h.b16 %v309
        %v650 = vunpack.c.l.b16 %v310
        %v651 = vunpack.c.h.b16 %v310
        %v652 = vunpack.c.l.b16 %v311
        %v653 = vunpack.c.h.b16 %v311
        %v654 = vunpack.c.l.b16 %v312
        %v655 = vunpack.c.h.b16 %v312
        %v656 = vunpack.c.l.b16 %v313
        %v657 = vunpack.c.h.b16 %v313
        %v658 = vunpack.c.l.b16 %v314
        %v659 = vunpack.c.h.b16 %v314
        %v660 = vunpack.c.l.b16 %v315
        %v661 = vunpack.c.h.b16 %v315
        %v662 = vunpack.c.l.b16 %v316
        %v663 = vunpack.c.h.b16 %v316
        %v664 = vunpack.c.l.b16 %v317
        %v665 = vunpack.c.h.b16 %v317
        %v666 = vunpack.c.l.b16 %v318
        %v667 = vunpack.c.h.b16 %v318
        %v668 = vunpack.c.l.b16 %v319
        %v669 = vunpack.c.h.b16 %v319
        %v670 = vunpack.c.l.b16 %v320
        %v671 = vunpack.c.h.b16 %v320
        %v672 = vunpack.c.l.b16 %v321
        %v673 = vunpack.c.h.b16 %v321
        %v674 = vunpack.c.l.b16 %v322
        %v675 = vunpack.c.h.b16 %v322
        %v676 = vunpack.c.l.b16 %v323
        %v677 = vunpack.c.h.b16 %v323
        %v678 = vunpack.c.l.b16 %v324
        %v679 = vunpack.c.h.b16 %v324
        %v680 = vunpack.c.l.b16 %v325
        %v681 = vunpack.c.h.b16 %v325
        %v682 = vunpack.c.l.b16 %v326
        %v683 = vunpack.c.h.b16 %v326
        %v684 = vunpack.c.l.b16 %v327
        %v685 = vunpack.c.h.b16 %v327
        %v686 = vunpack.c.l.b16 %v328
        %v687 = vunpack.c.h.b16 %v328
        %v688 = vunpack.c.l.b16 %v329
        %v689 = vunpack.c.h.b16 %v329
        %v690 = vunpack.c.l.b16 %v330
        %v691 = vunpack.c.h.b16 %v330
        %v692 = vunpack.c.l.b16 %v331
        %v693 = vunpack.c.h.b16 %v331
        %v694 = vunpack.c.l.b16 %v332
        %v695 = vunpack.c.h.b16 %v332
        %v696 = vunpack.c.l.b16 %v333
        %v697 = vunpack.c.h.b16 %v333
        %v698 = vunpack.c.l.b16 %v334
        %v699 = vunpack.c.h.b16 %v334
        %v700 = vunpack.c.l.b16 %v335
        %v701 = vunpack.c.h.b16 %v335
        %v702 = vunpack.c.l.b16 %v336
        %v703 = vunpack.c.h.b16 %v336
        %v704 = vunpack.c.l.b16 %v337
        %v705 = vunpack.c.h.b16 %v337
        %v706 = vunpack.c.l.b16 %v338
        %v707 = vunpack.c.h.b16 %v338
        %v708 = vunpack.c.l.b16 %v339
        %v709 = vunpack.c.h.b16 %v339
        %v710 = vunpack.c.l.b16 %v340
        %v711 = vunpack.c.h.b16 %v340
        %v712 = vunpack.c.l.b16 %v341
        %v713 = vunpack.c.h.b16 %v341
        %v714 = vunpack.c.l.b16 %v342
        %v715 = vunpack.c.h.b16 %v342
        %v716 = vunpack.c.l.b16 %v343
        %v717 = vunpack.c.h.b16 %v343
        %v718 = vunpack.c.l.b16 %v344
        %v719 = vunpack.c.h.b16 %v344
        %v720 = vunpack.c.l.b16 %v345
        %v721 = vunpack.c.h.b16 %v345
        %v722 = vunpack.c.l.b16 %v346
        %v723 = vunpack.c.h.b16 %v346
        %v724 = vunpack.c.l.b16 %v347
        %v725 = vunpack.c.h.b16 %v347
        %v726 = vunpack.c.l.b16 %v348
        %v727 = vunpack.c.h.b16 %v348
        %v728 = vunpack.c.l.b16 %v349
        %v729 = vunpack.c.h.b16 %v349
        %v730 = vunpack.c.l.b16 %v350
        %v731 = vunpack.c.h.b16 %v350
        %v732 = vunpack.c.l.b16 %v351
        %v733 = vunpack.c.h.b16 %v351
        %v734 = vunpack.c.l.b16 %v352
        %v735 = vunpack.c.h.b16 %v352
        %v736 = vunpack.c.l.b16 %v353
        %v737 = vunpack.c.h.b16 %v353
        %v738 = vunpack.c.l.b16 %v354
        %v739 = vunpack.c.h.b16 %v354
        %v740 = vunpack.c.l.b16 %v355
        %v741 = vunpack.c.h.b16 %v355
        %v742 = vunpack.c.l.b16 %v356
        %v743 = vunpack.c.h.b16 %v356
        %v744 = vunpack.c.l.b16 %v357
        %v745 = vunpack.c.h.b16 %v357
        %v746 = vunpack.c.l.b16 %v358
        %v747 = vunpack.c.h.b16 %v358
        %v748 = vunpack.c.l.b16 %v359
        %v749 = vunpack.c.h.b16 %v359
        %v750 = vunpack.c.l.b16 %v360
        %v751 = vunpack.c.h.b16 %v360
        %v752 = vunpack.c.l.b16 %v361
        %v753 = vunpack.c.h.b16 %v361
        %v754 = vpack.c.b16 %v656, %v642
        %v755 = vpack.c.b16 %v657, %v643
        %v756 = vpack.c.b16 %v658, %v644
        %v757 = vpack.c.b16 %v659, %v645
        %v758 = vpack.c.b16 %v660, %v646
        %v759 = vpack.c.b16 %v661, %v647
        %v760 = vpack.c.b16 %v662, %v648
        %v761 = vpack.c.b16 %v663, %v649
        %v762 = vpack.c.b16 %v664, %v650
        %v763 = vpack.c.b16 %v665, %v651
        %v764 = vpack.c.b16 %v666, %v652
        %v765 = vpack.c.b16 %v667, %v653
        %v766 = vpack.c.b16 %v668, %v654
        %v767 = vpack.c.b16 %v669, %v655
        %v768 = vpack.c.b16 %v684, %v670
        %v769 = vpack.c.b16 %v685, %v671
        %v770 = vpack.c.b16 %v686, %v672
        %v771 = vpack.c.b16 %v687, %v673
        %v772 = vpack.c.b16 %v688, %v674
        %v773 = vpack.c.b16 %v689, %v675
        %v774 = vpack.c.b16 %v690, %v676
        %v775 = vpack.c.b16 %v691, %v677
        %v776 = vpack.c.b16 %v692, %v678
        %v777 = vpack.c.b16 %v693, %v679
        %v778 = vpack.c.b16 %v694, %v680
        %v779 = vpack.c.b16 %v695, %v681
        %v780 = vpack.c.b16 %v696, %v682
        %v781 = vpack.c.b16 %v697, %v683
        %v782 = vpack.c.b16 %v712, %v698
        %v783 = vpack.c.b16 %v713, %v699
        %v784 = vpack.c.b16 %v714, %v700
        %v785 = vpack.c.b16 %v715, %v701
        %v786 = vpack.c.b16 %v716, %v702
        %v787 = vpack.c.b16 %v717, %v703
        %v788 = vpack.c.b16 %v718, %v704
        %v789 = vpack.c.b16 %v719, %v705
        %v790 = vpack.c.b16 %v720, %v706
        %v791 = vpack.c.b16 %v721, %v707
        %v792 = vpack.c.b16 %v722, %v708
        %v793 = vpack.c.b16 %v723, %v709
        %v794 = vpack.c.b16 %v724, %v710
        %v795 = vpack.c.b16 %v725, %v711
        %v796 = vpack.c.b16 %v740, %v726
        %v797 = vpack.c.b16 %v741, %v727
        %v798 = vpack.c.b16 %v742, %v728
        %v799 = vpack.c.b16 %v743, %v729
        %v800 = vpack.c.b16 %v744, %v730
        %v801 = vpack.c.b16 %v745, %v731
        %v802 = vpack.c.b16 %v746, %v732
        %v803 = vpack.c.b16 %v747, %v733
        %v804 = vpack.c.b16 %v748, %v734
        %v805 = vpack.c.b16 %v749, %v735
        %v806 = vpack.c.b16 %v750, %v736
        %v807 = vpack.c.b16 %v751, %v737
        %v808 = vpack.c.b16 %v752, %v738
        %v809 = vpack.c.b16 %v753, %v739
        %v1090 = vunpack.c.l.b16 %v362
        %v1091 = vunpack.c.h.b16 %v362
        %v1092 = vunpack.c.l.b16 %v363
        %v1093 = vunpack.c.h.b16 %v363
        %v1094 = vunpack.c.l.b16 %v364
        %v1095 = vunpack.c.h.b16 %v364
        %v1096 = vunpack.c.l.b16 %v365
        %v1097 = vunpack.c.h.b16 %v365
        %v1098 = vunpack.c.l.b16 %v366
        %v1099 = vunpack.c.h.b16 %v366
        %v1100 = vunpack.c.l.b16 %v367
        %v1101 = vunpack.c.h.b16 %v367
        %v1102 = vunpack.c.l.b16 %v368
        %v1103 = vunpack.c.h.b16 %v368
        %v1104 = vunpack.c.l.b16 %v369
        %v1105 = vunpack.c.h.b16 %v369
        %v1106 = vunpack.c.l.b16 %v370
        %v1107 = vunpack.c.h.b16 %v370
        %v1108 = vunpack.c.l.b16 %v371
        %v1109 = vunpack.c.h.b16 %v371
        %v1110 = vunpack.c.l.b16 %v372
        %v1111 = vunpack.c.h.b16 %v372
        %v1112 = vunpack.c.l.b16 %v373
        %v1113 = vunpack.c.h.b16 %v373
        %v1114 = vunpack.c.l.b16 %v374
        %v1115 = vunpack.c.h.b16 %v374
        %v1116 = vunpack.c.l.b16 %v375
        %v1117 = vunpack.c.h.b16 %v375
        %v1118 = vunpack.c.l.b16 %v376
        %v1119 = vunpack.c.h.b16 %v376
        %v1120 = vunpack.c.l.b16 %v377
        %v1121 = vunpack.c.h.b16 %v377
        %v1122 = vunpack.c.l.b16 %v378
        %v1123 = vunpack.c.h.b16 %v378
        %v1124 = vunpack.c.l.b16 %v379
        %v1125 = vunpack.c.h.b16 %v379
        %v1126 = vunpack.c.l.b16 %v380
        %v1127 = vunpack.c.h.b16 %v380
        %v1128 = vunpack.c.l.b16 %v381
        %v1129 = vunpack.c.h.b16 %v381
        %v1130 = vunpack.c.l.b16 %v382
        %v1131 = vunpack.c.h.b16 %v382
        %v1132 = vunpack.c.l.b16 %v383
        %v1133 = vunpack.c.h.b16 %v383
        %v1134 = vunpack.c.l.b16 %v384
        %v1135 = vunpack.c.h.b16 %v384
        %v1136 = vunpack.c.l.b16 %v385
        %v1137 = vunpack.c.h.b16 %v385
        %v1138 = vunpack.c.l.b16 %v386
        %v1139 = vunpack.c.h.b16 %v386
        %v1140 = vunpack.c.l.b16 %v387
        %v1141 = vunpack.c.h.b16 %v387
        %v1142 = vunpack.c.l.b16 %v388
        %v1143 = vunpack.c.h.b16 %v388
        %v1144 = vunpack.c.l.b16 %v389
        %v1145 = vunpack.c.h.b16 %v389
        %v1146 = vunpack.c.l.b16 %v390
        %v1147 = vunpack.c.h.b16 %v390
        %v1148 = vunpack.c.l.b16 %v391
        %v1149 = vunpack.c.h.b16 %v391
        %v1150 = vunpack.c.l.b16 %v392
        %v1151 = vunpack.c.h.b16 %v392
        %v1152 = vunpack.c.l.b16 %v393
        %v1153 = vunpack.c.h.b16 %v393
        %v1154 = vunpack.c.l.b16 %v394
        %v1155 = vunpack.c.h.b16 %v394
        %v1156 = vunpack.c.l.b16 %v395
        %v1157 = vunpack.c.h.b16 %v395
        %v1158 = vunpack.c.l.b16 %v396
        %v1159 = vunpack.c.h.b16 %v396
        %v1160 = vunpack.c.l.b16 %v397
        %v1161 = vunpack.c.h.b16 %v397
        %v1162 = vunpack.c.l.b16 %v398
        %v1163 = vunpack.c.h.b16 %v398
        %v1164 = vunpack.c.l.b16 %v399
        %v1165 = vunpack.c.h.b16 %v399
        %v1166 = vunpack.c.l.b16 %v400
        %v1167 = vunpack.c.h.b16 %v400
        %v1168 = vunpack.c.l.b16 %v401
        %v1169 = vunpack.c.h.b16 %v401
        %v1170 = vunpack.c.l.b16 %v402
        %v1171 = vunpack.c.h.b16 %v402
        %v1172 = vunpack.c.l.b16 %v403
        %v1173 = vunpack.c.h.b16 %v403
        %v1174 = vunpack.c.l.b16 %v404
        %v1175 = vunpack.c.h.b16 %v404
        %v1176 = vunpack.c.l.b16 %v405
        %v1177 = vunpack.c.h.b16 %v405
        %v1178 = vunpack.c.l.b16 %v406
        %v1179 = vunpack.c.h.b16 %v406
        %v1180 = vunpack.c.l.b16 %v407
        %v1181 = vunpack.c.h.b16 %v407
        %v1182 = vunpack.c.l.b16 %v408
        %v1183 = vunpack.c.h.b16 %v408
        %v1184 = vunpack.c.l.b16 %v409
        %v1185 = vunpack.c.h.b16 %v409
        %v1186 = vunpack.c.l.b16 %v410
        %v1187 = vunpack.c.h.b16 %v410
        %v1188 = vunpack.c.l.b16 %v411
        %v1189 = vunpack.c.h.b16 %v411
        %v1190 = vunpack.c.l.b16 %v412
        %v1191 = vunpack.c.h.b16 %v412
        %v1192 = vunpack.c.l.b16 %v413
        %v1193 = vunpack.c.h.b16 %v413
        %v1194 = vunpack.c.l.b16 %v414
        %v1195 = vunpack.c.h.b16 %v414
        %v1196 = vunpack.c.l.b16 %v415
        %v1197 = vunpack.c.h.b16 %v415
        %v1198 = vunpack.c.l.b16 %v416
        %v1199 = vunpack.c.h.b16 %v416
        %v1200 = vunpack.c.l.b16 %v417
        %v1201 = vunpack.c.h.b16 %v417
        %v1202 = vunpack.c.l.b16 %v418
        %v1203 = vunpack.c.h.b16 %v418
        %v1204 = vunpack.c.l.b16 %v419
        %v1205 = vunpack.c.h.b16 %v419
        %v1206 = vunpack.c.l.b16 %v420
        %v1207 = vunpack.c.h.b16 %v420
        %v1208 = vunpack.c.l.b16 %v421
        %v1209 = vunpack.c.h.b16 %v421
        %v1210 = vunpack.c.l.b16 %v422
        %v1211 = vunpack.c.h.b16 %v422
        %v1212 = vunpack.c.l.b16 %v423
        %v1213 = vunpack.c.h.b16 %v423
        %v1214 = vunpack.c.l.b16 %v424
        %v1215 = vunpack.c.h.b16 %v424
        %v1216 = vunpack.c.l.b16 %v425
        %v1217 = vunpack.c.h.b16 %v425
        %v1218 = vunpack.c.l.b16 %v426
        %v1219 = vunpack.c.h.b16 %v426
        %v1220 = vunpack.c.l.b16 %v427
        %v1221 = vunpack.c.h.b16 %v427
        %v1222 = vunpack.c.l.b16 %v428
        %v1223 = vunpack.c.h.b16 %v428
        %v1224 = vunpack.c.l.b16 %v429
        %v1225 = vunpack.c.h.b16 %v429
        %v1226 = vunpack.c.l.b16 %v430
        %v1227 = vunpack.c.h.b16 %v430
        %v1228 = vunpack.c.l.b16 %v431
        %v1229 = vunpack.c.h.b16 %v431
        %v1230 = vunpack.c.l.b16 %v432
        %v1231 = vunpack.c.h.b16 %v432
        %v1232 = vunpack.c.l.b16 %v433
        %v1233 = vunpack.c.h.b16 %v433
        %v1234 = vunpack.c.l.b16 %v434
        %v1235 = vunpack.c.h.b16 %v434
        %v1236 = vunpack.c.l.b16 %v435
        %v1237 = vunpack.c.h.b16 %v435
        %v1238 = vunpack.c.l.b16 %v436
        %v1239 = vunpack.c.h.b16 %v436
        %v1240 = vunpack.c.l.b16 %v437
        %v1241 = vunpack.c.h.b16 %v437
        %v1242 = vunpack.c.l.b16 %v438
        %v1243 = vunpack.c.h.b16 %v438
        %v1244 = vunpack.c.l.b16 %v439
        %v1245 = vunpack.c.h.b16 %v439
        %v1246 = vunpack.c.l.b16 %v440
        %v1247 = vunpack.c.h.b16 %v440
        %v1248 = vunpack.c.l.b16 %v441
        %v1249 = vunpack.c.h.b16 %v441
        %v1250 = vunpack.c.l.b16 %v442
        %v1251 = vunpack.c.h.b16 %v442
        %v1252 = vunpack.c.l.b16 %v443
        %v1253 = vunpack.c.h.b16 %v443
        %v1254 = vunpack.c.l.b16 %v444
        %v1255 = vunpack.c.h.b16 %v444
        %v1256 = vunpack.c.l.b16 %v445
        %v1257 = vunpack.c.h.b16 %v445
        %v1258 = vunpack.c.l.b16 %v446
        %v1259 = vunpack.c.h.b16 %v446
        %v1260 = vunpack.c.l.b16 %v447
        %v1261 = vunpack.c.h.b16 %v447
        %v1262 = vunpack.c.l.b16 %v448
        %v1263 = vunpack.c.h.b16 %v448
        %v1264 = vunpack.c.l.b16 %v449
        %v1265 = vunpack.c.h.b16 %v449
        %v1266 = vunpack.c.l.b16 %v450
        %v1267 = vunpack.c.h.b16 %v450
        %v1268 = vunpack.c.l.b16 %v451
        %v1269 = vunpack.c.h.b16 %v451
        %v1270 = vunpack.c.l.b16 %v452
        %v1271 = vunpack.c.h.b16 %v452
        %v1272 = vunpack.c.l.b16 %v453
        %v1273 = vunpack.c.h.b16 %v453
        %v1274 = vunpack.c.l.b16 %v454
        %v1275 = vunpack.c.h.b16 %v454
        %v1276 = vunpack.c.l.b16 %v455
        %v1277 = vunpack.c.h.b16 %v455
        %v1278 = vunpack.c.l.b16 %v456
        %v1279 = vunpack.c.h.b16 %v456
        %v1280 = vunpack.c.l.b16 %v457
        %v1281 = vunpack.c.h.b16 %v457
        %v1282 = vunpack.c.l.b16 %v458
        %v1283 = vunpack.c.h.b16 %v458
        %v1284 = vunpack.c.l.b16 %v459
        %v1285 = vunpack.c.h.b16 %v459
        %v1286 = vunpack.c.l.b16 %v460
        %v1287 = vunpack.c.h.b16 %v460
        %v1288 = vunpack.c.l.b16 %v461
        %v1289 = vunpack.c.h.b16 %v461
        %v1290 = vunpack.c.l.b16 %v462
        %v1291 = vunpack.c.h.b16 %v462
        %v1292 = vunpack.c.l.b16 %v463
        %v1293 = vunpack.c.h.b16 %v463
        %v1294 = vunpack.c.l.b16 %v464
        %v1295 = vunpack.c.h.b16 %v464
        %v1296 = vunpack.c.l.b16 %v465
        %v1297 = vunpack.c.h.b16 %v465
        %v1298 = vunpack.c.l.b16 %v466
        %v1299 = vunpack.c.h.b16 %v466
        %v1300 = vunpack.c.l.b16 %v467
        %v1301 = vunpack.c.h.b16 %v467
        %v1302 = vunpack.c.l.b16 %v468
        %v1303 = vunpack.c.h.b16 %v468
        %v1304 = vunpack.c.l.b16 %v469
        %v1305 = vunpack.c.h.b16 %v469
        %v1306 = vunpack.c.l.b16 %v470
        %v1307 = vunpack.c.h.b16 %v470
        %v1308 = vunpack.c.l.b16 %v471
        %v1309 = vunpack.c.h.b16 %v471
        %v1310 = vunpack.c.l.b16 %v472
        %v1311 = vunpack.c.h.b16 %v472
        %v1312 = vunpack.c.l.b16 %v473
        %v1313 = vunpack.c.h.b16 %v473
        %v1314 = vunpack.c.l.b16 %v474
        %v1315 = vunpack.c.h.b16 %v474
        %v1316 = vunpack.c.l.b16 %v475
        %v1317 = vunpack.c.h.b16 %v475
        %v1318 = vunpack.c.l.b16 %v476
        %v1319 = vunpack.c.h.b16 %v476
        %v1320 = vunpack.c.l.b16 %v477
        %v1321 = vunpack.c.h.b16 %v477
        %v1322 = vunpack.c.l.b16 %v478
        %v1323 = vunpack.c.h.b16 %v478
        %v1324 = vunpack.c.l.b16 %v479
        %v1325 = vunpack.c.h.b16 %v479
        %v1326 = vunpack.c.l.b16 %v480
        %v1327 = vunpack.c.h.b16 %v480
        %v1328 = vunpack.c.l.b16 %v481
        %v1329 = vunpack.c.h.b16 %v481
        %v1330 = vunpack.c.l.b16 %v482
        %v1331 = vunpack.c.h.b16 %v482
        %v1332 = vunpack.c.l.b16 %v483
        %v1333 = vunpack.c.h.b16 %v483
        %v1334 = vunpack.c.l.b16 %v484
        %v1335 = vunpack.c.h.b16 %v484
        %v1336 = vunpack.c.l.b16 %v485
        %v1337 = vunpack.c.h.b16 %v485
        %v1338 = vunpack.c.l.b16 %v486
        %v1339 = vunpack.c.h.b16 %v486
        %v1340 = vunpack.c.l.b16 %v487
        %v1341 = vunpack.c.h.b16 %v487
        %v1342 = vunpack.c.l.b16 %v488
        %v1343 = vunpack.c.h.b16 %v488
        %v1344 = vunpack.c.l.b16 %v489
        %v1345 = vunpack.c.h.b16 %v489
        %v1346 = vunpack.c.l.b16 %v490
        %v1347 = vunpack.c.h.b16 %v490
        %v1348 = vunpack.c.l.b16 %v491
        %v1349 = vunpack.c.h.b16 %v491
        %v1350 = vunpack.c.l.b16 %v492
        %v1351 = vunpack.c.h.b16 %v492
        %v1352 = vunpack.c.l.b16 %v493
        %v1353 = vunpack.c.h.b16 %v493
        %v1354 = vunpack.c.l.b16 %v494
        %v1355 = vunpack.c.h.b16 %v494
        %v1356 = vunpack.c.l.b16 %v495
        %v1357 = vunpack.c.h.b16 %v495
        %v1358 = vunpack.c.l.b16 %v496
        %v1359 = vunpack.c.h.b16 %v496
        %v1360 = vunpack.c.l.b16 %v497
        %v1361 = vunpack.c.h.b16 %v497
        %v1362 = vunpack.c.l.b16 %v498
        %v1363 = vunpack.c.h.b16 %v498
        %v1364 = vunpack.c.l.b16 %v499
        %v1365 = vunpack.c.h.b16 %v499
        %v1366 = vunpack.c.l.b16 %v500
        %v1367 = vunpack.c.h.b16 %v500
        %v1368 = vunpack.c.l.b16 %v501
        %v1369 = vunpack.c.h.b16 %v501
        %v1370 = vunpack.c.l.b16 %v502
        %v1371 = vunpack.c.h.b16 %v502
        %v1372 = vunpack.c.l.b16 %v503
        %v1373 = vunpack.c.h.b16 %v503
        %v1374 = vunpack.c.l.b16 %v504
        %v1375 = vunpack.c.h.b16 %v504
        %v1376 = vunpack.c.l.b16 %v505
        %v1377 = vunpack.c.h.b16 %v505
        %v1378 = vunpack.c.l.b16 %v506
        %v1379 = vunpack.c.h.b16 %v506
        %v1380 = vunpack.c.l.b16 %v507
        %v1381 = vunpack.c.h.b16 %v507
        %v1382 = vunpack.c.l.b16 %v508
        %v1383 = vunpack.c.h.b16 %v508
        %v1384 = vunpack.c.l.b16 %v509
        %v1385 = vunpack.c.h.b16 %v509
        %v1386 = vunpack.c.l.b16 %v510
        %v1387 = vunpack.c.h.b16 %v510
        %v1388 = vunpack.c.l.b16 %v511
        %v1389 = vunpack.c.h.b16 %v511
        %v1390 = vunpack.c.l.b16 %v512
        %v1391 = vunpack.c.h.b16 %v512
        %v1392 = vunpack.c.l.b16 %v513
        %v1393 = vunpack.c.h.b16 %v513
        %v1394 = vunpack.c.l.b16 %v514
        %v1395 = vunpack.c.h.b16 %v514
        %v1396 = vunpack.c.l.b16 %v515
        %v1397 = vunpack.c.h.b16 %v515
        %v1398 = vunpack.c.l.b16 %v516
        %v1399 = vunpack.c.h.b16 %v516
        %v1400 = vunpack.c.l.b16 %v517
        %v1401 = vunpack.c.h.b16 %v517
        %v1402 = vunpack.c.l.b16 %v518
        %v1403 = vunpack.c.h.b16 %v518
        %v1404 = vunpack.c.l.b16 %v519
        %v1405 = vunpack.c.h.b16 %v519
        %v1406 = vunpack.c.l.b16 %v520
        %v1407 = vunpack.c.h.b16 %v520
        %v1408 = vunpack.c.l.b16 %v521
        %v1409 = vunpack.c.h.b16 %v521
        %v1410 = vunpack.c.l.b16 %v522
        %v1411 = vunpack.c.h.b16 %v522
        %v1412 = vunpack.c.l.b16 %v523
        %v1413 = vunpack.c.h.b16 %v523
        %v1414 = vunpack.c.l.b16 %v524
        %v1415 = vunpack.c.h.b16 %v524
        %v1416 = vunpack.c.l.b16 %v525
        %v1417 = vunpack.c.h.b16 %v525
        %v1418 = vunpack.c.l.b16 %v526
        %v1419 = vunpack.c.h.b16 %v526
        %v1420 = vunpack.c.l.b16 %v527
        %v1421 = vunpack.c.h.b16 %v527
        %v1422 = vunpack.c.l.b16 %v528
        %v1423 = vunpack.c.h.b16 %v528
        %v1424 = vunpack.c.l.b16 %v529
        %v1425 = vunpack.c.h.b16 %v529
        %v1426 = vunpack.c.l.b16 %v530
        %v1427 = vunpack.c.h.b16 %v530
        %v1428 = vunpack.c.l.b16 %v531
        %v1429 = vunpack.c.h.b16 %v531
        %v1430 = vunpack.c.l.b16 %v532
        %v1431 = vunpack.c.h.b16 %v532
        %v1432 = vunpack.c.l.b16 %v533
        %v1433 = vunpack.c.h.b16 %v533
        %v1434 = vunpack.c.l.b16 %v534
        %v1435 = vunpack.c.h.b16 %v534
        %v1436 = vunpack.c.l.b16 %v535
        %v1437 = vunpack.c.h.b16 %v535
        %v1438 = vunpack.c.l.b16 %v536
        %v1439 = vunpack.c.h.b16 %v536
        %v1440 = vunpack.c.l.b16 %v537
        %v1441 = vunpack.c.h.b16 %v537
        %v1442 = vunpack.c.l.b16 %v538
        %v1443 = vunpack.c.h.b16 %v538
        %v1444 = vunpack.c.l.b16 %v539
        %v1445 = vunpack.c.h.b16 %v539
        %v1446 = vunpack.c.l.b16 %v540
        %v1447 = vunpack.c.h.b16 %v540
        %v1448 = vunpack.c.l.b16 %v541
        %v1449 = vunpack.c.h.b16 %v541
        %v1450 = vunpack.c.l.b16 %v542
        %v1451 = vunpack.c.h.b16 %v542
        %v1452 = vunpack.c.l.b16 %v543
        %v1453 = vunpack.c.h.b16 %v543
        %v1454 = vunpack.c.l.b16 %v544
        %v1455 = vunpack.c.h.b16 %v544
        %v1456 = vunpack.c.l.b16 %v545
        %v1457 = vunpack.c.h.b16 %v545
        %v1458 = vunpack.c.l.b16 %v546
        %v1459 = vunpack.c.h.b16 %v546
        %v1460 = vunpack.c.l.b16 %v547
        %v1461 = vunpack.c.h.b16 %v547
        %v1462 = vunpack.c.l.b16 %v548
        %v1463 = vunpack.c.h.b16 %v548
        %v1464 = vunpack.c.l.b16 %v549
        %v1465 = vunpack.c.h.b16 %v549
        %v1466 = vunpack.c.l.b16 %v550
        %v1467 = vunpack.c.h.b16 %v550
        %v1468 = vunpack.c.l.b16 %v551
        %v1469 = vunpack.c.h.b16 %v551
        %v1470 = vunpack.c.l.b16 %v552
        %v1471 = vunpack.c.h.b16 %v552
        %v1472 = vunpack.c.l.b16 %v553
        %v1473 = vunpack.c.h.b16 %v553
        %v1474 = vunpack.c.l.b16 %v554
        %v1475 = vunpack.c.h.b16 %v554
        %v1476 = vunpack.c.l.b16 %v555
        %v1477 = vunpack.c.h.b16 %v555
        %v1478 = vunpack.c.l.b16 %v556
        %v1479 = vunpack.c.h.b16 %v556
        %v1480 = vunpack.c.l.b16 %v557
        %v1481 = vunpack.c.h.b16 %v557
        %v1482 = vunpack.c.l.b16 %v558
        %v1483 = vunpack.c.h.b16 %v558
        %v1484 = vunpack.c.l.b16 %v559
        %v1485 = vunpack.c.h.b16 %v559
        %v1486 = vunpack.c.l.b16 %v560
        %v1487 = vunpack.c.h.b16 %v560
        %v1488 = vunpack.c.l.b16 %v561
        %v1489 = vunpack.c.h.b16 %v561
        %v1490 = vunpack.c.l.b16 %v562
        %v1491 = vunpack.c.h.b16 %v562
        %v1492 = vunpack.c.l.b16 %v563
        %v1493 = vunpack.c.h.b16 %v563
        %v1494 = vunpack.c.l.b16 %v564
        %v1495 = vunpack.c.h.b16 %v564
        %v1496 = vunpack.c.l.b16 %v565
        %v1497 = vunpack.c.h.b16 %v565
        %v1498 = vunpack.c.l.b16 %v566
        %v1499 = vunpack.c.h.b16 %v566
        %v1500 = vunpack.c.l.b16 %v567
        %v1501 = vunpack.c.h.b16 %v567
        %v1502 = vunpack.c.l.b16 %v568
        %v1503 = vunpack.c.h.b16 %v568
        %v1504 = vunpack.c.l.b16 %v569
        %v1505 = vunpack.c.h.b16 %v569
        %v1506 = vunpack.c.l.b16 %v570
        %v1507 = vunpack.c.h.b16 %v570
        %v1508 = vunpack.c.l.b16 %v571
        %v1509 = vunpack.c.h.b16 %v571
        %v1510 = vunpack.c.l.b16 %v572
        %v1511 = vunpack.c.h.b16 %v572
        %v1512 = vunpack.c.l.b16 %v573
        %v1513 = vunpack.c.h.b16 %v573
        %v1514 = vunpack.c.l.b16 %v574
        %v1515 = vunpack.c.h.b16 %v574
        %v1516 = vunpack.c.l.b16 %v575
        %v1517 = vunpack.c.h.b16 %v575
        %v1518 = vunpack.c.l.b16 %v576
        %v1519 = vunpack.c.h.b16 %v576
        %v1520 = vunpack.c.l.b16 %v577
        %v1521 = vunpack.c.h.b16 %v577
        %v1522 = vunpack.c.l.b16 %v578
        %v1523 = vunpack.c.h.b16 %v578
        %v1524 = vunpack.c.l.b16 %v579
        %v1525 = vunpack.c.h.b16 %v579
        %v1526 = vunpack.c.l.b16 %v580
        %v1527 = vunpack.c.h.b16 %v580
        %v1528 = vunpack.c.l.b16 %v581
        %v1529 = vunpack.c.h.b16 %v581
        %v1530 = vunpack.c.l.b16 %v582
        %v1531 = vunpack.c.h.b16 %v582
        %v1532 = vunpack.c.l.b16 %v583
        %v1533 = vunpack.c.h.b16 %v583
        %v1534 = vunpack.c.l.b16 %v584
        %v1535 = vunpack.c.h.b16 %v584
        %v1536 = vunpack.c.l.b16 %v585
        %v1537 = vunpack.c.h.b16 %v585
        %v1538 = vpack.c.b16 %v1092, %v1090
        %v1539 = vpack.c.b16 %v1093, %v1091
        %v1540 = vpack.c.b16 %v1096, %v1094
        %v1541 = vpack.c.b16 %v1097, %v1095
        %v1542 = vpack.c.b16 %v1100, %v1098
        %v1543 = vpack.c.b16 %v1101, %v1099
        %v1544 = vpack.c.b16 %v1104, %v1102
        %v1545 = vpack.c.b16 %v1105, %v1103
        %v1546 = vpack.c.b16 %v1108, %v1106
        %v1547 = vpack.c.b16 %v1109, %v1107
        %v1548 = vpack.c.b16 %v1112, %v1110
        %v1549 = vpack.c.b16 %v1113, %v1111
        %v1550 = vpack.c.b16 %v1116, %v1114
        %v1551 = vpack.c.b16 %v1117, %v1115
        %v1552 = vpack.c.b16 %v1120, %v1118
        %v1553 = vpack.c.b16 %v1121, %v1119
        %v1554 = vpack.c.b16 %v1124, %v1122
        %v1555 = vpack.c.b16 %v1125, %v1123
        %v1556 = vpack.c.b16 %v1128, %v1126
        %v1557 = vpack.c.b16 %v1129, %v1127
        %v1558 = vpack.c.b16 %v1132, %v1130
        %v1559 = vpack.c.b16 %v1133, %v1131
        %v1560 = vpack.c.b16 %v1136, %v1134
        %v1561 = vpack.c.b16 %v1137, %v1135
        %v1562 = vpack.c.b16 %v1140, %v1138
        %v1563 = vpack.c.b16 %v1141, %v1139
        %v1564 = vpack.c.b16 %v1144, %v1142
        %v1565 = vpack.c.b16 %v1145, %v1143
        %v1566 = vpack.c.b16 %v1148, %v1146
        %v1567 = vpack.c.b16 %v1149, %v1147
        %v1568 = vpack.c.b16 %v1152, %v1150
        %v1569 = vpack.c.b16 %v1153, %v1151
        %v1570 = vpack.c.b16 %v1156, %v1154
        %v1571 = vpack.c.b16 %v1157, %v1155
        %v1572 = vpack.c.b16 %v1160, %v1158
        %v1573 = vpack.c.b16 %v1161, %v1159
        %v1574 = vpack.c.b16 %v1164, %v1162
        %v1575 = vpack.c.b16 %v1165, %v1163
        %v1576 = vpack.c.b16 %v1168, %v1166
        %v1577 = vpack.c.b16 %v1169, %v1167
        %v1578 = vpack.c.b16 %v1172, %v1170
        %v1579 = vpack.c.b16 %v1173, %v1171
        %v1580 = vpack.c.b16 %v1176, %v1174
        %v1581 = vpack.c.b16 %v1177, %v1175
        %v1582 = vpack.c.b16 %v1180, %v1178
        %v1583 = vpack.c.b16 %v1181, %v1179
        %v1584 = vpack.c.b16 %v1184, %v1182
        %v1585 = vpack.c.b16 %v1185, %v1183
        %v1586 = vpack.c.b16 %v1188, %v1186
        %v1587 = vpack.c.b16 %v1189, %v1187
        %v1588 = vpack.c.b16 %v1192, %v1190
        %v1589 = vpack.c.b16 %v1193, %v1191
        %v1590 = vpack.c.b16 %v1196, %v1194
        %v1591 = vpack.c.b16 %v1197, %v1195
        %v1592 = vpack.c.b16 %v1200, %v1198
        %v1593 = vpack.c.b16 %v1201, %v1199
        %v1594 = vpack.c.b16 %v1204, %v1202
        %v1595 = vpack.c.b16 %v1205, %v1203
        %v1596 = vpack.c.b16 %v1208, %v1206
        %v1597 = vpack.c.b16 %v1209, %v1207
        %v1598 = vpack.c.b16 %v1212, %v1210
        %v1599 = vpack.c.b16 %v1213, %v1211
        %v1600 = vpack.c.b16 %v1216, %v1214
        %v1601 = vpack.c.b16 %v1217, %v1215
        %v1602 = vpack.c.b16 %v1220, %v1218
        %v1603 = vpack.c.b16 %v1221, %v1219
        %v1604 = vpack.c.b16 %v1224, %v1222
        %v1605 = vpack.c.b16 %v1225, %v1223
        %v1606 = vpack.c.b16 %v1228, %v1226
        %v1607 = vpack.c.b16 %v1229, %v1227
        %v1608 = vpack.c.b16 %v1232, %v1230
        %v1609 = vpack.c.b16 %v1233, %v1231
        %v1610 = vpack.c.b16 %v1236, %v1234
        %v1611 = vpack.c.b16 %v1237, %v1235
        %v1612 = vpack.c.b16 %v1240, %v1238
        %v1613 = vpack.c.b16 %v1241, %v1239
        %v1614 = vpack.c.b16 %v1244, %v1242
        %v1615 = vpack.c.b16 %v1245, %v1243
        %v1616 = vpack.c.b16 %v1248, %v1246
        %v1617 = vpack.c.b16 %v1249, %v1247
        %v1618 = vpack.c.b16 %v1252, %v1250
        %v1619 = vpack.c.b16 %v1253, %v1251
        %v1620 = vpack.c.b16 %v1256, %v1254
        %v1621 = vpack.c.b16 %v1257, %v1255
        %v1622 = vpack.c.b16 %v1260, %v1258
        %v1623 = vpack.c.b16 %v1261, %v1259
        %v1624 = vpack.c.b16 %v1264, %v1262
        %v1625 = vpack.c.b16 %v1265, %v1263
        %v1626 = vpack.c.b16 %v1268, %v1266
        %v1627 = vpack.c.b16 %v1269, %v1267
        %v1628 = vpack.c.b16 %v1272, %v1270
        %v1629 = vpack.c.b16 %v1273, %v1271
        %v1630 = vpack.c.b16 %v1276, %v1274
        %v1631 = vpack.c.b16 %v1277, %v1275
        %v1632 = vpack.c.b16 %v1280, %v1278
        %v1633 = vpack.c.b16 %v1281, %v1279
        %v1634 = vpack.c.b16 %v1284, %v1282
        %v1635 = vpack.c.b16 %v1285, %v1283
        %v1636 = vpack.c.b16 %v1288, %v1286
        %v1637 = vpack.c.b16 %v1289, %v1287
        %v1638 = vpack.c.b16 %v1292, %v1290
        %v1639 = vpack.c.b16 %v1293, %v1291
        %v1640 = vpack.c.b16 %v1296, %v1294
        %v1641 = vpack.c.b16 %v1297, %v1295
        %v1642 = vpack.c.b16 %v1300, %v1298
        %v1643 = vpack.c.b16 %v1301, %v1299
        %v1644 = vpack.c.b16 %v1304, %v1302
        %v1645 = vpack.c.b16 %v1305, %v1303
        %v1646 = vpack.c.b16 %v1308, %v1306
        %v1647 = vpack.c.b16 %v1309, %v1307
        %v1648 = vpack.c.b16 %v1312, %v1310
        %v1649 = vpack.c.b16 %v1313, %v1311
        %v1650 = vpack.c.b16 %v1316, %v1314
        %v1651 = vpack.c.b16 %v1317, %v1315
        %v1652 = vpack.c.b16 %v1320, %v1318
        %v1653 = vpack.c.b16 %v1321, %v1319
        %v1654 = vpack.c.b16 %v1324, %v1322
        %v1655 = vpack.c.b16 %v1325, %v1323
        %v1656 = vpack.c.b16 %v1328, %v1326
        %v1657 = vpack.c.b16 %v1329, %v1327
        %v1658 = vpack.c.b16 %v1332, %v1330
        %v1659 = vpack.c.b16 %v1333, %v1331
        %v1660 = vpack.c.b16 %v1336, %v1334
        %v1661 = vpack.c.b16 %v1337, %v1335
        %v1662 = vpack.c.b16 %v1340, %v1338
        %v1663 = vpack.c.b16 %v1341, %v1339
        %v1664 = vpack.c.b16 %v1344, %v1342
        %v1665 = vpack.c.b16 %v1345, %v1343
        %v1666 = vpack.c.b16 %v1348, %v1346
        %v1667 = vpack.c.b16 %v1349, %v1347
        %v1668 = vpack.c.b16 %v1352, %v1350
        %v1669 = vpack.c.b16 %v1353, %v1351
        %v1670 = vpack.c.b16 %v1356, %v1354
        %v1671 = vpack.c.b16 %v1357, %v1355
        %v1672 = vpack.c.b16 %v1360, %v1358
        %v1673 = vpack.c.b16 %v1361, %v1359
        %v1674 = vpack.c.b16 %v1364, %v1362
        %v1675 = vpack.c.b16 %v1365, %v1363
        %v1676 = vpack.c.b16 %v1368, %v1366
        %v1677 = vpack.c.b16 %v1369, %v1367
        %v1678 = vpack.c.b16 %v1372, %v1370
        %v1679 = vpack.c.b16 %v1373, %v1371
        %v1680 = vpack.c.b16 %v1376, %v1374
        %v1681 = vpack.c.b16 %v1377, %v1375
        %v1682 = vpack.c.b16 %v1380, %v1378
        %v1683 = vpack.c.b16 %v1381, %v1379
        %v1684 = vpack.c.b16 %v1384, %v1382
        %v1685 = vpack.c.b16 %v1385, %v1383
        %v1686 = vpack.c.b16 %v1388, %v1386
        %v1687 = vpack.c.b16 %v1389, %v1387
        %v1688 = vpack.c.b16 %v1392, %v1390
        %v1689 = vpack.c.b16 %v1393, %v1391
        %v1690 = vpack.c.b16 %v1396, %v1394
        %v1691 = vpack.c.b16 %v1397, %v1395
        %v1692 = vpack.c.b16 %v1400, %v1398
        %v1693 = vpack.c.b16 %v1401, %v1399
        %v1694 = vpack.c.b16 %v1404, %v1402
        %v1695 = vpack.c.b16 %v1405, %v1403
        %v1696 = vpack.c.b16 %v1408, %v1406
        %v1697 = vpack.c.b16 %v1409, %v1407
        %v1698 = vpack.c.b16 %v1412, %v1410
        %v1699 = vpack.c.b16 %v1413, %v1411
        %v1700 = vpack.c.b16 %v1416, %v1414
        %v1701 = vpack.c.b16 %v1417, %v1415
        %v1702 = vpack.c.b16 %v1420, %v1418
        %v1703 = vpack.c.b16 %v1421, %v1419
        %v1704 = vpack.c.b16 %v1424, %v1422
        %v1705 = vpack.c.b16 %v1425, %v1423
        %v1706 = vpack.c.b16 %v1428, %v1426
        %v1707 = vpack.c.b16 %v1429, %v1427
        %v1708 = vpack.c.b16 %v1432, %v1430
        %v1709 = vpack.c.b16 %v1433, %v1431
        %v1710 = vpack.c.b16 %v1436, %v1434
        %v1711 = vpack.c.b16 %v1437, %v1435
        %v1712 = vpack.c.b16 %v1440, %v1438
        %v1713 = vpack.c.b16 %v1441, %v1439
        %v1714 = vpack.c.b16 %v1444, %v1442
        %v1715 = vpack.c.b16 %v1445, %v1443
        %v1716 = vpack.c.b16 %v1448, %v1446
        %v1717 = vpack.c.b16 %v1449, %v1447
        %v1718 = vpack.c.b16 %v1452, %v1450
        %v1719 = vpack.c.b16 %v1453, %v1451
        %v1720 = vpack.c.b16 %v1456, %v1454
        %v1721 = vpack.c.b16 %v1457, %v1455
        %v1722 = vpack.c.b16 %v1460, %v1458
        %v1723 = vpack.c.b16 %v1461, %v1459
        %v1724 = vpack.c.b16 %v1464, %v1462
        %v1725 = vpack.c.b16 %v1465, %v1463
        %v1726 = vpack.c.b16 %v1468, %v1466
        %v1727 = vpack.c.b16 %v1469, %v1467
        %v1728 = vpack.c.b16 %v1472, %v1470
        %v1729 = vpack.c.b16 %v1473, %v1471
        %v1730 = vpack.c.b16 %v1476, %v1474
        %v1731 = vpack.c.b16 %v1477, %v1475
        %v1732 = vpack.c.b16 %v1480, %v1478
        %v1733 = vpack.c.b16 %v1481, %v1479
        %v1734 = vpack.c.b16 %v1484, %v1482
        %v1735 = vpack.c.b16 %v1485, %v1483
        %v1736 = vpack.c.b16 %v1488, %v1486
        %v1737 = vpack.c.b16 %v1489, %v1487
        %v1738 = vpack.c.b16 %v1492, %v1490
        %v1739 = vpack.c.b16 %v1493, %v1491
        %v1740 = vpack.c.b16 %v1496, %v1494
        %v1741 = vpack.c.b16 %v1497, %v1495
        %v1742 = vpack.c.b16 %v1500, %v1498
        %v1743 = vpack.c.b16 %v1501, %v1499
        %v1744 = vpack.c.b16 %v1504, %v1502
        %v1745 = vpack.c.b16 %v1505, %v1503
        %v1746 = vpack.c.b16 %v1508, %v1506
        %v1747 = vpack.c.b16 %v1509, %v1507
        %v1748 = vpack.c.b16 %v1512, %v1510
        %v1749 = vpack.c.b16 %v1513, %v1511
        %v1750 = vpack.c.b16 %v1516, %v1514
        %v1751 = vpack.c.b16 %v1517, %v1515
        %v1752 = vpack.c.b16 %v1520, %v1518
        %v1753 = vpack.c.b16 %v1521, %v1519
        %v1754 = vpack.c.b16 %v1524, %v1522
        %v1755 = vpack.c.b16 %v1525, %v1523
        %v1756 = vpack.c.b16 %v1528, %v1526
        %v1757 = vpack.c.b16 %v1529, %v1527
        %v1758 = vpack.c.b16 %v1532, %v1530
        %v1759 = vpack.c.b16 %v1533, %v1531
        %v1760 = vpack.c.b16 %v1536, %v1534
        %v1761 = vpack.c.b16 %v1537, %v1535
        %1986 = vmatprep.subr.bf16.mxu0 %v1539
        %1987 = vmatpush1.bf16.msra.mxu0 %v1538
        %1988 = vmatprep.subr.bf16.mxu0 %v1541
        %1989 = vmatpush1.bf16.msra.mxu0 %v1540
        %1990 = vmatprep.subr.bf16.mxu0 %v1543
        %1991 = vmatpush1.bf16.msra.mxu0 %v1542
        %1992 = vmatprep.subr.bf16.mxu0 %v1545
        %1993 = vmatpush1.bf16.msra.mxu0 %v1544
        %1994 = vmatprep.subr.bf16.mxu0 %v1547
        %1995 = vmatpush1.bf16.msra.mxu0 %v1546
        %1996 = vmatprep.subr.bf16.mxu0 %v1549
        %1997 = vmatpush1.bf16.msra.mxu0 %v1548
        %1998 = vmatprep.subr.bf16.mxu0 %v1551
        %1999 = vmatpush1.bf16.msra.mxu0 %v1550
        %2000 = vmatprep.subr.bf16.mxu0 %v1553
        %2001 = vmatpush1.bf16.msra.mxu0 %v1552
        %2002 = vmatprep.subr.bf16.mxu0 %v1555
        %2003 = vmatpush1.bf16.msra.mxu0 %v1554
        %2004 = vmatprep.subr.bf16.mxu0 %v1557
        %2005 = vmatpush1.bf16.msra.mxu0 %v1556
        %2006 = vmatprep.subr.bf16.mxu0 %v1559
        %2007 = vmatpush1.bf16.msra.mxu0 %v1558
        %2008 = vmatprep.subr.bf16.mxu0 %v1561
        %2009 = vmatpush1.bf16.msra.mxu0 %v1560
        %2010 = vmatprep.subr.bf16.mxu0 %v1563
        %2011 = vmatpush1.bf16.msra.mxu0 %v1562
        %2012 = vmatprep.subr.bf16.mxu0 %v1565
        %2013 = vmatpush1.bf16.msra.mxu0 %v1564
        %2014 = vmatprep.subr.bf16.mxu0 %v1567
        %2015 = vmatpush1.bf16.msra.mxu0 %v1566
        %2016 = vmatprep.subr.bf16.mxu0 %v1569
        %2017 = vmatpush1.bf16.msra.mxu0 %v1568
        %2018 = vmatprep.mubr.bf16.mxu0 %v755
        %2019 = vmatmul.mubr.bf16.gmra.mrb[0].mxu0 %v754
        %v2020 = vpop.f32.mrb[0].mxu0
        %v2021 = vadd.f32 0.0, %v2020
        %v2022 = vpop.f32.mrb[0].mxu0
        %v2023 = vadd.f32 0.0, %v2022
        %v2024 = vpop.f32.mrb[0].mxu0
        %v2025 = vadd.f32 0.0, %v2024
        %v2026 = vpop.f32.mrb[0].mxu0
        %v2027 = vadd.f32 0.0, %v2026
        %2028 = vmatprep.mubr.bf16.mxu0 %v769
        %2029 = vmatmul.mubr.bf16.gmra.mrb[0].mxu0 %v768
        %v2030 = vpop.f32.mrb[0].mxu0
        %v2031 = vadd.f32 0.0, %v2030
        %v2032 = vpop.f32.mrb[0].mxu0
        %v2033 = vadd.f32 0.0, %v2032
        %v2034 = vpop.f32.mrb[0].mxu0
        %v2035 = vadd.f32 0.0, %v2034
        %v2036 = vpop.f32.mrb[0].mxu0
        %v2037 = vadd.f32 0.0, %v2036
        %2038 = vmatprep.mubr.bf16.mxu0 %v783
        %2039 = vmatmul.mubr.bf16.gmra.mrb[0].mxu0 %v782
        %v2040 = vpop.f32.mrb[0].mxu0
        %v2041 = vadd.f32 0.0, %v2040
        %v2042 = vpop.f32.mrb[0].mxu0
        %v2043 = vadd.f32 0.0, %v2042
        %v2044 = vpop.f32.mrb[0].mxu0
        %v2045 = vadd.f32 0.0, %v2044
        %v2046 = vpop.f32.mrb[0].mxu0
        %v2047 = vadd.f32 0.0, %v2046
        %2048 = vmatprep.mubr.bf16.mxu0 %v797
        %2049 = vmatmul.mubr.bf16.gmra.mrb[0].mxu0 %v796
        %v2050 = vpop.f32.mrb[0].mxu0
        %v2051 = vadd.f32 0.0, %v2050
        %v2052 = vpop.f32.mrb[0].mxu0
        %v2053 = vadd.f32 0.0, %v2052
        %v2054 = vpop.f32.mrb[0].mxu0
        %v2055 = vadd.f32 0.0, %v2054
        %v2056 = vpop.f32.mrb[0].mxu0
        %v2057 = vadd.f32 0.0, %v2056
        %2058 = vdwg.mxu0
        %2059 = vmatprep.subr.bf16.mxu0 %v1571
        %2060 = vmatpush1.bf16.msra.mxu0 %v1570
        %2061 = vmatprep.subr.bf16.mxu0 %v1573
        %2062 = vmatpush1.bf16.msra.mxu0 %v1572
        %2063 = vmatprep.subr.bf16.mxu0 %v1575
        %2064 = vmatpush1.bf16.msra.mxu0 %v1574
        %2065 = vmatprep.subr.bf16.mxu0 %v1577
        %2066 = vmatpush1.bf16.msra.mxu0 %v1576
        %2067 = vmatprep.subr.bf16.mxu0 %v1579
        %2068 = vmatpush1.bf16.msra.mxu0 %v1578
        %2069 = vmatprep.subr.bf16.mxu0 %v1581
        %2070 = vmatpush1.bf16.msra.mxu0 %v1580
        %2071 = vmatprep.subr.bf16.mxu0 %v1583
        %2072 = vmatpush1.bf16.msra.mxu0 %v1582
        %2073 = vmatprep.subr.bf16.mxu0 %v1585
        %2074 = vmatpush1.bf16.msra.mxu0 %v1584
        %2075 = vmatprep.subr.bf16.mxu0 %v1587
        %2076 = vmatpush1.bf16.msra.mxu0 %v1586
        %2077 = vmatprep.subr.bf16.mxu0 %v1589
        %2078 = vmatpush1.bf16.msra.mxu0 %v1588
        %2079 = vmatprep.subr.bf16.mxu0 %v1591
        %2080 = vmatpush1.bf16.msra.mxu0 %v1590
        %2081 = vmatprep.subr.bf16.mxu0 %v1593
        %2082 = vmatpush1.bf16.msra.mxu0 %v1592
        %2083 = vmatprep.subr.bf16.mxu0 %v1595
        %2084 = vmatpush1.bf16.msra.mxu0 %v1594
        %2085 = vmatprep.subr.bf16.mxu0 %v1597
        %2086 = vmatpush1.bf16.msra.mxu0 %v1596
        %2087 = vmatprep.subr.bf16.mxu0 %v1599
        %2088 = vmatpush1.bf16.msra.mxu0 %v1598
        %2089 = vmatprep.subr.bf16.mxu0 %v1601
        %2090 = vmatpush1.bf16.msra.mxu0 %v1600
        %2091 = vmatprep.mubr.bf16.mxu0 %v757
        %2092 = vmatmul.mubr.bf16.gmra.mrb[0].mxu0 %v756
        %v2093 = vpop.f32.mrb[0].mxu0
        %v2094 = vadd.f32 %v2021, %v2093
        %v2095 = vpop.f32.mrb[0].mxu0
        %v2096 = vadd.f32 %v2023, %v2095
        %v2097 = vpop.f32.mrb[0].mxu0
        %v2098 = vadd.f32 %v2025, %v2097
        %v2099 = vpop.f32.mrb[0].mxu0
        %v2100 = vadd.f32 %v2027, %v2099
        %2101 = vmatprep.mubr.bf16.mxu0 %v771
        %2102 = vmatmul.mubr.bf16.gmra.mrb[0].mxu0 %v770
        %v2103 = vpop.f32.mrb[0].mxu0
        %v2104 = vadd.f32 %v2031, %v2103
        %v2105 = vpop.f32.mrb[0].mxu0
        %v2106 = vadd.f32 %v2033, %v2105
        %v2107 = vpop.f32.mrb[0].mxu0
        %v2108 = vadd.f32 %v2035, %v2107
        %v2109 = vpop.f32.mrb[0].mxu0
        %v2110 = vadd.f32 %v2037, %v2109
        %2111 = vmatprep.mubr.bf16.mxu0 %v785
        %2112 = vmatmul.mubr.bf16.gmra.mrb[0].mxu0 %v784
        %v2113 = vpop.f32.mrb[0].mxu0
        %v2114 = vadd.f32 %v2041, %v2113
        %v2115 = vpop.f32.mrb[0].mxu0
        %v2116 = vadd.f32 %v2043, %v2115
        %v2117 = vpop.f32.mrb[0].mxu0
        %v2118 = vadd.f32 %v2045, %v2117
        %v2119 = vpop.f32.mrb[0].mxu0
        %v2120 = vadd.f32 %v2047, %v2119
        %2121 = vmatprep.mubr.bf16.mxu0 %v799
        %2122 = vmatmul.mubr.bf16.gmra.mrb[0].mxu0 %v798
        %v2123 = vpop.f32.mrb[0].mxu0
        %v2124 = vadd.f32 %v2051, %v2123
        %v2125 = vpop.f32.mrb[0].mxu0
        %v2126 = vadd.f32 %v2053, %v2125
        %v2127 = vpop.f32.mrb[0].mxu0
        %v2128 = vadd.f32 %v2055, %v2127
        %v2129 = vpop.f32.mrb[0].mxu0
        %v2130 = vadd.f32 %v2057, %v2129
        %2131 = vdwg.mxu0
        %2132 = vmatprep.subr.bf16.mxu0 %v1603
        %2133 = vmatpush1.bf16.msra.mxu0 %v1602
        %2134 = vmatprep.subr.bf16.mxu0 %v1605
        %2135 = vmatpush1.bf16.msra.mxu0 %v1604
        %2136 = vmatprep.subr.bf16.mxu0 %v1607
        %2137 = vmatpush1.bf16.msra.mxu0 %v1606
        %2138 = vmatprep.subr.bf16.mxu0 %v1609
        %2139 = vmatpush1.bf16.msra.mxu0 %v1608
        %2140 = vmatprep.subr.bf16.mxu0 %v1611
        %2141 = vmatpush1.bf16.msra.mxu0 %v1610
        %2142 = vmatprep.subr.bf16.mxu0 %v1613
        %2143 = vmatpush1.bf16.msra.mxu0 %v1612
        %2144 = vmatprep.subr.bf16.mxu0 %v1615
        %2145 = vmatpush1.bf16.msra.mxu0 %v1614
        %2146 = vmatprep.subr.bf16.mxu0 %v1617
        %2147 = vmatpush1.bf16.msra.mxu0 %v1616
        %2148 = vmatprep.subr.bf16.mxu0 %v1619
        %2149 = vmatpush1.bf16.msra.mxu0 %v1618
        %2150 = vmatprep.subr.bf16.mxu0 %v1621
        %2151 = vmatpush1.bf16.msra.mxu0 %v1620
        %2152 = vmatprep.subr.bf16.mxu0 %v1623
        %2153 = vmatpush1.bf16.msra.mxu0 %v1622
        %2154 = vmatprep.subr.bf16.mxu0 %v1625
        %2155 = vmatpush1.bf16.msra.mxu0 %v1624
        %2156 = vmatprep.subr.bf16.mxu0 %v1627
        %2157 = vmatpush1.bf16.msra.mxu0 %v1626
        %2158 = vmatprep.subr.bf16.mxu0 %v1629
        %2159 = vmatpush1.bf16.msra.mxu0 %v1628
        %2160 = vmatprep.subr.bf16.mxu0 %v1631
        %2161 = vmatpush1.bf16.msra.mxu0 %v1630
        %2162 = vmatprep.subr.bf16.mxu0 %v1633
        %2163 = vmatpush1.bf16.msra.mxu0 %v1632
        %2164 = vmatprep.mubr.bf16.mxu0 %v759
        %2165 = vmatmul.mubr.bf16.gmra.mrb[0].mxu0 %v758
        %v2166 = vpop.f32.mrb[0].mxu0
        %v2167 = vadd.f32 %v2094, %v2166
        %v2168 = vpop.f32.mrb[0].mxu0
        %v2169 = vadd.f32 %v2096, %v2168
        %v2170 = vpop.f32.mrb[0].mxu0
        %v2171 = vadd.f32 %v2098, %v2170
        %v2172 = vpop.f32.mrb[0].mxu0
        %v2173 = vadd.f32 %v2100, %v2172
        %2174 = vmatprep.mubr.bf16.mxu0 %v773
        %2175 = vmatmul.mubr.bf16.gmra.mrb[0].mxu0 %v772
        %v2176 = vpop.f32.mrb[0].mxu0
        %v2177 = vadd.f32 %v2104, %v2176
        %v2178 = vpop.f32.mrb[0].mxu0
        %v2179 = vadd.f32 %v2106, %v2178
        %v2180 = vpop.f32.mrb[0].mxu0
        %v2181 = vadd.f32 %v2108, %v2180
        %v2182 = vpop.f32.mrb[0].mxu0
        %v2183 = vadd.f32 %v2110, %v2182
        %2184 = vmatprep.mubr.bf16.mxu0 %v787
        %2185 = vmatmul.mubr.bf16.gmra.mrb[0].mxu0 %v786
        %v2186 = vpop.f32.mrb[0].mxu0
        %v2187 = vadd.f32 %v2114, %v2186
        %v2188 = vpop.f32.mrb[0].mxu0
        %v2189 = vadd.f32 %v2116, %v2188
        %v2190 = vpop.f32.mrb[0].mxu0
        %v2191 = vadd.f32 %v2118, %v2190
        %v2192 = vpop.f32.mrb[0].mxu0
        %v2193 = vadd.f32 %v2120, %v2192
        %2194 = vmatprep.mubr.bf16.mxu0 %v801
        %2195 = vmatmul.mubr.bf16.gmra.mrb[0].mxu0 %v800
        %v2196 = vpop.f32.mrb[0].mxu0
        %v2197 = vadd.f32 %v2124, %v2196
        %v2198 = vpop.f32.mrb[0].mxu0
        %v2199 = vadd.f32 %v2126, %v2198
        %v2200 = vpop.f32.mrb[0].mxu0
        %v2201 = vadd.f32 %v2128, %v2200
        %v2202 = vpop.f32.mrb[0].mxu0
        %v2203 = vadd.f32 %v2130, %v2202
        %2204 = vdwg.mxu0
        %2205 = vmatprep.subr.bf16.mxu0 %v1635
        %2206 = vmatpush1.bf16.msra.mxu0 %v1634
        %2207 = vmatprep.subr.bf16.mxu0 %v1637
        %2208 = vmatpush1.bf16.msra.mxu0 %v1636
        %2209 = vmatprep.subr.bf16.mxu0 %v1639
        %2210 = vmatpush1.bf16.msra.mxu0 %v1638
        %2211 = vmatprep.subr.bf16.mxu0 %v1641
        %2212 = vmatpush1.bf16.msra.mxu0 %v1640
        %2213 = vmatprep.subr.bf16.mxu0 %v1643
        %2214 = vmatpush1.bf16.msra.mxu0 %v1642
        %2215 = vmatprep.subr.bf16.mxu0 %v1645
        %2216 = vmatpush1.bf16.msra.mxu0 %v1644
        %2217 = vmatprep.subr.bf16.mxu0 %v1647
        %2218 = vmatpush1.bf16.msra.mxu0 %v1646
        %2219 = vmatprep.subr.bf16.mxu0 %v1649
        %2220 = vmatpush1.bf16.msra.mxu0 %v1648
        %2221 = vmatprep.subr.bf16.mxu0 %v1651
        %2222 = vmatpush1.bf16.msra.mxu0 %v1650
        %2223 = vmatprep.subr.bf16.mxu0 %v1653
        %2224 = vmatpush1.bf16.msra.mxu0 %v1652
        %2225 = vmatprep.subr.bf16.mxu0 %v1655
        %2226 = vmatpush1.bf16.msra.mxu0 %v1654
        %2227 = vmatprep.subr.bf16.mxu0 %v1657
        %2228 = vmatpush1.bf16.msra.mxu0 %v1656
        %2229 = vmatprep.subr.bf16.mxu0 %v1659
        %2230 = vmatpush1.bf16.msra.mxu0 %v1658
        %2231 = vmatprep.subr.bf16.mxu0 %v1661
        %2232 = vmatpush1.bf16.msra.mxu0 %v1660
        %2233 = vmatprep.subr.bf16.mxu0 %v1663
        %2234 = vmatpush1.bf16.msra.mxu0 %v1662
        %2235 = vmatprep.subr.bf16.mxu0 %v1665
        %2236 = vmatpush1.bf16.msra.mxu0 %v1664
        %2237 = vmatprep.mubr.bf16.mxu0 %v761
        %2238 = vmatmul.mubr.bf16.gmra.mrb[0].mxu0 %v760
        %v2239 = vpop.f32.mrb[0].mxu0
        %v2240 = vadd.f32 %v2167, %v2239
        %v2241 = vpop.f32.mrb[0].mxu0
        %v2242 = vadd.f32 %v2169, %v2241
        %v2243 = vpop.f32.mrb[0].mxu0
        %v2244 = vadd.f32 %v2171, %v2243
        %v2245 = vpop.f32.mrb[0].mxu0
        %v2246 = vadd.f32 %v2173, %v2245
        %2247 = vmatprep.mubr.bf16.mxu0 %v775
        %2248 = vmatmul.mubr.bf16.gmra.mrb[0].mxu0 %v774
        %v2249 = vpop.f32.mrb[0].mxu0
        %v2250 = vadd.f32 %v2177, %v2249
        %v2251 = vpop.f32.mrb[0].mxu0
        %v2252 = vadd.f32 %v2179, %v2251
        %v2253 = vpop.f32.mrb[0].mxu0
        %v2254 = vadd.f32 %v2181, %v2253
        %v2255 = vpop.f32.mrb[0].mxu0
        %v2256 = vadd.f32 %v2183, %v2255
        %2257 = vmatprep.mubr.bf16.mxu0 %v789
        %2258 = vmatmul.mubr.bf16.gmra.mrb[0].mxu0 %v788
        %v2259 = vpop.f32.mrb[0].mxu0
        %v2260 = vadd.f32 %v2187, %v2259
        %v2261 = vpop.f32.mrb[0].mxu0
        %v2262 = vadd.f32 %v2189, %v2261
        %v2263 = vpop.f32.mrb[0].mxu0
        %v2264 = vadd.f32 %v2191, %v2263
        %v2265 = vpop.f32.mrb[0].mxu0
        %v2266 = vadd.f32 %v2193, %v2265
        %2267 = vmatprep.mubr.bf16.mxu0 %v803
        %2268 = vmatmul.mubr.bf16.gmra.mrb[0].mxu0 %v802
        %v2269 = vpop.f32.mrb[0].mxu0
        %v2270 = vadd.f32 %v2197, %v2269
        %v2271 = vpop.f32.mrb[0].mxu0
        %v2272 = vadd.f32 %v2199, %v2271
        %v2273 = vpop.f32.mrb[0].mxu0
        %v2274 = vadd.f32 %v2201, %v2273
        %v2275 = vpop.f32.mrb[0].mxu0
        %v2276 = vadd.f32 %v2203, %v2275
        %2277 = vdwg.mxu0
        %2278 = vmatprep.subr.bf16.mxu0 %v1667
        %2279 = vmatpush1.bf16.msra.mxu0 %v1666
        %2280 = vmatprep.subr.bf16.mxu0 %v1669
        %2281 = vmatpush1.bf16.msra.mxu0 %v1668
        %2282 = vmatprep.subr.bf16.mxu0 %v1671
        %2283 = vmatpush1.bf16.msra.mxu0 %v1670
        %2284 = vmatprep.subr.bf16.mxu0 %v1673
        %2285 = vmatpush1.bf16.msra.mxu0 %v1672
        %2286 = vmatprep.subr.bf16.mxu0 %v1675
        %2287 = vmatpush1.bf16.msra.mxu0 %v1674
        %2288 = vmatprep.subr.bf16.mxu0 %v1677
        %2289 = vmatpush1.bf16.msra.mxu0 %v1676
        %2290 = vmatprep.subr.bf16.mxu0 %v1679
        %2291 = vmatpush1.bf16.msra.mxu0 %v1678
        %2292 = vmatprep.subr.bf16.mxu0 %v1681
        %2293 = vmatpush1.bf16.msra.mxu0 %v1680
        %2294 = vmatprep.subr.bf16.mxu0 %v1683
        %2295 = vmatpush1.bf16.msra.mxu0 %v1682
        %2296 = vmatprep.subr.bf16.mxu0 %v1685
        %2297 = vmatpush1.bf16.msra.mxu0 %v1684
        %2298 = vmatprep.subr.bf16.mxu0 %v1687
        %2299 = vmatpush1.bf16.msra.mxu0 %v1686
        %2300 = vmatprep.subr.bf16.mxu0 %v1689
        %2301 = vmatpush1.bf16.msra.mxu0 %v1688
        %2302 = vmatprep.subr.bf16.mxu0 %v1691
        %2303 = vmatpush1.bf16.msra.mxu0 %v1690
        %2304 = vmatprep.subr.bf16.mxu0 %v1693
        %2305 = vmatpush1.bf16.msra.mxu0 %v1692
        %2306 = vmatprep.subr.bf16.mxu0 %v1695
        %2307 = vmatpush1.bf16.msra.mxu0 %v1694
        %2308 = vmatprep.subr.bf16.mxu0 %v1697
        %2309 = vmatpush1.bf16.msra.mxu0 %v1696
        %2310 = vmatprep.mubr.bf16.mxu0 %v763
        %2311 = vmatmul.mubr.bf16.gmra.mrb[0].mxu0 %v762
        %v2312 = vpop.f32.mrb[0].mxu0
        %v2313 = vadd.f32 %v2240, %v2312
        %v2314 = vpop.f32.mrb[0].mxu0
        %v2315 = vadd.f32 %v2242, %v2314
        %v2316 = vpop.f32.mrb[0].mxu0
        %v2317 = vadd.f32 %v2244, %v2316
        %v2318 = vpop.f32.mrb[0].mxu0
        %v2319 = vadd.f32 %v2246, %v2318
        %2320 = vmatprep.mubr.bf16.mxu0 %v777
        %2321 = vmatmul.mubr.bf16.gmra.mrb[0].mxu0 %v776
        %v2322 = vpop.f32.mrb[0].mxu0
        %v2323 = vadd.f32 %v2250, %v2322
        %v2324 = vpop.f32.mrb[0].mxu0
        %v2325 = vadd.f32 %v2252, %v2324
        %v2326 = vpop.f32.mrb[0].mxu0
        %v2327 = vadd.f32 %v2254, %v2326
        %v2328 = vpop.f32.mrb[0].mxu0
        %v2329 = vadd.f32 %v2256, %v2328
        %2330 = vmatprep.mubr.bf16.mxu0 %v791
        %2331 = vmatmul.mubr.bf16.gmra.mrb[0].mxu0 %v790
        %v2332 = vpop.f32.mrb[0].mxu0
        %v2333 = vadd.f32 %v2260, %v2332
        %v2334 = vpop.f32.mrb[0].mxu0
        %v2335 = vadd.f32 %v2262, %v2334
        %v2336 = vpop.f32.mrb[0].mxu0
        %v2337 = vadd.f32 %v2264, %v2336
        %v2338 = vpop.f32.mrb[0].mxu0
        %v2339 = vadd.f32 %v2266, %v2338
        %2340 = vmatprep.mubr.bf16.mxu0 %v805
        %2341 = vmatmul.mubr.bf16.gmra.mrb[0].mxu0 %v804
        %v2342 = vpop.f32.mrb[0].mxu0
        %v2343 = vadd.f32 %v2270, %v2342
        %v2344 = vpop.f32.mrb[0].mxu0
        %v2345 = vadd.f32 %v2272, %v2344
        %v2346 = vpop.f32.mrb[0].mxu0
        %v2347 = vadd.f32 %v2274, %v2346
        %v2348 = vpop.f32.mrb[0].mxu0
        %v2349 = vadd.f32 %v2276, %v2348
        %2350 = vdwg.mxu0
        %2351 = vmatprep.subr.bf16.mxu0 %v1699
        %2352 = vmatpush1.bf16.msra.mxu0 %v1698
        %2353 = vmatprep.subr.bf16.mxu0 %v1701
        %2354 = vmatpush1.bf16.msra.mxu0 %v1700
        %2355 = vmatprep.subr.bf16.mxu0 %v1703
        %2356 = vmatpush1.bf16.msra.mxu0 %v1702
        %2357 = vmatprep.subr.bf16.mxu0 %v1705
        %2358 = vmatpush1.bf16.msra.mxu0 %v1704
        %2359 = vmatprep.subr.bf16.mxu0 %v1707
        %2360 = vmatpush1.bf16.msra.mxu0 %v1706
        %2361 = vmatprep.subr.bf16.mxu0 %v1709
        %2362 = vmatpush1.bf16.msra.mxu0 %v1708
        %2363 = vmatprep.subr.bf16.mxu0 %v1711
        %2364 = vmatpush1.bf16.msra.mxu0 %v1710
        %2365 = vmatprep.subr.bf16.mxu0 %v1713
        %2366 = vmatpush1.bf16.msra.mxu0 %v1712
        %2367 = vmatprep.subr.bf16.mxu0 %v1715
        %2368 = vmatpush1.bf16.msra.mxu0 %v1714
        %2369 = vmatprep.subr.bf16.mxu0 %v1717
        %2370 = vmatpush1.bf16.msra.mxu0 %v1716
        %2371 = vmatprep.subr.bf16.mxu0 %v1719
        %2372 = vmatpush1.bf16.msra.mxu0 %v1718
        %2373 = vmatprep.subr.bf16.mxu0 %v1721
        %2374 = vmatpush1.bf16.msra.mxu0 %v1720
        %2375 = vmatprep.subr.bf16.mxu0 %v1723
        %2376 = vmatpush1.bf16.msra.mxu0 %v1722
        %2377 = vmatprep.subr.bf16.mxu0 %v1725
        %2378 = vmatpush1.bf16.msra.mxu0 %v1724
        %2379 = vmatprep.subr.bf16.mxu0 %v1727
        %2380 = vmatpush1.bf16.msra.mxu0 %v1726
        %2381 = vmatprep.subr.bf16.mxu0 %v1729
        %2382 = vmatpush1.bf16.msra.mxu0 %v1728
        %2383 = vmatprep.mubr.bf16.mxu0 %v765
        %2384 = vmatmul.mubr.bf16.gmra.mrb[0].mxu0 %v764
        %v2385 = vpop.f32.mrb[0].mxu0
        %v2386 = vadd.f32 %v2313, %v2385
        %v2387 = vpop.f32.mrb[0].mxu0
        %v2388 = vadd.f32 %v2315, %v2387
        %v2389 = vpop.f32.mrb[0].mxu0
        %v2390 = vadd.f32 %v2317, %v2389
        %v2391 = vpop.f32.mrb[0].mxu0
        %v2392 = vadd.f32 %v2319, %v2391
        %2393 = vmatprep.mubr.bf16.mxu0 %v779
        %2394 = vmatmul.mubr.bf16.gmra.mrb[0].mxu0 %v778
        %v2395 = vpop.f32.mrb[0].mxu0
        %v2396 = vadd.f32 %v2323, %v2395
        %v2397 = vpop.f32.mrb[0].mxu0
        %v2398 = vadd.f32 %v2325, %v2397
        %v2399 = vpop.f32.mrb[0].mxu0
        %v2400 = vadd.f32 %v2327, %v2399
        %v2401 = vpop.f32.mrb[0].mxu0
        %v2402 = vadd.f32 %v2329, %v2401
        %2403 = vmatprep.mubr.bf16.mxu0 %v793
        %2404 = vmatmul.mubr.bf16.gmra.mrb[0].mxu0 %v792
        %v2405 = vpop.f32.mrb[0].mxu0
        %v2406 = vadd.f32 %v2333, %v2405
        %v2407 = vpop.f32.mrb[0].mxu0
        %v2408 = vadd.f32 %v2335, %v2407
        %v2409 = vpop.f32.mrb[0].mxu0
        %v2410 = vadd.f32 %v2337, %v2409
        %v2411 = vpop.f32.mrb[0].mxu0
        %v2412 = vadd.f32 %v2339, %v2411
        %2413 = vmatprep.mubr.bf16.mxu0 %v807
        %2414 = vmatmul.mubr.bf16.gmra.mrb[0].mxu0 %v806
        %v2415 = vpop.f32.mrb[0].mxu0
        %v2416 = vadd.f32 %v2343, %v2415
        %v2417 = vpop.f32.mrb[0].mxu0
        %v2418 = vadd.f32 %v2345, %v2417
        %v2419 = vpop.f32.mrb[0].mxu0
        %v2420 = vadd.f32 %v2347, %v2419
        %v2421 = vpop.f32.mrb[0].mxu0
        %v2422 = vadd.f32 %v2349, %v2421
        %2423 = vdwg.mxu0
        %2424 = vmatprep.subr.bf16.mxu0 %v1731
        %2425 = vmatpush1.bf16.msra.mxu0 %v1730
        %2426 = vmatprep.subr.bf16.mxu0 %v1733
        %2427 = vmatpush1.bf16.msra.mxu0 %v1732
        %2428 = vmatprep.subr.bf16.mxu0 %v1735
        %2429 = vmatpush1.bf16.msra.mxu0 %v1734
        %2430 = vmatprep.subr.bf16.mxu0 %v1737
        %2431 = vmatpush1.bf16.msra.mxu0 %v1736
        %2432 = vmatprep.subr.bf16.mxu0 %v1739
        %2433 = vmatpush1.bf16.msra.mxu0 %v1738
        %2434 = vmatprep.subr.bf16.mxu0 %v1741
        %2435 = vmatpush1.bf16.msra.mxu0 %v1740
        %2436 = vmatprep.subr.bf16.mxu0 %v1743
        %2437 = vmatpush1.bf16.msra.mxu0 %v1742
        %2438 = vmatprep.subr.bf16.mxu0 %v1745
        %2439 = vmatpush1.bf16.msra.mxu0 %v1744
        %2440 = vmatprep.subr.bf16.mxu0 %v1747
        %2441 = vmatpush1.bf16.msra.mxu0 %v1746
        %2442 = vmatprep.subr.bf16.mxu0 %v1749
        %2443 = vmatpush1.bf16.msra.mxu0 %v1748
        %2444 = vmatprep.subr.bf16.mxu0 %v1751
        %2445 = vmatpush1.bf16.msra.mxu0 %v1750
        %2446 = vmatprep.subr.bf16.mxu0 %v1753
        %2447 = vmatpush1.bf16.msra.mxu0 %v1752
        %2448 = vmatprep.subr.bf16.mxu0 %v1755
        %2449 = vmatpush1.bf16.msra.mxu0 %v1754
        %2450 = vmatprep.subr.bf16.mxu0 %v1757
        %2451 = vmatpush1.bf16.msra.mxu0 %v1756
        %2452 = vmatprep.subr.bf16.mxu0 %v1759
        %2453 = vmatpush1.bf16.msra.mxu0 %v1758
        %2454 = vmatprep.subr.bf16.mxu0 %v1761
        %2455 = vmatpush1.bf16.msra.mxu0 %v1760
        %2456 = vmatprep.mubr.bf16.mxu0 %v767
        %2457 = vmatmul.mubr.bf16.gmra.mrb[0].mxu0 %v766
        %v2458 = vpop.f32.mrb[0].mxu0
        %v2459 = vadd.f32 %v2386, %v2458
        %v2460 = vpop.f32.mrb[0].mxu0
        %v2461 = vadd.f32 %v2388, %v2460
        %v2462 = vpop.f32.mrb[0].mxu0
        %v2463 = vadd.f32 %v2390, %v2462
        %v2464 = vpop.f32.mrb[0].mxu0
        %v2465 = vadd.f32 %v2392, %v2464
        %2466 = vmatprep.mubr.bf16.mxu0 %v781
        %2467 = vmatmul.mubr.bf16.gmra.mrb[0].mxu0 %v780
        %v2468 = vpop.f32.mrb[0].mxu0
        %v2469 = vadd.f32 %v2396, %v2468
        %v2470 = vpop.f32.mrb[0].mxu0
        %v2471 = vadd.f32 %v2398, %v2470
        %v2472 = vpop.f32.mrb[0].mxu0
        %v2473 = vadd.f32 %v2400, %v2472
        %v2474 = vpop.f32.mrb[0].mxu0
        %v2475 = vadd.f32 %v2402, %v2474
        %2476 = vmatprep.mubr.bf16.mxu0 %v795
        %2477 = vmatmul.mubr.bf16.gmra.mrb[0].mxu0 %v794
        %v2478 = vpop.f32.mrb[0].mxu0
        %v2479 = vadd.f32 %v2406, %v2478
        %v2480 = vpop.f32.mrb[0].mxu0
        %v2481 = vadd.f32 %v2408, %v2480
        %v2482 = vpop.f32.mrb[0].mxu0
        %v2483 = vadd.f32 %v2410, %v2482
        %v2484 = vpop.f32.mrb[0].mxu0
        %v2485 = vadd.f32 %v2412, %v2484
        %2486 = vmatprep.mubr.bf16.mxu0 %v809
        %2487 = vmatmul.mubr.bf16.gmra.mrb[0].mxu0 %v808
        %v2488 = vpop.f32.mrb[0].mxu0
        %v2489 = vadd.f32 %v2416, %v2488
        %v2490 = vpop.f32.mrb[0].mxu0
        %v2491 = vadd.f32 %v2418, %v2490
        %v2492 = vpop.f32.mrb[0].mxu0
        %v2493 = vadd.f32 %v2420, %v2492
        %v2494 = vpop.f32.mrb[0].mxu0
        %v2495 = vadd.f32 %v2422, %v2494
        %2496 = vdwg.mxu0
        %v2497 = vmax.f32 %v2459, %v2469
        %v2498 = vmax.f32 %v2461, %v2471
        %v2499 = vmax.f32 %v2463, %v2473
        %v2500 = vmax.f32 %v2465, %v2475
        %v2501 = vmax.f32 %v2479, %v2489
        %v2502 = vmax.f32 %v2481, %v2491
        %v2503 = vmax.f32 %v2483, %v2493
        %v2504 = vmax.f32 %v2485, %v2495
        %v2505 = vmax.f32 %v2497, %v2501
        %v2506 = vmax.f32 %v2498, %v2502
        %v2507 = vmax.f32 %v2499, %v2503
        %v2508 = vmax.f32 %v2500, %v2504
        %v2509 = vld [vmem:[%s2] sm:$0x3]
        %v2511 = vlaneseq
        %v2512 = vshrl.u32 %v2511, 7
        %v2513 = vsub.s32 0, %v2512
        %v2514 = vrot.slane %v2509, %v2513
        %v2515 = vlaneseq
        %v2516 = vshrl.u32 %v2515, 7
        %v2517 = vsub.s32 1, %v2516
        %v2518 = vrot.slane %v2509, %v2517
        %v2521 = vadd.f32 %v2505, %v2514
        %v2522 = vadd.f32 %v2506, %v2518
        %v2523 = vadd.f32 %v2507, %v2514
        %v2524 = vadd.f32 %v2508, %v2518
        %v2525 = vmax.f32 %v2521, 0.0
        %v2526 = vmax.f32 %v2522, 0.0
        %v2527 = vmax.f32 %v2523, 0.0
        %v2528 = vmax.f32 %v2524, 0.0
        %v2529 = vpack.c.bf16 %v2527, %v2525
        %v2530 = vpack.c.bf16 %v2528, %v2526
        %v2533 = vunpack.c.l.b16 %v2529
        %v2534 = vunpack.c.l.b16 %v2530
        %v2535 = vunpack.c.h.b16 %v2529
        %v2536 = vunpack.c.h.b16 %v2530
        %v2537 = vpack.c.b16 %v2534, %v2533
        %v2538 = vpack.c.b16 %v2536, %v2535
        %2541 = vst [vmem:[%s304] sm:$0xff] %v2537
        %2542 = vst [vmem:[%s304 + $0x8] sm:$0xff] %v2538
        %s2543 = smul.u32 2, %s14
        %p2544 = scmp.lt.s32.totalorder %s2543, 3
        %s2545 = scalar_select %p2544, %s2543, 3
        %s2546 = smul.addr %s2545, 2
        %s2547 = smul.addr %s2546, 4
        %s2548 = scalar_lea.vmem %s3, %s2547
        // Predicated region
        $region56: #{dilenet_forward.6} parent=50 // pred_check
          %p2549 = pneg %p100
        $region57: #{dilenet_forward.6} parent=50 // pred_check_branch
          %2551 = sbr.rel (%p2549) target = $region59
        $region58: #{dilenet_forward.6} parent=50 // pred_region
          %s2552 = smul.u32 2, %s14
        $region59: #{dilenet_forward.6} parent=50 // pred_fallthru
          _
      $region51: #{dilenet_forward.6} parent=5 // pred_fallthru
        _
      %p2553 = scmp.le.s32.totalorder 2, %s9
      // Predicated region
      $region60: #{dilenet_forward.6} parent=5 // pred_check
        %p2554 = pneg %p2553
      $region61: #{dilenet_forward.6} parent=5 // pred_check_branch
        %2556 = sbr.rel (%p2554) target = $region63
      $region62: #{dilenet_forward.6} parent=5 // pred_region
        %s2557 = ssub.s32 %s9, 2
        // Predicated region
        $region64: #{dilenet_forward.6} parent=62 // pred_check
          %p2558 = pneg %p106
        $region65: #{dilenet_forward.6} parent=62 // pred_check_branch
          %2560 = sbr.rel (%p2558) target = $region67
        $region66: #{dilenet_forward.6} parent=62 // pred_region
          %s2561 = smul.u32 2, %s15
          %p2562 = scmp.lt.s32.totalorder %s2561, 3
          %s2563 = scalar_select %p2562, %s2561, 3
          %s2564 = smul.addr %s2563, 2
          %s2565 = smul.addr %s2564, 4
          %s2566 = scalar_lea.vmem %s3, %s2565
        $region67: #{dilenet_forward.6} parent=62 // pred_fallthru
          _
      $region63: #{dilenet_forward.6} parent=5 // pred_fallthru
        _
    $region6: #{dilenet_forward.6} parent=1 // loop_footer
      %s13 = sadd.s32 1, %s9
    $region7: #{dilenet_forward.6} parent=1 // loop_footer_branch
      %8 = sbr.rel target = $region3
    $region8: #{dilenet_forward.6} parent=1 // loop_exit
      _

// kernel: dilenet_forward.7
$region0: #{dilenet_forward.7}
  #allocation0 [shape = 'u32[]', space=smem, size = 0x4, offset = 0x4, fixed_abs, tag = 'smem constant byte address 0x4 - core index']
  #allocation1 [shape = 'u32[144,128]{1,0:T(1,128)}', space=vmem, size = 0x12000, scoped, tag = 'internal scratch']
  %s0 = inlined_call_operand.vmem [shape: bf16[2,4096], index: 0, kind: input, shape index: {}]
  %s1 = inlined_call_operand.vmem [shape: bf16[4096,128], index: 1, kind: input, shape index: {}]
  %s2 = inlined_call_operand.vmem [shape: f32[1,128], index: 2, kind: input, shape index: {}]
  %s3 = inlined_call_operand.hbm [shape: f32[2,128], index: 3, kind: output, shape index: {}]
  %s4 = sld [smem:[#allocation0]]
  $region22: #{dilenet_forward.7} parent=0
    _
  %s6 = ssub.s32 1, %s4
  %s7 = scalar_select 0, %s6, %s4
  $region1: #{dilenet_forward.7} parent=0
    #allocation2 [shape = 'u8[1024]{0}', space=vmem, size = 0x400, scoped, tag = 'output window, operand 0, single buffered']
    #allocation3 [shape = 's32[1]{0}', space=sflag, size = 0x4, scoped, tag = 'scoped memory for dilenet_forward.7']
    %8 = vsyncpa [#allocation3], 0
    // Predicated region
    $region2: #{dilenet_forward.7} parent=1 // pred_check
      _
    $region3: #{dilenet_forward.7} parent=1 // pred_check_branch
      %10 = sbr.rel (0) target = $region5
    $region4: #{dilenet_forward.7} parent=1 // pred_region
      _
    $region5: #{dilenet_forward.7} parent=1 // pred_fallthru
      _
    // Predicated region
    $region6: #{dilenet_forward.7} parent=1 // pred_check
      _
    $region7: #{dilenet_forward.7} parent=1 // pred_check_branch
      %12 = sbr.rel (0) target = $region9
    $region8: #{dilenet_forward.7} parent=1 // pred_region
      _
    $region9: #{dilenet_forward.7} parent=1 // pred_fallthru
      _
    // Predicated region
    $region10: #{dilenet_forward.7} parent=1 // pred_check
      _
    $region11: #{dilenet_forward.7} parent=1 // pred_check_branch
      %14 = sbr.rel (0) target = $region13
    $region12: #{dilenet_forward.7} parent=1 // pred_region
      _
    $region13: #{dilenet_forward.7} parent=1 // pred_fallthru
      _
    %v16 = vld [vmem:[%s0] sm:$0xff]
    %v17 = vld [vmem:[%s0 + $0x8] sm:$0xff]
    %v18 = vld [vmem:[%s0 + $0x10] sm:$0xff]
    %v19 = vld [vmem:[%s0 + $0x18] sm:$0xff]
    %v20 = vld [vmem:[%s1] sm:$0xf]
    %v21 = vld [vmem:[%s1 + $0x4] sm:$0xf]
    %v22 = vld [vmem:[%s1 + $0x8] sm:$0xf]
    %v23 = vld [vmem:[%s1 + $0xc] sm:$0xf]
    %v24 = vld [vmem:[%s1 + $0x10] sm:$0xf]
    %v25 = vld [vmem:[%s1 + $0x14] sm:$0xf]
    %v26 = vld [vmem:[%s1 + $0x18] sm:$0xf]
    %v27 = vld [vmem:[%s1 + $0x1c] sm:$0xf]
    %v28 = vld [vmem:[%s1 + $0x20] sm:$0xf]
    %v29 = vld [vmem:[%s1 + $0x24] sm:$0xf]
    %v30 = vld [vmem:[%s1 + $0x28] sm:$0xf]
    %v31 = vld [vmem:[%s1 + $0x2c] sm:$0xf]
    %v32 = vld [vmem:[%s1 + $0x30] sm:$0xf]
    %v33 = vld [vmem:[%s1 + $0x34] sm:$0xf]
    %v34 = vld [vmem:[%s1 + $0x38] sm:$0xf]
    %v35 = vld [vmem:[%s1 + $0x3c] sm:$0xf]
    %v36 = vld [vmem:[%s1 + $0x40] sm:$0xf]
    %v37 = vld [vmem:[%s1 + $0x44] sm:$0xf]
    %v38 = vld [vmem:[%s1 + $0x48] sm:$0xf]
    %v39 = vld [vmem:[%s1 + $0x4c] sm:$0xf]
    %v40 = vld [vmem:[%s1 + $0x50] sm:$0xf]
    %v41 = vld [vmem:[%s1 + $0x54] sm:$0xf]
    %v42 = vld [vmem:[%s1 + $0x58] sm:$0xf]
    %v43 = vld [vmem:[%s1 + $0x5c] sm:$0xf]
    %v44 = vld [vmem:[%s1 + $0x60] sm:$0xf]
    %v45 = vld [vmem:[%s1 + $0x64] sm:$0xf]
    %v46 = vld [vmem:[%s1 + $0x68] sm:$0xf]
    %v47 = vld [vmem:[%s1 + $0x6c] sm:$0xf]
    %v48 = vld [vmem:[%s1 + $0x70] sm:$0xf]
    %v49 = vld [vmem:[%s1 + $0x74] sm:$0xf]
    %v50 = vld [vmem:[%s1 + $0x78] sm:$0xf]
    %v51 = vld [vmem:[%s1 + $0x7c] sm:$0xf]
    %v52 = vld [vmem:[%s1 + $0x80] sm:$0xf]
    %v53 = vld [vmem:[%s1 + $0x84] sm:$0xf]
    %v54 = vld [vmem:[%s1 + $0x88] sm:$0xf]
    %v55 = vld [vmem:[%s1 + $0x8c] sm:$0xf]
    %v56 = vld [vmem:[%s1 + $0x90] sm:$0xf]
    %v57 = vld [vmem:[%s1 + $0x94] sm:$0xf]
    %v58 = vld [vmem:[%s1 + $0x98] sm:$0xf]
    %v59 = vld [vmem:[%s1 + $0x9c] sm:$0xf]
    %v60 = vld [vmem:[%s1 + $0xa0] sm:$0xf]
    %v61 = vld [vmem:[%s1 + $0xa4] sm:$0xf]
    %v62 = vld [vmem:[%s1 + $0xa8] sm:$0xf]
    %v63 = vld [vmem:[%s1 + $0xac] sm:$0xf]
    %v64 = vld [vmem:[%s1 + $0xb0] sm:$0xf]
    %v65 = vld [vmem:[%s1 + $0xb4] sm:$0xf]
    %v66 = vld [vmem:[%s1 + $0xb8] sm:$0xf]
    %v67 = vld [vmem:[%s1 + $0xbc] sm:$0xf]
    %v68 = vld [vmem:[%s1 + $0xc0] sm:$0xf]
    %v69 = vld [vmem:[%s1 + $0xc4] sm:$0xf]
    %v70 = vld [vmem:[%s1 + $0xc8] sm:$0xf]
    %v71 = vld [vmem:[%s1 + $0xcc] sm:$0xf]
    %v72 = vld [vmem:[%s1 + $0xd0] sm:$0xf]
    %v73 = vld [vmem:[%s1 + $0xd4] sm:$0xf]
    %v74 = vld [vmem:[%s1 + $0xd8] sm:$0xf]
    %v75 = vld [vmem:[%s1 + $0xdc] sm:$0xf]
    %v76 = vld [vmem:[%s1 + $0xe0] sm:$0xf]
    %v77 = vld [vmem:[%s1 + $0xe4] sm:$0xf]
    %v78 = vld [vmem:[%s1 + $0xe8] sm:$0xf]
    %v79 = vld [vmem:[%s1 + $0xec] sm:$0xf]
    %v80 = vld [vmem:[%s1 + $0xf0] sm:$0xf]
    %v81 = vld [vmem:[%s1 + $0xf4] sm:$0xf]
    %v82 = vld [vmem:[%s1 + $0xf8] sm:$0xf]
    %v83 = vld [vmem:[%s1 + $0xfc] sm:$0xf]
    %v84 = vld [vmem:[%s1 + $0x100] sm:$0xf]
    %v85 = vld [vmem:[%s1 + $0x104] sm:$0xf]
    %v86 = vld [vmem:[%s1 + $0x108] sm:$0xf]
    %v87 = vld [vmem:[%s1 + $0x10c] sm:$0xf]
    %v88 = vld [vmem:[%s1 + $0x110] sm:$0xf]
    %v89 = vld [vmem:[%s1 + $0x114] sm:$0xf]
    %v90 = vld [vmem:[%s1 + $0x118] sm:$0xf]
    %v91 = vld [vmem:[%s1 + $0x11c] sm:$0xf]
    %v92 = vld [vmem:[%s1 + $0x120] sm:$0xf]
    %v93 = vld [vmem:[%s1 + $0x124] sm:$0xf]
    %v94 = vld [vmem:[%s1 + $0x128] sm:$0xf]
    %v95 = vld [vmem:[%s1 + $0x12c] sm:$0xf]
    %v96 = vld [vmem:[%s1 + $0x130] sm:$0xf]
    %v97 = vld [vmem:[%s1 + $0x134] sm:$0xf]
    %v98 = vld [vmem:[%s1 + $0x138] sm:$0xf]
    %v99 = vld [vmem:[%s1 + $0x13c] sm:$0xf]
    %v100 = vld [vmem:[%s1 + $0x140] sm:$0xf]
    %v101 = vld [vmem:[%s1 + $0x144] sm:$0xf]
    %v102 = vld [vmem:[%s1 + $0x148] sm:$0xf]
    %v103 = vld [vmem:[%s1 + $0x14c] sm:$0xf]
    %v104 = vld [vmem:[%s1 + $0x150] sm:$0xf]
    %v105 = vld [vmem:[%s1 + $0x154] sm:$0xf]
    %v106 = vld [vmem:[%s1 + $0x158] sm:$0xf]
    %v107 = vld [vmem:[%s1 + $0x15c] sm:$0xf]
    %v108 = vld [vmem:[%s1 + $0x160] sm:$0xf]
    %v109 = vld [vmem:[%s1 + $0x164] sm:$0xf]
    %v110 = vld [vmem:[%s1 + $0x168] sm:$0xf]
    %v111 = vld [vmem:[%s1 + $0x16c] sm:$0xf]
    %v112 = vld [vmem:[%s1 + $0x170] sm:$0xf]
    %v113 = vld [vmem:[%s1 + $0x174] sm:$0xf]
    %v114 = vld [vmem:[%s1 + $0x178] sm:$0xf]
    %v115 = vld [vmem:[%s1 + $0x17c] sm:$0xf]
    %v116 = vld [vmem:[%s1 + $0x180] sm:$0xf]
    %v117 = vld [vmem:[%s1 + $0x184] sm:$0xf]
    %v118 = vld [vmem:[%s1 + $0x188] sm:$0xf]
    %v119 = vld [vmem:[%s1 + $0x18c] sm:$0xf]
    %v120 = vld [vmem:[%s1 + $0x190] sm:$0xf]
    %v121 = vld [vmem:[%s1 + $0x194] sm:$0xf]
    %v122 = vld [vmem:[%s1 + $0x198] sm:$0xf]
    %v123 = vld [vmem:[%s1 + $0x19c] sm:$0xf]
    %v124 = vld [vmem:[%s1 + $0x1a0] sm:$0xf]
    %v125 = vld [vmem:[%s1 + $0x1a4] sm:$0xf]
    %v126 = vld [vmem:[%s1 + $0x1a8] sm:$0xf]
    %v127 = vld [vmem:[%s1 + $0x1ac] sm:$0xf]
    %v128 = vld [vmem:[%s1 + $0x1b0] sm:$0xf]
    %v129 = vld [vmem:[%s1 + $0x1b4] sm:$0xf]
    %v130 = vld [vmem:[%s1 + $0x1b8] sm:$0xf]
    %v131 = vld [vmem:[%s1 + $0x1bc] sm:$0xf]
    %v132 = vld [vmem:[%s1 + $0x1c0] sm:$0xf]
    %v133 = vld [vmem:[%s1 + $0x1c4] sm:$0xf]
    %v134 = vld [vmem:[%s1 + $0x1c8] sm:$0xf]
    %v135 = vld [vmem:[%s1 + $0x1cc] sm:$0xf]
    %v136 = vld [vmem:[%s1 + $0x1d0] sm:$0xf]
    %v137 = vld [vmem:[%s1 + $0x1d4] sm:$0xf]
    %v138 = vld [vmem:[%s1 + $0x1d8] sm:$0xf]
    %v139 = vld [vmem:[%s1 + $0x1dc] sm:$0xf]
    %v140 = vld [vmem:[%s1 + $0x1e0] sm:$0xf]
    %v141 = vld [vmem:[%s1 + $0x1e4] sm:$0xf]
    %v142 = vld [vmem:[%s1 + $0x1e8] sm:$0xf]
    %v143 = vld [vmem:[%s1 + $0x1ec] sm:$0xf]
    %v144 = vld [vmem:[%s1 + $0x1f0] sm:$0xf]
    %v145 = vld [vmem:[%s1 + $0x1f4] sm:$0xf]
    %v146 = vld [vmem:[%s1 + $0x1f8] sm:$0xf]
    %v147 = vld [vmem:[%s1 + $0x1fc] sm:$0xf]
    %v148 = vld [vmem:[%s1 + $0x200] sm:$0xf]
    %v149 = vld [vmem:[%s1 + $0x204] sm:$0xf]
    %v150 = vld [vmem:[%s1 + $0x208] sm:$0xf]
    %v151 = vld [vmem:[%s1 + $0x20c] sm:$0xf]
    %v152 = vld [vmem:[%s1 + $0x210] sm:$0xf]
    %v153 = vld [vmem:[%s1 + $0x214] sm:$0xf]
    %v154 = vld [vmem:[%s1 + $0x218] sm:$0xf]
    %v155 = vld [vmem:[%s1 + $0x21c] sm:$0xf]
    %v156 = vld [vmem:[%s1 + $0x220] sm:$0xf]
    %v157 = vld [vmem:[%s1 + $0x224] sm:$0xf]
    %v158 = vld [vmem:[%s1 + $0x228] sm:$0xf]
    %v159 = vld [vmem:[%s1 + $0x22c] sm:$0xf]
    %v160 = vld [vmem:[%s1 + $0x230] sm:$0xf]
    %v161 = vld [vmem:[%s1 + $0x234] sm:$0xf]
    %v162 = vld [vmem:[%s1 + $0x238] sm:$0xf]
    %v163 = vld [vmem:[%s1 + $0x23c] sm:$0xf]
    %v164 = vld [vmem:[%s1 + $0x240] sm:$0xf]
    %v165 = vld [vmem:[%s1 + $0x244] sm:$0xf]
    %v166 = vld [vmem:[%s1 + $0x248] sm:$0xf]
    %v167 = vld [vmem:[%s1 + $0x24c] sm:$0xf]
    %v168 = vld [vmem:[%s1 + $0x250] sm:$0xf]
    %v169 = vld [vmem:[%s1 + $0x254] sm:$0xf]
    %v170 = vld [vmem:[%s1 + $0x258] sm:$0xf]
    %v171 = vld [vmem:[%s1 + $0x25c] sm:$0xf]
    %v172 = vld [vmem:[%s1 + $0x260] sm:$0xf]
    %v173 = vld [vmem:[%s1 + $0x264] sm:$0xf]
    %v174 = vld [vmem:[%s1 + $0x268] sm:$0xf]
    %v175 = vld [vmem:[%s1 + $0x26c] sm:$0xf]
    %v176 = vld [vmem:[%s1 + $0x270] sm:$0xf]
    %v177 = vld [vmem:[%s1 + $0x274] sm:$0xf]
    %v178 = vld [vmem:[%s1 + $0x278] sm:$0xf]
    %v179 = vld [vmem:[%s1 + $0x27c] sm:$0xf]
    %v180 = vld [vmem:[%s1 + $0x280] sm:$0xf]
    %v181 = vld [vmem:[%s1 + $0x284] sm:$0xf]
    %v182 = vld [vmem:[%s1 + $0x288] sm:$0xf]
    %v183 = vld [vmem:[%s1 + $0x28c] sm:$0xf]
    %v184 = vld [vmem:[%s1 + $0x290] sm:$0xf]
    %v185 = vld [vmem:[%s1 + $0x294] sm:$0xf]
    %v186 = vld [vmem:[%s1 + $0x298] sm:$0xf]
    %v187 = vld [vmem:[%s1 + $0x29c] sm:$0xf]
    %v188 = vld [vmem:[%s1 + $0x2a0] sm:$0xf]
    %v189 = vld [vmem:[%s1 + $0x2a4] sm:$0xf]
    %v190 = vld [vmem:[%s1 + $0x2a8] sm:$0xf]
    %v191 = vld [vmem:[%s1 + $0x2ac] sm:$0xf]
    %v192 = vld [vmem:[%s1 + $0x2b0] sm:$0xf]
    %v193 = vld [vmem:[%s1 + $0x2b4] sm:$0xf]
    %v194 = vld [vmem:[%s1 + $0x2b8] sm:$0xf]
    %v195 = vld [vmem:[%s1 + $0x2bc] sm:$0xf]
    %v196 = vld [vmem:[%s1 + $0x2c0] sm:$0xf]
    %v197 = vld [vmem:[%s1 + $0x2c4] sm:$0xf]
    %v198 = vld [vmem:[%s1 + $0x2c8] sm:$0xf]
    %v199 = vld [vmem:[%s1 + $0x2cc] sm:$0xf]
    %v200 = vld [vmem:[%s1 + $0x2d0] sm:$0xf]
    %v201 = vld [vmem:[%s1 + $0x2d4] sm:$0xf]
    %v202 = vld [vmem:[%s1 + $0x2d8] sm:$0xf]
    %v203 = vld [vmem:[%s1 + $0x2dc] sm:$0xf]
    %v204 = vld [vmem:[%s1 + $0x2e0] sm:$0xf]
    %v205 = vld [vmem:[%s1 + $0x2e4] sm:$0xf]
    %v206 = vld [vmem:[%s1 + $0x2e8] sm:$0xf]
    %v207 = vld [vmem:[%s1 + $0x2ec] sm:$0xf]
    %v208 = vld [vmem:[%s1 + $0x2f0] sm:$0xf]
    %v209 = vld [vmem:[%s1 + $0x2f4] sm:$0xf]
    %v210 = vld [vmem:[%s1 + $0x2f8] sm:$0xf]
    %v211 = vld [vmem:[%s1 + $0x2fc] sm:$0xf]
    %v212 = vld [vmem:[%s1 + $0x300] sm:$0xf]
    %v213 = vld [vmem:[%s1 + $0x304] sm:$0xf]
    %v214 = vld [vmem:[%s1 + $0x308] sm:$0xf]
    %v215 = vld [vmem:[%s1 + $0x30c] sm:$0xf]
    %v216 = vld [vmem:[%s1 + $0x310] sm:$0xf]
    %v217 = vld [vmem:[%s1 + $0x314] sm:$0xf]
    %v218 = vld [vmem:[%s1 + $0x318] sm:$0xf]
    %v219 = vld [vmem:[%s1 + $0x31c] sm:$0xf]
    %v220 = vld [vmem:[%s1 + $0x320] sm:$0xf]
    %v221 = vld [vmem:[%s1 + $0x324] sm:$0xf]
    %v222 = vld [vmem:[%s1 + $0x328] sm:$0xf]
    %v223 = vld [vmem:[%s1 + $0x32c] sm:$0xf]
    %v224 = vld [vmem:[%s1 + $0x330] sm:$0xf]
    %v225 = vld [vmem:[%s1 + $0x334] sm:$0xf]
    %v226 = vld [vmem:[%s1 + $0x338] sm:$0xf]
    %v227 = vld [vmem:[%s1 + $0x33c] sm:$0xf]
    %v228 = vld [vmem:[%s1 + $0x340] sm:$0xf]
    %v229 = vld [vmem:[%s1 + $0x344] sm:$0xf]
    %v230 = vld [vmem:[%s1 + $0x348] sm:$0xf]
    %v231 = vld [vmem:[%s1 + $0x34c] sm:$0xf]
    %v232 = vld [vmem:[%s1 + $0x350] sm:$0xf]
    %v233 = vld [vmem:[%s1 + $0x354] sm:$0xf]
    %v234 = vld [vmem:[%s1 + $0x358] sm:$0xf]
    %v235 = vld [vmem:[%s1 + $0x35c] sm:$0xf]
    %v236 = vld [vmem:[%s1 + $0x360] sm:$0xf]
    %v237 = vld [vmem:[%s1 + $0x364] sm:$0xf]
    %v238 = vld [vmem:[%s1 + $0x368] sm:$0xf]
    %v239 = vld [vmem:[%s1 + $0x36c] sm:$0xf]
    %v240 = vld [vmem:[%s1 + $0x370] sm:$0xf]
    %v241 = vld [vmem:[%s1 + $0x374] sm:$0xf]
    %v242 = vld [vmem:[%s1 + $0x378] sm:$0xf]
    %v243 = vld [vmem:[%s1 + $0x37c] sm:$0xf]
    %v244 = vld [vmem:[%s1 + $0x380] sm:$0xf]
    %v245 = vld [vmem:[%s1 + $0x384] sm:$0xf]
    %v246 = vld [vmem:[%s1 + $0x388] sm:$0xf]
    %v247 = vld [vmem:[%s1 + $0x38c] sm:$0xf]
    %v248 = vld [vmem:[%s1 + $0x390] sm:$0xf]
    %v249 = vld [vmem:[%s1 + $0x394] sm:$0xf]
    %v250 = vld [vmem:[%s1 + $0x398] sm:$0xf]
    %v251 = vld [vmem:[%s1 + $0x39c] sm:$0xf]
    %v252 = vld [vmem:[%s1 + $0x3a0] sm:$0xf]
    %v253 = vld [vmem:[%s1 + $0x3a4] sm:$0xf]
    %v254 = vld [vmem:[%s1 + $0x3a8] sm:$0xf]
    %v255 = vld [vmem:[%s1 + $0x3ac] sm:$0xf]
    %v256 = vld [vmem:[%s1 + $0x3b0] sm:$0xf]
    %v257 = vld [vmem:[%s1 + $0x3b4] sm:$0xf]
    %v258 = vld [vmem:[%s1 + $0x3b8] sm:$0xf]
    %v259 = vld [vmem:[%s1 + $0x3bc] sm:$0xf]
    %v260 = vld [vmem:[%s1 + $0x3c0] sm:$0xf]
    %v261 = vld [vmem:[%s1 + $0x3c4] sm:$0xf]
    %v262 = vld [vmem:[%s1 + $0x3c8] sm:$0xf]
    %v263 = vld [vmem:[%s1 + $0x3cc] sm:$0xf]
    %v264 = vld [vmem:[%s1 + $0x3d0] sm:$0xf]
    %v265 = vld [vmem:[%s1 + $0x3d4] sm:$0xf]
    %v266 = vld [vmem:[%s1 + $0x3d8] sm:$0xf]
    %v267 = vld [vmem:[%s1 + $0x3dc] sm:$0xf]
    %v268 = vld [vmem:[%s1 + $0x3e0] sm:$0xf]
    %v269 = vld [vmem:[%s1 + $0x3e4] sm:$0xf]
    %v270 = vld [vmem:[%s1 + $0x3e8] sm:$0xf]
    %v271 = vld [vmem:[%s1 + $0x3ec] sm:$0xf]
    %v272 = vld [vmem:[%s1 + $0x3f0] sm:$0xf]
    %v273 = vld [vmem:[%s1 + $0x3f4] sm:$0xf]
    %v274 = vld [vmem:[%s1 + $0x3f8] sm:$0xf]
    %v275 = vld [vmem:[%s1 + $0x3fc] sm:$0xf]
    %v276 = vld [vmem:[%s1 + $0x400] sm:$0xf]
    %v277 = vld [vmem:[%s1 + $0x404] sm:$0xf]
    %v278 = vld [vmem:[%s1 + $0x408] sm:$0xf]
    %v279 = vld [vmem:[%s1 + $0x40c] sm:$0xf]
    %v280 = vld [vmem:[%s1 + $0x410] sm:$0xf]
    %v281 = vld [vmem:[%s1 + $0x414] sm:$0xf]
    %v282 = vld [vmem:[%s1 + $0x418] sm:$0xf]
    %v283 = vld [vmem:[%s1 + $0x41c] sm:$0xf]
    %v284 = vld [vmem:[%s1 + $0x420] sm:$0xf]
    %v285 = vld [vmem:[%s1 + $0x424] sm:$0xf]
    %v286 = vld [vmem:[%s1 + $0x428] sm:$0xf]
    %v287 = vld [vmem:[%s1 + $0x42c] sm:$0xf]
    %v288 = vld [vmem:[%s1 + $0x430] sm:$0xf]
    %v289 = vld [vmem:[%s1 + $0x434] sm:$0xf]
    %v290 = vld [vmem:[%s1 + $0x438] sm:$0xf]
    %v291 = vld [vmem:[%s1 + $0x43c] sm:$0xf]
    %v292 = vld [vmem:[%s1 + $0x440] sm:$0xf]
    %v293 = vld [vmem:[%s1 + $0x444] sm:$0xf]
    %v294 = vld [vmem:[%s1 + $0x448] sm:$0xf]
    %v295 = vld [vmem:[%s1 + $0x44c] sm:$0xf]
    %v296 = vld [vmem:[%s1 + $0x450] sm:$0xf]
    %v297 = vld [vmem:[%s1 + $0x454] sm:$0xf]
    %v298 = vld [vmem:[%s1 + $0x458] sm:$0xf]
    %v299 = vld [vmem:[%s1 + $0x45c] sm:$0xf]
    %v300 = vld [vmem:[%s1 + $0x460] sm:$0xf]
    %v301 = vld [vmem:[%s1 + $0x464] sm:$0xf]
    %v302 = vld [vmem:[%s1 + $0x468] sm:$0xf]
    %v303 = vld [vmem:[%s1 + $0x46c] sm:$0xf]
    %v304 = vld [vmem:[%s1 + $0x470] sm:$0xf]
    %v305 = vld [vmem:[%s1 + $0x474] sm:$0xf]
    %v306 = vld [vmem:[%s1 + $0x478] sm:$0xf]
    %v307 = vld [vmem:[%s1 + $0x47c] sm:$0xf]
    %v308 = vld [vmem:[%s1 + $0x480] sm:$0xf]
    %v309 = vld [vmem:[%s1 + $0x484] sm:$0xf]
    %v310 = vld [vmem:[%s1 + $0x488] sm:$0xf]
    %v311 = vld [vmem:[%s1 + $0x48c] sm:$0xf]
    %v312 = vld [vmem:[%s1 + $0x490] sm:$0xf]
    %v313 = vld [vmem:[%s1 + $0x494] sm:$0xf]
    %v314 = vld [vmem:[%s1 + $0x498] sm:$0xf]
    %v315 = vld [vmem:[%s1 + $0x49c] sm:$0xf]
    %v316 = vld [vmem:[%s1 + $0x4a0] sm:$0xf]
    %v317 = vld [vmem:[%s1 + $0x4a4] sm:$0xf]
    %v318 = vld [vmem:[%s1 + $0x4a8] sm:$0xf]
    %v319 = vld [vmem:[%s1 + $0x4ac] sm:$0xf]
    %v320 = vld [vmem:[%s1 + $0x4b0] sm:$0xf]
    %v321 = vld [vmem:[%s1 + $0x4b4] sm:$0xf]
    %v322 = vld [vmem:[%s1 + $0x4b8] sm:$0xf]
    %v323 = vld [vmem:[%s1 + $0x4bc] sm:$0xf]
    %v324 = vld [vmem:[%s1 + $0x4c0] sm:$0xf]
    %v325 = vld [vmem:[%s1 + $0x4c4] sm:$0xf]
    %v326 = vld [vmem:[%s1 + $0x4c8] sm:$0xf]
    %v327 = vld [vmem:[%s1 + $0x4cc] sm:$0xf]
    %v328 = vld [vmem:[%s1 + $0x4d0] sm:$0xf]
    %v329 = vld [vmem:[%s1 + $0x4d4] sm:$0xf]
    %v330 = vld [vmem:[%s1 + $0x4d8] sm:$0xf]
    %v331 = vld [vmem:[%s1 + $0x4dc] sm:$0xf]
    %v332 = vld [vmem:[%s1 + $0x4e0] sm:$0xf]
    %v333 = vld [vmem:[%s1 + $0x4e4] sm:$0xf]
    %v334 = vld [vmem:[%s1 + $0x4e8] sm:$0xf]
    %v335 = vld [vmem:[%s1 + $0x4ec] sm:$0xf]
    %v336 = vld [vmem:[%s1 + $0x4f0] sm:$0xf]
    %v337 = vld [vmem:[%s1 + $0x4f4] sm:$0xf]
    %v338 = vld [vmem:[%s1 + $0x4f8] sm:$0xf]
    %v339 = vld [vmem:[%s1 + $0x4fc] sm:$0xf]
    %v340 = vld [vmem:[%s1 + $0x500] sm:$0xf]
    %v341 = vld [vmem:[%s1 + $0x504] sm:$0xf]
    %v342 = vld [vmem:[%s1 + $0x508] sm:$0xf]
    %v343 = vld [vmem:[%s1 + $0x50c] sm:$0xf]
    %v344 = vld [vmem:[%s1 + $0x510] sm:$0xf]
    %v345 = vld [vmem:[%s1 + $0x514] sm:$0xf]
    %v346 = vld [vmem:[%s1 + $0x518] sm:$0xf]
    %v347 = vld [vmem:[%s1 + $0x51c] sm:$0xf]
    %v348 = vld [vmem:[%s1 + $0x520] sm:$0xf]
    %v349 = vld [vmem:[%s1 + $0x524] sm:$0xf]
    %v350 = vld [vmem:[%s1 + $0x528] sm:$0xf]
    %v351 = vld [vmem:[%s1 + $0x52c] sm:$0xf]
    %v352 = vld [vmem:[%s1 + $0x530] sm:$0xf]
    %v353 = vld [vmem:[%s1 + $0x534] sm:$0xf]
    %v354 = vld [vmem:[%s1 + $0x538] sm:$0xf]
    %v355 = vld [vmem:[%s1 + $0x53c] sm:$0xf]
    %v356 = vld [vmem:[%s1 + $0x540] sm:$0xf]
    %v357 = vld [vmem:[%s1 + $0x544] sm:$0xf]
    %v358 = vld [vmem:[%s1 + $0x548] sm:$0xf]
    %v359 = vld [vmem:[%s1 + $0x54c] sm:$0xf]
    %v360 = vld [vmem:[%s1 + $0x550] sm:$0xf]
    %v361 = vld [vmem:[%s1 + $0x554] sm:$0xf]
    %v362 = vld [vmem:[%s1 + $0x558] sm:$0xf]
    %v363 = vld [vmem:[%s1 + $0x55c] sm:$0xf]
    %v364 = vld [vmem:[%s1 + $0x560] sm:$0xf]
    %v365 = vld [vmem:[%s1 + $0x564] sm:$0xf]
    %v366 = vld [vmem:[%s1 + $0x568] sm:$0xf]
    %v367 = vld [vmem:[%s1 + $0x56c] sm:$0xf]
    %v368 = vld [vmem:[%s1 + $0x570] sm:$0xf]
    %v369 = vld [vmem:[%s1 + $0x574] sm:$0xf]
    %v370 = vld [vmem:[%s1 + $0x578] sm:$0xf]
    %v371 = vld [vmem:[%s1 + $0x57c] sm:$0xf]
    %v372 = vld [vmem:[%s1 + $0x580] sm:$0xf]
    %v373 = vld [vmem:[%s1 + $0x584] sm:$0xf]
    %v374 = vld [vmem:[%s1 + $0x588] sm:$0xf]
    %v375 = vld [vmem:[%s1 + $0x58c] sm:$0xf]
    %v376 = vld [vmem:[%s1 + $0x590] sm:$0xf]
    %v377 = vld [vmem:[%s1 + $0x594] sm:$0xf]
    %v378 = vld [vmem:[%s1 + $0x598] sm:$0xf]
    %v379 = vld [vmem:[%s1 + $0x59c] sm:$0xf]
    %v380 = vld [vmem:[%s1 + $0x5a0] sm:$0xf]
    %v381 = vld [vmem:[%s1 + $0x5a4] sm:$0xf]
    %v382 = vld [vmem:[%s1 + $0x5a8] sm:$0xf]
    %v383 = vld [vmem:[%s1 + $0x5ac] sm:$0xf]
    %v384 = vld [vmem:[%s1 + $0x5b0] sm:$0xf]
    %v385 = vld [vmem:[%s1 + $0x5b4] sm:$0xf]
    %v386 = vld [vmem:[%s1 + $0x5b8] sm:$0xf]
    %v387 = vld [vmem:[%s1 + $0x5bc] sm:$0xf]
    %v388 = vld [vmem:[%s1 + $0x5c0] sm:$0xf]
    %v389 = vld [vmem:[%s1 + $0x5c4] sm:$0xf]
    %v390 = vld [vmem:[%s1 + $0x5c8] sm:$0xf]
    %v391 = vld [vmem:[%s1 + $0x5cc] sm:$0xf]
    %v392 = vld [vmem:[%s1 + $0x5d0] sm:$0xf]
    %v393 = vld [vmem:[%s1 + $0x5d4] sm:$0xf]
    %v394 = vld [vmem:[%s1 + $0x5d8] sm:$0xf]
    %v395 = vld [vmem:[%s1 + $0x5dc] sm:$0xf]
    %v396 = vld [vmem:[%s1 + $0x5e0] sm:$0xf]
    %v397 = vld [vmem:[%s1 + $0x5e4] sm:$0xf]
    %v398 = vld [vmem:[%s1 + $0x5e8] sm:$0xf]
    %v399 = vld [vmem:[%s1 + $0x5ec] sm:$0xf]
    %v400 = vld [vmem:[%s1 + $0x5f0] sm:$0xf]
    %v401 = vld [vmem:[%s1 + $0x5f4] sm:$0xf]
    %v402 = vld [vmem:[%s1 + $0x5f8] sm:$0xf]
    %v403 = vld [vmem:[%s1 + $0x5fc] sm:$0xf]
    %v404 = vld [vmem:[%s1 + $0x600] sm:$0xf]
    %v405 = vld [vmem:[%s1 + $0x604] sm:$0xf]
    %v406 = vld [vmem:[%s1 + $0x608] sm:$0xf]
    %v407 = vld [vmem:[%s1 + $0x60c] sm:$0xf]
    %v408 = vld [vmem:[%s1 + $0x610] sm:$0xf]
    %v409 = vld [vmem:[%s1 + $0x614] sm:$0xf]
    %v410 = vld [vmem:[%s1 + $0x618] sm:$0xf]
    %v411 = vld [vmem:[%s1 + $0x61c] sm:$0xf]
    %v412 = vld [vmem:[%s1 + $0x620] sm:$0xf]
    %v413 = vld [vmem:[%s1 + $0x624] sm:$0xf]
    %v414 = vld [vmem:[%s1 + $0x628] sm:$0xf]
    %v415 = vld [vmem:[%s1 + $0x62c] sm:$0xf]
    %v416 = vld [vmem:[%s1 + $0x630] sm:$0xf]
    %v417 = vld [vmem:[%s1 + $0x634] sm:$0xf]
    %v418 = vld [vmem:[%s1 + $0x638] sm:$0xf]
    %v419 = vld [vmem:[%s1 + $0x63c] sm:$0xf]
    %v420 = vld [vmem:[%s1 + $0x640] sm:$0xf]
    %v421 = vld [vmem:[%s1 + $0x644] sm:$0xf]
    %v422 = vld [vmem:[%s1 + $0x648] sm:$0xf]
    %v423 = vld [vmem:[%s1 + $0x64c] sm:$0xf]
    %v424 = vld [vmem:[%s1 + $0x650] sm:$0xf]
    %v425 = vld [vmem:[%s1 + $0x654] sm:$0xf]
    %v426 = vld [vmem:[%s1 + $0x658] sm:$0xf]
    %v427 = vld [vmem:[%s1 + $0x65c] sm:$0xf]
    %v428 = vld [vmem:[%s1 + $0x660] sm:$0xf]
    %v429 = vld [vmem:[%s1 + $0x664] sm:$0xf]
    %v430 = vld [vmem:[%s1 + $0x668] sm:$0xf]
    %v431 = vld [vmem:[%s1 + $0x66c] sm:$0xf]
    %v432 = vld [vmem:[%s1 + $0x670] sm:$0xf]
    %v433 = vld [vmem:[%s1 + $0x674] sm:$0xf]
    %v434 = vld [vmem:[%s1 + $0x678] sm:$0xf]
    %v435 = vld [vmem:[%s1 + $0x67c] sm:$0xf]
    %v436 = vld [vmem:[%s1 + $0x680] sm:$0xf]
    %v437 = vld [vmem:[%s1 + $0x684] sm:$0xf]
    %v438 = vld [vmem:[%s1 + $0x688] sm:$0xf]
    %v439 = vld [vmem:[%s1 + $0x68c] sm:$0xf]
    %v440 = vld [vmem:[%s1 + $0x690] sm:$0xf]
    %v441 = vld [vmem:[%s1 + $0x694] sm:$0xf]
    %v442 = vld [vmem:[%s1 + $0x698] sm:$0xf]
    %v443 = vld [vmem:[%s1 + $0x69c] sm:$0xf]
    %v444 = vld [vmem:[%s1 + $0x6a0] sm:$0xf]
    %v445 = vld [vmem:[%s1 + $0x6a4] sm:$0xf]
    %v446 = vld [vmem:[%s1 + $0x6a8] sm:$0xf]
    %v447 = vld [vmem:[%s1 + $0x6ac] sm:$0xf]
    %v448 = vld [vmem:[%s1 + $0x6b0] sm:$0xf]
    %v449 = vld [vmem:[%s1 + $0x6b4] sm:$0xf]
    %v450 = vld [vmem:[%s1 + $0x6b8] sm:$0xf]
    %v451 = vld [vmem:[%s1 + $0x6bc] sm:$0xf]
    %v452 = vld [vmem:[%s1 + $0x6c0] sm:$0xf]
    %v453 = vld [vmem:[%s1 + $0x6c4] sm:$0xf]
    %v454 = vld [vmem:[%s1 + $0x6c8] sm:$0xf]
    %v455 = vld [vmem:[%s1 + $0x6cc] sm:$0xf]
    %v456 = vld [vmem:[%s1 + $0x6d0] sm:$0xf]
    %v457 = vld [vmem:[%s1 + $0x6d4] sm:$0xf]
    %v458 = vld [vmem:[%s1 + $0x6d8] sm:$0xf]
    %v459 = vld [vmem:[%s1 + $0x6dc] sm:$0xf]
    %v460 = vld [vmem:[%s1 + $0x6e0] sm:$0xf]
    %v461 = vld [vmem:[%s1 + $0x6e4] sm:$0xf]
    %v462 = vld [vmem:[%s1 + $0x6e8] sm:$0xf]
    %v463 = vld [vmem:[%s1 + $0x6ec] sm:$0xf]
    %v464 = vld [vmem:[%s1 + $0x6f0] sm:$0xf]
    %v465 = vld [vmem:[%s1 + $0x6f4] sm:$0xf]
    %v466 = vld [vmem:[%s1 + $0x6f8] sm:$0xf]
    %v467 = vld [vmem:[%s1 + $0x6fc] sm:$0xf]
    %v468 = vld [vmem:[%s1 + $0x700] sm:$0xf]
    %v469 = vld [vmem:[%s1 + $0x704] sm:$0xf]
    %v470 = vld [vmem:[%s1 + $0x708] sm:$0xf]
    %v471 = vld [vmem:[%s1 + $0x70c] sm:$0xf]
    %v472 = vld [vmem:[%s1 + $0x710] sm:$0xf]
    %v473 = vld [vmem:[%s1 + $0x714] sm:$0xf]
    %v474 = vld [vmem:[%s1 + $0x718] sm:$0xf]
    %v475 = vld [vmem:[%s1 + $0x71c] sm:$0xf]
    %v476 = vld [vmem:[%s1 + $0x720] sm:$0xf]
    %v477 = vld [vmem:[%s1 + $0x724] sm:$0xf]
    %v478 = vld [vmem:[%s1 + $0x728] sm:$0xf]
    %v479 = vld [vmem:[%s1 + $0x72c] sm:$0xf]
    %v480 = vld [vmem:[%s1 + $0x730] sm:$0xf]
    %v481 = vld [vmem:[%s1 + $0x734] sm:$0xf]
    %v482 = vld [vmem:[%s1 + $0x738] sm:$0xf]
    %v483 = vld [vmem:[%s1 + $0x73c] sm:$0xf]
    %v484 = vld [vmem:[%s1 + $0x740] sm:$0xf]
    %v485 = vld [vmem:[%s1 + $0x744] sm:$0xf]
    %v486 = vld [vmem:[%s1 + $0x748] sm:$0xf]
    %v487 = vld [vmem:[%s1 + $0x74c] sm:$0xf]
    %v488 = vld [vmem:[%s1 + $0x750] sm:$0xf]
    %v489 = vld [vmem:[%s1 + $0x754] sm:$0xf]
    %v490 = vld [vmem:[%s1 + $0x758] sm:$0xf]
    %v491 = vld [vmem:[%s1 + $0x75c] sm:$0xf]
    %v492 = vld [vmem:[%s1 + $0x760] sm:$0xf]
    %v493 = vld [vmem:[%s1 + $0x764] sm:$0xf]
    %v494 = vld [vmem:[%s1 + $0x768] sm:$0xf]
    %v495 = vld [vmem:[%s1 + $0x76c] sm:$0xf]
    %v496 = vld [vmem:[%s1 + $0x770] sm:$0xf]
    %v497 = vld [vmem:[%s1 + $0x774] sm:$0xf]
    %v498 = vld [vmem:[%s1 + $0x778] sm:$0xf]
    %v499 = vld [vmem:[%s1 + $0x77c] sm:$0xf]
    %v500 = vld [vmem:[%s1 + $0x780] sm:$0xf]
    %v501 = vld [vmem:[%s1 + $0x784] sm:$0xf]
    %v502 = vld [vmem:[%s1 + $0x788] sm:$0xf]
    %v503 = vld [vmem:[%s1 + $0x78c] sm:$0xf]
    %v504 = vld [vmem:[%s1 + $0x790] sm:$0xf]
    %v505 = vld [vmem:[%s1 + $0x794] sm:$0xf]
    %v506 = vld [vmem:[%s1 + $0x798] sm:$0xf]
    %v507 = vld [vmem:[%s1 + $0x79c] sm:$0xf]
    %v508 = vld [vmem:[%s1 + $0x7a0] sm:$0xf]
    %v509 = vld [vmem:[%s1 + $0x7a4] sm:$0xf]
    %v510 = vld [vmem:[%s1 + $0x7a8] sm:$0xf]
    %v511 = vld [vmem:[%s1 + $0x7ac] sm:$0xf]
    %v512 = vld [vmem:[%s1 + $0x7b0] sm:$0xf]
    %v513 = vld [vmem:[%s1 + $0x7b4] sm:$0xf]
    %v514 = vld [vmem:[%s1 + $0x7b8] sm:$0xf]
    %v515 = vld [vmem:[%s1 + $0x7bc] sm:$0xf]
    %v516 = vld [vmem:[%s1 + $0x7c0] sm:$0xf]
    %v517 = vld [vmem:[%s1 + $0x7c4] sm:$0xf]
    %v518 = vld [vmem:[%s1 + $0x7c8] sm:$0xf]
    %v519 = vld [vmem:[%s1 + $0x7cc] sm:$0xf]
    %v520 = vld [vmem:[%s1 + $0x7d0] sm:$0xf]
    %v521 = vld [vmem:[%s1 + $0x7d4] sm:$0xf]
    %v522 = vld [vmem:[%s1 + $0x7d8] sm:$0xf]
    %v523 = vld [vmem:[%s1 + $0x7dc] sm:$0xf]
    %v524 = vld [vmem:[%s1 + $0x7e0] sm:$0xf]
    %v525 = vld [vmem:[%s1 + $0x7e4] sm:$0xf]
    %v526 = vld [vmem:[%s1 + $0x7e8] sm:$0xf]
    %v527 = vld [vmem:[%s1 + $0x7ec] sm:$0xf]
    %v528 = vld [vmem:[%s1 + $0x7f0] sm:$0xf]
    %v529 = vld [vmem:[%s1 + $0x7f4] sm:$0xf]
    %v530 = vld [vmem:[%s1 + $0x7f8] sm:$0xf]
    %v531 = vld [vmem:[%s1 + $0x7fc] sm:$0xf]
    %v532 = vld [vmem:[%s2] sm:$0x1]
    %v534 = vlaneseq
    %v535 = vshrl.u32 %v534, 7
    %v536 = vsub.s32 0, %v535
    %v537 = vrot.slane %v532, %v536
    %v543 = vcombine.high %v16, %v16
    %v545 = vunpack.c.l.s4 1966171168
    %v546 = vunpack.c.0.s8 %v545
    %v547 = vlaneseq
    %v548 = vshrl.u32 %v547, 7
    %v549 = vsub.s32 %v546, %v548
    %v550 = vrot.slane %v16, %v549
    %v552 = vunpack.c.l.s4 1966171168
    %v553 = vunpack.c.0.s8 %v552
    %v554 = vlaneseq
    %v555 = vshrl.u32 %v554, 7
    %v556 = vsub.s32 %v553, %v555
    %v557 = vrot.slane %v543, %v556
    %v558 = vcombine.high %v550, %v550
    %v559 = vcombine.high %v557, %v557
    %v561 = vunpack.c.l.s4 1966171168
    %v562 = vunpack.c.0.s8 %v561
    %v563 = vlaneseq
    %v564 = vshrl.u32 %v563, 7
    %v565 = vsub.s32 %v562, %v564
    %v566 = vrot.slane %v550, %v565
    %v568 = vunpack.c.l.s4 1966171168
    %v569 = vunpack.c.0.s8 %v568
    %v570 = vlaneseq
    %v571 = vshrl.u32 %v570, 7
    %v572 = vsub.s32 %v569, %v571
    %v573 = vrot.slane %v557, %v572
    %v575 = vunpack.c.l.s4 1966171168
    %v576 = vunpack.c.0.s8 %v575
    %v577 = vlaneseq
    %v578 = vshrl.u32 %v577, 7
    %v579 = vsub.s32 %v576, %v578
    %v580 = vrot.slane %v558, %v579
    %v582 = vunpack.c.l.s4 1966171168
    %v583 = vunpack.c.0.s8 %v582
    %v584 = vlaneseq
    %v585 = vshrl.u32 %v584, 7
    %v586 = vsub.s32 %v583, %v585
    %v587 = vrot.slane %v559, %v586
    %v588 = vcombine.high %v566, %v566
    %v589 = vcombine.high %v573, %v573
    %v590 = vcombine.high %v580, %v580
    %v591 = vcombine.high %v587, %v587
    %v592 = vcombine.high %v17, %v17
    %v594 = vunpack.c.l.s4 1966171168
    %v595 = vunpack.c.0.s8 %v594
    %v596 = vlaneseq
    %v597 = vshrl.u32 %v596, 7
    %v598 = vsub.s32 %v595, %v597
    %v599 = vrot.slane %v17, %v598
    %v601 = vunpack.c.l.s4 1966171168
    %v602 = vunpack.c.0.s8 %v601
    %v603 = vlaneseq
    %v604 = vshrl.u32 %v603, 7
    %v605 = vsub.s32 %v602, %v604
    %v606 = vrot.slane %v592, %v605
    %v607 = vcombine.high %v599, %v599
    %v608 = vcombine.high %v606, %v606
    %v610 = vunpack.c.l.s4 1966171168
    %v611 = vunpack.c.0.s8 %v610
    %v612 = vlaneseq
    %v613 = vshrl.u32 %v612, 7
    %v614 = vsub.s32 %v611, %v613
    %v615 = vrot.slane %v599, %v614
    %v617 = vunpack.c.l.s4 1966171168
    %v618 = vunpack.c.0.s8 %v617
    %v619 = vlaneseq
    %v620 = vshrl.u32 %v619, 7
    %v621 = vsub.s32 %v618, %v620
    %v622 = vrot.slane %v606, %v621
    %v624 = vunpack.c.l.s4 1966171168
    %v625 = vunpack.c.0.s8 %v624
    %v626 = vlaneseq
    %v627 = vshrl.u32 %v626, 7
    %v628 = vsub.s32 %v625, %v627
    %v629 = vrot.slane %v607, %v628
    %v631 = vunpack.c.l.s4 1966171168
    %v632 = vunpack.c.0.s8 %v631
    %v633 = vlaneseq
    %v634 = vshrl.u32 %v633, 7
    %v635 = vsub.s32 %v632, %v634
    %v636 = vrot.slane %v608, %v635
    %v637 = vcombine.high %v615, %v615
    %v638 = vcombine.high %v622, %v622
    %v639 = vcombine.high %v629, %v629
    %v640 = vcombine.high %v636, %v636
    %v641 = vcombine.high %v18, %v18
    %v643 = vunpack.c.l.s4 1966171168
    %v644 = vunpack.c.0.s8 %v643
    %v645 = vlaneseq
    %v646 = vshrl.u32 %v645, 7
    %v647 = vsub.s32 %v644, %v646
    %v648 = vrot.slane %v18, %v647
    %v650 = vunpack.c.l.s4 1966171168
    %v651 = vunpack.c.0.s8 %v650
    %v652 = vlaneseq
    %v653 = vshrl.u32 %v652, 7
    %v654 = vsub.s32 %v651, %v653
    %v655 = vrot.slane %v641, %v654
    %v656 = vcombine.high %v648, %v648
    %v657 = vcombine.high %v655, %v655
    %v659 = vunpack.c.l.s4 1966171168
    %v660 = vunpack.c.0.s8 %v659
    %v661 = vlaneseq
    %v662 = vshrl.u32 %v661, 7
    %v663 = vsub.s32 %v660, %v662
    %v664 = vrot.slane %v648, %v663
    %v666 = vunpack.c.l.s4 1966171168
    %v667 = vunpack.c.0.s8 %v666
    %v668 = vlaneseq
    %v669 = vshrl.u32 %v668, 7
    %v670 = vsub.s32 %v667, %v669
    %v671 = vrot.slane %v655, %v670
    %v673 = vunpack.c.l.s4 1966171168
    %v674 = vunpack.c.0.s8 %v673
    %v675 = vlaneseq
    %v676 = vshrl.u32 %v675, 7
    %v677 = vsub.s32 %v674, %v676
    %v678 = vrot.slane %v656, %v677
    %v680 = vunpack.c.l.s4 1966171168
    %v681 = vunpack.c.0.s8 %v680
    %v682 = vlaneseq
    %v683 = vshrl.u32 %v682, 7
    %v684 = vsub.s32 %v681, %v683
    %v685 = vrot.slane %v657, %v684
    %v686 = vcombine.high %v664, %v664
    %v687 = vcombine.high %v671, %v671
    %v688 = vcombine.high %v678, %v678
    %v689 = vcombine.high %v685, %v685
    %v690 = vcombine.high %v19, %v19
    %v692 = vunpack.c.l.s4 1966171168
    %v693 = vunpack.c.0.s8 %v692
    %v694 = vlaneseq
    %v695 = vshrl.u32 %v694, 7
    %v696 = vsub.s32 %v693, %v695
    %v697 = vrot.slane %v19, %v696
    %v699 = vunpack.c.l.s4 1966171168
    %v700 = vunpack.c.0.s8 %v699
    %v701 = vlaneseq
    %v702 = vshrl.u32 %v701, 7
    %v703 = vsub.s32 %v700, %v702
    %v704 = vrot.slane %v690, %v703
    %v705 = vcombine.high %v697, %v697
    %v706 = vcombine.high %v704, %v704
    %v708 = vunpack.c.l.s4 1966171168
    %v709 = vunpack.c.0.s8 %v708
    %v710 = vlaneseq
    %v711 = vshrl.u32 %v710, 7
    %v712 = vsub.s32 %v709, %v711
    %v713 = vrot.slane %v697, %v712
    %v715 = vunpack.c.l.s4 1966171168
    %v716 = vunpack.c.0.s8 %v715
    %v717 = vlaneseq
    %v718 = vshrl.u32 %v717, 7
    %v719 = vsub.s32 %v716, %v718
    %v720 = vrot.slane %v704, %v719
    %v722 = vunpack.c.l.s4 1966171168
    %v723 = vunpack.c.0.s8 %v722
    %v724 = vlaneseq
    %v725 = vshrl.u32 %v724, 7
    %v726 = vsub.s32 %v723, %v725
    %v727 = vrot.slane %v705, %v726
    %v729 = vunpack.c.l.s4 1966171168
    %v730 = vunpack.c.0.s8 %v729
    %v731 = vlaneseq
    %v732 = vshrl.u32 %v731, 7
    %v733 = vsub.s32 %v730, %v732
    %v734 = vrot.slane %v706, %v733
    %v735 = vcombine.high %v713, %v713
    %v736 = vcombine.high %v720, %v720
    %v737 = vcombine.high %v727, %v727
    %v738 = vcombine.high %v734, %v734
    %v1283 = vunpack.c.l.b16 %v20
    %v1284 = vunpack.c.l.b16 %v21
    %v1285 = vunpack.c.l.b16 %v22
    %v1286 = vunpack.c.l.b16 %v23
    %v1287 = vunpack.c.l.b16 %v24
    %v1288 = vunpack.c.l.b16 %v25
    %v1289 = vunpack.c.l.b16 %v26
    %v1290 = vunpack.c.l.b16 %v27
    %v1291 = vunpack.c.l.b16 %v28
    %v1292 = vunpack.c.l.b16 %v29
    %v1293 = vunpack.c.l.b16 %v30
    %v1294 = vunpack.c.l.b16 %v31
    %v1295 = vunpack.c.l.b16 %v32
    %v1296 = vunpack.c.l.b16 %v33
    %v1297 = vunpack.c.l.b16 %v34
    %v1298 = vunpack.c.l.b16 %v35
    %v1299 = vunpack.c.l.b16 %v36
    %v1300 = vunpack.c.l.b16 %v37
    %v1301 = vunpack.c.l.b16 %v38
    %v1302 = vunpack.c.l.b16 %v39
    %v1303 = vunpack.c.l.b16 %v40
    %v1304 = vunpack.c.l.b16 %v41
    %v1305 = vunpack.c.l.b16 %v42
    %v1306 = vunpack.c.l.b16 %v43
    %v1307 = vunpack.c.l.b16 %v44
    %v1308 = vunpack.c.l.b16 %v45
    %v1309 = vunpack.c.l.b16 %v46
    %v1310 = vunpack.c.l.b16 %v47
    %v1311 = vunpack.c.l.b16 %v48
    %v1312 = vunpack.c.l.b16 %v49
    %v1313 = vunpack.c.l.b16 %v50
    %v1314 = vunpack.c.l.b16 %v51
    %v1315 = vunpack.c.l.b16 %v52
    %v1316 = vunpack.c.l.b16 %v53
    %v1317 = vunpack.c.l.b16 %v54
    %v1318 = vunpack.c.l.b16 %v55
    %v1319 = vunpack.c.l.b16 %v56
    %v1320 = vunpack.c.l.b16 %v57
    %v1321 = vunpack.c.l.b16 %v58
    %v1322 = vunpack.c.l.b16 %v59
    %v1323 = vunpack.c.l.b16 %v60
    %v1324 = vunpack.c.l.b16 %v61
    %v1325 = vunpack.c.l.b16 %v62
    %v1326 = vunpack.c.l.b16 %v63
    %v1327 = vunpack.c.l.b16 %v64
    %v1328 = vunpack.c.l.b16 %v65
    %v1329 = vunpack.c.l.b16 %v66
    %v1330 = vunpack.c.l.b16 %v67
    %v1331 = vunpack.c.l.b16 %v68
    %v1332 = vunpack.c.l.b16 %v69
    %v1333 = vunpack.c.l.b16 %v70
    %v1334 = vunpack.c.l.b16 %v71
    %v1335 = vunpack.c.l.b16 %v72
    %v1336 = vunpack.c.l.b16 %v73
    %v1337 = vunpack.c.l.b16 %v74
    %v1338 = vunpack.c.l.b16 %v75
    %v1339 = vunpack.c.l.b16 %v76
    %v1340 = vunpack.c.l.b16 %v77
    %v1341 = vunpack.c.l.b16 %v78
    %v1342 = vunpack.c.l.b16 %v79
    %v1343 = vunpack.c.l.b16 %v80
    %v1344 = vunpack.c.l.b16 %v81
    %v1345 = vunpack.c.l.b16 %v82
    %v1346 = vunpack.c.l.b16 %v83
    %v1347 = vunpack.c.l.b16 %v84
    %v1348 = vunpack.c.l.b16 %v85
    %v1349 = vunpack.c.l.b16 %v86
    %v1350 = vunpack.c.l.b16 %v87
    %v1351 = vunpack.c.l.b16 %v88
    %v1352 = vunpack.c.l.b16 %v89
    %v1353 = vunpack.c.l.b16 %v90
    %v1354 = vunpack.c.l.b16 %v91
    %v1355 = vunpack.c.l.b16 %v92
    %v1356 = vunpack.c.l.b16 %v93
    %v1357 = vunpack.c.l.b16 %v94
    %v1358 = vunpack.c.l.b16 %v95
    %v1359 = vunpack.c.l.b16 %v96
    %v1360 = vunpack.c.l.b16 %v97
    %v1361 = vunpack.c.l.b16 %v98
    %v1362 = vunpack.c.l.b16 %v99
    %v1363 = vunpack.c.l.b16 %v100
    %v1364 = vunpack.c.l.b16 %v101
    %v1365 = vunpack.c.l.b16 %v102
    %v1366 = vunpack.c.l.b16 %v103
    %v1367 = vunpack.c.l.b16 %v104
    %v1368 = vunpack.c.l.b16 %v105
    %v1369 = vunpack.c.l.b16 %v106
    %v1370 = vunpack.c.l.b16 %v107
    %v1371 = vunpack.c.l.b16 %v108
    %v1372 = vunpack.c.l.b16 %v109
    %v1373 = vunpack.c.l.b16 %v110
    %v1374 = vunpack.c.l.b16 %v111
    %v1375 = vunpack.c.l.b16 %v112
    %v1376 = vunpack.c.l.b16 %v113
    %v1377 = vunpack.c.l.b16 %v114
    %v1378 = vunpack.c.l.b16 %v115
    %v1379 = vunpack.c.l.b16 %v116
    %v1380 = vunpack.c.l.b16 %v117
    %v1381 = vunpack.c.l.b16 %v118
    %v1382 = vunpack.c.l.b16 %v119
    %v1383 = vunpack.c.l.b16 %v120
    %v1384 = vunpack.c.l.b16 %v121
    %v1385 = vunpack.c.l.b16 %v122
    %v1386 = vunpack.c.l.b16 %v123
    %v1387 = vunpack.c.l.b16 %v124
    %v1388 = vunpack.c.l.b16 %v125
    %v1389 = vunpack.c.l.b16 %v126
    %v1390 = vunpack.c.l.b16 %v127
    %v1391 = vunpack.c.l.b16 %v128
    %v1392 = vunpack.c.l.b16 %v129
    %v1393 = vunpack.c.l.b16 %v130
    %v1394 = vunpack.c.l.b16 %v131
    %v1395 = vunpack.c.l.b16 %v132
    %v1396 = vunpack.c.l.b16 %v133
    %v1397 = vunpack.c.l.b16 %v134
    %v1398 = vunpack.c.l.b16 %v135
    %v1399 = vunpack.c.l.b16 %v136
    %v1400 = vunpack.c.l.b16 %v137
    %v1401 = vunpack.c.l.b16 %v138
    %v1402 = vunpack.c.l.b16 %v139
    %v1403 = vunpack.c.l.b16 %v140
    %v1404 = vunpack.c.l.b16 %v141
    %v1405 = vunpack.c.l.b16 %v142
    %v1406 = vunpack.c.l.b16 %v143
    %v1407 = vunpack.c.l.b16 %v144
    %v1408 = vunpack.c.l.b16 %v145
    %v1409 = vunpack.c.l.b16 %v146
    %v1410 = vunpack.c.l.b16 %v147
    %v1411 = vunpack.c.l.b16 %v148
    %v1412 = vunpack.c.l.b16 %v149
    %v1413 = vunpack.c.l.b16 %v150
    %v1414 = vunpack.c.l.b16 %v151
    %v1415 = vunpack.c.l.b16 %v152
    %v1416 = vunpack.c.l.b16 %v153
    %v1417 = vunpack.c.l.b16 %v154
    %v1418 = vunpack.c.l.b16 %v155
    %v1419 = vunpack.c.l.b16 %v156
    %v1420 = vunpack.c.l.b16 %v157
    %v1421 = vunpack.c.l.b16 %v158
    %v1422 = vunpack.c.l.b16 %v159
    %v1423 = vunpack.c.l.b16 %v160
    %v1424 = vunpack.c.l.b16 %v161
    %v1425 = vunpack.c.l.b16 %v162
    %v1426 = vunpack.c.l.b16 %v163
    %v1427 = vunpack.c.l.b16 %v164
    %v1428 = vunpack.c.l.b16 %v165
    %v1429 = vunpack.c.l.b16 %v166
    %v1430 = vunpack.c.l.b16 %v167
    %v1431 = vunpack.c.l.b16 %v168
    %v1432 = vunpack.c.l.b16 %v169
    %v1433 = vunpack.c.l.b16 %v170
    %v1434 = vunpack.c.l.b16 %v171
    %v1435 = vunpack.c.l.b16 %v172
    %v1436 = vunpack.c.l.b16 %v173
    %v1437 = vunpack.c.l.b16 %v174
    %v1438 = vunpack.c.l.b16 %v175
    %v1439 = vunpack.c.l.b16 %v176
    %v1440 = vunpack.c.l.b16 %v177
    %v1441 = vunpack.c.l.b16 %v178
    %v1442 = vunpack.c.l.b16 %v179
    %v1443 = vunpack.c.l.b16 %v180
    %v1444 = vunpack.c.l.b16 %v181
    %v1445 = vunpack.c.l.b16 %v182
    %v1446 = vunpack.c.l.b16 %v183
    %v1447 = vunpack.c.l.b16 %v184
    %v1448 = vunpack.c.l.b16 %v185
    %v1449 = vunpack.c.l.b16 %v186
    %v1450 = vunpack.c.l.b16 %v187
    %v1451 = vunpack.c.l.b16 %v188
    %v1452 = vunpack.c.l.b16 %v189
    %v1453 = vunpack.c.l.b16 %v190
    %v1454 = vunpack.c.l.b16 %v191
    %v1455 = vunpack.c.l.b16 %v192
    %v1456 = vunpack.c.l.b16 %v193
    %v1457 = vunpack.c.l.b16 %v194
    %v1458 = vunpack.c.l.b16 %v195
    %v1459 = vunpack.c.l.b16 %v196
    %v1460 = vunpack.c.l.b16 %v197
    %v1461 = vunpack.c.l.b16 %v198
    %v1462 = vunpack.c.l.b16 %v199
    %v1463 = vunpack.c.l.b16 %v200
    %v1464 = vunpack.c.l.b16 %v201
    %v1465 = vunpack.c.l.b16 %v202
    %v1466 = vunpack.c.l.b16 %v203
    %v1467 = vunpack.c.l.b16 %v204
    %v1468 = vunpack.c.l.b16 %v205
    %v1469 = vunpack.c.l.b16 %v206
    %v1470 = vunpack.c.l.b16 %v207
    %v1471 = vunpack.c.l.b16 %v208
    %v1472 = vunpack.c.l.b16 %v209
    %v1473 = vunpack.c.l.b16 %v210
    %v1474 = vunpack.c.l.b16 %v211
    %v1475 = vunpack.c.l.b16 %v212
    %v1476 = vunpack.c.l.b16 %v213
    %v1477 = vunpack.c.l.b16 %v214
    %v1478 = vunpack.c.l.b16 %v215
    %v1479 = vunpack.c.l.b16 %v216
    %v1480 = vunpack.c.l.b16 %v217
    %v1481 = vunpack.c.l.b16 %v218
    %v1482 = vunpack.c.l.b16 %v219
    %v1483 = vunpack.c.l.b16 %v220
    %v1484 = vunpack.c.l.b16 %v221
    %v1485 = vunpack.c.l.b16 %v222
    %v1486 = vunpack.c.l.b16 %v223
    %v1487 = vunpack.c.l.b16 %v224
    %v1488 = vunpack.c.l.b16 %v225
    %v1489 = vunpack.c.l.b16 %v226
    %v1490 = vunpack.c.l.b16 %v227
    %v1491 = vunpack.c.l.b16 %v228
    %v1492 = vunpack.c.l.b16 %v229
    %v1493 = vunpack.c.l.b16 %v230
    %v1494 = vunpack.c.l.b16 %v231
    %v1495 = vunpack.c.l.b16 %v232
    %v1496 = vunpack.c.l.b16 %v233
    %v1497 = vunpack.c.l.b16 %v234
    %v1498 = vunpack.c.l.b16 %v235
    %v1499 = vunpack.c.l.b16 %v236
    %v1500 = vunpack.c.l.b16 %v237
    %v1501 = vunpack.c.l.b16 %v238
    %v1502 = vunpack.c.l.b16 %v239
    %v1503 = vunpack.c.l.b16 %v240
    %v1504 = vunpack.c.l.b16 %v241
    %v1505 = vunpack.c.l.b16 %v242
    %v1506 = vunpack.c.l.b16 %v243
    %v1507 = vunpack.c.l.b16 %v244
    %v1508 = vunpack.c.l.b16 %v245
    %v1509 = vunpack.c.l.b16 %v246
    %v1510 = vunpack.c.l.b16 %v247
    %v1511 = vunpack.c.l.b16 %v248
    %v1512 = vunpack.c.l.b16 %v249
    %v1513 = vunpack.c.l.b16 %v250
    %v1514 = vunpack.c.l.b16 %v251
    %v1515 = vunpack.c.l.b16 %v252
    %v1516 = vunpack.c.l.b16 %v253
    %v1517 = vunpack.c.l.b16 %v254
    %v1518 = vunpack.c.l.b16 %v255
    %v1519 = vunpack.c.l.b16 %v256
    %v1520 = vunpack.c.l.b16 %v257
    %v1521 = vunpack.c.l.b16 %v258
    %v1522 = vunpack.c.l.b16 %v259
    %v1523 = vunpack.c.l.b16 %v260
    %v1524 = vunpack.c.l.b16 %v261
    %v1525 = vunpack.c.l.b16 %v262
    %v1526 = vunpack.c.l.b16 %v263
    %v1527 = vunpack.c.l.b16 %v264
    %v1528 = vunpack.c.l.b16 %v265
    %v1529 = vunpack.c.l.b16 %v266
    %v1530 = vunpack.c.l.b16 %v267
    %v1531 = vunpack.c.l.b16 %v268
    %v1532 = vunpack.c.l.b16 %v269
    %v1533 = vunpack.c.l.b16 %v270
    %v1534 = vunpack.c.l.b16 %v271
    %v1535 = vunpack.c.l.b16 %v272
    %v1536 = vunpack.c.l.b16 %v273
    %v1537 = vunpack.c.l.b16 %v274
    %v1538 = vunpack.c.l.b16 %v275
    %v1539 = vunpack.c.l.b16 %v276
    %v1540 = vunpack.c.l.b16 %v277
    %v1541 = vunpack.c.l.b16 %v278
    %v1542 = vunpack.c.l.b16 %v279
    %v1543 = vunpack.c.l.b16 %v280
    %v1544 = vunpack.c.l.b16 %v281
    %v1545 = vunpack.c.l.b16 %v282
    %v1546 = vunpack.c.l.b16 %v283
    %v1547 = vunpack.c.l.b16 %v284
    %v1548 = vunpack.c.l.b16 %v285
    %v1549 = vunpack.c.l.b16 %v286
    %v1550 = vunpack.c.l.b16 %v287
    %v1551 = vunpack.c.l.b16 %v288
    %v1552 = vunpack.c.l.b16 %v289
    %v1553 = vunpack.c.l.b16 %v290
    %v1554 = vunpack.c.l.b16 %v291
    %v1555 = vunpack.c.l.b16 %v292
    %v1556 = vunpack.c.l.b16 %v293
    %v1557 = vunpack.c.l.b16 %v294
    %v1558 = vunpack.c.l.b16 %v295
    %v1559 = vunpack.c.l.b16 %v296
    %v1560 = vunpack.c.l.b16 %v297
    %v1561 = vunpack.c.l.b16 %v298
    %v1562 = vunpack.c.l.b16 %v299
    %v1563 = vunpack.c.l.b16 %v300
    %v1564 = vunpack.c.l.b16 %v301
    %v1565 = vunpack.c.l.b16 %v302
    %v1566 = vunpack.c.l.b16 %v303
    %v1567 = vunpack.c.l.b16 %v304
    %v1568 = vunpack.c.l.b16 %v305
    %v1569 = vunpack.c.l.b16 %v306
    %v1570 = vunpack.c.l.b16 %v307
    %v1571 = vunpack.c.l.b16 %v308
    %v1572 = vunpack.c.l.b16 %v309
    %v1573 = vunpack.c.l.b16 %v310
    %v1574 = vunpack.c.l.b16 %v311
    %v1575 = vunpack.c.l.b16 %v312
    %v1576 = vunpack.c.l.b16 %v313
    %v1577 = vunpack.c.l.b16 %v314
    %v1578 = vunpack.c.l.b16 %v315
    %v1579 = vunpack.c.l.b16 %v316
    %v1580 = vunpack.c.l.b16 %v317
    %v1581 = vunpack.c.l.b16 %v318
    %v1582 = vunpack.c.l.b16 %v319
    %v1583 = vunpack.c.l.b16 %v320
    %v1584 = vunpack.c.l.b16 %v321
    %v1585 = vunpack.c.l.b16 %v322
    %v1586 = vunpack.c.l.b16 %v323
    %v1587 = vunpack.c.l.b16 %v324
    %v1588 = vunpack.c.l.b16 %v325
    %v1589 = vunpack.c.l.b16 %v326
    %v1590 = vunpack.c.l.b16 %v327
    %v1591 = vunpack.c.l.b16 %v328
    %v1592 = vunpack.c.l.b16 %v329
    %v1593 = vunpack.c.l.b16 %v330
    %v1594 = vunpack.c.l.b16 %v331
    %v1595 = vunpack.c.l.b16 %v332
    %v1596 = vunpack.c.l.b16 %v333
    %v1597 = vunpack.c.l.b16 %v334
    %v1598 = vunpack.c.l.b16 %v335
    %v1599 = vunpack.c.l.b16 %v336
    %v1600 = vunpack.c.l.b16 %v337
    %v1601 = vunpack.c.l.b16 %v338
    %v1602 = vunpack.c.l.b16 %v339
    %v1603 = vunpack.c.l.b16 %v340
    %v1604 = vunpack.c.l.b16 %v341
    %v1605 = vunpack.c.l.b16 %v342
    %v1606 = vunpack.c.l.b16 %v343
    %v1607 = vunpack.c.l.b16 %v344
    %v1608 = vunpack.c.l.b16 %v345
    %v1609 = vunpack.c.l.b16 %v346
    %v1610 = vunpack.c.l.b16 %v347
    %v1611 = vunpack.c.l.b16 %v348
    %v1612 = vunpack.c.l.b16 %v349
    %v1613 = vunpack.c.l.b16 %v350
    %v1614 = vunpack.c.l.b16 %v351
    %v1615 = vunpack.c.l.b16 %v352
    %v1616 = vunpack.c.l.b16 %v353
    %v1617 = vunpack.c.l.b16 %v354
    %v1618 = vunpack.c.l.b16 %v355
    %v1619 = vunpack.c.l.b16 %v356
    %v1620 = vunpack.c.l.b16 %v357
    %v1621 = vunpack.c.l.b16 %v358
    %v1622 = vunpack.c.l.b16 %v359
    %v1623 = vunpack.c.l.b16 %v360
    %v1624 = vunpack.c.l.b16 %v361
    %v1625 = vunpack.c.l.b16 %v362
    %v1626 = vunpack.c.l.b16 %v363
    %v1627 = vunpack.c.l.b16 %v364
    %v1628 = vunpack.c.l.b16 %v365
    %v1629 = vunpack.c.l.b16 %v366
    %v1630 = vunpack.c.l.b16 %v367
    %v1631 = vunpack.c.l.b16 %v368
    %v1632 = vunpack.c.l.b16 %v369
    %v1633 = vunpack.c.l.b16 %v370
    %v1634 = vunpack.c.l.b16 %v371
    %v1635 = vunpack.c.l.b16 %v372
    %v1636 = vunpack.c.l.b16 %v373
    %v1637 = vunpack.c.l.b16 %v374
    %v1638 = vunpack.c.l.b16 %v375
    %v1639 = vunpack.c.l.b16 %v376
    %v1640 = vunpack.c.l.b16 %v377
    %v1641 = vunpack.c.l.b16 %v378
    %v1642 = vunpack.c.l.b16 %v379
    %v1643 = vunpack.c.l.b16 %v380
    %v1644 = vunpack.c.l.b16 %v381
    %v1645 = vunpack.c.l.b16 %v382
    %v1646 = vunpack.c.l.b16 %v383
    %v1647 = vunpack.c.l.b16 %v384
    %v1648 = vunpack.c.l.b16 %v385
    %v1649 = vunpack.c.l.b16 %v386
    %v1650 = vunpack.c.l.b16 %v387
    %v1651 = vunpack.c.l.b16 %v388
    %v1652 = vunpack.c.l.b16 %v389
    %v1653 = vunpack.c.l.b16 %v390
    %v1654 = vunpack.c.l.b16 %v391
    %v1655 = vunpack.c.l.b16 %v392
    %v1656 = vunpack.c.l.b16 %v393
    %v1657 = vunpack.c.l.b16 %v394
    %v1658 = vunpack.c.l.b16 %v395
    %v1659 = vunpack.c.l.b16 %v396
    %v1660 = vunpack.c.l.b16 %v397
    %v1661 = vunpack.c.l.b16 %v398
    %v1662 = vunpack.c.l.b16 %v399
    %v1663 = vunpack.c.l.b16 %v400
    %v1664 = vunpack.c.l.b16 %v401
    %v1665 = vunpack.c.l.b16 %v402
    %v1666 = vunpack.c.l.b16 %v403
    %v1667 = vunpack.c.l.b16 %v404
    %v1668 = vunpack.c.l.b16 %v405
    %v1669 = vunpack.c.l.b16 %v406
    %v1670 = vunpack.c.l.b16 %v407
    %v1671 = vunpack.c.l.b16 %v408
    %v1672 = vunpack.c.l.b16 %v409
    %v1673 = vunpack.c.l.b16 %v410
    %v1674 = vunpack.c.l.b16 %v411
    %v1675 = vunpack.c.l.b16 %v412
    %v1676 = vunpack.c.l.b16 %v413
    %v1677 = vunpack.c.l.b16 %v414
    %v1678 = vunpack.c.l.b16 %v415
    %v1679 = vunpack.c.l.b16 %v416
    %v1680 = vunpack.c.l.b16 %v417
    %v1681 = vunpack.c.l.b16 %v418
    %v1682 = vunpack.c.l.b16 %v419
    %v1683 = vunpack.c.l.b16 %v420
    %v1684 = vunpack.c.l.b16 %v421
    %v1685 = vunpack.c.l.b16 %v422
    %v1686 = vunpack.c.l.b16 %v423
    %v1687 = vunpack.c.l.b16 %v424
    %v1688 = vunpack.c.l.b16 %v425
    %v1689 = vunpack.c.l.b16 %v426
    %v1690 = vunpack.c.l.b16 %v427
    %v1691 = vunpack.c.l.b16 %v428
    %v1692 = vunpack.c.l.b16 %v429
    %v1693 = vunpack.c.l.b16 %v430
    %v1694 = vunpack.c.l.b16 %v431
    %v1695 = vunpack.c.l.b16 %v432
    %v1696 = vunpack.c.l.b16 %v433
    %v1697 = vunpack.c.l.b16 %v434
    %v1698 = vunpack.c.l.b16 %v435
    %v1699 = vunpack.c.l.b16 %v436
    %v1700 = vunpack.c.l.b16 %v437
    %v1701 = vunpack.c.l.b16 %v438
    %v1702 = vunpack.c.l.b16 %v439
    %v1703 = vunpack.c.l.b16 %v440
    %v1704 = vunpack.c.l.b16 %v441
    %v1705 = vunpack.c.l.b16 %v442
    %v1706 = vunpack.c.l.b16 %v443
    %v1707 = vunpack.c.l.b16 %v444
    %v1708 = vunpack.c.l.b16 %v445
    %v1709 = vunpack.c.l.b16 %v446
    %v1710 = vunpack.c.l.b16 %v447
    %v1711 = vunpack.c.l.b16 %v448
    %v1712 = vunpack.c.l.b16 %v449
    %v1713 = vunpack.c.l.b16 %v450
    %v1714 = vunpack.c.l.b16 %v451
    %v1715 = vunpack.c.l.b16 %v452
    %v1716 = vunpack.c.l.b16 %v453
    %v1717 = vunpack.c.l.b16 %v454
    %v1718 = vunpack.c.l.b16 %v455
    %v1719 = vunpack.c.l.b16 %v456
    %v1720 = vunpack.c.l.b16 %v457
    %v1721 = vunpack.c.l.b16 %v458
    %v1722 = vunpack.c.l.b16 %v459
    %v1723 = vunpack.c.l.b16 %v460
    %v1724 = vunpack.c.l.b16 %v461
    %v1725 = vunpack.c.l.b16 %v462
    %v1726 = vunpack.c.l.b16 %v463
    %v1727 = vunpack.c.l.b16 %v464
    %v1728 = vunpack.c.l.b16 %v465
    %v1729 = vunpack.c.l.b16 %v466
    %v1730 = vunpack.c.l.b16 %v467
    %v1731 = vunpack.c.l.b16 %v468
    %v1732 = vunpack.c.l.b16 %v469
    %v1733 = vunpack.c.l.b16 %v470
    %v1734 = vunpack.c.l.b16 %v471
    %v1735 = vunpack.c.l.b16 %v472
    %v1736 = vunpack.c.l.b16 %v473
    %v1737 = vunpack.c.l.b16 %v474
    %v1738 = vunpack.c.l.b16 %v475
    %v1739 = vunpack.c.l.b16 %v476
    %v1740 = vunpack.c.l.b16 %v477
    %v1741 = vunpack.c.l.b16 %v478
    %v1742 = vunpack.c.l.b16 %v479
    %v1743 = vunpack.c.l.b16 %v480
    %v1744 = vunpack.c.l.b16 %v481
    %v1745 = vunpack.c.l.b16 %v482
    %v1746 = vunpack.c.l.b16 %v483
    %v1747 = vunpack.c.l.b16 %v484
    %v1748 = vunpack.c.l.b16 %v485
    %v1749 = vunpack.c.l.b16 %v486
    %v1750 = vunpack.c.l.b16 %v487
    %v1751 = vunpack.c.l.b16 %v488
    %v1752 = vunpack.c.l.b16 %v489
    %v1753 = vunpack.c.l.b16 %v490
    %v1754 = vunpack.c.l.b16 %v491
    %v1755 = vunpack.c.l.b16 %v492
    %v1756 = vunpack.c.l.b16 %v493
    %v1757 = vunpack.c.l.b16 %v494
    %v1758 = vunpack.c.l.b16 %v495
    %v1759 = vunpack.c.l.b16 %v496
    %v1760 = vunpack.c.l.b16 %v497
    %v1761 = vunpack.c.l.b16 %v498
    %v1762 = vunpack.c.l.b16 %v499
    %v1763 = vunpack.c.l.b16 %v500
    %v1764 = vunpack.c.l.b16 %v501
    %v1765 = vunpack.c.l.b16 %v502
    %v1766 = vunpack.c.l.b16 %v503
    %v1767 = vunpack.c.l.b16 %v504
    %v1768 = vunpack.c.l.b16 %v505
    %v1769 = vunpack.c.l.b16 %v506
    %v1770 = vunpack.c.l.b16 %v507
    %v1771 = vunpack.c.l.b16 %v508
    %v1772 = vunpack.c.l.b16 %v509
    %v1773 = vunpack.c.l.b16 %v510
    %v1774 = vunpack.c.l.b16 %v511
    %v1775 = vunpack.c.l.b16 %v512
    %v1776 = vunpack.c.l.b16 %v513
    %v1777 = vunpack.c.l.b16 %v514
    %v1778 = vunpack.c.l.b16 %v515
    %v1779 = vunpack.c.l.b16 %v516
    %v1780 = vunpack.c.l.b16 %v517
    %v1781 = vunpack.c.l.b16 %v518
    %v1782 = vunpack.c.l.b16 %v519
    %v1783 = vunpack.c.l.b16 %v520
    %v1784 = vunpack.c.l.b16 %v521
    %v1785 = vunpack.c.l.b16 %v522
    %v1786 = vunpack.c.l.b16 %v523
    %v1787 = vunpack.c.l.b16 %v524
    %v1788 = vunpack.c.l.b16 %v525
    %v1789 = vunpack.c.l.b16 %v526
    %v1790 = vunpack.c.l.b16 %v527
    %v1791 = vunpack.c.l.b16 %v528
    %v1792 = vunpack.c.l.b16 %v529
    %v1793 = vunpack.c.l.b16 %v530
    %v1794 = vunpack.c.l.b16 %v531
    %v1795 = vpack.c.b16 %v1284, %v1283
    %v1796 = vpack.c.b16 %v1286, %v1285
    %v1797 = vpack.c.b16 %v1288, %v1287
    %v1798 = vpack.c.b16 %v1290, %v1289
    %v1799 = vpack.c.b16 %v1292, %v1291
    %v1800 = vpack.c.b16 %v1294, %v1293
    %v1801 = vpack.c.b16 %v1296, %v1295
    %v1802 = vpack.c.b16 %v1298, %v1297
    %v1803 = vpack.c.b16 %v1300, %v1299
    %v1804 = vpack.c.b16 %v1302, %v1301
    %v1805 = vpack.c.b16 %v1304, %v1303
    %v1806 = vpack.c.b16 %v1306, %v1305
    %v1807 = vpack.c.b16 %v1308, %v1307
    %v1808 = vpack.c.b16 %v1310, %v1309
    %v1809 = vpack.c.b16 %v1312, %v1311
    %v1810 = vpack.c.b16 %v1314, %v1313
    %v1811 = vpack.c.b16 %v1316, %v1315
    %v1812 = vpack.c.b16 %v1318, %v1317
    %v1813 = vpack.c.b16 %v1320, %v1319
    %v1814 = vpack.c.b16 %v1322, %v1321
    %v1815 = vpack.c.b16 %v1324, %v1323
    %v1816 = vpack.c.b16 %v1326, %v1325
    %v1817 = vpack.c.b16 %v1328, %v1327
    %v1818 = vpack.c.b16 %v1330, %v1329
    %v1819 = vpack.c.b16 %v1332, %v1331
    %v1820 = vpack.c.b16 %v1334, %v1333
    %v1821 = vpack.c.b16 %v1336, %v1335
    %v1822 = vpack.c.b16 %v1338, %v1337
    %v1823 = vpack.c.b16 %v1340, %v1339
    %v1824 = vpack.c.b16 %v1342, %v1341
    %v1825 = vpack.c.b16 %v1344, %v1343
    %v1826 = vpack.c.b16 %v1346, %v1345
    %v1827 = vpack.c.b16 %v1348, %v1347
    %v1828 = vpack.c.b16 %v1350, %v1349
    %v1829 = vpack.c.b16 %v1352, %v1351
    %v1830 = vpack.c.b16 %v1354, %v1353
    %v1831 = vpack.c.b16 %v1356, %v1355
    %v1832 = vpack.c.b16 %v1358, %v1357
    %v1833 = vpack.c.b16 %v1360, %v1359
    %v1834 = vpack.c.b16 %v1362, %v1361
    %v1835 = vpack.c.b16 %v1364, %v1363
    %v1836 = vpack.c.b16 %v1366, %v1365
    %v1837 = vpack.c.b16 %v1368, %v1367
    %v1838 = vpack.c.b16 %v1370, %v1369
    %v1839 = vpack.c.b16 %v1372, %v1371
    %v1840 = vpack.c.b16 %v1374, %v1373
    %v1841 = vpack.c.b16 %v1376, %v1375
    %v1842 = vpack.c.b16 %v1378, %v1377
    %v1843 = vpack.c.b16 %v1380, %v1379
    %v1844 = vpack.c.b16 %v1382, %v1381
    %v1845 = vpack.c.b16 %v1384, %v1383
    %v1846 = vpack.c.b16 %v1386, %v1385
    %v1847 = vpack.c.b16 %v1388, %v1387
    %v1848 = vpack.c.b16 %v1390, %v1389
    %v1849 = vpack.c.b16 %v1392, %v1391
    %v1850 = vpack.c.b16 %v1394, %v1393
    %v1851 = vpack.c.b16 %v1396, %v1395
    %v1852 = vpack.c.b16 %v1398, %v1397
    %v1853 = vpack.c.b16 %v1400, %v1399
    %v1854 = vpack.c.b16 %v1402, %v1401
    %v1855 = vpack.c.b16 %v1404, %v1403
    %v1856 = vpack.c.b16 %v1406, %v1405
    %v1857 = vpack.c.b16 %v1408, %v1407
    %v1858 = vpack.c.b16 %v1410, %v1409
    %v1859 = vpack.c.b16 %v1412, %v1411
    %v1860 = vpack.c.b16 %v1414, %v1413
    %v1861 = vpack.c.b16 %v1416, %v1415
    %v1862 = vpack.c.b16 %v1418, %v1417
    %v1863 = vpack.c.b16 %v1420, %v1419
    %v1864 = vpack.c.b16 %v1422, %v1421
    %v1865 = vpack.c.b16 %v1424, %v1423
    %v1866 = vpack.c.b16 %v1426, %v1425
    %v1867 = vpack.c.b16 %v1428, %v1427
    %v1868 = vpack.c.b16 %v1430, %v1429
    %v1869 = vpack.c.b16 %v1432, %v1431
    %v1870 = vpack.c.b16 %v1434, %v1433
    %v1871 = vpack.c.b16 %v1436, %v1435
    %v1872 = vpack.c.b16 %v1438, %v1437
    %v1873 = vpack.c.b16 %v1440, %v1439
    %v1874 = vpack.c.b16 %v1442, %v1441
    %v1875 = vpack.c.b16 %v1444, %v1443
    %v1876 = vpack.c.b16 %v1446, %v1445
    %v1877 = vpack.c.b16 %v1448, %v1447
    %v1878 = vpack.c.b16 %v1450, %v1449
    %v1879 = vpack.c.b16 %v1452, %v1451
    %v1880 = vpack.c.b16 %v1454, %v1453
    %v1881 = vpack.c.b16 %v1456, %v1455
    %v1882 = vpack.c.b16 %v1458, %v1457
    %v1883 = vpack.c.b16 %v1460, %v1459
    %v1884 = vpack.c.b16 %v1462, %v1461
    %v1885 = vpack.c.b16 %v1464, %v1463
    %v1886 = vpack.c.b16 %v1466, %v1465
    %v1887 = vpack.c.b16 %v1468, %v1467
    %v1888 = vpack.c.b16 %v1470, %v1469
    %v1889 = vpack.c.b16 %v1472, %v1471
    %v1890 = vpack.c.b16 %v1474, %v1473
    %v1891 = vpack.c.b16 %v1476, %v1475
    %v1892 = vpack.c.b16 %v1478, %v1477
    %v1893 = vpack.c.b16 %v1480, %v1479
    %v1894 = vpack.c.b16 %v1482, %v1481
    %v1895 = vpack.c.b16 %v1484, %v1483
    %v1896 = vpack.c.b16 %v1486, %v1485
    %v1897 = vpack.c.b16 %v1488, %v1487
    %v1898 = vpack.c.b16 %v1490, %v1489
    %v1899 = vpack.c.b16 %v1492, %v1491
    %v1900 = vpack.c.b16 %v1494, %v1493
    %v1901 = vpack.c.b16 %v1496, %v1495
    %v1902 = vpack.c.b16 %v1498, %v1497
    %v1903 = vpack.c.b16 %v1500, %v1499
    %v1904 = vpack.c.b16 %v1502, %v1501
    %v1905 = vpack.c.b16 %v1504, %v1503
    %v1906 = vpack.c.b16 %v1506, %v1505
    %v1907 = vpack.c.b16 %v1508, %v1507
    %v1908 = vpack.c.b16 %v1510, %v1509
    %v1909 = vpack.c.b16 %v1512, %v1511
    %v1910 = vpack.c.b16 %v1514, %v1513
    %v1911 = vpack.c.b16 %v1516, %v1515
    %v1912 = vpack.c.b16 %v1518, %v1517
    %v1913 = vpack.c.b16 %v1520, %v1519
    %v1914 = vpack.c.b16 %v1522, %v1521
    %v1915 = vpack.c.b16 %v1524, %v1523
    %v1916 = vpack.c.b16 %v1526, %v1525
    %v1917 = vpack.c.b16 %v1528, %v1527
    %v1918 = vpack.c.b16 %v1530, %v1529
    %v1919 = vpack.c.b16 %v1532, %v1531
    %v1920 = vpack.c.b16 %v1534, %v1533
    %v1921 = vpack.c.b16 %v1536, %v1535
    %v1922 = vpack.c.b16 %v1538, %v1537
    %v1923 = vpack.c.b16 %v1540, %v1539
    %v1924 = vpack.c.b16 %v1542, %v1541
    %v1925 = vpack.c.b16 %v1544, %v1543
    %v1926 = vpack.c.b16 %v1546, %v1545
    %v1927 = vpack.c.b16 %v1548, %v1547
    %v1928 = vpack.c.b16 %v1550, %v1549
    %v1929 = vpack.c.b16 %v1552, %v1551
    %v1930 = vpack.c.b16 %v1554, %v1553
    %v1931 = vpack.c.b16 %v1556, %v1555
    %v1932 = vpack.c.b16 %v1558, %v1557
    %v1933 = vpack.c.b16 %v1560, %v1559
    %v1934 = vpack.c.b16 %v1562, %v1561
    %v1935 = vpack.c.b16 %v1564, %v1563
    %v1936 = vpack.c.b16 %v1566, %v1565
    %v1937 = vpack.c.b16 %v1568, %v1567
    %v1938 = vpack.c.b16 %v1570, %v1569
    %v1939 = vpack.c.b16 %v1572, %v1571
    %v1940 = vpack.c.b16 %v1574, %v1573
    %v1941 = vpack.c.b16 %v1576, %v1575
    %v1942 = vpack.c.b16 %v1578, %v1577
    %v1943 = vpack.c.b16 %v1580, %v1579
    %v1944 = vpack.c.b16 %v1582, %v1581
    %v1945 = vpack.c.b16 %v1584, %v1583
    %v1946 = vpack.c.b16 %v1586, %v1585
    %v1947 = vpack.c.b16 %v1588, %v1587
    %v1948 = vpack.c.b16 %v1590, %v1589
    %v1949 = vpack.c.b16 %v1592, %v1591
    %v1950 = vpack.c.b16 %v1594, %v1593
    %v1951 = vpack.c.b16 %v1596, %v1595
    %v1952 = vpack.c.b16 %v1598, %v1597
    %v1953 = vpack.c.b16 %v1600, %v1599
    %v1954 = vpack.c.b16 %v1602, %v1601
    %v1955 = vpack.c.b16 %v1604, %v1603
    %v1956 = vpack.c.b16 %v1606, %v1605
    %v1957 = vpack.c.b16 %v1608, %v1607
    %v1958 = vpack.c.b16 %v1610, %v1609
    %v1959 = vpack.c.b16 %v1612, %v1611
    %v1960 = vpack.c.b16 %v1614, %v1613
    %v1961 = vpack.c.b16 %v1616, %v1615
    %v1962 = vpack.c.b16 %v1618, %v1617
    %v1963 = vpack.c.b16 %v1620, %v1619
    %v1964 = vpack.c.b16 %v1622, %v1621
    %v1965 = vpack.c.b16 %v1624, %v1623
    %v1966 = vpack.c.b16 %v1626, %v1625
    %v1967 = vpack.c.b16 %v1628, %v1627
    %v1968 = vpack.c.b16 %v1630, %v1629
    %v1969 = vpack.c.b16 %v1632, %v1631
    %v1970 = vpack.c.b16 %v1634, %v1633
    %v1971 = vpack.c.b16 %v1636, %v1635
    %v1972 = vpack.c.b16 %v1638, %v1637
    %v1973 = vpack.c.b16 %v1640, %v1639
    %v1974 = vpack.c.b16 %v1642, %v1641
    %v1975 = vpack.c.b16 %v1644, %v1643
    %v1976 = vpack.c.b16 %v1646, %v1645
    %v1977 = vpack.c.b16 %v1648, %v1647
    %v1978 = vpack.c.b16 %v1650, %v1649
    %v1979 = vpack.c.b16 %v1652, %v1651
    %v1980 = vpack.c.b16 %v1654, %v1653
    %v1981 = vpack.c.b16 %v1656, %v1655
    %v1982 = vpack.c.b16 %v1658, %v1657
    %v1983 = vpack.c.b16 %v1660, %v1659
    %v1984 = vpack.c.b16 %v1662, %v1661
    %v1985 = vpack.c.b16 %v1664, %v1663
    %v1986 = vpack.c.b16 %v1666, %v1665
    %v1987 = vpack.c.b16 %v1668, %v1667
    %v1988 = vpack.c.b16 %v1670, %v1669
    %v1989 = vpack.c.b16 %v1672, %v1671
    %v1990 = vpack.c.b16 %v1674, %v1673
    %v1991 = vpack.c.b16 %v1676, %v1675
    %v1992 = vpack.c.b16 %v1678, %v1677
    %v1993 = vpack.c.b16 %v1680, %v1679
    %v1994 = vpack.c.b16 %v1682, %v1681
    %v1995 = vpack.c.b16 %v1684, %v1683
    %v1996 = vpack.c.b16 %v1686, %v1685
    %v1997 = vpack.c.b16 %v1688, %v1687
    %v1998 = vpack.c.b16 %v1690, %v1689
    %v1999 = vpack.c.b16 %v1692, %v1691
    %v2000 = vpack.c.b16 %v1694, %v1693
    %v2001 = vpack.c.b16 %v1696, %v1695
    %v2002 = vpack.c.b16 %v1698, %v1697
    %v2003 = vpack.c.b16 %v1700, %v1699
    %v2004 = vpack.c.b16 %v1702, %v1701
    %v2005 = vpack.c.b16 %v1704, %v1703
    %v2006 = vpack.c.b16 %v1706, %v1705
    %v2007 = vpack.c.b16 %v1708, %v1707
    %v2008 = vpack.c.b16 %v1710, %v1709
    %v2009 = vpack.c.b16 %v1712, %v1711
    %v2010 = vpack.c.b16 %v1714, %v1713
    %v2011 = vpack.c.b16 %v1716, %v1715
    %v2012 = vpack.c.b16 %v1718, %v1717
    %v2013 = vpack.c.b16 %v1720, %v1719
    %v2014 = vpack.c.b16 %v1722, %v1721
    %v2015 = vpack.c.b16 %v1724, %v1723
    %v2016 = vpack.c.b16 %v1726, %v1725
    %v2017 = vpack.c.b16 %v1728, %v1727
    %v2018 = vpack.c.b16 %v1730, %v1729
    %v2019 = vpack.c.b16 %v1732, %v1731
    %v2020 = vpack.c.b16 %v1734, %v1733
    %v2021 = vpack.c.b16 %v1736, %v1735
    %v2022 = vpack.c.b16 %v1738, %v1737
    %v2023 = vpack.c.b16 %v1740, %v1739
    %v2024 = vpack.c.b16 %v1742, %v1741
    %v2025 = vpack.c.b16 %v1744, %v1743
    %v2026 = vpack.c.b16 %v1746, %v1745
    %v2027 = vpack.c.b16 %v1748, %v1747
    %v2028 = vpack.c.b16 %v1750, %v1749
    %v2029 = vpack.c.b16 %v1752, %v1751
    %v2030 = vpack.c.b16 %v1754, %v1753
    %v2031 = vpack.c.b16 %v1756, %v1755
    %v2032 = vpack.c.b16 %v1758, %v1757
    %v2033 = vpack.c.b16 %v1760, %v1759
    %v2034 = vpack.c.b16 %v1762, %v1761
    %v2035 = vpack.c.b16 %v1764, %v1763
    %v2036 = vpack.c.b16 %v1766, %v1765
    %v2037 = vpack.c.b16 %v1768, %v1767
    %v2038 = vpack.c.b16 %v1770, %v1769
    %v2039 = vpack.c.b16 %v1772, %v1771
    %v2040 = vpack.c.b16 %v1774, %v1773
    %v2041 = vpack.c.b16 %v1776, %v1775
    %v2042 = vpack.c.b16 %v1778, %v1777
    %v2043 = vpack.c.b16 %v1780, %v1779
    %v2044 = vpack.c.b16 %v1782, %v1781
    %v2045 = vpack.c.b16 %v1784, %v1783
    %v2046 = vpack.c.b16 %v1786, %v1785
    %v2047 = vpack.c.b16 %v1788, %v1787
    %v2048 = vpack.c.b16 %v1790, %v1789
    %v2049 = vpack.c.b16 %v1792, %v1791
    %v2050 = vpack.c.b16 %v1794, %v1793
    %2307 = vmatprep.subr.bf16.mxu0 0
    %2308 = vmatpush1.bf16.msra.mxu0 %v1795
    %2309 = vmatprep.subr.bf16.mxu0 0
    %2310 = vmatpush1.bf16.msra.mxu0 %v1796
    %2311 = vmatprep.subr.bf16.mxu0 0
    %2312 = vmatpush1.bf16.msra.mxu0 %v1797
    %2313 = vmatprep.subr.bf16.mxu0 0
    %2314 = vmatpush1.bf16.msra.mxu0 %v1798
    %2315 = vmatprep.subr.bf16.mxu0 0
    %2316 = vmatpush1.bf16.msra.mxu0 %v1799
    %2317 = vmatprep.subr.bf16.mxu0 0
    %2318 = vmatpush1.bf16.msra.mxu0 %v1800
    %2319 = vmatprep.subr.bf16.mxu0 0
    %2320 = vmatpush1.bf16.msra.mxu0 %v1801
    %2321 = vmatprep.subr.bf16.mxu0 0
    %2322 = vmatpush1.bf16.msra.mxu0 %v1802
    %2323 = vmatprep.subr.bf16.mxu0 0
    %2324 = vmatpush1.bf16.msra.mxu0 %v1803
    %2325 = vmatprep.subr.bf16.mxu0 0
    %2326 = vmatpush1.bf16.msra.mxu0 %v1804
    %2327 = vmatprep.subr.bf16.mxu0 0
    %2328 = vmatpush1.bf16.msra.mxu0 %v1805
    %2329 = vmatprep.subr.bf16.mxu0 0
    %2330 = vmatpush1.bf16.msra.mxu0 %v1806
    %2331 = vmatprep.subr.bf16.mxu0 0
    %2332 = vmatpush1.bf16.msra.mxu0 %v1807
    %2333 = vmatprep.subr.bf16.mxu0 0
    %2334 = vmatpush1.bf16.msra.mxu0 %v1808
    %2335 = vmatprep.subr.bf16.mxu0 0
    %2336 = vmatpush1.bf16.msra.mxu0 %v1809
    %2337 = vmatprep.subr.bf16.mxu0 0
    %2338 = vmatpush1.bf16.msra.mxu0 %v1810
    %2339 = vmatprep.mubr.bf16.mxu0 %v580
    %2340 = vmatmul.mubr.bf16.gmra.mrb[0].mxu0 %v566
    %v2341 = vpop.f32.mrb[0].mxu0
    %v2342 = vadd.f32 %v537, %v2341
    %v2343 = vpop.f32.mrb[0].mxu0
    %v2344 = vpop.f32.mrb[0].mxu0
    %v2345 = vpop.f32.mrb[0].mxu0
    %2346 = vdwg.mxu0
    %2347 = vmatprep.subr.bf16.mxu0 0
    %2348 = vmatpush1.bf16.msra.mxu0 %v1811
    %2349 = vmatprep.subr.bf16.mxu0 0
    %2350 = vmatpush1.bf16.msra.mxu0 %v1812
    %2351 = vmatprep.subr.bf16.mxu0 0
    %2352 = vmatpush1.bf16.msra.mxu0 %v1813
    %2353 = vmatprep.subr.bf16.mxu0 0
    %2354 = vmatpush1.bf16.msra.mxu0 %v1814
    %2355 = vmatprep.subr.bf16.mxu0 0
    %2356 = vmatpush1.bf16.msra.mxu0 %v1815
    %2357 = vmatprep.subr.bf16.mxu0 0
    %2358 = vmatpush1.bf16.msra.mxu0 %v1816
    %2359 = vmatprep.subr.bf16.mxu0 0
    %2360 = vmatpush1.bf16.msra.mxu0 %v1817
    %2361 = vmatprep.subr.bf16.mxu0 0
    %2362 = vmatpush1.bf16.msra.mxu0 %v1818
    %2363 = vmatprep.subr.bf16.mxu0 0
    %2364 = vmatpush1.bf16.msra.mxu0 %v1819
    %2365 = vmatprep.subr.bf16.mxu0 0
    %2366 = vmatpush1.bf16.msra.mxu0 %v1820
    %2367 = vmatprep.subr.bf16.mxu0 0
    %2368 = vmatpush1.bf16.msra.mxu0 %v1821
    %2369 = vmatprep.subr.bf16.mxu0 0
    %2370 = vmatpush1.bf16.msra.mxu0 %v1822
    %2371 = vmatprep.subr.bf16.mxu0 0
    %2372 = vmatpush1.bf16.msra.mxu0 %v1823
    %2373 = vmatprep.subr.bf16.mxu0 0
    %2374 = vmatpush1.bf16.msra.mxu0 %v1824
    %2375 = vmatprep.subr.bf16.mxu0 0
    %2376 = vmatpush1.bf16.msra.mxu0 %v1825
    %2377 = vmatprep.subr.bf16.mxu0 0
    %2378 = vmatpush1.bf16.msra.mxu0 %v1826
    %2379 = vmatprep.mubr.bf16.mxu0 %v590
    %2380 = vmatmul.mubr.bf16.gmra.mrb[0].mxu0 %v588
    %v2381 = vpop.f32.mrb[0].mxu0
    %v2382 = vadd.f32 %v2342, %v2381
    %v2383 = vpop.f32.mrb[0].mxu0
    %v2384 = vpop.f32.mrb[0].mxu0
    %v2385 = vpop.f32.mrb[0].mxu0
    %2386 = vdwg.mxu0
    %2387 = vmatprep.subr.bf16.mxu0 0
    %2388 = vmatpush1.bf16.msra.mxu0 %v1827
    %2389 = vmatprep.subr.bf16.mxu0 0
    %2390 = vmatpush1.bf16.msra.mxu0 %v1828
    %2391 = vmatprep.subr.bf16.mxu0 0
    %2392 = vmatpush1.bf16.msra.mxu0 %v1829
    %2393 = vmatprep.subr.bf16.mxu0 0
    %2394 = vmatpush1.bf16.msra.mxu0 %v1830
    %2395 = vmatprep.subr.bf16.mxu0 0
    %2396 = vmatpush1.bf16.msra.mxu0 %v1831
    %2397 = vmatprep.subr.bf16.mxu0 0
    %2398 = vmatpush1.bf16.msra.mxu0 %v1832
    %2399 = vmatprep.subr.bf16.mxu0 0
    %2400 = vmatpush1.bf16.msra.mxu0 %v1833
    %2401 = vmatprep.subr.bf16.mxu0 0
    %2402 = vmatpush1.bf16.msra.mxu0 %v1834
    %2403 = vmatprep.subr.bf16.mxu0 0
    %2404 = vmatpush1.bf16.msra.mxu0 %v1835
    %2405 = vmatprep.subr.bf16.mxu0 0
    %2406 = vmatpush1.bf16.msra.mxu0 %v1836
    %2407 = vmatprep.subr.bf16.mxu0 0
    %2408 = vmatpush1.bf16.msra.mxu0 %v1837
    %2409 = vmatprep.subr.bf16.mxu0 0
    %2410 = vmatpush1.bf16.msra.mxu0 %v1838
    %2411 = vmatprep.subr.bf16.mxu0 0
    %2412 = vmatpush1.bf16.msra.mxu0 %v1839
    %2413 = vmatprep.subr.bf16.mxu0 0
    %2414 = vmatpush1.bf16.msra.mxu0 %v1840
    %2415 = vmatprep.subr.bf16.mxu0 0
    %2416 = vmatpush1.bf16.msra.mxu0 %v1841
    %2417 = vmatprep.subr.bf16.mxu0 0
    %2418 = vmatpush1.bf16.msra.mxu0 %v1842
    %2419 = vmatprep.mubr.bf16.mxu0 %v587
    %2420 = vmatmul.mubr.bf16.gmra.mrb[0].mxu0 %v573
    %v2421 = vpop.f32.mrb[0].mxu0
    %v2422 = vadd.f32 %v2382, %v2421
    %v2423 = vpop.f32.mrb[0].mxu0
    %v2424 = vpop.f32.mrb[0].mxu0
    %v2425 = vpop.f32.mrb[0].mxu0
    %2426 = vdwg.mxu0
    %2427 = vmatprep.subr.bf16.mxu0 0
    %2428 = vmatpush1.bf16.msra.mxu0 %v1843
    %2429 = vmatprep.subr.bf16.mxu0 0
    %2430 = vmatpush1.bf16.msra.mxu0 %v1844
    %2431 = vmatprep.subr.bf16.mxu0 0
    %2432 = vmatpush1.bf16.msra.mxu0 %v1845
    %2433 = vmatprep.subr.bf16.mxu0 0
    %2434 = vmatpush1.bf16.msra.mxu0 %v1846
    %2435 = vmatprep.subr.bf16.mxu0 0
    %2436 = vmatpush1.bf16.msra.mxu0 %v1847
    %2437 = vmatprep.subr.bf16.mxu0 0
    %2438 = vmatpush1.bf16.msra.mxu0 %v1848
    %2439 = vmatprep.subr.bf16.mxu0 0
    %2440 = vmatpush1.bf16.msra.mxu0 %v1849
    %2441 = vmatprep.subr.bf16.mxu0 0
    %2442 = vmatpush1.bf16.msra.mxu0 %v1850
    %2443 = vmatprep.subr.bf16.mxu0 0
    %2444 = vmatpush1.bf16.msra.mxu0 %v1851
    %2445 = vmatprep.subr.bf16.mxu0 0
    %2446 = vmatpush1.bf16.msra.mxu0 %v1852
    %2447 = vmatprep.subr.bf16.mxu0 0
    %2448 = vmatpush1.bf16.msra.mxu0 %v1853
    %2449 = vmatprep.subr.bf16.mxu0 0
    %2450 = vmatpush1.bf16.msra.mxu0 %v1854
    %2451 = vmatprep.subr.bf16.mxu0 0
    %2452 = vmatpush1.bf16.msra.mxu0 %v1855
    %2453 = vmatprep.subr.bf16.mxu0 0
    %2454 = vmatpush1.bf16.msra.mxu0 %v1856
    %2455 = vmatprep.subr.bf16.mxu0 0
    %2456 = vmatpush1.bf16.msra.mxu0 %v1857
    %2457 = vmatprep.subr.bf16.mxu0 0
    %2458 = vmatpush1.bf16.msra.mxu0 %v1858
    %2459 = vmatprep.mubr.bf16.mxu0 %v591
    %2460 = vmatmul.mubr.bf16.gmra.mrb[0].mxu0 %v589
    %v2461 = vpop.f32.mrb[0].mxu0
    %v2462 = vadd.f32 %v2422, %v2461
    %v2463 = vpop.f32.mrb[0].mxu0
    %v2464 = vpop.f32.mrb[0].mxu0
    %v2465 = vpop.f32.mrb[0].mxu0
    %2466 = vdwg.mxu0
    %2467 = vmatprep.subr.bf16.mxu0 0
    %2468 = vmatpush1.bf16.msra.mxu0 %v1859
    %2469 = vmatprep.subr.bf16.mxu0 0
    %2470 = vmatpush1.bf16.msra.mxu0 %v1860
    %2471 = vmatprep.subr.bf16.mxu0 0
    %2472 = vmatpush1.bf16.msra.mxu0 %v1861
    %2473 = vmatprep.subr.bf16.mxu0 0
    %2474 = vmatpush1.bf16.msra.mxu0 %v1862
    %2475 = vmatprep.subr.bf16.mxu0 0
    %2476 = vmatpush1.bf16.msra.mxu0 %v1863
    %2477 = vmatprep.subr.bf16.mxu0 0
    %2478 = vmatpush1.bf16.msra.mxu0 %v1864
    %2479 = vmatprep.subr.bf16.mxu0 0
    %2480 = vmatpush1.bf16.msra.mxu0 %v1865
    %2481 = vmatprep.subr.bf16.mxu0 0
    %2482 = vmatpush1.bf16.msra.mxu0 %v1866
    %2483 = vmatprep.subr.bf16.mxu0 0
    %2484 = vmatpush1.bf16.msra.mxu0 %v1867
    %2485 = vmatprep.subr.bf16.mxu0 0
    %2486 = vmatpush1.bf16.msra.mxu0 %v1868
    %2487 = vmatprep.subr.bf16.mxu0 0
    %2488 = vmatpush1.bf16.msra.mxu0 %v1869
    %2489 = vmatprep.subr.bf16.mxu0 0
    %2490 = vmatpush1.bf16.msra.mxu0 %v1870
    %2491 = vmatprep.subr.bf16.mxu0 0
    %2492 = vmatpush1.bf16.msra.mxu0 %v1871
    %2493 = vmatprep.subr.bf16.mxu0 0
    %2494 = vmatpush1.bf16.msra.mxu0 %v1872
    %2495 = vmatprep.subr.bf16.mxu0 0
    %2496 = vmatpush1.bf16.msra.mxu0 %v1873
    %2497 = vmatprep.subr.bf16.mxu0 0
    %2498 = vmatpush1.bf16.msra.mxu0 %v1874
    %2499 = vmatprep.mubr.bf16.mxu0 %v629
    %2500 = vmatmul.mubr.bf16.gmra.mrb[0].mxu0 %v615
    %v2501 = vpop.f32.mrb[0].mxu0
    %v2502 = vadd.f32 %v2462, %v2501
    %v2503 = vpop.f32.mrb[0].mxu0
    %v2504 = vpop.f32.mrb[0].mxu0
    %v2505 = vpop.f32.mrb[0].mxu0
    %2506 = vdwg.mxu0
    %2507 = vmatprep.subr.bf16.mxu0 0
    %2508 = vmatpush1.bf16.msra.mxu0 %v1875
    %2509 = vmatprep.subr.bf16.mxu0 0
    %2510 = vmatpush1.bf16.msra.mxu0 %v1876
    %2511 = vmatprep.subr.bf16.mxu0 0
    %2512 = vmatpush1.bf16.msra.mxu0 %v1877
    %2513 = vmatprep.subr.bf16.mxu0 0
    %2514 = vmatpush1.bf16.msra.mxu0 %v1878
    %2515 = vmatprep.subr.bf16.mxu0 0
    %2516 = vmatpush1.bf16.msra.mxu0 %v1879
    %2517 = vmatprep.subr.bf16.mxu0 0
    %2518 = vmatpush1.bf16.msra.mxu0 %v1880
    %2519 = vmatprep.subr.bf16.mxu0 0
    %2520 = vmatpush1.bf16.msra.mxu0 %v1881
    %2521 = vmatprep.subr.bf16.mxu0 0
    %2522 = vmatpush1.bf16.msra.mxu0 %v1882
    %2523 = vmatprep.subr.bf16.mxu0 0
    %2524 = vmatpush1.bf16.msra.mxu0 %v1883
    %2525 = vmatprep.subr.bf16.mxu0 0
    %2526 = vmatpush1.bf16.msra.mxu0 %v1884
    %2527 = vmatprep.subr.bf16.mxu0 0
    %2528 = vmatpush1.bf16.msra.mxu0 %v1885
    %2529 = vmatprep.subr.bf16.mxu0 0
    %2530 = vmatpush1.bf16.msra.mxu0 %v1886
    %2531 = vmatprep.subr.bf16.mxu0 0
    %2532 = vmatpush1.bf16.msra.mxu0 %v1887
    %2533 = vmatprep.subr.bf16.mxu0 0
    %2534 = vmatpush1.bf16.msra.mxu0 %v1888
    %2535 = vmatprep.subr.bf16.mxu0 0
    %2536 = vmatpush1.bf16.msra.mxu0 %v1889
    %2537 = vmatprep.subr.bf16.mxu0 0
    %2538 = vmatpush1.bf16.msra.mxu0 %v1890
    %2539 = vmatprep.mubr.bf16.mxu0 %v639
    %2540 = vmatmul.mubr.bf16.gmra.mrb[0].mxu0 %v637
    %v2541 = vpop.f32.mrb[0].mxu0
    %v2542 = vadd.f32 %v2502, %v2541
    %v2543 = vpop.f32.mrb[0].mxu0
    %v2544 = vpop.f32.mrb[0].mxu0
    %v2545 = vpop.f32.mrb[0].mxu0
    %2546 = vdwg.mxu0
    %2547 = vmatprep.subr.bf16.mxu0 0
    %2548 = vmatpush1.bf16.msra.mxu0 %v1891
    %2549 = vmatprep.subr.bf16.mxu0 0
    %2550 = vmatpush1.bf16.msra.mxu0 %v1892
    %2551 = vmatprep.subr.bf16.mxu0 0
    %2552 = vmatpush1.bf16.msra.mxu0 %v1893
    %2553 = vmatprep.subr.bf16.mxu0 0
    %2554 = vmatpush1.bf16.msra.mxu0 %v1894
    %2555 = vmatprep.subr.bf16.mxu0 0
    %2556 = vmatpush1.bf16.msra.mxu0 %v1895
    %2557 = vmatprep.subr.bf16.mxu0 0
    %2558 = vmatpush1.bf16.msra.mxu0 %v1896
    %2559 = vmatprep.subr.bf16.mxu0 0
    %2560 = vmatpush1.bf16.msra.mxu0 %v1897
    %2561 = vmatprep.subr.bf16.mxu0 0
    %2562 = vmatpush1.bf16.msra.mxu0 %v1898
    %2563 = vmatprep.subr.bf16.mxu0 0
    %2564 = vmatpush1.bf16.msra.mxu0 %v1899
    %2565 = vmatprep.subr.bf16.mxu0 0
    %2566 = vmatpush1.bf16.msra.mxu0 %v1900
    %2567 = vmatprep.subr.bf16.mxu0 0
    %2568 = vmatpush1.bf16.msra.mxu0 %v1901
    %2569 = vmatprep.subr.bf16.mxu0 0
    %2570 = vmatpush1.bf16.msra.mxu0 %v1902
    %2571 = vmatprep.subr.bf16.mxu0 0
    %2572 = vmatpush1.bf16.msra.mxu0 %v1903
    %2573 = vmatprep.subr.bf16.mxu0 0
    %2574 = vmatpush1.bf16.msra.mxu0 %v1904
    %2575 = vmatprep.subr.bf16.mxu0 0
    %2576 = vmatpush1.bf16.msra.mxu0 %v1905
    %2577 = vmatprep.subr.bf16.mxu0 0
    %2578 = vmatpush1.bf16.msra.mxu0 %v1906
    %2579 = vmatprep.mubr.bf16.mxu0 %v636
    %2580 = vmatmul.mubr.bf16.gmra.mrb[0].mxu0 %v622
    %v2581 = vpop.f32.mrb[0].mxu0
    %v2582 = vadd.f32 %v2542, %v2581
    %v2583 = vpop.f32.mrb[0].mxu0
    %v2584 = vpop.f32.mrb[0].mxu0
    %v2585 = vpop.f32.mrb[0].mxu0
    %2586 = vdwg.mxu0
    %2587 = vmatprep.subr.bf16.mxu0 0
    %2588 = vmatpush1.bf16.msra.mxu0 %v1907
    %2589 = vmatprep.subr.bf16.mxu0 0
    %2590 = vmatpush1.bf16.msra.mxu0 %v1908
    %2591 = vmatprep.subr.bf16.mxu0 0
    %2592 = vmatpush1.bf16.msra.mxu0 %v1909
    %2593 = vmatprep.subr.bf16.mxu0 0
    %2594 = vmatpush1.bf16.msra.mxu0 %v1910
    %2595 = vmatprep.subr.bf16.mxu0 0
    %2596 = vmatpush1.bf16.msra.mxu0 %v1911
    %2597 = vmatprep.subr.bf16.mxu0 0
    %2598 = vmatpush1.bf16.msra.mxu0 %v1912
    %2599 = vmatprep.subr.bf16.mxu0 0
    %2600 = vmatpush1.bf16.msra.mxu0 %v1913
    %2601 = vmatprep.subr.bf16.mxu0 0
    %2602 = vmatpush1.bf16.msra.mxu0 %v1914
    %2603 = vmatprep.subr.bf16.mxu0 0
    %2604 = vmatpush1.bf16.msra.mxu0 %v1915
    %2605 = vmatprep.subr.bf16.mxu0 0
    %2606 = vmatpush1.bf16.msra.mxu0 %v1916
    %2607 = vmatprep.subr.bf16.mxu0 0
    %2608 = vmatpush1.bf16.msra.mxu0 %v1917
    %2609 = vmatprep.subr.bf16.mxu0 0
    %2610 = vmatpush1.bf16.msra.mxu0 %v1918
    %2611 = vmatprep.subr.bf16.mxu0 0
    %2612 = vmatpush1.bf16.msra.mxu0 %v1919
    %2613 = vmatprep.subr.bf16.mxu0 0
    %2614 = vmatpush1.bf16.msra.mxu0 %v1920
    %2615 = vmatprep.subr.bf16.mxu0 0
    %2616 = vmatpush1.bf16.msra.mxu0 %v1921
    %2617 = vmatprep.subr.bf16.mxu0 0
    %2618 = vmatpush1.bf16.msra.mxu0 %v1922
    %2619 = vmatprep.mubr.bf16.mxu0 %v640
    %2620 = vmatmul.mubr.bf16.gmra.mrb[0].mxu0 %v638
    %v2621 = vpop.f32.mrb[0].mxu0
    %v2622 = vadd.f32 %v2582, %v2621
    %v2623 = vpop.f32.mrb[0].mxu0
    %v2624 = vpop.f32.mrb[0].mxu0
    %v2625 = vpop.f32.mrb[0].mxu0
    %2626 = vdwg.mxu0
    %2627 = vmatprep.subr.bf16.mxu0 0
    %2628 = vmatpush1.bf16.msra.mxu0 %v1923
    %2629 = vmatprep.subr.bf16.mxu0 0
    %2630 = vmatpush1.bf16.msra.mxu0 %v1924
    %2631 = vmatprep.subr.bf16.mxu0 0
    %2632 = vmatpush1.bf16.msra.mxu0 %v1925
    %2633 = vmatprep.subr.bf16.mxu0 0
    %2634 = vmatpush1.bf16.msra.mxu0 %v1926
    %2635 = vmatprep.subr.bf16.mxu0 0
    %2636 = vmatpush1.bf16.msra.mxu0 %v1927
    %2637 = vmatprep.subr.bf16.mxu0 0
    %2638 = vmatpush1.bf16.msra.mxu0 %v1928
    %2639 = vmatprep.subr.bf16.mxu0 0
    %2640 = vmatpush1.bf16.msra.mxu0 %v1929
    %2641 = vmatprep.subr.bf16.mxu0 0
    %2642 = vmatpush1.bf16.msra.mxu0 %v1930
    %2643 = vmatprep.subr.bf16.mxu0 0
    %2644 = vmatpush1.bf16.msra.mxu0 %v1931
    %2645 = vmatprep.subr.bf16.mxu0 0
    %2646 = vmatpush1.bf16.msra.mxu0 %v1932
    %2647 = vmatprep.subr.bf16.mxu0 0
    %2648 = vmatpush1.bf16.msra.mxu0 %v1933
    %2649 = vmatprep.subr.bf16.mxu0 0
    %2650 = vmatpush1.bf16.msra.mxu0 %v1934
    %2651 = vmatprep.subr.bf16.mxu0 0
    %2652 = vmatpush1.bf16.msra.mxu0 %v1935
    %2653 = vmatprep.subr.bf16.mxu0 0
    %2654 = vmatpush1.bf16.msra.mxu0 %v1936
    %2655 = vmatprep.subr.bf16.mxu0 0
    %2656 = vmatpush1.bf16.msra.mxu0 %v1937
    %2657 = vmatprep.subr.bf16.mxu0 0
    %2658 = vmatpush1.bf16.msra.mxu0 %v1938
    %2659 = vmatprep.mubr.bf16.mxu0 %v678
    %2660 = vmatmul.mubr.bf16.gmra.mrb[0].mxu0 %v664
    %v2661 = vpop.f32.mrb[0].mxu0
    %v2662 = vadd.f32 %v2622, %v2661
    %v2663 = vpop.f32.mrb[0].mxu0
    %v2664 = vpop.f32.mrb[0].mxu0
    %v2665 = vpop.f32.mrb[0].mxu0
    %2666 = vdwg.mxu0
    %2667 = vmatprep.subr.bf16.mxu0 0
    %2668 = vmatpush1.bf16.msra.mxu0 %v1939
    %2669 = vmatprep.subr.bf16.mxu0 0
    %2670 = vmatpush1.bf16.msra.mxu0 %v1940
    %2671 = vmatprep.subr.bf16.mxu0 0
    %2672 = vmatpush1.bf16.msra.mxu0 %v1941
    %2673 = vmatprep.subr.bf16.mxu0 0
    %2674 = vmatpush1.bf16.msra.mxu0 %v1942
    %2675 = vmatprep.subr.bf16.mxu0 0
    %2676 = vmatpush1.bf16.msra.mxu0 %v1943
    %2677 = vmatprep.subr.bf16.mxu0 0
    %2678 = vmatpush1.bf16.msra.mxu0 %v1944
    %2679 = vmatprep.subr.bf16.mxu0 0
    %2680 = vmatpush1.bf16.msra.mxu0 %v1945
    %2681 = vmatprep.subr.bf16.mxu0 0
    %2682 = vmatpush1.bf16.msra.mxu0 %v1946
    %2683 = vmatprep.subr.bf16.mxu0 0
    %2684 = vmatpush1.bf16.msra.mxu0 %v1947
    %2685 = vmatprep.subr.bf16.mxu0 0
    %2686 = vmatpush1.bf16.msra.mxu0 %v1948
    %2687 = vmatprep.subr.bf16.mxu0 0
    %2688 = vmatpush1.bf16.msra.mxu0 %v1949
    %2689 = vmatprep.subr.bf16.mxu0 0
    %2690 = vmatpush1.bf16.msra.mxu0 %v1950
    %2691 = vmatprep.subr.bf16.mxu0 0
    %2692 = vmatpush1.bf16.msra.mxu0 %v1951
    %2693 = vmatprep.subr.bf16.mxu0 0
    %2694 = vmatpush1.bf16.msra.mxu0 %v1952
    %2695 = vmatprep.subr.bf16.mxu0 0
    %2696 = vmatpush1.bf16.msra.mxu0 %v1953
    %2697 = vmatprep.subr.bf16.mxu0 0
    %2698 = vmatpush1.bf16.msra.mxu0 %v1954
    %2699 = vmatprep.mubr.bf16.mxu0 %v688
    %2700 = vmatmul.mubr.bf16.gmra.mrb[0].mxu0 %v686
    %v2701 = vpop.f32.mrb[0].mxu0
    %v2702 = vadd.f32 %v2662, %v2701
    %v2703 = vpop.f32.mrb[0].mxu0
    %v2704 = vpop.f32.mrb[0].mxu0
    %v2705 = vpop.f32.mrb[0].mxu0
    %2706 = vdwg.mxu0
    %2707 = vmatprep.subr.bf16.mxu0 0
    %2708 = vmatpush1.bf16.msra.mxu0 %v1955
    %2709 = vmatprep.subr.bf16.mxu0 0
    %2710 = vmatpush1.bf16.msra.mxu0 %v1956
    %2711 = vmatprep.subr.bf16.mxu0 0
    %2712 = vmatpush1.bf16.msra.mxu0 %v1957
    %2713 = vmatprep.subr.bf16.mxu0 0
    %2714 = vmatpush1.bf16.msra.mxu0 %v1958
    %2715 = vmatprep.subr.bf16.mxu0 0
    %2716 = vmatpush1.bf16.msra.mxu0 %v1959
    %2717 = vmatprep.subr.bf16.mxu0 0
    %2718 = vmatpush1.bf16.msra.mxu0 %v1960
    %2719 = vmatprep.subr.bf16.mxu0 0
    %2720 = vmatpush1.bf16.msra.mxu0 %v1961
    %2721 = vmatprep.subr.bf16.mxu0 0
    %2722 = vmatpush1.bf16.msra.mxu0 %v1962
    %2723 = vmatprep.subr.bf16.mxu0 0
    %2724 = vmatpush1.bf16.msra.mxu0 %v1963
    %2725 = vmatprep.subr.bf16.mxu0 0
    %2726 = vmatpush1.bf16.msra.mxu0 %v1964
    %2727 = vmatprep.subr.bf16.mxu0 0
    %2728 = vmatpush1.bf16.msra.mxu0 %v1965
    %2729 = vmatprep.subr.bf16.mxu0 0
    %2730 = vmatpush1.bf16.msra.mxu0 %v1966
    %2731 = vmatprep.subr.bf16.mxu0 0
    %2732 = vmatpush1.bf16.msra.mxu0 %v1967
    %2733 = vmatprep.subr.bf16.mxu0 0
    %2734 = vmatpush1.bf16.msra.mxu0 %v1968
    %2735 = vmatprep.subr.bf16.mxu0 0
    %2736 = vmatpush1.bf16.msra.mxu0 %v1969
    %2737 = vmatprep.subr.bf16.mxu0 0
    %2738 = vmatpush1.bf16.msra.mxu0 %v1970
    %2739 = vmatprep.mubr.bf16.mxu0 %v685
    %2740 = vmatmul.mubr.bf16.gmra.mrb[0].mxu0 %v671
    %v2741 = vpop.f32.mrb[0].mxu0
    %v2742 = vadd.f32 %v2702, %v2741
    %v2743 = vpop.f32.mrb[0].mxu0
    %v2744 = vpop.f32.mrb[0].mxu0
    %v2745 = vpop.f32.mrb[0].mxu0
    %2746 = vdwg.mxu0
    %2747 = vmatprep.subr.bf16.mxu0 0
    %2748 = vmatpush1.bf16.msra.mxu0 %v1971
    %2749 = vmatprep.subr.bf16.mxu0 0
    %2750 = vmatpush1.bf16.msra.mxu0 %v1972
    %2751 = vmatprep.subr.bf16.mxu0 0
    %2752 = vmatpush1.bf16.msra.mxu0 %v1973
    %2753 = vmatprep.subr.bf16.mxu0 0
    %2754 = vmatpush1.bf16.msra.mxu0 %v1974
    %2755 = vmatprep.subr.bf16.mxu0 0
    %2756 = vmatpush1.bf16.msra.mxu0 %v1975
    %2757 = vmatprep.subr.bf16.mxu0 0
    %2758 = vmatpush1.bf16.msra.mxu0 %v1976
    %2759 = vmatprep.subr.bf16.mxu0 0
    %2760 = vmatpush1.bf16.msra.mxu0 %v1977
    %2761 = vmatprep.subr.bf16.mxu0 0
    %2762 = vmatpush1.bf16.msra.mxu0 %v1978
    %2763 = vmatprep.subr.bf16.mxu0 0
    %2764 = vmatpush1.bf16.msra.mxu0 %v1979
    %2765 = vmatprep.subr.bf16.mxu0 0
    %2766 = vmatpush1.bf16.msra.mxu0 %v1980
    %2767 = vmatprep.subr.bf16.mxu0 0
    %2768 = vmatpush1.bf16.msra.mxu0 %v1981
    %2769 = vmatprep.subr.bf16.mxu0 0
    %2770 = vmatpush1.bf16.msra.mxu0 %v1982
    %2771 = vmatprep.subr.bf16.mxu0 0
    %2772 = vmatpush1.bf16.msra.mxu0 %v1983
    %2773 = vmatprep.subr.bf16.mxu0 0
    %2774 = vmatpush1.bf16.msra.mxu0 %v1984
    %2775 = vmatprep.subr.bf16.mxu0 0
    %2776 = vmatpush1.bf16.msra.mxu0 %v1985
    %2777 = vmatprep.subr.bf16.mxu0 0
    %2778 = vmatpush1.bf16.msra.mxu0 %v1986
    %2779 = vmatprep.mubr.bf16.mxu0 %v689
    %2780 = vmatmul.mubr.bf16.gmra.mrb[0].mxu0 %v687
    %v2781 = vpop.f32.mrb[0].mxu0
    %v2782 = vadd.f32 %v2742, %v2781
    %v2783 = vpop.f32.mrb[0].mxu0
    %v2784 = vpop.f32.mrb[0].mxu0
    %v2785 = vpop.f32.mrb[0].mxu0
    %2786 = vdwg.mxu0
    %2787 = vmatprep.subr.bf16.mxu0 0
    %2788 = vmatpush1.bf16.msra.mxu0 %v1987
    %2789 = vmatprep.subr.bf16.mxu0 0
    %2790 = vmatpush1.bf16.msra.mxu0 %v1988
    %2791 = vmatprep.subr.bf16.mxu0 0
    %2792 = vmatpush1.bf16.msra.mxu0 %v1989
    %2793 = vmatprep.subr.bf16.mxu0 0
    %2794 = vmatpush1.bf16.msra.mxu0 %v1990
    %2795 = vmatprep.subr.bf16.mxu0 0
    %2796 = vmatpush1.bf16.msra.mxu0 %v1991
    %2797 = vmatprep.subr.bf16.mxu0 0
    %2798 = vmatpush1.bf16.msra.mxu0 %v1992
    %2799 = vmatprep.subr.bf16.mxu0 0
    %2800 = vmatpush1.bf16.msra.mxu0 %v1993
    %2801 = vmatprep.subr.bf16.mxu0 0
    %2802 = vmatpush1.bf16.msra.mxu0 %v1994
    %2803 = vmatprep.subr.bf16.mxu0 0
    %2804 = vmatpush1.bf16.msra.mxu0 %v1995
    %2805 = vmatprep.subr.bf16.mxu0 0
    %2806 = vmatpush1.bf16.msra.mxu0 %v1996
    %2807 = vmatprep.subr.bf16.mxu0 0
    %2808 = vmatpush1.bf16.msra.mxu0 %v1997
    %2809 = vmatprep.subr.bf16.mxu0 0
    %2810 = vmatpush1.bf16.msra.mxu0 %v1998
    %2811 = vmatprep.subr.bf16.mxu0 0
    %2812 = vmatpush1.bf16.msra.mxu0 %v1999
    %2813 = vmatprep.subr.bf16.mxu0 0
    %2814 = vmatpush1.bf16.msra.mxu0 %v2000
    %2815 = vmatprep.subr.bf16.mxu0 0
    %2816 = vmatpush1.bf16.msra.mxu0 %v2001
    %2817 = vmatprep.subr.bf16.mxu0 0
    %2818 = vmatpush1.bf16.msra.mxu0 %v2002
    %2819 = vmatprep.mubr.bf16.mxu0 %v727
    %2820 = vmatmul.mubr.bf16.gmra.mrb[0].mxu0 %v713
    %v2821 = vpop.f32.mrb[0].mxu0
    %v2822 = vadd.f32 %v2782, %v2821
    %v2823 = vpop.f32.mrb[0].mxu0
    %v2824 = vpop.f32.mrb[0].mxu0
    %v2825 = vpop.f32.mrb[0].mxu0
    %2826 = vdwg.mxu0
    %2827 = vmatprep.subr.bf16.mxu0 0
    %2828 = vmatpush1.bf16.msra.mxu0 %v2003
    %2829 = vmatprep.subr.bf16.mxu0 0
    %2830 = vmatpush1.bf16.msra.mxu0 %v2004
    %2831 = vmatprep.subr.bf16.mxu0 0
    %2832 = vmatpush1.bf16.msra.mxu0 %v2005
    %2833 = vmatprep.subr.bf16.mxu0 0
    %2834 = vmatpush1.bf16.msra.mxu0 %v2006
    %2835 = vmatprep.subr.bf16.mxu0 0
    %2836 = vmatpush1.bf16.msra.mxu0 %v2007
    %2837 = vmatprep.subr.bf16.mxu0 0
    %2838 = vmatpush1.bf16.msra.mxu0 %v2008
    %2839 = vmatprep.subr.bf16.mxu0 0
    %2840 = vmatpush1.bf16.msra.mxu0 %v2009
    %2841 = vmatprep.subr.bf16.mxu0 0
    %2842 = vmatpush1.bf16.msra.mxu0 %v2010
    %2843 = vmatprep.subr.bf16.mxu0 0
    %2844 = vmatpush1.bf16.msra.mxu0 %v2011
    %2845 = vmatprep.subr.bf16.mxu0 0
    %2846 = vmatpush1.bf16.msra.mxu0 %v2012
    %2847 = vmatprep.subr.bf16.mxu0 0
    %2848 = vmatpush1.bf16.msra.mxu0 %v2013
    %2849 = vmatprep.subr.bf16.mxu0 0
    %2850 = vmatpush1.bf16.msra.mxu0 %v2014
    %2851 = vmatprep.subr.bf16.mxu0 0
    %2852 = vmatpush1.bf16.msra.mxu0 %v2015
    %2853 = vmatprep.subr.bf16.mxu0 0
    %2854 = vmatpush1.bf16.msra.mxu0 %v2016
    %2855 = vmatprep.subr.bf16.mxu0 0
    %2856 = vmatpush1.bf16.msra.mxu0 %v2017
    %2857 = vmatprep.subr.bf16.mxu0 0
    %2858 = vmatpush1.bf16.msra.mxu0 %v2018
    %2859 = vmatprep.mubr.bf16.mxu0 %v737
    %2860 = vmatmul.mubr.bf16.gmra.mrb[0].mxu0 %v735
    %v2861 = vpop.f32.mrb[0].mxu0
    %v2862 = vadd.f32 %v2822, %v2861
    %v2863 = vpop.f32.mrb[0].mxu0
    %v2864 = vpop.f32.mrb[0].mxu0
    %v2865 = vpop.f32.mrb[0].mxu0
    %2866 = vdwg.mxu0
    %2867 = vmatprep.subr.bf16.mxu0 0
    %2868 = vmatpush1.bf16.msra.mxu0 %v2019
    %2869 = vmatprep.subr.bf16.mxu0 0
    %2870 = vmatpush1.bf16.msra.mxu0 %v2020
    %2871 = vmatprep.subr.bf16.mxu0 0
    %2872 = vmatpush1.bf16.msra.mxu0 %v2021
    %2873 = vmatprep.subr.bf16.mxu0 0
    %2874 = vmatpush1.bf16.msra.mxu0 %v2022
    %2875 = vmatprep.subr.bf16.mxu0 0
    %2876 = vmatpush1.bf16.msra.mxu0 %v2023
    %2877 = vmatprep.subr.bf16.mxu0 0
    %2878 = vmatpush1.bf16.msra.mxu0 %v2024
    %2879 = vmatprep.subr.bf16.mxu0 0
    %2880 = vmatpush1.bf16.msra.mxu0 %v2025
    %2881 = vmatprep.subr.bf16.mxu0 0
    %2882 = vmatpush1.bf16.msra.mxu0 %v2026
    %2883 = vmatprep.subr.bf16.mxu0 0
    %2884 = vmatpush1.bf16.msra.mxu0 %v2027
    %2885 = vmatprep.subr.bf16.mxu0 0
    %2886 = vmatpush1.bf16.msra.mxu0 %v2028
    %2887 = vmatprep.subr.bf16.mxu0 0
    %2888 = vmatpush1.bf16.msra.mxu0 %v2029
    %2889 = vmatprep.subr.bf16.mxu0 0
    %2890 = vmatpush1.bf16.msra.mxu0 %v2030
    %2891 = vmatprep.subr.bf16.mxu0 0
    %2892 = vmatpush1.bf16.msra.mxu0 %v2031
    %2893 = vmatprep.subr.bf16.mxu0 0
    %2894 = vmatpush1.bf16.msra.mxu0 %v2032
    %2895 = vmatprep.subr.bf16.mxu0 0
    %2896 = vmatpush1.bf16.msra.mxu0 %v2033
    %2897 = vmatprep.subr.bf16.mxu0 0
    %2898 = vmatpush1.bf16.msra.mxu0 %v2034
    %2899 = vmatprep.mubr.bf16.mxu0 %v734
    %2900 = vmatmul.mubr.bf16.gmra.mrb[0].mxu0 %v720
    %v2901 = vpop.f32.mrb[0].mxu0
    %v2902 = vadd.f32 %v2862, %v2901
    %v2903 = vpop.f32.mrb[0].mxu0
    %v2904 = vpop.f32.mrb[0].mxu0
    %v2905 = vpop.f32.mrb[0].mxu0
    %2906 = vdwg.mxu0
    %2907 = vmatprep.subr.bf16.mxu0 0
    %2908 = vmatpush1.bf16.msra.mxu0 %v2035
    %2909 = vmatprep.subr.bf16.mxu0 0
    %2910 = vmatpush1.bf16.msra.mxu0 %v2036
    %2911 = vmatprep.subr.bf16.mxu0 0
    %2912 = vmatpush1.bf16.msra.mxu0 %v2037
    %2913 = vmatprep.subr.bf16.mxu0 0
    %2914 = vmatpush1.bf16.msra.mxu0 %v2038
    %2915 = vmatprep.subr.bf16.mxu0 0
    %2916 = vmatpush1.bf16.msra.mxu0 %v2039
    %2917 = vmatprep.subr.bf16.mxu0 0
    %2918 = vmatpush1.bf16.msra.mxu0 %v2040
    %2919 = vmatprep.subr.bf16.mxu0 0
    %2920 = vmatpush1.bf16.msra.mxu0 %v2041
    %2921 = vmatprep.subr.bf16.mxu0 0
    %2922 = vmatpush1.bf16.msra.mxu0 %v2042
    %2923 = vmatprep.subr.bf16.mxu0 0
    %2924 = vmatpush1.bf16.msra.mxu0 %v2043
    %2925 = vmatprep.subr.bf16.mxu0 0
    %2926 = vmatpush1.bf16.msra.mxu0 %v2044
    %2927 = vmatprep.subr.bf16.mxu0 0
    %2928 = vmatpush1.bf16.msra.mxu0 %v2045
    %2929 = vmatprep.subr.bf16.mxu0 0
    %2930 = vmatpush1.bf16.msra.mxu0 %v2046
    %2931 = vmatprep.subr.bf16.mxu0 0
    %2932 = vmatpush1.bf16.msra.mxu0 %v2047
    %2933 = vmatprep.subr.bf16.mxu0 0
    %2934 = vmatpush1.bf16.msra.mxu0 %v2048
    %2935 = vmatprep.subr.bf16.mxu0 0
    %2936 = vmatpush1.bf16.msra.mxu0 %v2049
    %2937 = vmatprep.subr.bf16.mxu0 0
    %2938 = vmatpush1.bf16.msra.mxu0 %v2050
    %2939 = vmatprep.mubr.bf16.mxu0 %v738
    %2940 = vmatmul.mubr.bf16.gmra.mrb[0].mxu0 %v736
    %v2941 = vpop.f32.mrb[0].mxu0
    %v2942 = vadd.f32 %v2902, %v2941
    %v2943 = vpop.f32.mrb[0].mxu0
    %v2944 = vpop.f32.mrb[0].mxu0
    %v2945 = vpop.f32.mrb[0].mxu0
    %2946 = vdwg.mxu0
    %2947 = vst [vmem:[#allocation2] sm:$0x3] %v2942
    // Predicated region
    $region14: #{dilenet_forward.7} parent=1 // pred_check
      _
    $region15: #{dilenet_forward.7} parent=1 // pred_check_branch
      %2949 = sbr.rel (0) target = $region17
    $region16: #{dilenet_forward.7} parent=1 // pred_region
      %s2951 = ssub.s32 32, 32
      %2952 = vsyncadd [#allocation3], %s2951
      %s2954 = sshll.u32 [#allocation2], 4
      %s2955 = int_to_ptr.vmem [resolvable:$true] %s2954
      %2957 = dma.vmem_to_hbm [thread:$0]  %s2955, 32, %s3, [#allocation3]
    $region17: #{dilenet_forward.7} parent=1 // pred_fallthru
      _
    // Predicated region
    $region18: #{dilenet_forward.7} parent=1 // pred_check
      _
    $region19: #{dilenet_forward.7} parent=1 // pred_check_branch
      %2959 = sbr.rel (0) target = $region21
    $region20: #{dilenet_forward.7} parent=1 // pred_region
      %2960 = dma.done [#allocation3], 32
    $region21: #{dilenet_forward.7} parent=1 // pred_fallthru
      _
    %2961 = vsyncpa [#allocation3], 1

</llo_original>
